<compile_context>
chip_gen: v7x
topology: tpu7x:2x2x1
jax: 0.10.0
libtpu: 0.0.40
codegen_flags: <defaults>
</compile_context>

<pallas_src>
import functools

import jax
import jax.numpy as jnp
from jax import lax
from jax.experimental import pallas as pl
from jax.experimental.pallas import tpu as pltpu


LANE = 128                     # Cout lane-padding target (fills MXU N dim)
M_TILE_BUDGET = 128            # flattened output rows per grid step (demo size)
VMEM_LIMIT_BYTES = 48 * 1024 * 1024


# ----------------------------------------------------------------------------
# Synthetic "cfg" (what parse_cfg would return), exercising every branch of
# Net.forward: convolutional, shortcut, route (1 & 2 layers), upsample, yolo x2
# ----------------------------------------------------------------------------
CFG_BLOCKS = [
    {"type": "net", "height": "16", "width": "16", "channels": "3"},
    {"type": "convolutional", "batch_normalize": "1", "filters": "8",
     "size": "3", "stride": "1", "pad": "1", "activation": "leaky"},
    {"type": "convolutional", "batch_normalize": "1", "filters": "8",
     "size": "3", "stride": "1", "pad": "1", "activation": "leaky"},
    {"type": "shortcut", "from": "-2", "activation": "linear"},
    {"type": "convolutional", "batch_normalize": "1", "filters": "16",
     "size": "3", "stride": "2", "pad": "1", "activation": "leaky"},
    {"type": "convolutional", "filters": "14", "size": "1", "stride": "1",
     "pad": "1", "activation": "linear"},
    {"type": "yolo", "mask": "0,1", "anchors": "10,13, 16,30, 33,23",
     "classes": "2", "num": "3"},
    {"type": "route", "layers": "-3"},
    {"type": "convolutional", "batch_normalize": "1", "filters": "8",
     "size": "1", "stride": "1", "pad": "1", "activation": "leaky"},
    {"type": "upsample", "stride": "2"},
    {"type": "route", "layers": "-1,-7"},
    {"type": "convolutional", "filters": "14", "size": "1", "stride": "1",
     "pad": "1", "activation": "linear"},
    {"type": "yolo", "mask": "1,2", "anchors": "10,13, 16,30, 33,23",
     "classes": "2", "num": "3"},
]


def _round_up(v, m):
    return (v + m - 1) // m * m


def _pick_rows(ho, wo, budget=M_TILE_BUDGET):
    """Largest divisor r of ho with r*wo <= budget (M tile = whole output rows)."""
    best = 1
    for r in range(1, ho + 1):
        if ho % r == 0 and r * wo <= budget:
            best = r
    return best


# ----------------------------------------------------------------------------
# The fused conv kernel:  per-tap MXU matmuls + folded-BN bias + LeakyReLU
#                         [+ fused shortcut add] [+ fused YOLO decode]
# ----------------------------------------------------------------------------
def _fused_conv_kernel(*refs, taps, cin, rows_t, wo, tm, pad, h, w, is_1x1,
                       in_kernel_pad, neg_slope, has_residual, has_yolo,
                       det_stride):
    it = iter(refs)
    x_ref = next(it)                       # 1x1: (tm, cin) bf16 ; else (1,Hi,Wi,Cimg) bf16
    w_ref = next(it)                       # (T, cin, Cout_p) bf16, BN scale folded
    bias_ref = next(it)                    # (1, Cout_p) f32
    res_ref = next(it) if has_residual else None   # (tm, Cout_p) bf16
    dec_ref = next(it) if has_yolo else None       # (4, Cout_p) f32 decode table
    out_ref = next(it)                     # (tm, Cout_p) bf16 / f32
    pad_ref = next(it) if (not is_1x1) and in_kernel_pad else None  # bf16 halo

    mi = pl.program_id(1)
    row0 = mi * rows_t                     # output-row offset of this M tile

    if is_1x1:
        # The input tile already is the patch matrix.
        acc = jnp.dot(x_ref[...], w_ref[0], preferred_element_type=jnp.float32)
    else:
        if in_kernel_pad:
            # In-kernel zero-halo: fill the padded bf16 scratch once per batch
            # element (M axis is marked "arbitrary", so mi==0 runs first).
            @pl.when(mi == 0)
            def _fill():
                pad_ref[...] = jnp.zeros(pad_ref.shape, pad_ref.dtype)
                pad_ref[pad:pad + h, pad:pad + w, :] = x_ref[0]

        # K*K per-tap matmuls accumulated in f32 (no im2col scratch at all).
        acc = None
        for t, (dh, dw, c0) in enumerate(taps):
            if in_kernel_pad:
                tap = pad_ref[pl.ds(row0 + dh, rows_t), dw:dw + wo, c0:c0 + cin]
            else:
                tap = x_ref[0, pl.ds(row0 + dh, rows_t), dw:dw + wo, c0:c0 + cin]
            part = jnp.dot(tap.reshape(tm, cin), w_ref[t],
                           preferred_element_type=jnp.float32)
            acc = part if acc is None else acc + part

    y = acc + bias_ref[...]
    if neg_slope != 1.0:
        y = jnp.where(y >= 0.0, y, neg_slope * y)
    if has_residual:
        y = y + res_ref[...].astype(jnp.float32)

    # Fused YOLO decode epilogue (standard YOLOv3 predict_transform).
    if has_yolo:
        cout = y.shape[-1]
        mul = dec_ref[0:1, :]              # per-channel affine multiplier
        is_x = dec_ref[1:2, :]             # 1.0 on x columns
        is_y = dec_ref[2:3, :]             # 1.0 on y columns
        is_wh = dec_ref[3:4, :]            # 1.0 on w/h columns
        # Cell offsets from a 3-D iota (works for any grid size, e.g. 13/26/52).
        gy = (lax.broadcasted_iota(jnp.int32, (rows_t, wo, cout), 0)
              .reshape(tm, cout) + row0).astype(jnp.float32)
        gx = (lax.broadcasted_iota(jnp.int32, (rows_t, wo, cout), 1)
              .reshape(tm, cout)).astype(jnp.float32)
        # Exact sigmoid / exp (no approx reciprocal -> no inf on large logits).
        en = jnp.exp(-y)
        sig = 1.0 / (1.0 + en)
        ex = jnp.exp(y)
        act = jnp.where(is_wh > 0.0, ex, sig)
        y = act * mul + (is_x * gx + is_y * gy) * det_stride

    out_ref[...] = y.astype(out_ref.dtype)


# ----------------------------------------------------------------------------
# Layer wrappers
# ----------------------------------------------------------------------------
def _yolo_decode_consts(anchors, n_classes, det_stride, cout_pad):
    """(4, Cout_p) table: rows = [affine mul | is_x | is_y | is_wh]; pad cols 0."""
    ba = 5 + n_classes
    mul = [0.0] * cout_pad
    isx = [0.0] * cout_pad
    isy = [0.0] * cout_pad
    iswh = [0.0] * cout_pad
    for a, (aw, ah) in enumerate(anchors):
        o = a * ba
        mul[o + 0] = det_stride
        mul[o + 1] = det_stride
        mul[o + 2] = float(aw)
        mul[o + 3] = float(ah)
        for j in range(4, ba):
            mul[o + j] = 1.0
        isx[o + 0] = 1.0
        isy[o + 1] = 1.0
        iswh[o + 2] = 1.0
        iswh[o + 3] = 1.0
    return jnp.array([mul, isx, isy, iswh], jnp.float32)


def conv_block(x_nhwc, layer, residual=None, yolo=None):
    """One fused pallas_call for a conv layer (+ optional shortcut / yolo)."""
    K, stride, pad = layer["size"], layer["stride"], layer["pad"]
    cin_phys, cout = layer["cin_phys"], layer["cout_pad"]
    n, h, w, cimg_in = x_nhwc.shape
    assert cimg_in == cin_phys
    ho = (h + 2 * pad - K) // stride + 1
    wo = (w + 2 * pad - K) // stride + 1

    if stride == 1:
        x_img = x_nhwc                                     # unpadded; halo in-kernel
        taps = tuple((kh, kw, 0) for kh in range(K) for kw in range(K))
        in_kernel_pad = (K > 1 and pad > 0)
    else:
        # Wrapper-side pad + space-to-depth: the kernel then sees unit-stride
        # taps over phase-packed channels (1x input HBM traffic, no K*K dup).
        xp = x_nhwc
        if pad:
            xp = jnp.pad(xp, ((0, 0), (pad, pad), (pad, pad), (0, 0)))
        hp, wp = xp.shape[1], xp.shape[2]
        eh, ew = (-hp) % stride, (-wp) % stride
        if eh or ew:
            xp = jnp.pad(xp, ((0, 0), (0, eh), (0, ew), (0, 0)))
        phases = [xp[:, ph::stride, pw::stride, :]
                  for ph in range(stride) for pw in range(stride)]
        x_img = jnp.concatenate(phases, axis=-1)
        taps = tuple((kh // stride, kw // stride,
                      ((kh % stride) * stride + (kw % stride)) * cin_phys)
                     for kh in range(K) for kw in range(K))
        in_kernel_pad = False

    is_1x1 = (K == 1 and stride == 1)
    m = ho * wo
    rows_t = _pick_rows(ho, wo)
    tm = rows_t * wo
    n_mt = m // tm

    has_res = residual is not None
    has_yolo = yolo is not None
    out_dtype = jnp.float32 if has_yolo else jnp.bfloat16

    args = []
    in_specs = []
    if is_1x1:
        args.append(x_img.reshape(n * m, cin_phys))
        in_specs.append(pl.BlockSpec((tm, cin_phys),
                                     lambda b, mi: (b * n_mt + mi, 0)))
    else:
        hi, wi, cimg = x_img.shape[1:]
        args.append(x_img)
        in_specs.append(pl.BlockSpec((1, hi, wi, cimg),
                                     lambda b, mi: (b, 0, 0, 0)))
    args += [layer["w_taps"], layer["bias"]]
    in_specs += [pl.BlockSpec(layer["w_taps"].shape, lambda b, mi: (0, 0, 0)),
                 pl.BlockSpec((1, cout), lambda b, mi: (0, 0))]
    if has_res:
        args.append(residual.reshape(n * m, cout))
        in_specs.append(pl.BlockSpec((tm, cout),
                                     lambda b, mi: (b * n_mt + mi, 0)))
    det_stride = 0.0
    if has_yolo:
        dec_consts, det_stride = yolo
        args.append(dec_consts)
        in_specs.append(pl.BlockSpec((4, cout), lambda b, mi: (0, 0)))

    scratch = []
    if (not is_1x1) and in_kernel_pad:
        scratch.append(pltpu.VMEM((h + 2 * pad, w + 2 * pad, cin_phys),
                                  jnp.bfloat16))

    kernel = functools.partial(
        _fused_conv_kernel, taps=taps, cin=cin_phys, rows_t=rows_t, wo=wo,
        tm=tm, pad=pad, h=h, w=w, is_1x1=is_1x1, in_kernel_pad=in_kernel_pad,
        neg_slope=layer["neg_slope"], has_residual=has_res, has_yolo=has_yolo,
        det_stride=float(det_stride))

    out = pl.pallas_call(
        kernel,
        out_shape=jax.ShapeDtypeStruct((n * m, cout), out_dtype),
        grid=(n, n_mt),                         # batch x M-tiles, M innermost
        in_specs=in_specs,
        out_specs=pl.BlockSpec((tm, cout), lambda b, mi: (b * n_mt + mi, 0)),
        scratch_shapes=scratch,
        compiler_params=pltpu.CompilerParams(
            dimension_semantics=("parallel",
                                 "arbitrary" if scratch else "parallel"),
            vmem_limit_bytes=VMEM_LIMIT_BYTES),
    )(*args)
    return out.reshape(n, ho, wo, cout)


def _yolo_decode_ref(x_nhwc, in_dims, anchors, n_classes):
    # TODO(synk): predict_transform is not defined in the reference source; this
    # plain-JAX fallback implements the standard YOLOv3 decode it refers to (the
    # fused conv-kernel epilogue above is the path actually taken for this cfg).
    b, g = x_nhwc.shape[0], x_nhwc.shape[1]
    stride = in_dims // g
    ba = 5 + n_classes
    na = len(anchors)
    p = x_nhwc.reshape(b, g * g, -1)[:, :, :na * ba].astype(jnp.float32)
    p = p.reshape(b, g * g * na, ba)
    gy, gx = jnp.meshgrid(jnp.arange(g, dtype=jnp.float32),
                          jnp.arange(g, dtype=jnp.float32), indexing="ij")
    off = jnp.repeat(jnp.stack([gx.reshape(-1), gy.reshape(-1)], axis=1), na, 0)
    anc = jnp.tile(jnp.array(anchors, jnp.float32), (g * g, 1))
    xy = (jax.nn.sigmoid(p[..., 0:2]) + off) * float(stride)
    wh = jnp.exp(p[..., 2:4]) * anc
    return jnp.concatenate([xy, wh, jax.nn.sigmoid(p[..., 4:])], axis=-1)


# ----------------------------------------------------------------------------
# Parameter construction (mirrors create_modules' filter bookkeeping).
# Cout is lane-padded to 128; each layer's weight rows are placed at the
# physical (lane-padded / route-concatenated) positions of its input channels,
# with zeros for padding lanes, so activations never get sliced between layers.
# ----------------------------------------------------------------------------
def build_params(blocks, key):
    net_info = blocks[0]
    in_ch = int(net_info.get("channels", 3))
    prev_filters = in_ch
    prev_phys = _round_up(in_ch, 8)          # network input lightly padded
    prev_segs = ((0, in_ch),)
    output_filters, out_phys, out_segs = [], [], []
    layers = []
    for index, block in enumerate(blocks[1:]):
        btype = block["type"]
        filters = prev_filters
        phys, segs = prev_phys, prev_segs
        if btype == "convolutional":
            bn = int(block.get("batch_normalize", 0))
            filters = int(block["filters"])
            K = int(block["size"])
            stride = int(block["stride"])
            pad = (K - 1) // 2 if int(block["pad"]) else 0
            key, k1, k2, k3, k4, k5, k6 = jax.random.split(key, 7)
            w = jax.random.normal(k1, (K, K, prev_filters, filters),
                                  jnp.float32) * 0.1
            if bn:
                # Eval-mode BatchNorm folded into (scale, bias).
                gamma = 1.0 + 0.1 * jax.random.normal(k2, (filters,), jnp.float32)
                beta = 0.1 * jax.random.normal(k3, (filters,), jnp.float32)
                mean = 0.1 * jax.random.normal(k4, (filters,), jnp.float32)
                var = 1.0 + 0.1 * jnp.abs(
                    jax.random.normal(k5, (filters,), jnp.float32))
                scale = gamma / jnp.sqrt(var + 1e-5)
                bias = beta - mean * scale
            else:
                scale = jnp.ones((filters,), jnp.float32)
                bias = 0.1 * jax.random.normal(k6, (filters,), jnp.float32)
            neg = 0.1 if block["activation"] == "leaky" else 1.0
            cout_pad = _round_up(filters, LANE)
            # Per-tap (T, Cin_phys, Cout_pad) weights, BN scale folded, bf16.
            w_sc = w * scale[None, None, None, :]
            wt = jnp.zeros((K * K, prev_phys, cout_pad), jnp.float32)
            r0 = 0
            for (p0, cnt) in prev_segs:
                blk = w_sc[:, :, r0:r0 + cnt, :].reshape(K * K, cnt, filters)
                wt = wt.at[:, p0:p0 + cnt, :filters].set(blk)
                r0 += cnt
            bias_pad = jnp.zeros((1, cout_pad), jnp.float32)
            bias_pad = bias_pad.at[0, :filters].set(bias)
            layers.append(dict(type="convolutional",
                               w_taps=wt.astype(jnp.bfloat16), bias=bias_pad,
                               size=K, stride=stride, pad=pad,
                               cin_phys=prev_phys, cout_real=filters,
                               cout_pad=cout_pad, neg_slope=neg))
            phys, segs = cout_pad, ((0, filters),)
        elif btype == "upsample":
            layers.append(dict(type="upsample"))
        elif btype == "route":
            ls = [int(v) for v in block["layers"].split(",")]
            start = ls[0]
            end = ls[1] if len(ls) > 1 else 0
            if start > 0:
                start -= index
            if end > 0:
                end -= index
            if end < 0:
                filters = output_filters[index + start] + output_filters[index + end]
                base = out_phys[index + start]
                phys = base + out_phys[index + end]
                segs = tuple(out_segs[index + start]) + tuple(
                    (off + base, cnt) for off, cnt in out_segs[index + end])
            else:
                filters = output_filters[index + start]
                phys = out_phys[index + start]
                segs = out_segs[index + start]
            layers.append(dict(type="route", layers=ls))
        elif btype == "shortcut":
            layers.append(dict(type="shortcut", frm=int(block["from"])))
        elif btype == "yolo":
            mask = [int(m) for m in block["mask"].split(",")]
            anch = [int(a) for a in block["anchors"].split(",")]
            anch = [(anch[i], anch[i + 1]) for i in range(0, len(anch), 2)]
            anch = [anch[i] for i in mask]
            layers.append(dict(type="yolo", anchors=anch,
                               classes=int(block["classes"])))
        prev_filters = filters
        prev_phys, prev_segs = phys, segs
        output_filters.append(filters)
        out_phys.append(phys)
        out_segs.append(segs)
    return layers


# ----------------------------------------------------------------------------
# Net.forward equivalent
# ----------------------------------------------------------------------------
def net_forward(x_nchw, blocks, layers):
    in_dims = int(blocks[0]["height"])
    x = jnp.transpose(x_nchw, (0, 2, 3, 1)).astype(jnp.bfloat16)  # NCHW -> NHWC
    # Lane-pad the image channels up to the first conv's physical Cin.
    if layers and layers[0]["type"] == "convolutional":
        extra = layers[0]["cin_phys"] - x.shape[-1]
        if extra > 0:
            x = jnp.pad(x, ((0, 0), (0, 0), (0, 0), (0, extra)))

    # Which layer indices are referenced by later routes / shortcuts (fusion
    # of an epilogue into conv idx is only safe if nothing but idx+1 reads idx).
    referenced = {}
    for i, lr in enumerate(layers):
        if lr["type"] == "route":
            ls = list(lr["layers"])
            a = ls[0] - i if ls[0] > 0 else ls[0]
            referenced.setdefault(i + a, set()).add(i)
            if len(ls) > 1:
                b2 = ls[1] - i if ls[1] > 0 else ls[1]
                referenced.setdefault(i + b2, set()).add(i)
        elif lr["type"] == "shortcut":
            referenced.setdefault(i - 1, set()).add(i)
            referenced.setdefault(i + lr["frm"], set()).add(i)

    outputs = {}
    detections = None
    idx, n_layers = 0, len(layers)
    while idx < n_layers:
        layer = layers[idx]
        t = layer["type"]
        if t == "convolutional":
            nxt = layers[idx + 1] if idx + 1 < n_layers else None
            residual, yolo, consumed = None, None, 1
            safe = referenced.get(idx, set()).issubset({idx + 1})
            if nxt is not None and nxt["type"] == "shortcut" and safe:
                residual = outputs[(idx + 1) + nxt["frm"]]
                consumed = 2
            elif nxt is not None and nxt["type"] == "yolo" and safe:
                K, s, p = layer["size"], layer["stride"], layer["pad"]
                g = (x.shape[1] + 2 * p - K) // s + 1
                det_stride = in_dims // g
                dec = _yolo_decode_consts(nxt["anchors"], nxt["classes"],
                                          float(det_stride), layer["cout_pad"])
                yolo = (dec, float(det_stride))
                consumed = 2
            x = conv_block(x, layer, residual=residual, yolo=yolo)
            if yolo is not None:
                na = len(layers[idx + 1]["anchors"])
                ba = 5 + layers[idx + 1]["classes"]
                n = x.shape[0]
                det = x.reshape(n, -1, layer["cout_pad"])[:, :, :na * ba]
                det = det.reshape(n, -1, ba)                # (B, G*G*na, 5+C)
                detections = det if detections is None else jnp.concatenate(
                    [detections, det], axis=1)
                outputs[idx] = x            # post-decode; never routed (guarded)
                outputs[idx + 1] = det
                x = det
            else:
                outputs[idx] = x
                if consumed == 2:
                    outputs[idx + 1] = x
            idx += consumed
            continue
        if t == "upsample":
            # nn.Upsample(scale_factor=2, mode='bilinear'), align_corners=False.
            n, h, w, c = x.shape
            x = jax.image.resize(x.astype(jnp.float32), (n, 2 * h, 2 * w, c),
                                 method="bilinear").astype(jnp.bfloat16)
        elif t == "route":
            ls = list(layer["layers"])
            if ls[0] > 0:
                ls[0] -= idx
            if len(ls) == 1:
                x = outputs[idx + ls[0]]
            else:
                if ls[1] > 0:
                    ls[1] -= idx
                x = jnp.concatenate([outputs[idx + ls[0]],
                                     outputs[idx + ls[1]]], axis=-1)
        elif t == "shortcut":
            # Fallback (normally fused above); plain add beats a tiny pallas_call.
            x = outputs[idx - 1] + outputs[idx + layer["frm"]]
        elif t == "yolo":
            # Fallback standalone decode (normally fused above).
            x = _yolo_decode_ref(x, in_dims, layer["anchors"], layer["classes"])
            detections = x if detections is None else jnp.concatenate(
                [detections, x], axis=1)
        outputs[idx] = x
        idx += 1
    return detections


if __name__ == "__main__":
    key = jax.random.PRNGKey(0)
    key, kx, kp = jax.random.split(key, 3)
    x = jax.random.normal(kx, (2, 3, 16, 16), jnp.float32)  # NCHW like PyTorch
    layers = build_params(CFG_BLOCKS, kp)

    fwd = jax.jit(lambda inp: net_forward(inp, CFG_BLOCKS, layers))
    det = jax.block_until_ready(fwd(x))

    # two yolo heads: 8*8*2 + 16*16*2 boxes, 5+2 attrs each
    assert det.shape == (2, 8 * 8 * 2 + 16 * 16 * 2, 7), det.shape
    assert bool(jnp.all(jnp.isfinite(det)))
    print("KERNEL_OK")
</pallas_src>

<mosaic_0001>
module attributes {stable_mosaic.version = 11 : i64} {
  func.func @_fused_conv_kernel(%arg0: i32, %arg1: i32, %arg2: memref<1x16x16x128xbf16, #tpu.memory_space<vmem>>, %arg3: memref<9x128x128xbf16, #tpu.memory_space<vmem>>, %arg4: memref<1x128xf32, #tpu.memory_space<vmem>>, %arg5: memref<128x128xbf16, #tpu.memory_space<vmem>>, %arg6: memref<128x128xbf16, #tpu.memory_space<vmem>>, %arg7: memref<18x18x128xbf16, #tpu.memory_space<vmem>>) attributes {dimension_semantics = [#tpu.dimension_semantics<parallel>, #tpu.dimension_semantics<arbitrary>], iteration_bounds = array<i64: 2, 2>, scalar_prefetch = 0 : i64, scratch_operands = 1 : i64, tpu.core_type = #tpu.core_type<tc>, window_params = [{transform_indices = @transform_0, window_bounds = array<i64: 1, 16, 16, 128>}, {pipeline_mode = #tpu.pipeline_mode<synchronous>, transform_indices = @transform_1, window_bounds = array<i64: 9, 128, 128>}, {pipeline_mode = #tpu.pipeline_mode<synchronous>, transform_indices = @transform_2, window_bounds = array<i64: 1, 128>}, {transform_indices = @transform_3, window_bounds = array<i64: 128, 128>}, {transform_indices = @transform_4, window_bounds = array<i64: 128, 128>}]} {
    %c8_i32 = arith.constant 8 : i32
    %0 = arith.muli %arg1, %c8_i32 : i32
    %c0_i32 = arith.constant 0 : i32
    %1 = arith.cmpi eq, %arg1, %c0_i32 : i32
    %2 = arith.extui %1 : i1 to i32
    %c0_i32_0 = arith.constant 0 : i32
    %3 = arith.cmpi ne, %2, %c0_i32_0 : i32
    scf.if %3 {
      %cst_60 = arith.constant 0.000000e+00 : bf16
      %88 = vector.broadcast %cst_60 : bf16 to vector<18x18x128xbf16>
      %c0_61 = arith.constant 0 : index
      %c0_62 = arith.constant 0 : index
      %c0_63 = arith.constant 0 : index
      %89 = vector.load %arg7[%c0_61, %c0_62, %c0_63] : memref<18x18x128xbf16, #tpu.memory_space<vmem>>, vector<18x18x128xbf16>
      tpu.vector_store %arg7[%c0_61, %c0_62, %c0_63], %88 {strides = array<i32>} : memref<18x18x128xbf16, #tpu.memory_space<vmem>>, vector<18x18x128xbf16>,
      %c0_64 = arith.constant 0 : index
      %c0_65 = arith.constant 0 : index
      %c0_66 = arith.constant 0 : index
      %c0_67 = arith.constant 0 : index
      %90 = vector.load %arg2[%c0_64, %c0_65, %c0_66, %c0_67] : memref<1x16x16x128xbf16, #tpu.memory_space<vmem>>, vector<1x16x16x128xbf16>
      %91 = vector.shape_cast %90 : vector<1x16x16x128xbf16> to vector<16x16x128xbf16>
      %c1_68 = arith.constant 1 : index
      %c1_69 = arith.constant 1 : index
      %c0_70 = arith.constant 0 : index
      %92 = vector.load %arg7[%c1_68, %c1_69, %c0_70] : memref<18x18x128xbf16, #tpu.memory_space<vmem>>, vector<16x16x128xbf16>
      tpu.vector_store %arg7[%c1_68, %c1_69, %c0_70], %91 {strides = array<i32>} : memref<18x18x128xbf16, #tpu.memory_space<vmem>>, vector<16x16x128xbf16>,
    } else {
    }
    %c0_i32_1 = arith.constant 0 : i32
    %4 = arith.addi %0, %c0_i32_1 : i32
    %5 = arith.index_cast %4 : i32 to index
    %c0 = arith.constant 0 : index
    %c0_2 = arith.constant 0 : index
    %6 = vector.load %arg7[%5, %c0, %c0_2] : memref<18x18x128xbf16, #tpu.memory_space<vmem>>, vector<8x16x128xbf16>
    %7 = vector.shape_cast %6 : vector<8x16x128xbf16> to vector<128x128xbf16>
    %c0_3 = arith.constant 0 : index
    %c0_4 = arith.constant 0 : index
    %c0_5 = arith.constant 0 : index
    %8 = vector.load %arg3[%c0_3, %c0_4, %c0_5] : memref<9x128x128xbf16, #tpu.memory_space<vmem>>, vector<1x128x128xbf16>
    %9 = vector.shape_cast %8 : vector<1x128x128xbf16> to vector<128x128xbf16>
    %cst = arith.constant dense<0.000000e+00> : vector<128x128xf32>
    %10 = tpu.matmul %7, %9, %cst {dimension_numbers = #tpu.dot_dimension_numbers<[1], [0], [0], [1], [0, 0, 1, 1], [], []>} : vector<128x128xbf16>, vector<128x128xbf16>, vector<128x128xf32> -> vector<128x128xf32>
    %c0_i32_6 = arith.constant 0 : i32
    %11 = arith.addi %0, %c0_i32_6 : i32
    %12 = arith.index_cast %11 : i32 to index
    %c1 = arith.constant 1 : index
    %c0_7 = arith.constant 0 : index
    %13 = vector.load %arg7[%12, %c1, %c0_7] : memref<18x18x128xbf16, #tpu.memory_space<vmem>>, vector<8x16x128xbf16>
    %14 = vector.shape_cast %13 : vector<8x16x128xbf16> to vector<128x128xbf16>
    %c1_8 = arith.constant 1 : index
    %c0_9 = arith.constant 0 : index
    %c0_10 = arith.constant 0 : index
    %15 = vector.load %arg3[%c1_8, %c0_9, %c0_10] : memref<9x128x128xbf16, #tpu.memory_space<vmem>>, vector<1x128x128xbf16>
    %16 = vector.shape_cast %15 : vector<1x128x128xbf16> to vector<128x128xbf16>
    %cst_11 = arith.constant dense<0.000000e+00> : vector<128x128xf32>
    %17 = tpu.matmul %14, %16, %cst_11 {dimension_numbers = #tpu.dot_dimension_numbers<[1], [0], [0], [1], [0, 0, 1, 1], [], []>} : vector<128x128xbf16>, vector<128x128xbf16>, vector<128x128xf32> -> vector<128x128xf32>
    %18 = arith.addf %10, %17 : vector<128x128xf32>
    %c0_i32_12 = arith.constant 0 : i32
    %19 = arith.addi %0, %c0_i32_12 : i32
    %20 = arith.index_cast %19 : i32 to index
    %c2 = arith.constant 2 : index
    %c0_13 = arith.constant 0 : index
    %21 = vector.load %arg7[%20, %c2, %c0_13] : memref<18x18x128xbf16, #tpu.memory_space<vmem>>, vector<8x16x128xbf16>
    %22 = vector.shape_cast %21 : vector<8x16x128xbf16> to vector<128x128xbf16>
    %c2_14 = arith.constant 2 : index
    %c0_15 = arith.constant 0 : index
    %c0_16 = arith.constant 0 : index
    %23 = vector.load %arg3[%c2_14, %c0_15, %c0_16] : memref<9x128x128xbf16, #tpu.memory_space<vmem>>, vector<1x128x128xbf16>
    %24 = vector.shape_cast %23 : vector<1x128x128xbf16> to vector<128x128xbf16>
    %cst_17 = arith.constant dense<0.000000e+00> : vector<128x128xf32>
    %25 = tpu.matmul %22, %24, %cst_17 {dimension_numbers = #tpu.dot_dimension_numbers<[1], [0], [0], [1], [0, 0, 1, 1], [], []>} : vector<128x128xbf16>, vector<128x128xbf16>, vector<128x128xf32> -> vector<128x128xf32>
    %26 = arith.addf %18, %25 : vector<128x128xf32>
    %c1_i32 = arith.constant 1 : i32
    %27 = arith.addi %0, %c1_i32 : i32
    %28 = arith.index_cast %27 : i32 to index
    %c0_18 = arith.constant 0 : index
    %c0_19 = arith.constant 0 : index
    %29 = vector.load %arg7[%28, %c0_18, %c0_19] : memref<18x18x128xbf16, #tpu.memory_space<vmem>>, vector<8x16x128xbf16>
    %30 = vector.shape_cast %29 : vector<8x16x128xbf16> to vector<128x128xbf16>
    %c3 = arith.constant 3 : index
    %c0_20 = arith.constant 0 : index
    %c0_21 = arith.constant 0 : index
    %31 = vector.load %arg3[%c3, %c0_20, %c0_21] : memref<9x128x128xbf16, #tpu.memory_space<vmem>>, vector<1x128x128xbf16>
    %32 = vector.shape_cast %31 : vector<1x128x128xbf16> to vector<128x128xbf16>
    %cst_22 = arith.constant dense<0.000000e+00> : vector<128x128xf32>
    %33 = tpu.matmul %30, %32, %cst_22 {dimension_numbers = #tpu.dot_dimension_numbers<[1], [0], [0], [1], [0, 0, 1, 1], [], []>} : vector<128x128xbf16>, vector<128x128xbf16>, vector<128x128xf32> -> vector<128x128xf32>
    %34 = arith.addf %26, %33 : vector<128x128xf32>
    %c1_i32_23 = arith.constant 1 : i32
    %35 = arith.addi %0, %c1_i32_23 : i32
    %36 = arith.index_cast %35 : i32 to index
    %c1_24 = arith.constant 1 : index
    %c0_25 = arith.constant 0 : index
    %37 = vector.load %arg7[%36, %c1_24, %c0_25] : memref<18x18x128xbf16, #tpu.memory_space<vmem>>, vector<8x16x128xbf16>
    %38 = vector.shape_cast %37 : vector<8x16x128xbf16> to vector<128x128xbf16>
    %c4 = arith.constant 4 : index
    %c0_26 = arith.constant 0 : index
    %c0_27 = arith.constant 0 : index
    %39 = vector.load %arg3[%c4, %c0_26, %c0_27] : memref<9x128x128xbf16, #tpu.memory_space<vmem>>, vector<1x128x128xbf16>
    %40 = vector.shape_cast %39 : vector<1x128x128xbf16> to vector<128x128xbf16>
    %cst_28 = arith.constant dense<0.000000e+00> : vector<128x128xf32>
    %41 = tpu.matmul %38, %40, %cst_28 {dimension_numbers = #tpu.dot_dimension_numbers<[1], [0], [0], [1], [0, 0, 1, 1], [], []>} : vector<128x128xbf16>, vector<128x128xbf16>, vector<128x128xf32> -> vector<128x128xf32>
    %42 = arith.addf %34, %41 : vector<128x128xf32>
    %c1_i32_29 = arith.constant 1 : i32
    %43 = arith.addi %0, %c1_i32_29 : i32
    %44 = arith.index_cast %43 : i32 to index
    %c2_30 = arith.constant 2 : index
    %c0_31 = arith.constant 0 : index
    %45 = vector.load %arg7[%44, %c2_30, %c0_31] : memref<18x18x128xbf16, #tpu.memory_space<vmem>>, vector<8x16x128xbf16>
    %46 = vector.shape_cast %45 : vector<8x16x128xbf16> to vector<128x128xbf16>
    %c5 = arith.constant 5 : index
    %c0_32 = arith.constant 0 : index
    %c0_33 = arith.constant 0 : index
    %47 = vector.load %arg3[%c5, %c0_32, %c0_33] : memref<9x128x128xbf16, #tpu.memory_space<vmem>>, vector<1x128x128xbf16>
    %48 = vector.shape_cast %47 : vector<1x128x128xbf16> to vector<128x128xbf16>
    %cst_34 = arith.constant dense<0.000000e+00> : vector<128x128xf32>
    %49 = tpu.matmul %46, %48, %cst_34 {dimension_numbers = #tpu.dot_dimension_numbers<[1], [0], [0], [1], [0, 0, 1, 1], [], []>} : vector<128x128xbf16>, vector<128x128xbf16>, vector<128x128xf32> -> vector<128x128xf32>
    %50 = arith.addf %42, %49 : vector<128x128xf32>
    %c2_i32 = arith.constant 2 : i32
    %51 = arith.addi %0, %c2_i32 : i32
    %52 = arith.index_cast %51 : i32 to index
    %c0_35 = arith.constant 0 : index
    %c0_36 = arith.constant 0 : index
    %53 = vector.load %arg7[%52, %c0_35, %c0_36] : memref<18x18x128xbf16, #tpu.memory_space<vmem>>, vector<8x16x128xbf16>
    %54 = vector.shape_cast %53 : vector<8x16x128xbf16> to vector<128x128xbf16>
    %c6 = arith.constant 6 : index
    %c0_37 = arith.constant 0 : index
    %c0_38 = arith.constant 0 : index
    %55 = vector.load %arg3[%c6, %c0_37, %c0_38] : memref<9x128x128xbf16, #tpu.memory_space<vmem>>, vector<1x128x128xbf16>
    %56 = vector.shape_cast %55 : vector<1x128x128xbf16> to vector<128x128xbf16>
    %cst_39 = arith.constant dense<0.000000e+00> : vector<128x128xf32>
    %57 = tpu.matmul %54, %56, %cst_39 {dimension_numbers = #tpu.dot_dimension_numbers<[1], [0], [0], [1], [0, 0, 1, 1], [], []>} : vector<128x128xbf16>, vector<128x128xbf16>, vector<128x128xf32> -> vector<128x128xf32>
    %58 = arith.addf %50, %57 : vector<128x128xf32>
    %c2_i32_40 = arith.constant 2 : i32
    %59 = arith.addi %0, %c2_i32_40 : i32
    %60 = arith.index_cast %59 : i32 to index
    %c1_41 = arith.constant 1 : index
    %c0_42 = arith.constant 0 : index
    %61 = vector.load %arg7[%60, %c1_41, %c0_42] : memref<18x18x128xbf16, #tpu.memory_space<vmem>>, vector<8x16x128xbf16>
    %62 = vector.shape_cast %61 : vector<8x16x128xbf16> to vector<128x128xbf16>
    %c7 = arith.constant 7 : index
    %c0_43 = arith.constant 0 : index
    %c0_44 = arith.constant 0 : index
    %63 = vector.load %arg3[%c7, %c0_43, %c0_44] : memref<9x128x128xbf16, #tpu.memory_space<vmem>>, vector<1x128x128xbf16>
    %64 = vector.shape_cast %63 : vector<1x128x128xbf16> to vector<128x128xbf16>
    %cst_45 = arith.constant dense<0.000000e+00> : vector<128x128xf32>
    %65 = tpu.matmul %62, %64, %cst_45 {dimension_numbers = #tpu.dot_dimension_numbers<[1], [0], [0], [1], [0, 0, 1, 1], [], []>} : vector<128x128xbf16>, vector<128x128xbf16>, vector<128x128xf32> -> vector<128x128xf32>
    %66 = arith.addf %58, %65 : vector<128x128xf32>
    %c2_i32_46 = arith.constant 2 : i32
    %67 = arith.addi %0, %c2_i32_46 : i32
    %68 = arith.index_cast %67 : i32 to index
    %c2_47 = arith.constant 2 : index
    %c0_48 = arith.constant 0 : index
    %69 = vector.load %arg7[%68, %c2_47, %c0_48] : memref<18x18x128xbf16, #tpu.memory_space<vmem>>, vector<8x16x128xbf16>
    %70 = vector.shape_cast %69 : vector<8x16x128xbf16> to vector<128x128xbf16>
    %c8 = arith.constant 8 : index
    %c0_49 = arith.constant 0 : index
    %c0_50 = arith.constant 0 : index
    %71 = vector.load %arg3[%c8, %c0_49, %c0_50] : memref<9x128x128xbf16, #tpu.memory_space<vmem>>, vector<1x128x128xbf16>
    %72 = vector.shape_cast %71 : vector<1x128x128xbf16> to vector<128x128xbf16>
    %cst_51 = arith.constant dense<0.000000e+00> : vector<128x128xf32>
    %73 = tpu.matmul %70, %72, %cst_51 {dimension_numbers = #tpu.dot_dimension_numbers<[1], [0], [0], [1], [0, 0, 1, 1], [], []>} : vector<128x128xbf16>, vector<128x128xbf16>, vector<128x128xf32> -> vector<128x128xf32>
    %74 = arith.addf %66, %73 : vector<128x128xf32>
    %c0_52 = arith.constant 0 : index
    %c0_53 = arith.constant 0 : index
    %75 = vector.load %arg4[%c0_52, %c0_53] : memref<1x128xf32, #tpu.memory_space<vmem>>, vector<1x128xf32>
    %76 = vector.broadcast %75 : vector<1x128xf32> to vector<128x128xf32>
    %77 = arith.addf %74, %76 : vector<128x128xf32>
    %cst_54 = arith.constant 0.000000e+00 : f32
    %78 = vector.broadcast %cst_54 : f32 to vector<128x128xf32>
    %79 = arith.cmpf oge, %77, %78 : vector<128x128xf32>
    %cst_55 = arith.constant 1.000000e-01 : f32
    %80 = vector.broadcast %cst_55 : f32 to vector<128x128xf32>
    %81 = arith.mulf %80, %77 : vector<128x128xf32>
    %82 = arith.select %79, %77, %81 : vector<128x128xi1>, vector<128x128xf32>
    %c0_56 = arith.constant 0 : index
    %c0_57 = arith.constant 0 : index
    %83 = vector.load %arg5[%c0_56, %c0_57] : memref<128x128xbf16, #tpu.memory_space<vmem>>, vector<128x128xbf16>
    %84 = arith.extf %83 : vector<128x128xbf16> to vector<128x128xf32>
    %85 = arith.addf %82, %84 : vector<128x128xf32>
    %86 = arith.truncf %85 : vector<128x128xf32> to vector<128x128xbf16>
    %c0_58 = arith.constant 0 : index
    %c0_59 = arith.constant 0 : index
    %87 = vector.load %arg6[%c0_58, %c0_59] : memref<128x128xbf16, #tpu.memory_space<vmem>>, vector<128x128xbf16>
    tpu.vector_store %arg6[%c0_58, %c0_59], %86 {strides = array<i32>} : memref<128x128xbf16, #tpu.memory_space<vmem>>, vector<128x128xbf16>,
    return
  }
  func.func @transform_0(%arg0: i32, %arg1: i32) -> (i32, i32, i32, i32) {
    %c0_i32 = arith.constant 0 : i32
    %c0_i32_0 = arith.constant 0 : i32
    %c0_i32_1 = arith.constant 0 : i32
    %c0_i32_2 = arith.constant 0 : i32
    return %arg0, %c0_i32, %c0_i32_0, %c0_i32_1 : i32, i32, i32, i32
  }
  func.func @transform_1(%arg0: i32, %arg1: i32) -> (i32, i32, i32) {
    %c0_i32 = arith.constant 0 : i32
    %c0_i32_0 = arith.constant 0 : i32
    %c0_i32_1 = arith.constant 0 : i32
    %c0_i32_2 = arith.constant 0 : i32
    return %c0_i32, %c0_i32_0, %c0_i32_1 : i32, i32, i32
  }
  func.func @transform_2(%arg0: i32, %arg1: i32) -> (i32, i32) {
    %c0_i32 = arith.constant 0 : i32
    %c0_i32_0 = arith.constant 0 : i32
    %c0_i32_1 = arith.constant 0 : i32
    return %c0_i32, %c0_i32_0 : i32, i32
  }
  func.func @transform_3(%arg0: i32, %arg1: i32) -> (i32, i32) {
    %c2_i32 = arith.constant 2 : i32
    %0 = arith.muli %arg0, %c2_i32 : i32
    %1 = arith.addi %0, %arg1 : i32
    %c0_i32 = arith.constant 0 : i32
    %c0_i32_0 = arith.constant 0 : i32
    return %1, %c0_i32 : i32, i32
  }
  func.func @transform_4(%arg0: i32, %arg1: i32) -> (i32, i32) {
    %c2_i32 = arith.constant 2 : i32
    %0 = arith.muli %arg0, %c2_i32 : i32
    %1 = arith.addi %0, %arg1 : i32
    %c0_i32 = arith.constant 0 : i32
    %c0_i32_0 = arith.constant 0 : i32
    return %1, %c0_i32 : i32, i32
  }
}

module attributes {stable_mosaic.version = 11 : i64} {
  func.func @_fused_conv_kernel(%arg0: i32, %arg1: i32, %arg2: memref<1x16x16x8xbf16, #tpu.memory_space<vmem>>, %arg3: memref<9x8x128xbf16, #tpu.memory_space<vmem>>, %arg4: memref<1x128xf32, #tpu.memory_space<vmem>>, %arg5: memref<128x128xbf16, #tpu.memory_space<vmem>>, %arg6: memref<18x18x8xbf16, #tpu.memory_space<vmem>>) attributes {dimension_semantics = [#tpu.dimension_semantics<parallel>, #tpu.dimension_semantics<arbitrary>], iteration_bounds = array<i64: 2, 2>, scalar_prefetch = 0 : i64, scratch_operands = 1 : i64, tpu.core_type = #tpu.core_type<tc>, window_params = [{transform_indices = @transform_0, window_bounds = array<i64: 1, 16, 16, 8>}, {pipeline_mode = #tpu.pipeline_mode<synchronous>, transform_indices = @transform_1, window_bounds = array<i64: 9, 8, 128>}, {pipeline_mode = #tpu.pipeline_mode<synchronous>, transform_indices = @transform_2, window_bounds = array<i64: 1, 128>}, {transform_indices = @transform_3, window_bounds = array<i64: 128, 128>}]} {
    %c8_i32 = arith.constant 8 : i32
    %0 = arith.muli %arg1, %c8_i32 : i32
    %c0_i32 = arith.constant 0 : i32
    %1 = arith.cmpi eq, %arg1, %c0_i32 : i32
    %2 = arith.extui %1 : i1 to i32
    %c0_i32_0 = arith.constant 0 : i32
    %3 = arith.cmpi ne, %2, %c0_i32_0 : i32
    scf.if %3 {
      %cst_58 = arith.constant 0.000000e+00 : bf16
      %85 = vector.broadcast %cst_58 : bf16 to vector<18x18x8xbf16>
      %c0_59 = arith.constant 0 : index
      %c0_60 = arith.constant 0 : index
      %c0_61 = arith.constant 0 : index
      %86 = vector.load %arg6[%c0_59, %c0_60, %c0_61] : memref<18x18x8xbf16, #tpu.memory_space<vmem>>, vector<18x18x8xbf16>
      tpu.vector_store %arg6[%c0_59, %c0_60, %c0_61], %85 {strides = array<i32>} : memref<18x18x8xbf16, #tpu.memory_space<vmem>>, vector<18x18x8xbf16>,
      %c0_62 = arith.constant 0 : index
      %c0_63 = arith.constant 0 : index
      %c0_64 = arith.constant 0 : index
      %c0_65 = arith.constant 0 : index
      %87 = vector.load %arg2[%c0_62, %c0_63, %c0_64, %c0_65] : memref<1x16x16x8xbf16, #tpu.memory_space<vmem>>, vector<1x16x16x8xbf16>
      %88 = vector.shape_cast %87 : vector<1x16x16x8xbf16> to vector<16x16x8xbf16>
      %c1_66 = arith.constant 1 : index
      %c1_67 = arith.constant 1 : index
      %c0_68 = arith.constant 0 : index
      %89 = vector.load %arg6[%c1_66, %c1_67, %c0_68] : memref<18x18x8xbf16, #tpu.memory_space<vmem>>, vector<16x16x8xbf16>
      tpu.vector_store %arg6[%c1_66, %c1_67, %c0_68], %88 {strides = array<i32>} : memref<18x18x8xbf16, #tpu.memory_space<vmem>>, vector<16x16x8xbf16>,
    } else {
    }
    %c0_i32_1 = arith.constant 0 : i32
    %4 = arith.addi %0, %c0_i32_1 : i32
    %5 = arith.index_cast %4 : i32 to index
    %c0 = arith.constant 0 : index
    %c0_2 = arith.constant 0 : index
    %6 = vector.load %arg6[%5, %c0, %c0_2] : memref<18x18x8xbf16, #tpu.memory_space<vmem>>, vector<8x16x8xbf16>
    %7 = vector.shape_cast %6 : vector<8x16x8xbf16> to vector<128x8xbf16>
    %c0_3 = arith.constant 0 : index
    %c0_4 = arith.constant 0 : index
    %c0_5 = arith.constant 0 : index
    %8 = vector.load %arg3[%c0_3, %c0_4, %c0_5] : memref<9x8x128xbf16, #tpu.memory_space<vmem>>, vector<1x8x128xbf16>
    %9 = vector.shape_cast %8 : vector<1x8x128xbf16> to vector<8x128xbf16>
    %cst = arith.constant dense<0.000000e+00> : vector<128x128xf32>
    %10 = tpu.matmul %7, %9, %cst {dimension_numbers = #tpu.dot_dimension_numbers<[1], [0], [0], [1], [0, 0, 1, 1], [], []>} : vector<128x8xbf16>, vector<8x128xbf16>, vector<128x128xf32> -> vector<128x128xf32>
    %c0_i32_6 = arith.constant 0 : i32
    %11 = arith.addi %0, %c0_i32_6 : i32
    %12 = arith.index_cast %11 : i32 to index
    %c1 = arith.constant 1 : index
    %c0_7 = arith.constant 0 : index
    %13 = vector.load %arg6[%12, %c1, %c0_7] : memref<18x18x8xbf16, #tpu.memory_space<vmem>>, vector<8x16x8xbf16>
    %14 = vector.shape_cast %13 : vector<8x16x8xbf16> to vector<128x8xbf16>
    %c1_8 = arith.constant 1 : index
    %c0_9 = arith.constant 0 : index
    %c0_10 = arith.constant 0 : index
    %15 = vector.load %arg3[%c1_8, %c0_9, %c0_10] : memref<9x8x128xbf16, #tpu.memory_space<vmem>>, vector<1x8x128xbf16>
    %16 = vector.shape_cast %15 : vector<1x8x128xbf16> to vector<8x128xbf16>
    %cst_11 = arith.constant dense<0.000000e+00> : vector<128x128xf32>
    %17 = tpu.matmul %14, %16, %cst_11 {dimension_numbers = #tpu.dot_dimension_numbers<[1], [0], [0], [1], [0, 0, 1, 1], [], []>} : vector<128x8xbf16>, vector<8x128xbf16>, vector<128x128xf32> -> vector<128x128xf32>
    %18 = arith.addf %10, %17 : vector<128x128xf32>
    %c0_i32_12 = arith.constant 0 : i32
    %19 = arith.addi %0, %c0_i32_12 : i32
    %20 = arith.index_cast %19 : i32 to index
    %c2 = arith.constant 2 : index
    %c0_13 = arith.constant 0 : index
    %21 = vector.load %arg6[%20, %c2, %c0_13] : memref<18x18x8xbf16, #tpu.memory_space<vmem>>, vector<8x16x8xbf16>
    %22 = vector.shape_cast %21 : vector<8x16x8xbf16> to vector<128x8xbf16>
    %c2_14 = arith.constant 2 : index
    %c0_15 = arith.constant 0 : index
    %c0_16 = arith.constant 0 : index
    %23 = vector.load %arg3[%c2_14, %c0_15, %c0_16] : memref<9x8x128xbf16, #tpu.memory_space<vmem>>, vector<1x8x128xbf16>
    %24 = vector.shape_cast %23 : vector<1x8x128xbf16> to vector<8x128xbf16>
    %cst_17 = arith.constant dense<0.000000e+00> : vector<128x128xf32>
    %25 = tpu.matmul %22, %24, %cst_17 {dimension_numbers = #tpu.dot_dimension_numbers<[1], [0], [0], [1], [0, 0, 1, 1], [], []>} : vector<128x8xbf16>, vector<8x128xbf16>, vector<128x128xf32> -> vector<128x128xf32>
    %26 = arith.addf %18, %25 : vector<128x128xf32>
    %c1_i32 = arith.constant 1 : i32
    %27 = arith.addi %0, %c1_i32 : i32
    %28 = arith.index_cast %27 : i32 to index
    %c0_18 = arith.constant 0 : index
    %c0_19 = arith.constant 0 : index
    %29 = vector.load %arg6[%28, %c0_18, %c0_19] : memref<18x18x8xbf16, #tpu.memory_space<vmem>>, vector<8x16x8xbf16>
    %30 = vector.shape_cast %29 : vector<8x16x8xbf16> to vector<128x8xbf16>
    %c3 = arith.constant 3 : index
    %c0_20 = arith.constant 0 : index
    %c0_21 = arith.constant 0 : index
    %31 = vector.load %arg3[%c3, %c0_20, %c0_21] : memref<9x8x128xbf16, #tpu.memory_space<vmem>>, vector<1x8x128xbf16>
    %32 = vector.shape_cast %31 : vector<1x8x128xbf16> to vector<8x128xbf16>
    %cst_22 = arith.constant dense<0.000000e+00> : vector<128x128xf32>
    %33 = tpu.matmul %30, %32, %cst_22 {dimension_numbers = #tpu.dot_dimension_numbers<[1], [0], [0], [1], [0, 0, 1, 1], [], []>} : vector<128x8xbf16>, vector<8x128xbf16>, vector<128x128xf32> -> vector<128x128xf32>
    %34 = arith.addf %26, %33 : vector<128x128xf32>
    %c1_i32_23 = arith.constant 1 : i32
    %35 = arith.addi %0, %c1_i32_23 : i32
    %36 = arith.index_cast %35 : i32 to index
    %c1_24 = arith.constant 1 : index
    %c0_25 = arith.constant 0 : index
    %37 = vector.load %arg6[%36, %c1_24, %c0_25] : memref<18x18x8xbf16, #tpu.memory_space<vmem>>, vector<8x16x8xbf16>
    %38 = vector.shape_cast %37 : vector<8x16x8xbf16> to vector<128x8xbf16>
    %c4 = arith.constant 4 : index
    %c0_26 = arith.constant 0 : index
    %c0_27 = arith.constant 0 : index
    %39 = vector.load %arg3[%c4, %c0_26, %c0_27] : memref<9x8x128xbf16, #tpu.memory_space<vmem>>, vector<1x8x128xbf16>
    %40 = vector.shape_cast %39 : vector<1x8x128xbf16> to vector<8x128xbf16>
    %cst_28 = arith.constant dense<0.000000e+00> : vector<128x128xf32>
    %41 = tpu.matmul %38, %40, %cst_28 {dimension_numbers = #tpu.dot_dimension_numbers<[1], [0], [0], [1], [0, 0, 1, 1], [], []>} : vector<128x8xbf16>, vector<8x128xbf16>, vector<128x128xf32> -> vector<128x128xf32>
    %42 = arith.addf %34, %41 : vector<128x128xf32>
    %c1_i32_29 = arith.constant 1 : i32
    %43 = arith.addi %0, %c1_i32_29 : i32
    %44 = arith.index_cast %43 : i32 to index
    %c2_30 = arith.constant 2 : index
    %c0_31 = arith.constant 0 : index
    %45 = vector.load %arg6[%44, %c2_30, %c0_31] : memref<18x18x8xbf16, #tpu.memory_space<vmem>>, vector<8x16x8xbf16>
    %46 = vector.shape_cast %45 : vector<8x16x8xbf16> to vector<128x8xbf16>
    %c5 = arith.constant 5 : index
    %c0_32 = arith.constant 0 : index
    %c0_33 = arith.constant 0 : index
    %47 = vector.load %arg3[%c5, %c0_32, %c0_33] : memref<9x8x128xbf16, #tpu.memory_space<vmem>>, vector<1x8x128xbf16>
    %48 = vector.shape_cast %47 : vector<1x8x128xbf16> to vector<8x128xbf16>
    %cst_34 = arith.constant dense<0.000000e+00> : vector<128x128xf32>
    %49 = tpu.matmul %46, %48, %cst_34 {dimension_numbers = #tpu.dot_dimension_numbers<[1], [0], [0], [1], [0, 0, 1, 1], [], []>} : vector<128x8xbf16>, vector<8x128xbf16>, vector<128x128xf32> -> vector<128x128xf32>
    %50 = arith.addf %42, %49 : vector<128x128xf32>
    %c2_i32 = arith.constant 2 : i32
    %51 = arith.addi %0, %c2_i32 : i32
    %52 = arith.index_cast %51 : i32 to index
    %c0_35 = arith.constant 0 : index
    %c0_36 = arith.constant 0 : index
    %53 = vector.load %arg6[%52, %c0_35, %c0_36] : memref<18x18x8xbf16, #tpu.memory_space<vmem>>, vector<8x16x8xbf16>
    %54 = vector.shape_cast %53 : vector<8x16x8xbf16> to vector<128x8xbf16>
    %c6 = arith.constant 6 : index
    %c0_37 = arith.constant 0 : index
    %c0_38 = arith.constant 0 : index
    %55 = vector.load %arg3[%c6, %c0_37, %c0_38] : memref<9x8x128xbf16, #tpu.memory_space<vmem>>, vector<1x8x128xbf16>
    %56 = vector.shape_cast %55 : vector<1x8x128xbf16> to vector<8x128xbf16>
    %cst_39 = arith.constant dense<0.000000e+00> : vector<128x128xf32>
    %57 = tpu.matmul %54, %56, %cst_39 {dimension_numbers = #tpu.dot_dimension_numbers<[1], [0], [0], [1], [0, 0, 1, 1], [], []>} : vector<128x8xbf16>, vector<8x128xbf16>, vector<128x128xf32> -> vector<128x128xf32>
    %58 = arith.addf %50, %57 : vector<128x128xf32>
    %c2_i32_40 = arith.constant 2 : i32
    %59 = arith.addi %0, %c2_i32_40 : i32
    %60 = arith.index_cast %59 : i32 to index
    %c1_41 = arith.constant 1 : index
    %c0_42 = arith.constant 0 : index
    %61 = vector.load %arg6[%60, %c1_41, %c0_42] : memref<18x18x8xbf16, #tpu.memory_space<vmem>>, vector<8x16x8xbf16>
    %62 = vector.shape_cast %61 : vector<8x16x8xbf16> to vector<128x8xbf16>
    %c7 = arith.constant 7 : index
    %c0_43 = arith.constant 0 : index
    %c0_44 = arith.constant 0 : index
    %63 = vector.load %arg3[%c7, %c0_43, %c0_44] : memref<9x8x128xbf16, #tpu.memory_space<vmem>>, vector<1x8x128xbf16>
    %64 = vector.shape_cast %63 : vector<1x8x128xbf16> to vector<8x128xbf16>
    %cst_45 = arith.constant dense<0.000000e+00> : vector<128x128xf32>
    %65 = tpu.matmul %62, %64, %cst_45 {dimension_numbers = #tpu.dot_dimension_numbers<[1], [0], [0], [1], [0, 0, 1, 1], [], []>} : vector<128x8xbf16>, vector<8x128xbf16>, vector<128x128xf32> -> vector<128x128xf32>
    %66 = arith.addf %58, %65 : vector<128x128xf32>
    %c2_i32_46 = arith.constant 2 : i32
    %67 = arith.addi %0, %c2_i32_46 : i32
    %68 = arith.index_cast %67 : i32 to index
    %c2_47 = arith.constant 2 : index
    %c0_48 = arith.constant 0 : index
    %69 = vector.load %arg6[%68, %c2_47, %c0_48] : memref<18x18x8xbf16, #tpu.memory_space<vmem>>, vector<8x16x8xbf16>
    %70 = vector.shape_cast %69 : vector<8x16x8xbf16> to vector<128x8xbf16>
    %c8 = arith.constant 8 : index
    %c0_49 = arith.constant 0 : index
    %c0_50 = arith.constant 0 : index
    %71 = vector.load %arg3[%c8, %c0_49, %c0_50] : memref<9x8x128xbf16, #tpu.memory_space<vmem>>, vector<1x8x128xbf16>
    %72 = vector.shape_cast %71 : vector<1x8x128xbf16> to vector<8x128xbf16>
    %cst_51 = arith.constant dense<0.000000e+00> : vector<128x128xf32>
    %73 = tpu.matmul %70, %72, %cst_51 {dimension_numbers = #tpu.dot_dimension_numbers<[1], [0], [0], [1], [0, 0, 1, 1], [], []>} : vector<128x8xbf16>, vector<8x128xbf16>, vector<128x128xf32> -> vector<128x128xf32>
    %74 = arith.addf %66, %73 : vector<128x128xf32>
    %c0_52 = arith.constant 0 : index
    %c0_53 = arith.constant 0 : index
    %75 = vector.load %arg4[%c0_52, %c0_53] : memref<1x128xf32, #tpu.memory_space<vmem>>, vector<1x128xf32>
    %76 = vector.broadcast %75 : vector<1x128xf32> to vector<128x128xf32>
    %77 = arith.addf %74, %76 : vector<128x128xf32>
    %cst_54 = arith.constant 0.000000e+00 : f32
    %78 = vector.broadcast %cst_54 : f32 to vector<128x128xf32>
    %79 = arith.cmpf oge, %77, %78 : vector<128x128xf32>
    %cst_55 = arith.constant 1.000000e-01 : f32
    %80 = vector.broadcast %cst_55 : f32 to vector<128x128xf32>
    %81 = arith.mulf %80, %77 : vector<128x128xf32>
    %82 = arith.select %79, %77, %81 : vector<128x128xi1>, vector<128x128xf32>
    %83 = arith.truncf %82 : vector<128x128xf32> to vector<128x128xbf16>
    %c0_56 = arith.constant 0 : index
    %c0_57 = arith.constant 0 : index
    %84 = vector.load %arg5[%c0_56, %c0_57] : memref<128x128xbf16, #tpu.memory_space<vmem>>, vector<128x128xbf16>
    tpu.vector_store %arg5[%c0_56, %c0_57], %83 {strides = array<i32>} : memref<128x128xbf16, #tpu.memory_space<vmem>>, vector<128x128xbf16>,
    return
  }
  func.func @transform_0(%arg0: i32, %arg1: i32) -> (i32, i32, i32, i32) {
    %c0_i32 = arith.constant 0 : i32
    %c0_i32_0 = arith.constant 0 : i32
    %c0_i32_1 = arith.constant 0 : i32
    %c0_i32_2 = arith.constant 0 : i32
    return %arg0, %c0_i32, %c0_i32_0, %c0_i32_1 : i32, i32, i32, i32
  }
  func.func @transform_1(%arg0: i32, %arg1: i32) -> (i32, i32, i32) {
    %c0_i32 = arith.constant 0 : i32
    %c0_i32_0 = arith.constant 0 : i32
    %c0_i32_1 = arith.constant 0 : i32
    %c0_i32_2 = arith.constant 0 : i32
    return %c0_i32, %c0_i32_0, %c0_i32_1 : i32, i32, i32
  }
  func.func @transform_2(%arg0: i32, %arg1: i32) -> (i32, i32) {
    %c0_i32 = arith.constant 0 : i32
    %c0_i32_0 = arith.constant 0 : i32
    %c0_i32_1 = arith.constant 0 : i32
    return %c0_i32, %c0_i32_0 : i32, i32
  }
  func.func @transform_3(%arg0: i32, %arg1: i32) -> (i32, i32) {
    %c2_i32 = arith.constant 2 : i32
    %0 = arith.muli %arg0, %c2_i32 : i32
    %1 = arith.addi %0, %arg1 : i32
    %c0_i32 = arith.constant 0 : i32
    %c0_i32_0 = arith.constant 0 : i32
    return %1, %c0_i32 : i32, i32
  }
}

module attributes {stable_mosaic.version = 11 : i64} {
  func.func @_fused_conv_kernel(%arg0: i32, %arg1: i32, %arg2: memref<1x9x9x512xbf16, #tpu.memory_space<vmem>>, %arg3: memref<9x128x128xbf16, #tpu.memory_space<vmem>>, %arg4: memref<1x128xf32, #tpu.memory_space<vmem>>, %arg5: memref<64x128xbf16, #tpu.memory_space<vmem>>) attributes {dimension_semantics = [#tpu.dimension_semantics<parallel>, #tpu.dimension_semantics<parallel>], iteration_bounds = array<i64: 2, 1>, scalar_prefetch = 0 : i64, scratch_operands = 0 : i64, tpu.core_type = #tpu.core_type<tc>, window_params = [{transform_indices = @transform_0, window_bounds = array<i64: 1, 9, 9, 512>}, {pipeline_mode = #tpu.pipeline_mode<synchronous>, transform_indices = @transform_1, window_bounds = array<i64: 9, 128, 128>}, {pipeline_mode = #tpu.pipeline_mode<synchronous>, transform_indices = @transform_2, window_bounds = array<i64: 1, 128>}, {transform_indices = @transform_3, window_bounds = array<i64: 64, 128>}]} {
    %c8_i32 = arith.constant 8 : i32
    %0 = arith.muli %arg1, %c8_i32 : i32
    %c0_i32 = arith.constant 0 : i32
    %1 = arith.addi %0, %c0_i32 : i32
    %c0 = arith.constant 0 : index
    %2 = arith.index_cast %1 : i32 to index
    %c0_0 = arith.constant 0 : index
    %c0_1 = arith.constant 0 : index
    %3 = vector.load %arg2[%c0, %2, %c0_0, %c0_1] : memref<1x9x9x512xbf16, #tpu.memory_space<vmem>>, vector<1x8x8x128xbf16>
    %4 = vector.shape_cast %3 : vector<1x8x8x128xbf16> to vector<8x8x128xbf16>
    %5 = vector.shape_cast %4 : vector<8x8x128xbf16> to vector<64x128xbf16>
    %c0_2 = arith.constant 0 : index
    %c0_3 = arith.constant 0 : index
    %c0_4 = arith.constant 0 : index
    %6 = vector.load %arg3[%c0_2, %c0_3, %c0_4] : memref<9x128x128xbf16, #tpu.memory_space<vmem>>, vector<1x128x128xbf16>
    %7 = vector.shape_cast %6 : vector<1x128x128xbf16> to vector<128x128xbf16>
    %cst = arith.constant dense<0.000000e+00> : vector<64x128xf32>
    %8 = tpu.matmul %5, %7, %cst {dimension_numbers = #tpu.dot_dimension_numbers<[1], [0], [0], [1], [0, 0, 1, 1], [], []>} : vector<64x128xbf16>, vector<128x128xbf16>, vector<64x128xf32> -> vector<64x128xf32>
    %c0_i32_5 = arith.constant 0 : i32
    %9 = arith.addi %0, %c0_i32_5 : i32
    %c0_6 = arith.constant 0 : index
    %10 = arith.index_cast %9 : i32 to index
    %c0_7 = arith.constant 0 : index
    %c128 = arith.constant 128 : index
    %11 = vector.load %arg2[%c0_6, %10, %c0_7, %c128] : memref<1x9x9x512xbf16, #tpu.memory_space<vmem>>, vector<1x8x8x128xbf16>
    %12 = vector.shape_cast %11 : vector<1x8x8x128xbf16> to vector<8x8x128xbf16>
    %13 = vector.shape_cast %12 : vector<8x8x128xbf16> to vector<64x128xbf16>
    %c1 = arith.constant 1 : index
    %c0_8 = arith.constant 0 : index
    %c0_9 = arith.constant 0 : index
    %14 = vector.load %arg3[%c1, %c0_8, %c0_9] : memref<9x128x128xbf16, #tpu.memory_space<vmem>>, vector<1x128x128xbf16>
    %15 = vector.shape_cast %14 : vector<1x128x128xbf16> to vector<128x128xbf16>
    %cst_10 = arith.constant dense<0.000000e+00> : vector<64x128xf32>
    %16 = tpu.matmul %13, %15, %cst_10 {dimension_numbers = #tpu.dot_dimension_numbers<[1], [0], [0], [1], [0, 0, 1, 1], [], []>} : vector<64x128xbf16>, vector<128x128xbf16>, vector<64x128xf32> -> vector<64x128xf32>
    %17 = arith.addf %8, %16 : vector<64x128xf32>
    %c0_i32_11 = arith.constant 0 : i32
    %18 = arith.addi %0, %c0_i32_11 : i32
    %c0_12 = arith.constant 0 : index
    %19 = arith.index_cast %18 : i32 to index
    %c1_13 = arith.constant 1 : index
    %c0_14 = arith.constant 0 : index
    %20 = vector.load %arg2[%c0_12, %19, %c1_13, %c0_14] : memref<1x9x9x512xbf16, #tpu.memory_space<vmem>>, vector<1x8x8x128xbf16>
    %21 = vector.shape_cast %20 : vector<1x8x8x128xbf16> to vector<8x8x128xbf16>
    %22 = vector.shape_cast %21 : vector<8x8x128xbf16> to vector<64x128xbf16>
    %c2 = arith.constant 2 : index
    %c0_15 = arith.constant 0 : index
    %c0_16 = arith.constant 0 : index
    %23 = vector.load %arg3[%c2, %c0_15, %c0_16] : memref<9x128x128xbf16, #tpu.memory_space<vmem>>, vector<1x128x128xbf16>
    %24 = vector.shape_cast %23 : vector<1x128x128xbf16> to vector<128x128xbf16>
    %cst_17 = arith.constant dense<0.000000e+00> : vector<64x128xf32>
    %25 = tpu.matmul %22, %24, %cst_17 {dimension_numbers = #tpu.dot_dimension_numbers<[1], [0], [0], [1], [0, 0, 1, 1], [], []>} : vector<64x128xbf16>, vector<128x128xbf16>, vector<64x128xf32> -> vector<64x128xf32>
    %26 = arith.addf %17, %25 : vector<64x128xf32>
    %c0_i32_18 = arith.constant 0 : i32
    %27 = arith.addi %0, %c0_i32_18 : i32
    %c0_19 = arith.constant 0 : index
    %28 = arith.index_cast %27 : i32 to index
    %c0_20 = arith.constant 0 : index
    %c256 = arith.constant 256 : index
    %29 = vector.load %arg2[%c0_19, %28, %c0_20, %c256] : memref<1x9x9x512xbf16, #tpu.memory_space<vmem>>, vector<1x8x8x128xbf16>
    %30 = vector.shape_cast %29 : vector<1x8x8x128xbf16> to vector<8x8x128xbf16>
    %31 = vector.shape_cast %30 : vector<8x8x128xbf16> to vector<64x128xbf16>
    %c3 = arith.constant 3 : index
    %c0_21 = arith.constant 0 : index
    %c0_22 = arith.constant 0 : index
    %32 = vector.load %arg3[%c3, %c0_21, %c0_22] : memref<9x128x128xbf16, #tpu.memory_space<vmem>>, vector<1x128x128xbf16>
    %33 = vector.shape_cast %32 : vector<1x128x128xbf16> to vector<128x128xbf16>
    %cst_23 = arith.constant dense<0.000000e+00> : vector<64x128xf32>
    %34 = tpu.matmul %31, %33, %cst_23 {dimension_numbers = #tpu.dot_dimension_numbers<[1], [0], [0], [1], [0, 0, 1, 1], [], []>} : vector<64x128xbf16>, vector<128x128xbf16>, vector<64x128xf32> -> vector<64x128xf32>
    %35 = arith.addf %26, %34 : vector<64x128xf32>
    %c0_i32_24 = arith.constant 0 : i32
    %36 = arith.addi %0, %c0_i32_24 : i32
    %c0_25 = arith.constant 0 : index
    %37 = arith.index_cast %36 : i32 to index
    %c0_26 = arith.constant 0 : index
    %c384 = arith.constant 384 : index
    %38 = vector.load %arg2[%c0_25, %37, %c0_26, %c384] : memref<1x9x9x512xbf16, #tpu.memory_space<vmem>>, vector<1x8x8x128xbf16>
    %39 = vector.shape_cast %38 : vector<1x8x8x128xbf16> to vector<8x8x128xbf16>
    %40 = vector.shape_cast %39 : vector<8x8x128xbf16> to vector<64x128xbf16>
    %c4 = arith.constant 4 : index
    %c0_27 = arith.constant 0 : index
    %c0_28 = arith.constant 0 : index
    %41 = vector.load %arg3[%c4, %c0_27, %c0_28] : memref<9x128x128xbf16, #tpu.memory_space<vmem>>, vector<1x128x128xbf16>
    %42 = vector.shape_cast %41 : vector<1x128x128xbf16> to vector<128x128xbf16>
    %cst_29 = arith.constant dense<0.000000e+00> : vector<64x128xf32>
    %43 = tpu.matmul %40, %42, %cst_29 {dimension_numbers = #tpu.dot_dimension_numbers<[1], [0], [0], [1], [0, 0, 1, 1], [], []>} : vector<64x128xbf16>, vector<128x128xbf16>, vector<64x128xf32> -> vector<64x128xf32>
    %44 = arith.addf %35, %43 : vector<64x128xf32>
    %c0_i32_30 = arith.constant 0 : i32
    %45 = arith.addi %0, %c0_i32_30 : i32
    %c0_31 = arith.constant 0 : index
    %46 = arith.index_cast %45 : i32 to index
    %c1_32 = arith.constant 1 : index
    %c256_33 = arith.constant 256 : index
    %47 = vector.load %arg2[%c0_31, %46, %c1_32, %c256_33] : memref<1x9x9x512xbf16, #tpu.memory_space<vmem>>, vector<1x8x8x128xbf16>
    %48 = vector.shape_cast %47 : vector<1x8x8x128xbf16> to vector<8x8x128xbf16>
    %49 = vector.shape_cast %48 : vector<8x8x128xbf16> to vector<64x128xbf16>
    %c5 = arith.constant 5 : index
    %c0_34 = arith.constant 0 : index
    %c0_35 = arith.constant 0 : index
    %50 = vector.load %arg3[%c5, %c0_34, %c0_35] : memref<9x128x128xbf16, #tpu.memory_space<vmem>>, vector<1x128x128xbf16>
    %51 = vector.shape_cast %50 : vector<1x128x128xbf16> to vector<128x128xbf16>
    %cst_36 = arith.constant dense<0.000000e+00> : vector<64x128xf32>
    %52 = tpu.matmul %49, %51, %cst_36 {dimension_numbers = #tpu.dot_dimension_numbers<[1], [0], [0], [1], [0, 0, 1, 1], [], []>} : vector<64x128xbf16>, vector<128x128xbf16>, vector<64x128xf32> -> vector<64x128xf32>
    %53 = arith.addf %44, %52 : vector<64x128xf32>
    %c1_i32 = arith.constant 1 : i32
    %54 = arith.addi %0, %c1_i32 : i32
    %c0_37 = arith.constant 0 : index
    %55 = arith.index_cast %54 : i32 to index
    %c0_38 = arith.constant 0 : index
    %c0_39 = arith.constant 0 : index
    %56 = vector.load %arg2[%c0_37, %55, %c0_38, %c0_39] : memref<1x9x9x512xbf16, #tpu.memory_space<vmem>>, vector<1x8x8x128xbf16>
    %57 = vector.shape_cast %56 : vector<1x8x8x128xbf16> to vector<8x8x128xbf16>
    %58 = vector.shape_cast %57 : vector<8x8x128xbf16> to vector<64x128xbf16>
    %c6 = arith.constant 6 : index
    %c0_40 = arith.constant 0 : index
    %c0_41 = arith.constant 0 : index
    %59 = vector.load %arg3[%c6, %c0_40, %c0_41] : memref<9x128x128xbf16, #tpu.memory_space<vmem>>, vector<1x128x128xbf16>
    %60 = vector.shape_cast %59 : vector<1x128x128xbf16> to vector<128x128xbf16>
    %cst_42 = arith.constant dense<0.000000e+00> : vector<64x128xf32>
    %61 = tpu.matmul %58, %60, %cst_42 {dimension_numbers = #tpu.dot_dimension_numbers<[1], [0], [0], [1], [0, 0, 1, 1], [], []>} : vector<64x128xbf16>, vector<128x128xbf16>, vector<64x128xf32> -> vector<64x128xf32>
    %62 = arith.addf %53, %61 : vector<64x128xf32>
    %c1_i32_43 = arith.constant 1 : i32
    %63 = arith.addi %0, %c1_i32_43 : i32
    %c0_44 = arith.constant 0 : index
    %64 = arith.index_cast %63 : i32 to index
    %c0_45 = arith.constant 0 : index
    %c128_46 = arith.constant 128 : index
    %65 = vector.load %arg2[%c0_44, %64, %c0_45, %c128_46] : memref<1x9x9x512xbf16, #tpu.memory_space<vmem>>, vector<1x8x8x128xbf16>
    %66 = vector.shape_cast %65 : vector<1x8x8x128xbf16> to vector<8x8x128xbf16>
    %67 = vector.shape_cast %66 : vector<8x8x128xbf16> to vector<64x128xbf16>
    %c7 = arith.constant 7 : index
    %c0_47 = arith.constant 0 : index
    %c0_48 = arith.constant 0 : index
    %68 = vector.load %arg3[%c7, %c0_47, %c0_48] : memref<9x128x128xbf16, #tpu.memory_space<vmem>>, vector<1x128x128xbf16>
    %69 = vector.shape_cast %68 : vector<1x128x128xbf16> to vector<128x128xbf16>
    %cst_49 = arith.constant dense<0.000000e+00> : vector<64x128xf32>
    %70 = tpu.matmul %67, %69, %cst_49 {dimension_numbers = #tpu.dot_dimension_numbers<[1], [0], [0], [1], [0, 0, 1, 1], [], []>} : vector<64x128xbf16>, vector<128x128xbf16>, vector<64x128xf32> -> vector<64x128xf32>
    %71 = arith.addf %62, %70 : vector<64x128xf32>
    %c1_i32_50 = arith.constant 1 : i32
    %72 = arith.addi %0, %c1_i32_50 : i32
    %c0_51 = arith.constant 0 : index
    %73 = arith.index_cast %72 : i32 to index
    %c1_52 = arith.constant 1 : index
    %c0_53 = arith.constant 0 : index
    %74 = vector.load %arg2[%c0_51, %73, %c1_52, %c0_53] : memref<1x9x9x512xbf16, #tpu.memory_space<vmem>>, vector<1x8x8x128xbf16>
    %75 = vector.shape_cast %74 : vector<1x8x8x128xbf16> to vector<8x8x128xbf16>
    %76 = vector.shape_cast %75 : vector<8x8x128xbf16> to vector<64x128xbf16>
    %c8 = arith.constant 8 : index
    %c0_54 = arith.constant 0 : index
    %c0_55 = arith.constant 0 : index
    %77 = vector.load %arg3[%c8, %c0_54, %c0_55] : memref<9x128x128xbf16, #tpu.memory_space<vmem>>, vector<1x128x128xbf16>
    %78 = vector.shape_cast %77 : vector<1x128x128xbf16> to vector<128x128xbf16>
    %cst_56 = arith.constant dense<0.000000e+00> : vector<64x128xf32>
    %79 = tpu.matmul %76, %78, %cst_56 {dimension_numbers = #tpu.dot_dimension_numbers<[1], [0], [0], [1], [0, 0, 1, 1], [], []>} : vector<64x128xbf16>, vector<128x128xbf16>, vector<64x128xf32> -> vector<64x128xf32>
    %80 = arith.addf %71, %79 : vector<64x128xf32>
    %c0_57 = arith.constant 0 : index
    %c0_58 = arith.constant 0 : index
    %81 = vector.load %arg4[%c0_57, %c0_58] : memref<1x128xf32, #tpu.memory_space<vmem>>, vector<1x128xf32>
    %82 = vector.broadcast %81 : vector<1x128xf32> to vector<64x128xf32>
    %83 = arith.addf %80, %82 : vector<64x128xf32>
    %cst_59 = arith.constant 0.000000e+00 : f32
    %84 = vector.broadcast %cst_59 : f32 to vector<64x128xf32>
    %85 = arith.cmpf oge, %83, %84 : vector<64x128xf32>
    %cst_60 = arith.constant 1.000000e-01 : f32
    %86 = vector.broadcast %cst_60 : f32 to vector<64x128xf32>
    %87 = arith.mulf %86, %83 : vector<64x128xf32>
    %88 = arith.select %85, %83, %87 : vector<64x128xi1>, vector<64x128xf32>
    %89 = arith.truncf %88 : vector<64x128xf32> to vector<64x128xbf16>
    %c0_61 = arith.constant 0 : index
    %c0_62 = arith.constant 0 : index
    %90 = vector.load %arg5[%c0_61, %c0_62] : memref<64x128xbf16, #tpu.memory_space<vmem>>, vector<64x128xbf16>
    tpu.vector_store %arg5[%c0_61, %c0_62], %89 {strides = array<i32>} : memref<64x128xbf16, #tpu.memory_space<vmem>>, vector<64x128xbf16>,
    return
  }
  func.func @transform_0(%arg0: i32, %arg1: i32) -> (i32, i32, i32, i32) {
    %c0_i32 = arith.constant 0 : i32
    %c0_i32_0 = arith.constant 0 : i32
    %c0_i32_1 = arith.constant 0 : i32
    %c0_i32_2 = arith.constant 0 : i32
    return %arg0, %c0_i32, %c0_i32_0, %c0_i32_1 : i32, i32, i32, i32
  }
  func.func @transform_1(%arg0: i32, %arg1: i32) -> (i32, i32, i32) {
    %c0_i32 = arith.constant 0 : i32
    %c0_i32_0 = arith.constant 0 : i32
    %c0_i32_1 = arith.constant 0 : i32
    %c0_i32_2 = arith.constant 0 : i32
    return %c0_i32, %c0_i32_0, %c0_i32_1 : i32, i32, i32
  }
  func.func @transform_2(%arg0: i32, %arg1: i32) -> (i32, i32) {
    %c0_i32 = arith.constant 0 : i32
    %c0_i32_0 = arith.constant 0 : i32
    %c0_i32_1 = arith.constant 0 : i32
    return %c0_i32, %c0_i32_0 : i32, i32
  }
  func.func @transform_3(%arg0: i32, %arg1: i32) -> (i32, i32) {
    %c1_i32 = arith.constant 1 : i32
    %0 = arith.muli %arg0, %c1_i32 : i32
    %1 = arith.addi %0, %arg1 : i32
    %c0_i32 = arith.constant 0 : i32
    %c0_i32_0 = arith.constant 0 : i32
    return %1, %c0_i32 : i32, i32
  }
}

module attributes {stable_mosaic.version = 11 : i64} {
  func.func @_fused_conv_kernel(%arg0: i32, %arg1: i32, %arg2: memref<64x128xbf16, #tpu.memory_space<vmem>>, %arg3: memref<1x128x128xbf16, #tpu.memory_space<vmem>>, %arg4: memref<1x128xf32, #tpu.memory_space<vmem>>, %arg5: memref<64x128xbf16, #tpu.memory_space<vmem>>) attributes {dimension_semantics = [#tpu.dimension_semantics<parallel>, #tpu.dimension_semantics<parallel>], iteration_bounds = array<i64: 2, 1>, scalar_prefetch = 0 : i64, scratch_operands = 0 : i64, tpu.core_type = #tpu.core_type<tc>, window_params = [{transform_indices = @transform_0, window_bounds = array<i64: 64, 128>}, {pipeline_mode = #tpu.pipeline_mode<synchronous>, transform_indices = @transform_1, window_bounds = array<i64: 1, 128, 128>}, {pipeline_mode = #tpu.pipeline_mode<synchronous>, transform_indices = @transform_2, window_bounds = array<i64: 1, 128>}, {transform_indices = @transform_3, window_bounds = array<i64: 64, 128>}]} {
    %c0 = arith.constant 0 : index
    %c0_0 = arith.constant 0 : index
    %0 = vector.load %arg2[%c0, %c0_0] : memref<64x128xbf16, #tpu.memory_space<vmem>>, vector<64x128xbf16>
    %c0_1 = arith.constant 0 : index
    %c0_2 = arith.constant 0 : index
    %c0_3 = arith.constant 0 : index
    %1 = vector.load %arg3[%c0_1, %c0_2, %c0_3] : memref<1x128x128xbf16, #tpu.memory_space<vmem>>, vector<1x128x128xbf16>
    %2 = vector.shape_cast %1 : vector<1x128x128xbf16> to vector<128x128xbf16>
    %cst = arith.constant dense<0.000000e+00> : vector<64x128xf32>
    %3 = tpu.matmul %0, %2, %cst {dimension_numbers = #tpu.dot_dimension_numbers<[1], [0], [0], [1], [0, 0, 1, 1], [], []>} : vector<64x128xbf16>, vector<128x128xbf16>, vector<64x128xf32> -> vector<64x128xf32>
    %c0_4 = arith.constant 0 : index
    %c0_5 = arith.constant 0 : index
    %4 = vector.load %arg4[%c0_4, %c0_5] : memref<1x128xf32, #tpu.memory_space<vmem>>, vector<1x128xf32>
    %5 = vector.broadcast %4 : vector<1x128xf32> to vector<64x128xf32>
    %6 = arith.addf %3, %5 : vector<64x128xf32>
    %cst_6 = arith.constant 0.000000e+00 : f32
    %7 = vector.broadcast %cst_6 : f32 to vector<64x128xf32>
    %8 = arith.cmpf oge, %6, %7 : vector<64x128xf32>
    %cst_7 = arith.constant 1.000000e-01 : f32
    %9 = vector.broadcast %cst_7 : f32 to vector<64x128xf32>
    %10 = arith.mulf %9, %6 : vector<64x128xf32>
    %11 = arith.select %8, %6, %10 : vector<64x128xi1>, vector<64x128xf32>
    %12 = arith.truncf %11 : vector<64x128xf32> to vector<64x128xbf16>
    %c0_8 = arith.constant 0 : index
    %c0_9 = arith.constant 0 : index
    %13 = vector.load %arg5[%c0_8, %c0_9] : memref<64x128xbf16, #tpu.memory_space<vmem>>, vector<64x128xbf16>
    tpu.vector_store %arg5[%c0_8, %c0_9], %12 {strides = array<i32>} : memref<64x128xbf16, #tpu.memory_space<vmem>>, vector<64x128xbf16>,
    return
  }
  func.func @transform_0(%arg0: i32, %arg1: i32) -> (i32, i32) {
    %c1_i32 = arith.constant 1 : i32
    %0 = arith.muli %arg0, %c1_i32 : i32
    %1 = arith.addi %0, %arg1 : i32
    %c0_i32 = arith.constant 0 : i32
    %c0_i32_0 = arith.constant 0 : i32
    return %1, %c0_i32 : i32, i32
  }
  func.func @transform_1(%arg0: i32, %arg1: i32) -> (i32, i32, i32) {
    %c0_i32 = arith.constant 0 : i32
    %c0_i32_0 = arith.constant 0 : i32
    %c0_i32_1 = arith.constant 0 : i32
    %c0_i32_2 = arith.constant 0 : i32
    return %c0_i32, %c0_i32_0, %c0_i32_1 : i32, i32, i32
  }
  func.func @transform_2(%arg0: i32, %arg1: i32) -> (i32, i32) {
    %c0_i32 = arith.constant 0 : i32
    %c0_i32_0 = arith.constant 0 : i32
    %c0_i32_1 = arith.constant 0 : i32
    return %c0_i32, %c0_i32_0 : i32, i32
  }
  func.func @transform_3(%arg0: i32, %arg1: i32) -> (i32, i32) {
    %c1_i32 = arith.constant 1 : i32
    %0 = arith.muli %arg0, %c1_i32 : i32
    %1 = arith.addi %0, %arg1 : i32
    %c0_i32 = arith.constant 0 : i32
    %c0_i32_0 = arith.constant 0 : i32
    return %1, %c0_i32 : i32, i32
  }
}

module attributes {stable_mosaic.version = 11 : i64} {
  func.func @_fused_conv_kernel(%arg0: i32, %arg1: i32, %arg2: memref<64x128xbf16, #tpu.memory_space<vmem>>, %arg3: memref<1x128x128xbf16, #tpu.memory_space<vmem>>, %arg4: memref<1x128xf32, #tpu.memory_space<vmem>>, %arg5: memref<4x128xf32, #tpu.memory_space<vmem>>, %arg6: memref<64x128xf32, #tpu.memory_space<vmem>>) attributes {dimension_semantics = [#tpu.dimension_semantics<parallel>, #tpu.dimension_semantics<parallel>], iteration_bounds = array<i64: 2, 1>, scalar_prefetch = 0 : i64, scratch_operands = 0 : i64, tpu.core_type = #tpu.core_type<tc>, window_params = [{transform_indices = @transform_0, window_bounds = array<i64: 64, 128>}, {pipeline_mode = #tpu.pipeline_mode<synchronous>, transform_indices = @transform_1, window_bounds = array<i64: 1, 128, 128>}, {pipeline_mode = #tpu.pipeline_mode<synchronous>, transform_indices = @transform_2, window_bounds = array<i64: 1, 128>}, {pipeline_mode = #tpu.pipeline_mode<synchronous>, transform_indices = @transform_3, window_bounds = array<i64: 4, 128>}, {transform_indices = @transform_4, window_bounds = array<i64: 64, 128>}]} {
    %c8_i32 = arith.constant 8 : i32
    %0 = arith.muli %arg1, %c8_i32 : i32
    %c0 = arith.constant 0 : index
    %c0_0 = arith.constant 0 : index
    %1 = vector.load %arg2[%c0, %c0_0] : memref<64x128xbf16, #tpu.memory_space<vmem>>, vector<64x128xbf16>
    %c0_1 = arith.constant 0 : index
    %c0_2 = arith.constant 0 : index
    %c0_3 = arith.constant 0 : index
    %2 = vector.load %arg3[%c0_1, %c0_2, %c0_3] : memref<1x128x128xbf16, #tpu.memory_space<vmem>>, vector<1x128x128xbf16>
    %3 = vector.shape_cast %2 : vector<1x128x128xbf16> to vector<128x128xbf16>
    %cst = arith.constant dense<0.000000e+00> : vector<64x128xf32>
    %4 = tpu.matmul %1, %3, %cst {dimension_numbers = #tpu.dot_dimension_numbers<[1], [0], [0], [1], [0, 0, 1, 1], [], []>} : vector<64x128xbf16>, vector<128x128xbf16>, vector<64x128xf32> -> vector<64x128xf32>
    %c0_4 = arith.constant 0 : index
    %c0_5 = arith.constant 0 : index
    %5 = vector.load %arg4[%c0_4, %c0_5] : memref<1x128xf32, #tpu.memory_space<vmem>>, vector<1x128xf32>
    %6 = vector.broadcast %5 : vector<1x128xf32> to vector<64x128xf32>
    %7 = arith.addf %4, %6 : vector<64x128xf32>
    %c0_6 = arith.constant 0 : index
    %c0_7 = arith.constant 0 : index
    %8 = vector.load %arg5[%c0_6, %c0_7] : memref<4x128xf32, #tpu.memory_space<vmem>>, vector<1x128xf32>
    %c1 = arith.constant 1 : index
    %c0_8 = arith.constant 0 : index
    %9 = vector.load %arg5[%c1, %c0_8] : memref<4x128xf32, #tpu.memory_space<vmem>>, vector<1x128xf32>
    %c2 = arith.constant 2 : index
    %c0_9 = arith.constant 0 : index
    %10 = vector.load %arg5[%c2, %c0_9] : memref<4x128xf32, #tpu.memory_space<vmem>>, vector<1x128xf32>
    %c3 = arith.constant 3 : index
    %c0_10 = arith.constant 0 : index
    %11 = vector.load %arg5[%c3, %c0_10] : memref<4x128xf32, #tpu.memory_space<vmem>>, vector<1x128xf32>
    %12 = tpu.iota {dimensions = array<i32: 0>} : vector<8x8x128xi32>
    %13 = vector.shape_cast %12 : vector<8x8x128xi32> to vector<64x128xi32>
    %14 = vector.broadcast %0 : i32 to vector<64x128xi32>
    %15 = arith.addi %13, %14 : vector<64x128xi32>
    %16 = arith.sitofp %15 : vector<64x128xi32> to vector<64x128xf32>
    %17 = tpu.iota {dimensions = array<i32: 1>} : vector<8x8x128xi32>
    %18 = vector.shape_cast %17 : vector<8x8x128xi32> to vector<64x128xi32>
    %19 = arith.sitofp %18 : vector<64x128xi32> to vector<64x128xf32>
    %cst_11 = arith.constant 0.000000e+00 : f32
    %20 = vector.broadcast %cst_11 : f32 to vector<64x128xf32>
    %21 = arith.subf %20, %7 : vector<64x128xf32>
    %22 = math.exp %21 : vector<64x128xf32>
    %cst_12 = arith.constant 1.000000e+00 : f32
    %23 = vector.broadcast %cst_12 : f32 to vector<64x128xf32>
    %24 = arith.addf %23, %22 : vector<64x128xf32>
    %cst_13 = arith.constant 1.000000e+00 : f32
    %25 = vector.broadcast %cst_13 : f32 to vector<64x128xf32>
    %26 = arith.divf %25, %24 : vector<64x128xf32>
    %27 = math.exp %7 : vector<64x128xf32>
    %cst_14 = arith.constant 0.000000e+00 : f32
    %28 = vector.broadcast %cst_14 : f32 to vector<1x128xf32>
    %29 = arith.cmpf ogt, %11, %28 : vector<1x128xf32>
    %30 = vector.shape_cast %29 : vector<1x128xi1> to vector<1x128xi1>
    %31 = vector.broadcast %30 : vector<1x128xi1> to vector<64x128xi1>
    %32 = arith.select %31, %27, %26 : vector<64x128xi1>, vector<64x128xf32>
    %33 = vector.broadcast %8 : vector<1x128xf32> to vector<64x128xf32>
    %34 = arith.mulf %32, %33 : vector<64x128xf32>
    %35 = vector.broadcast %9 : vector<1x128xf32> to vector<64x128xf32>
    %36 = arith.mulf %35, %19 : vector<64x128xf32>
    %37 = vector.broadcast %10 : vector<1x128xf32> to vector<64x128xf32>
    %38 = arith.mulf %37, %16 : vector<64x128xf32>
    %39 = arith.addf %36, %38 : vector<64x128xf32>
    %cst_15 = arith.constant 2.000000e+00 : f32
    %40 = vector.broadcast %cst_15 : f32 to vector<64x128xf32>
    %41 = arith.mulf %39, %40 : vector<64x128xf32>
    %42 = arith.addf %34, %41 : vector<64x128xf32>
    %c0_16 = arith.constant 0 : index
    %c0_17 = arith.constant 0 : index
    %43 = vector.load %arg6[%c0_16, %c0_17] : memref<64x128xf32, #tpu.memory_space<vmem>>, vector<64x128xf32>
    tpu.vector_store %arg6[%c0_16, %c0_17], %42 {strides = array<i32>} : memref<64x128xf32, #tpu.memory_space<vmem>>, vector<64x128xf32>,
    return
  }
  func.func @transform_0(%arg0: i32, %arg1: i32) -> (i32, i32) {
    %c1_i32 = arith.constant 1 : i32
    %0 = arith.muli %arg0, %c1_i32 : i32
    %1 = arith.addi %0, %arg1 : i32
    %c0_i32 = arith.constant 0 : i32
    %c0_i32_0 = arith.constant 0 : i32
    return %1, %c0_i32 : i32, i32
  }
  func.func @transform_1(%arg0: i32, %arg1: i32) -> (i32, i32, i32) {
    %c0_i32 = arith.constant 0 : i32
    %c0_i32_0 = arith.constant 0 : i32
    %c0_i32_1 = arith.constant 0 : i32
    %c0_i32_2 = arith.constant 0 : i32
    return %c0_i32, %c0_i32_0, %c0_i32_1 : i32, i32, i32
  }
  func.func @transform_2(%arg0: i32, %arg1: i32) -> (i32, i32) {
    %c0_i32 = arith.constant 0 : i32
    %c0_i32_0 = arith.constant 0 : i32
    %c0_i32_1 = arith.constant 0 : i32
    return %c0_i32, %c0_i32_0 : i32, i32
  }
  func.func @transform_3(%arg0: i32, %arg1: i32) -> (i32, i32) {
    %c0_i32 = arith.constant 0 : i32
    %c0_i32_0 = arith.constant 0 : i32
    %c0_i32_1 = arith.constant 0 : i32
    return %c0_i32, %c0_i32_0 : i32, i32
  }
  func.func @transform_4(%arg0: i32, %arg1: i32) -> (i32, i32) {
    %c1_i32 = arith.constant 1 : i32
    %0 = arith.muli %arg0, %c1_i32 : i32
    %1 = arith.addi %0, %arg1 : i32
    %c0_i32 = arith.constant 0 : i32
    %c0_i32_0 = arith.constant 0 : i32
    return %1, %c0_i32 : i32, i32
  }
}

module attributes {stable_mosaic.version = 11 : i64} {
  func.func @_fused_conv_kernel(%arg0: i32, %arg1: i32, %arg2: memref<128x256xbf16, #tpu.memory_space<vmem>>, %arg3: memref<1x256x128xbf16, #tpu.memory_space<vmem>>, %arg4: memref<1x128xf32, #tpu.memory_space<vmem>>, %arg5: memref<4x128xf32, #tpu.memory_space<vmem>>, %arg6: memref<128x128xf32, #tpu.memory_space<vmem>>) attributes {dimension_semantics = [#tpu.dimension_semantics<parallel>, #tpu.dimension_semantics<parallel>], iteration_bounds = array<i64: 2, 2>, scalar_prefetch = 0 : i64, scratch_operands = 0 : i64, tpu.core_type = #tpu.core_type<tc>, window_params = [{transform_indices = @transform_0, window_bounds = array<i64: 128, 256>}, {pipeline_mode = #tpu.pipeline_mode<synchronous>, transform_indices = @transform_1, window_bounds = array<i64: 1, 256, 128>}, {pipeline_mode = #tpu.pipeline_mode<synchronous>, transform_indices = @transform_2, window_bounds = array<i64: 1, 128>}, {pipeline_mode = #tpu.pipeline_mode<synchronous>, transform_indices = @transform_3, window_bounds = array<i64: 4, 128>}, {transform_indices = @transform_4, window_bounds = array<i64: 128, 128>}]} {
    %c8_i32 = arith.constant 8 : i32
    %0 = arith.muli %arg1, %c8_i32 : i32
    %c0 = arith.constant 0 : index
    %c0_0 = arith.constant 0 : index
    %1 = vector.load %arg2[%c0, %c0_0] : memref<128x256xbf16, #tpu.memory_space<vmem>>, vector<128x256xbf16>
    %c0_1 = arith.constant 0 : index
    %c0_2 = arith.constant 0 : index
    %c0_3 = arith.constant 0 : index
    %2 = vector.load %arg3[%c0_1, %c0_2, %c0_3] : memref<1x256x128xbf16, #tpu.memory_space<vmem>>, vector<1x256x128xbf16>
    %3 = vector.shape_cast %2 : vector<1x256x128xbf16> to vector<256x128xbf16>
    %cst = arith.constant dense<0.000000e+00> : vector<128x128xf32>
    %4 = tpu.matmul %1, %3, %cst {dimension_numbers = #tpu.dot_dimension_numbers<[1], [0], [0], [1], [0, 0, 1, 1], [], []>} : vector<128x256xbf16>, vector<256x128xbf16>, vector<128x128xf32> -> vector<128x128xf32>
    %c0_4 = arith.constant 0 : index
    %c0_5 = arith.constant 0 : index
    %5 = vector.load %arg4[%c0_4, %c0_5] : memref<1x128xf32, #tpu.memory_space<vmem>>, vector<1x128xf32>
    %6 = vector.broadcast %5 : vector<1x128xf32> to vector<128x128xf32>
    %7 = arith.addf %4, %6 : vector<128x128xf32>
    %c0_6 = arith.constant 0 : index
    %c0_7 = arith.constant 0 : index
    %8 = vector.load %arg5[%c0_6, %c0_7] : memref<4x128xf32, #tpu.memory_space<vmem>>, vector<1x128xf32>
    %c1 = arith.constant 1 : index
    %c0_8 = arith.constant 0 : index
    %9 = vector.load %arg5[%c1, %c0_8] : memref<4x128xf32, #tpu.memory_space<vmem>>, vector<1x128xf32>
    %c2 = arith.constant 2 : index
    %c0_9 = arith.constant 0 : index
    %10 = vector.load %arg5[%c2, %c0_9] : memref<4x128xf32, #tpu.memory_space<vmem>>, vector<1x128xf32>
    %c3 = arith.constant 3 : index
    %c0_10 = arith.constant 0 : index
    %11 = vector.load %arg5[%c3, %c0_10] : memref<4x128xf32, #tpu.memory_space<vmem>>, vector<1x128xf32>
    %12 = tpu.iota {dimensions = array<i32: 0>} : vector<8x16x128xi32>
    %13 = vector.shape_cast %12 : vector<8x16x128xi32> to vector<128x128xi32>
    %14 = vector.broadcast %0 : i32 to vector<128x128xi32>
    %15 = arith.addi %13, %14 : vector<128x128xi32>
    %16 = arith.sitofp %15 : vector<128x128xi32> to vector<128x128xf32>
    %17 = tpu.iota {dimensions = array<i32: 1>} : vector<8x16x128xi32>
    %18 = vector.shape_cast %17 : vector<8x16x128xi32> to vector<128x128xi32>
    %19 = arith.sitofp %18 : vector<128x128xi32> to vector<128x128xf32>
    %cst_11 = arith.constant 0.000000e+00 : f32
    %20 = vector.broadcast %cst_11 : f32 to vector<128x128xf32>
    %21 = arith.subf %20, %7 : vector<128x128xf32>
    %22 = math.exp %21 : vector<128x128xf32>
    %cst_12 = arith.constant 1.000000e+00 : f32
    %23 = vector.broadcast %cst_12 : f32 to vector<128x128xf32>
    %24 = arith.addf %23, %22 : vector<128x128xf32>
    %cst_13 = arith.constant 1.000000e+00 : f32
    %25 = vector.broadcast %cst_13 : f32 to vector<128x128xf32>
    %26 = arith.divf %25, %24 : vector<128x128xf32>
    %27 = math.exp %7 : vector<128x128xf32>
    %cst_14 = arith.constant 0.000000e+00 : f32
    %28 = vector.broadcast %cst_14 : f32 to vector<1x128xf32>
    %29 = arith.cmpf ogt, %11, %28 : vector<1x128xf32>
    %30 = vector.shape_cast %29 : vector<1x128xi1> to vector<1x128xi1>
    %31 = vector.broadcast %30 : vector<1x128xi1> to vector<128x128xi1>
    %32 = arith.select %31, %27, %26 : vector<128x128xi1>, vector<128x128xf32>
    %33 = vector.broadcast %8 : vector<1x128xf32> to vector<128x128xf32>
    %34 = arith.mulf %32, %33 : vector<128x128xf32>
    %35 = vector.broadcast %9 : vector<1x128xf32> to vector<128x128xf32>
    %36 = arith.mulf %35, %19 : vector<128x128xf32>
    %37 = vector.broadcast %10 : vector<1x128xf32> to vector<128x128xf32>
    %38 = arith.mulf %37, %16 : vector<128x128xf32>
    %39 = arith.addf %36, %38 : vector<128x128xf32>
    %cst_15 = arith.constant 1.000000e+00 : f32
    %40 = vector.broadcast %cst_15 : f32 to vector<128x128xf32>
    %41 = arith.mulf %39, %40 : vector<128x128xf32>
    %42 = arith.addf %34, %41 : vector<128x128xf32>
    %c0_16 = arith.constant 0 : index
    %c0_17 = arith.constant 0 : index
    %43 = vector.load %arg6[%c0_16, %c0_17] : memref<128x128xf32, #tpu.memory_space<vmem>>, vector<128x128xf32>
    tpu.vector_store %arg6[%c0_16, %c0_17], %42 {strides = array<i32>} : memref<128x128xf32, #tpu.memory_space<vmem>>, vector<128x128xf32>,
    return
  }
  func.func @transform_0(%arg0: i32, %arg1: i32) -> (i32, i32) {
    %c2_i32 = arith.constant 2 : i32
    %0 = arith.muli %arg0, %c2_i32 : i32
    %1 = arith.addi %0, %arg1 : i32
    %c0_i32 = arith.constant 0 : i32
    %c0_i32_0 = arith.constant 0 : i32
    return %1, %c0_i32 : i32, i32
  }
  func.func @transform_1(%arg0: i32, %arg1: i32) -> (i32, i32, i32) {
    %c0_i32 = arith.constant 0 : i32
    %c0_i32_0 = arith.constant 0 : i32
    %c0_i32_1 = arith.constant 0 : i32
    %c0_i32_2 = arith.constant 0 : i32
    return %c0_i32, %c0_i32_0, %c0_i32_1 : i32, i32, i32
  }
  func.func @transform_2(%arg0: i32, %arg1: i32) -> (i32, i32) {
    %c0_i32 = arith.constant 0 : i32
    %c0_i32_0 = arith.constant 0 : i32
    %c0_i32_1 = arith.constant 0 : i32
    return %c0_i32, %c0_i32_0 : i32, i32
  }
  func.func @transform_3(%arg0: i32, %arg1: i32) -> (i32, i32) {
    %c0_i32 = arith.constant 0 : i32
    %c0_i32_0 = arith.constant 0 : i32
    %c0_i32_1 = arith.constant 0 : i32
    return %c0_i32, %c0_i32_0 : i32, i32
  }
  func.func @transform_4(%arg0: i32, %arg1: i32) -> (i32, i32) {
    %c2_i32 = arith.constant 2 : i32
    %0 = arith.muli %arg0, %c2_i32 : i32
    %1 = arith.addi %0, %arg1 : i32
    %c0_i32 = arith.constant 0 : i32
    %c0_i32_0 = arith.constant 0 : i32
    return %1, %c0_i32 : i32, i32
  }
}

</mosaic_0001>

<llo_original>
// kernel: _lambda_.10
$region0: #{_lambda_.10}
  #allocation0 [shape = 'u32[]', space=smem, size = 0x4, offset = 0x4, fixed_abs, tag = 'smem constant byte address 0x4 - core index']
  #allocation1 [shape = 'u32[144,128]{1,0:T(1,128)}', space=vmem, size = 0x12000, scoped, tag = 'internal scratch']
  %s0 = inlined_call_operand.vmem [shape: bf16[128,128], index: 0, kind: input, shape index: {}]
  %s1 = inlined_call_operand.vmem [shape: bf16[1,128,128], index: 1, kind: input, shape index: {}]
  %s2 = inlined_call_operand.vmem [shape: f32[1,128], index: 2, kind: input, shape index: {}]
  %s3 = inlined_call_operand.vmem [shape: bf16[128,128], index: 3, kind: output, shape index: {}]
  %s4 = sld [smem:[#allocation0]]
  $region45: #{_lambda_.10} parent=0
    _
  %s6 = ssub.s32 1, %s4
  %s7 = scalar_select 0, %s6, %s4
  loop: start=0, step=1, limit=4
  $region2: #{_lambda_.10} parent=0 // loop_pre_header
    _
  $region3: #{_lambda_.10} parent=0 // loop_header
    %s9 = sphi 0, %s13
    %p10 = scmp.ge.s32.totalorder %s9, 4
    %s16 = sphi 0, %s28
    %s17 = sphi 0, %s24
    %s18 = sphi 0, %s16
    %s19 = sphi 0, %s17
    %s20 = sphi 0, %s18
    %s21 = sphi 0, %s19
    %s33 = sphi 0, %s35
    %s36 = sphi 0, %s33
    %s37 = sphi 0, %s36
    %s53 = sphi 0, %s37
    %s57 = sphi 0, %s57
    %s59 = sphi 0, %s57
    %s60 = sphi 0, %s59
    %s74 = sphi 0, %s60
    %s78 = sphi 0, %s78
    %s80 = sphi 0, %s78
    %s81 = sphi 0, %s80
    %s95 = sphi 0, %s81
    %s103 = sphi 0, %s105
    %s106 = sphi 0, %s103
    %s107 = sphi 0, %s106
    %s123 = sphi 0, %s107
  $region4: #{_lambda_.10} parent=0 // loop_header_branch
    %12 = sbr.rel (%p10) target = $region8
  $region5: #{_lambda_.10} parent=0 // loop_body
    %s14 = ssub.s32 %s9, 1
    %s15 = ssub.s32 %s9, 2
    %s22 = sadd.s32 1, %s17
    %p23 = scmp.ge.s32.totalorder %s22, 1
    %s24 = scalar_select %p23, 0, %s22
    %s25 = sadd.s32 1, %s16
    %s26 = scalar_select %p23, %s25, %s16
    %p27 = scmp.ge.s32.totalorder %s26, 2
    %s28 = scalar_select %p27, 0, %s26
    %s29 = sadd.s32 %s16, %s17
    %s30 = sadd.s32 %s28, %s24
    %s31 = ssub.s32 %s29, %s30
    %p32 = scmp.eq.s32.totalorder %s31, 0
    %s34 = sadd.s32 %s33, 1
    %s35 = scalar_select %p32, %s33, %s34
    %p38 = pneg %p32
    %p39 = scmp.eq.s32.totalorder %s9, 1
    %p40 = por %p38, %p39
    %p41 = scmp.ne.s32.totalorder %s33, %s36
    %p42 = scmp.eq.s32.totalorder %s9, 0
    %p43 = por %p41, %p42
    %p44 = scmp.ne.s32.totalorder %s33, %s36
    %p45 = scmp.eq.s32.totalorder %s14, 1
    %p46 = por %p44, %p45
    %p47 = scmp.ne.s32.totalorder %s36, %s37
    %p48 = scmp.eq.s32.totalorder %s14, 0
    %p49 = por %p47, %p48
    %p50 = scmp.ne.s32.totalorder %s36, %s37
    %p51 = scmp.eq.s32.totalorder %s15, 1
    %p52 = por %p50, %p51
    %p54 = scmp.ne.s32.totalorder %s37, %s53
    %p55 = scmp.eq.s32.totalorder %s15, 0
    %p56 = por %p54, %p55
    %s58 = sadd.s32 %s57, 1
    %p61 = scmp.eq.s32.totalorder %s9, 1
    %p62 = scmp.ne.s32.totalorder %s57, %s59
    %p63 = scmp.eq.s32.totalorder %s9, 0
    %p64 = por %p62, %p63
    %p65 = scmp.ne.s32.totalorder %s57, %s59
    %p66 = scmp.eq.s32.totalorder %s14, 1
    %p67 = por %p65, %p66
    %p68 = scmp.ne.s32.totalorder %s59, %s60
    %p69 = scmp.eq.s32.totalorder %s14, 0
    %p70 = por %p68, %p69
    %p71 = scmp.ne.s32.totalorder %s59, %s60
    %p72 = scmp.eq.s32.totalorder %s15, 1
    %p73 = por %p71, %p72
    %p75 = scmp.ne.s32.totalorder %s60, %s74
    %p76 = scmp.eq.s32.totalorder %s15, 0
    %p77 = por %p75, %p76
    %s79 = sadd.s32 %s78, 1
    %p82 = scmp.eq.s32.totalorder %s9, 1
    %p83 = scmp.ne.s32.totalorder %s78, %s80
    %p84 = scmp.eq.s32.totalorder %s9, 0
    %p85 = por %p83, %p84
    %p86 = scmp.ne.s32.totalorder %s78, %s80
    %p87 = scmp.eq.s32.totalorder %s14, 1
    %p88 = por %p86, %p87
    %p89 = scmp.ne.s32.totalorder %s80, %s81
    %p90 = scmp.eq.s32.totalorder %s14, 0
    %p91 = por %p89, %p90
    %p92 = scmp.ne.s32.totalorder %s80, %s81
    %p93 = scmp.eq.s32.totalorder %s15, 1
    %p94 = por %p92, %p93
    %p96 = scmp.ne.s32.totalorder %s81, %s95
    %p97 = scmp.eq.s32.totalorder %s15, 0
    %p98 = por %p96, %p97
    %s99 = sadd.s32 %s16, %s17
    %s100 = sadd.s32 %s28, %s24
    %s101 = ssub.s32 %s99, %s100
    %p102 = scmp.eq.s32.totalorder %s101, 0
    %s104 = sadd.s32 %s103, 1
    %s105 = scalar_select %p102, %s103, %s104
    %p108 = pneg %p102
    %p109 = scmp.eq.s32.totalorder %s9, 1
    %p110 = por %p108, %p109
    %p111 = scmp.ne.s32.totalorder %s103, %s106
    %p112 = scmp.eq.s32.totalorder %s9, 0
    %p113 = por %p111, %p112
    %p114 = scmp.ne.s32.totalorder %s103, %s106
    %p115 = scmp.eq.s32.totalorder %s14, 1
    %p116 = por %p114, %p115
    %p117 = scmp.ne.s32.totalorder %s106, %s107
    %p118 = scmp.eq.s32.totalorder %s14, 0
    %p119 = por %p117, %p118
    %p120 = scmp.ne.s32.totalorder %s106, %s107
    %p121 = scmp.eq.s32.totalorder %s15, 1
    %p122 = por %p120, %p121
    %p124 = scmp.ne.s32.totalorder %s107, %s123
    %p125 = scmp.eq.s32.totalorder %s15, 0
    %p126 = por %p124, %p125
    %p127 = scmp.le.s32.totalorder 1, %s9
    %p128 = scmp.lt.s32.totalorder %s9, 3
    %p129 = pnand %p127, %p128
    %p130 = pneg %p129
    // Predicated region
    $region9: #{_lambda_.10} parent=5 // pred_check
      _
    $region10: #{_lambda_.10} parent=5 // pred_check_branch
      %132 = sbr.rel (%p129) target = $region12
    $region11: #{_lambda_.10} parent=5 // pred_region
      %s133 = ssub.s32 %s9, 1
      // Predicated region
      $region13: #{_lambda_.10} parent=11 // pred_check
        %p134 = pneg %p70
      $region14: #{_lambda_.10} parent=11 // pred_check_branch
        %136 = sbr.rel (%p134) target = $region16
      $region15: #{_lambda_.10} parent=11 // pred_region
        _
      $region16: #{_lambda_.10} parent=11 // pred_fallthru
        _
      // Predicated region
      $region17: #{_lambda_.10} parent=11 // pred_check
        %p137 = pneg %p91
      $region18: #{_lambda_.10} parent=11 // pred_check_branch
        %139 = sbr.rel (%p137) target = $region20
      $region19: #{_lambda_.10} parent=11 // pred_region
        _
      $region20: #{_lambda_.10} parent=11 // pred_fallthru
        _
    $region12: #{_lambda_.10} parent=5 // pred_fallthru
      _
    %p140 = scmp.lt.s32.totalorder %s9, 2
    // Predicated region
    $region21: #{_lambda_.10} parent=5 // pred_check
      %p141 = pneg %p140
    $region22: #{_lambda_.10} parent=5 // pred_check_branch
      %143 = sbr.rel (%p141) target = $region24
    $region23: #{_lambda_.10} parent=5 // pred_region
      // Predicated region
      $region25: #{_lambda_.10} parent=23 // pred_check
        %p144 = pneg %p43
      $region26: #{_lambda_.10} parent=23 // pred_check_branch
        %146 = sbr.rel (%p144) target = $region28
      $region27: #{_lambda_.10} parent=23 // pred_region
        %s147 = sadd.s32 %s16, %s17
        %s148 = smul.u32 8, %s147
        %p149 = scmp.lt.s32.totalorder %s148, 15
        %s150 = scalar_select %p149, %s148, 15
        %s151 = smul.addr %s150, 4
        %s152 = scalar_lea.vmem %s0, %s151
        %s153 = sadd.s32 %s16, %s17
        %s154 = smul.u32 8, %s153
      $region28: #{_lambda_.10} parent=23 // pred_fallthru
        _
    $region24: #{_lambda_.10} parent=5 // pred_fallthru
      _
    %p155 = scmp.le.s32.totalorder 1, %s9
    %p156 = scmp.lt.s32.totalorder %s9, 3
    %p157 = pnand %p155, %p156
    %p158 = pneg %p157
    // Predicated region
    $region29: #{_lambda_.10} parent=5 // pred_check
      _
    $region30: #{_lambda_.10} parent=5 // pred_check_branch
      %160 = sbr.rel (%p157) target = $region32
    $region31: #{_lambda_.10} parent=5 // pred_region
      %s161 = ssub.s32 %s9, 1
      %s162 = sadd.s32 %s18, %s19
      %s163 = smul.u32 8, %s162
      %p164 = scmp.lt.s32.totalorder %s163, 15
      %s165 = scalar_select %p164, %s163, 15
      %s166 = smul.addr %s165, 4
      %s167 = scalar_lea.vmem %s0, %s166
      %p168 = pneg %p49
      %p169 = pneg %p46
      %p170 = pneg %p70
      %p171 = pneg %p67
      %p172 = pneg %p91
      %p173 = pneg %p88
      %p174 = pneg %p119
      %p175 = pneg %p116
      %s176 = sadd.s32 %s18, %s19
      %s177 = smul.u32 8, %s176
      %p178 = scmp.lt.s32.totalorder %s177, 15
      %s179 = scalar_select %p178, %s177, 15
      %s180 = smul.addr %s179, 4
      %s181 = scalar_lea.vmem %s3, %s180
      %s182 = sadd.s32 %s18, %s19
      %s183 = smul.u32 8, %s182
      %p184 = scmp.lt.s32.totalorder %s183, 15
      %s185 = scalar_select %p184, %s183, 15
      %s186 = smul.addr %s185, 4
      %s187 = scalar_lea.vmem %s0, %s186
      %s188 = sadd.s32 %s18, %s19
      %s189 = smul.u32 8, %s188
      %s190 = sadd.s32 %s18, %s19
      %s191 = smul.u32 8, %s190
      %p192 = scmp.lt.s32.totalorder %s191, 15
      %s193 = scalar_select %p192, %s191, 15
      %s194 = smul.addr %s193, 4
      %s195 = scalar_lea.vmem %s3, %s194
      %s196 = sadd.s32 %s18, %s19
      %s197 = smul.u32 8, %s196
      %v199 = vld [vmem:[%s187] sm:$0xf]
      %v200 = vld [vmem:[%s187 + $0x4] sm:$0xf]
      %v201 = vld [vmem:[%s187 + $0x8] sm:$0xf]
      %v202 = vld [vmem:[%s187 + $0xc] sm:$0xf]
      %v203 = vld [vmem:[%s187 + $0x10] sm:$0xf]
      %v204 = vld [vmem:[%s187 + $0x14] sm:$0xf]
      %v205 = vld [vmem:[%s187 + $0x18] sm:$0xf]
      %v206 = vld [vmem:[%s187 + $0x1c] sm:$0xf]
      %v207 = vld [vmem:[%s1] sm:$0xf]
      %v208 = vld [vmem:[%s1 + $0x4] sm:$0xf]
      %v209 = vld [vmem:[%s1 + $0x8] sm:$0xf]
      %v210 = vld [vmem:[%s1 + $0xc] sm:$0xf]
      %v211 = vld [vmem:[%s1 + $0x10] sm:$0xf]
      %v212 = vld [vmem:[%s1 + $0x14] sm:$0xf]
      %v213 = vld [vmem:[%s1 + $0x18] sm:$0xf]
      %v214 = vld [vmem:[%s1 + $0x1c] sm:$0xf]
      %v215 = vld [vmem:[%s1 + $0x20] sm:$0xf]
      %v216 = vld [vmem:[%s1 + $0x24] sm:$0xf]
      %v217 = vld [vmem:[%s1 + $0x28] sm:$0xf]
      %v218 = vld [vmem:[%s1 + $0x2c] sm:$0xf]
      %v219 = vld [vmem:[%s1 + $0x30] sm:$0xf]
      %v220 = vld [vmem:[%s1 + $0x34] sm:$0xf]
      %v221 = vld [vmem:[%s1 + $0x38] sm:$0xf]
      %v222 = vld [vmem:[%s1 + $0x3c] sm:$0xf]
      %v223 = vld [vmem:[%s2] sm:$0x1]
      %v225 = vlaneseq
      %v226 = vshrl.u32 %v225, 7
      %v227 = vsub.s32 0, %v226
      %v228 = vrot.slane %v223, %v227
      %v238 = vunpack.c.l.b16 %v199
      %v239 = vunpack.c.l.b16 %v200
      %v240 = vunpack.c.l.b16 %v201
      %v241 = vunpack.c.l.b16 %v202
      %v242 = vunpack.c.l.b16 %v203
      %v243 = vunpack.c.l.b16 %v204
      %v244 = vunpack.c.l.b16 %v205
      %v245 = vunpack.c.l.b16 %v206
      %v246 = vpack.c.b16 %v239, %v238
      %v247 = vpack.c.b16 %v241, %v240
      %v248 = vpack.c.b16 %v243, %v242
      %v249 = vpack.c.b16 %v245, %v244
      %v270 = vunpack.c.l.b16 %v207
      %v271 = vunpack.c.l.b16 %v208
      %v272 = vunpack.c.l.b16 %v209
      %v273 = vunpack.c.l.b16 %v210
      %v274 = vunpack.c.l.b16 %v211
      %v275 = vunpack.c.l.b16 %v212
      %v276 = vunpack.c.l.b16 %v213
      %v277 = vunpack.c.l.b16 %v214
      %v278 = vunpack.c.l.b16 %v215
      %v279 = vunpack.c.l.b16 %v216
      %v280 = vunpack.c.l.b16 %v217
      %v281 = vunpack.c.l.b16 %v218
      %v282 = vunpack.c.l.b16 %v219
      %v283 = vunpack.c.l.b16 %v220
      %v284 = vunpack.c.l.b16 %v221
      %v285 = vunpack.c.l.b16 %v222
      %v286 = vpack.c.b16 %v271, %v270
      %v287 = vpack.c.b16 %v273, %v272
      %v288 = vpack.c.b16 %v275, %v274
      %v289 = vpack.c.b16 %v277, %v276
      %v290 = vpack.c.b16 %v279, %v278
      %v291 = vpack.c.b16 %v281, %v280
      %v292 = vpack.c.b16 %v283, %v282
      %v293 = vpack.c.b16 %v285, %v284
      %302 = vmatprep.subr.bf16.mxu0 0
      %303 = vmatpush1.bf16.msra.mxu0 %v286
      %304 = vmatprep.subr.bf16.mxu0 0
      %305 = vmatpush1.bf16.msra.mxu0 %v287
      %306 = vmatprep.subr.bf16.mxu0 0
      %307 = vmatpush1.bf16.msra.mxu0 %v288
      %308 = vmatprep.subr.bf16.mxu0 0
      %309 = vmatpush1.bf16.msra.mxu0 %v289
      %310 = vmatprep.subr.bf16.mxu0 0
      %311 = vmatpush1.bf16.msra.mxu0 %v290
      %312 = vmatprep.subr.bf16.mxu0 0
      %313 = vmatpush1.bf16.msra.mxu0 %v291
      %314 = vmatprep.subr.bf16.mxu0 0
      %315 = vmatpush1.bf16.msra.mxu0 %v292
      %316 = vmatprep.subr.bf16.mxu0 0
      %317 = vmatpush1.bf16.msra.mxu0 %v293
      %318 = vmatprep.subr.bf16.mxu0 0
      %319 = vmatpush1.bf16.msra.mxu0 0
      %320 = vmatprep.subr.bf16.mxu0 0
      %321 = vmatpush1.bf16.msra.mxu0 0
      %322 = vmatprep.subr.bf16.mxu0 0
      %323 = vmatpush1.bf16.msra.mxu0 0
      %324 = vmatprep.subr.bf16.mxu0 0
      %325 = vmatpush1.bf16.msra.mxu0 0
      %326 = vmatprep.subr.bf16.mxu0 0
      %327 = vmatpush1.bf16.msra.mxu0 0
      %328 = vmatprep.subr.bf16.mxu0 0
      %329 = vmatpush1.bf16.msra.mxu0 0
      %330 = vmatprep.subr.bf16.mxu0 0
      %331 = vmatpush1.bf16.msra.mxu0 0
      %332 = vmatprep.subr.bf16.mxu0 0
      %333 = vmatpush1.bf16.msra.mxu0 0
      %334 = vmatprep.mubr.bf16.mxu0 0
      %335 = vmatmul.mubr.bf16.gmra.mrb[0].mxu0 %v246
      %v336 = vpop.f32.mrb[0].mxu0
      %v337 = vadd.f32 %v228, %v336
      %v338 = vpop.f32.mrb[0].mxu0
      %v339 = vpop.f32.mrb[0].mxu0
      %v340 = vadd.f32 %v228, %v339
      %v341 = vpop.f32.mrb[0].mxu0
      %342 = vmatprep.mubr.bf16.mxu0 0
      %343 = vmatmul.mubr.bf16.gmra.mrb[0].mxu0 %v247
      %v344 = vpop.f32.mrb[0].mxu0
      %v345 = vadd.f32 %v228, %v344
      %v346 = vpop.f32.mrb[0].mxu0
      %v347 = vpop.f32.mrb[0].mxu0
      %v348 = vadd.f32 %v228, %v347
      %v349 = vpop.f32.mrb[0].mxu0
      %350 = vmatprep.mubr.bf16.mxu0 0
      %351 = vmatmul.mubr.bf16.gmra.mrb[0].mxu0 %v248
      %v352 = vpop.f32.mrb[0].mxu0
      %v353 = vadd.f32 %v228, %v352
      %v354 = vpop.f32.mrb[0].mxu0
      %v355 = vpop.f32.mrb[0].mxu0
      %v356 = vadd.f32 %v228, %v355
      %v357 = vpop.f32.mrb[0].mxu0
      %358 = vmatprep.mubr.bf16.mxu0 0
      %359 = vmatmul.mubr.bf16.gmra.mrb[0].mxu0 %v249
      %v360 = vpop.f32.mrb[0].mxu0
      %v361 = vadd.f32 %v228, %v360
      %v362 = vpop.f32.mrb[0].mxu0
      %v363 = vpop.f32.mrb[0].mxu0
      %v364 = vadd.f32 %v228, %v363
      %v365 = vpop.f32.mrb[0].mxu0
      %366 = vdwg.mxu0
      %vm367 = vcmp.ge.f32.partialorder %v337, 0.0
      %vm368 = vcmp.ge.f32.partialorder %v340, 0.0
      %vm369 = vcmp.ge.f32.partialorder %v345, 0.0
      %vm370 = vcmp.ge.f32.partialorder %v348, 0.0
      %vm371 = vcmp.ge.f32.partialorder %v353, 0.0
      %vm372 = vcmp.ge.f32.partialorder %v356, 0.0
      %vm373 = vcmp.ge.f32.partialorder %v361, 0.0
      %vm374 = vcmp.ge.f32.partialorder %v364, 0.0
      %v375 = vmul.f32 %v337, 0.1
      %v376 = vmul.f32 %v340, 0.1
      %v377 = vmul.f32 %v345, 0.1
      %v378 = vmul.f32 %v348, 0.1
      %v379 = vmul.f32 %v353, 0.1
      %v380 = vmul.f32 %v356, 0.1
      %v381 = vmul.f32 %v361, 0.1
      %v382 = vmul.f32 %v364, 0.1
      %v383 = vsel %vm367, %v337, %v375
      %v384 = vsel %vm368, %v340, %v376
      %v385 = vsel %vm369, %v345, %v377
      %v386 = vsel %vm370, %v348, %v378
      %v387 = vsel %vm371, %v353, %v379
      %v388 = vsel %vm372, %v356, %v380
      %v389 = vsel %vm373, %v361, %v381
      %v390 = vsel %vm374, %v364, %v382
      %v391 = vpack.c.bf16 %v384, %v383
      %v392 = vpack.c.bf16 %v386, %v385
      %v393 = vpack.c.bf16 %v388, %v387
      %v394 = vpack.c.bf16 %v390, %v389
      %v399 = vunpack.c.l.b16 %v391
      %v400 = vunpack.c.h.b16 %v391
      %v401 = vunpack.c.l.b16 %v392
      %v402 = vunpack.c.h.b16 %v392
      %v403 = vunpack.c.l.b16 %v393
      %v404 = vunpack.c.h.b16 %v393
      %v405 = vunpack.c.l.b16 %v394
      %v406 = vunpack.c.h.b16 %v394
      %v407 = vpack.c.b16 %v399, %v399
      %v408 = vpack.c.b16 %v400, %v400
      %v409 = vpack.c.b16 %v401, %v401
      %v410 = vpack.c.b16 %v402, %v402
      %v411 = vpack.c.b16 %v403, %v403
      %v412 = vpack.c.b16 %v404, %v404
      %v413 = vpack.c.b16 %v405, %v405
      %v414 = vpack.c.b16 %v406, %v406
      %423 = vst [vmem:[%s195] sm:$0xf] %v407
      %424 = vst [vmem:[%s195 + $0x4] sm:$0xf] %v408
      %425 = vst [vmem:[%s195 + $0x8] sm:$0xf] %v409
      %426 = vst [vmem:[%s195 + $0xc] sm:$0xf] %v410
      %427 = vst [vmem:[%s195 + $0x10] sm:$0xf] %v411
      %428 = vst [vmem:[%s195 + $0x14] sm:$0xf] %v412
      %429 = vst [vmem:[%s195 + $0x18] sm:$0xf] %v413
      %430 = vst [vmem:[%s195 + $0x1c] sm:$0xf] %v414
      %s431 = sadd.s32 %s18, %s19
      %s432 = smul.u32 8, %s431
      %p433 = scmp.lt.s32.totalorder %s432, 15
      %s434 = scalar_select %p433, %s432, 15
      %s435 = smul.addr %s434, 4
      %s436 = scalar_lea.vmem %s3, %s435
      // Predicated region
      $region33: #{_lambda_.10} parent=31 // pred_check
        %p437 = pneg %p116
      $region34: #{_lambda_.10} parent=31 // pred_check_branch
        %439 = sbr.rel (%p437) target = $region36
      $region35: #{_lambda_.10} parent=31 // pred_region
        %s440 = sadd.s32 %s18, %s19
        %s441 = smul.u32 8, %s440
      $region36: #{_lambda_.10} parent=31 // pred_fallthru
        _
    $region32: #{_lambda_.10} parent=5 // pred_fallthru
      _
    %p442 = scmp.le.s32.totalorder 2, %s9
    // Predicated region
    $region37: #{_lambda_.10} parent=5 // pred_check
      %p443 = pneg %p442
    $region38: #{_lambda_.10} parent=5 // pred_check_branch
      %445 = sbr.rel (%p443) target = $region40
    $region39: #{_lambda_.10} parent=5 // pred_region
      %s446 = ssub.s32 %s9, 2
      // Predicated region
      $region41: #{_lambda_.10} parent=39 // pred_check
        %p447 = pneg %p122
      $region42: #{_lambda_.10} parent=39 // pred_check_branch
        %449 = sbr.rel (%p447) target = $region44
      $region43: #{_lambda_.10} parent=39 // pred_region
        %s450 = sadd.s32 %s20, %s21
        %s451 = smul.u32 8, %s450
        %p452 = scmp.lt.s32.totalorder %s451, 15
        %s453 = scalar_select %p452, %s451, 15
        %s454 = smul.addr %s453, 4
        %s455 = scalar_lea.vmem %s3, %s454
      $region44: #{_lambda_.10} parent=39 // pred_fallthru
        _
    $region40: #{_lambda_.10} parent=5 // pred_fallthru
      _
  $region6: #{_lambda_.10} parent=0 // loop_footer
    %s13 = sadd.s32 1, %s9
  $region7: #{_lambda_.10} parent=0 // loop_footer_branch
    %8 = sbr.rel target = $region3
  $region8: #{_lambda_.10} parent=0 // loop_exit
    _

// kernel: _lambda_.9
$region0: #{_lambda_.9}
  #allocation0 [shape = 'u32[]', space=smem, size = 0x4, offset = 0x4, fixed_abs, tag = 'smem constant byte address 0x4 - core index']
  #allocation1 [shape = 'u32[144,128]{1,0:T(1,128)}', space=vmem, size = 0x12000, scoped, tag = 'internal scratch']
  %s0 = inlined_call_operand.vmem [shape: bf16[128,128], index: 0, kind: input, shape index: {}]
  %s1 = inlined_call_operand.vmem [shape: bf16[1,128,128], index: 1, kind: input, shape index: {}]
  %s2 = inlined_call_operand.vmem [shape: f32[1,128], index: 2, kind: input, shape index: {}]
  %s3 = inlined_call_operand.vmem [shape: f32[4,128], index: 3, kind: input, shape index: {}]
  %s4 = inlined_call_operand.vmem [shape: f32[128,128], index: 4, kind: output, shape index: {}]
  %s5 = sld [smem:[#allocation0]]
  $region49: #{_lambda_.9} parent=0
    _
  %s7 = ssub.s32 1, %s5
  %s8 = scalar_select 0, %s7, %s5
  loop: start=0, step=1, limit=4
  $region2: #{_lambda_.9} parent=0 // loop_pre_header
    _
  $region3: #{_lambda_.9} parent=0 // loop_header
    %s10 = sphi 0, %s14
    %p11 = scmp.ge.s32.totalorder %s10, 4
    %s17 = sphi 0, %s29
    %s18 = sphi 0, %s25
    %s19 = sphi 0, %s17
    %s20 = sphi 0, %s18
    %s21 = sphi 0, %s19
    %s22 = sphi 0, %s20
    %s34 = sphi 0, %s36
    %s37 = sphi 0, %s34
    %s38 = sphi 0, %s37
    %s54 = sphi 0, %s38
    %s58 = sphi 0, %s58
    %s60 = sphi 0, %s58
    %s61 = sphi 0, %s60
    %s75 = sphi 0, %s61
    %s79 = sphi 0, %s79
    %s81 = sphi 0, %s79
    %s82 = sphi 0, %s81
    %s96 = sphi 0, %s82
    %s100 = sphi 0, %s100
    %s102 = sphi 0, %s100
    %s103 = sphi 0, %s102
    %s117 = sphi 0, %s103
    %s125 = sphi 0, %s127
    %s128 = sphi 0, %s125
    %s129 = sphi 0, %s128
    %s145 = sphi 0, %s129
  $region4: #{_lambda_.9} parent=0 // loop_header_branch
    %13 = sbr.rel (%p11) target = $region8
  $region5: #{_lambda_.9} parent=0 // loop_body
    %s15 = ssub.s32 %s10, 1
    %s16 = ssub.s32 %s10, 2
    %s23 = sadd.s32 1, %s18
    %p24 = scmp.ge.s32.totalorder %s23, 1
    %s25 = scalar_select %p24, 0, %s23
    %s26 = sadd.s32 1, %s17
    %s27 = scalar_select %p24, %s26, %s17
    %p28 = scmp.ge.s32.totalorder %s27, 2
    %s29 = scalar_select %p28, 0, %s27
    %s30 = sadd.s32 %s17, %s18
    %s31 = sadd.s32 %s29, %s25
    %s32 = ssub.s32 %s30, %s31
    %p33 = scmp.eq.s32.totalorder %s32, 0
    %s35 = sadd.s32 %s34, 1
    %s36 = scalar_select %p33, %s34, %s35
    %p39 = pneg %p33
    %p40 = scmp.eq.s32.totalorder %s10, 1
    %p41 = por %p39, %p40
    %p42 = scmp.ne.s32.totalorder %s34, %s37
    %p43 = scmp.eq.s32.totalorder %s10, 0
    %p44 = por %p42, %p43
    %p45 = scmp.ne.s32.totalorder %s34, %s37
    %p46 = scmp.eq.s32.totalorder %s15, 1
    %p47 = por %p45, %p46
    %p48 = scmp.ne.s32.totalorder %s37, %s38
    %p49 = scmp.eq.s32.totalorder %s15, 0
    %p50 = por %p48, %p49
    %p51 = scmp.ne.s32.totalorder %s37, %s38
    %p52 = scmp.eq.s32.totalorder %s16, 1
    %p53 = por %p51, %p52
    %p55 = scmp.ne.s32.totalorder %s38, %s54
    %p56 = scmp.eq.s32.totalorder %s16, 0
    %p57 = por %p55, %p56
    %s59 = sadd.s32 %s58, 1
    %p62 = scmp.eq.s32.totalorder %s10, 1
    %p63 = scmp.ne.s32.totalorder %s58, %s60
    %p64 = scmp.eq.s32.totalorder %s10, 0
    %p65 = por %p63, %p64
    %p66 = scmp.ne.s32.totalorder %s58, %s60
    %p67 = scmp.eq.s32.totalorder %s15, 1
    %p68 = por %p66, %p67
    %p69 = scmp.ne.s32.totalorder %s60, %s61
    %p70 = scmp.eq.s32.totalorder %s15, 0
    %p71 = por %p69, %p70
    %p72 = scmp.ne.s32.totalorder %s60, %s61
    %p73 = scmp.eq.s32.totalorder %s16, 1
    %p74 = por %p72, %p73
    %p76 = scmp.ne.s32.totalorder %s61, %s75
    %p77 = scmp.eq.s32.totalorder %s16, 0
    %p78 = por %p76, %p77
    %s80 = sadd.s32 %s79, 1
    %p83 = scmp.eq.s32.totalorder %s10, 1
    %p84 = scmp.ne.s32.totalorder %s79, %s81
    %p85 = scmp.eq.s32.totalorder %s10, 0
    %p86 = por %p84, %p85
    %p87 = scmp.ne.s32.totalorder %s79, %s81
    %p88 = scmp.eq.s32.totalorder %s15, 1
    %p89 = por %p87, %p88
    %p90 = scmp.ne.s32.totalorder %s81, %s82
    %p91 = scmp.eq.s32.totalorder %s15, 0
    %p92 = por %p90, %p91
    %p93 = scmp.ne.s32.totalorder %s81, %s82
    %p94 = scmp.eq.s32.totalorder %s16, 1
    %p95 = por %p93, %p94
    %p97 = scmp.ne.s32.totalorder %s82, %s96
    %p98 = scmp.eq.s32.totalorder %s16, 0
    %p99 = por %p97, %p98
    %s101 = sadd.s32 %s100, 1
    %p104 = scmp.eq.s32.totalorder %s10, 1
    %p105 = scmp.ne.s32.totalorder %s100, %s102
    %p106 = scmp.eq.s32.totalorder %s10, 0
    %p107 = por %p105, %p106
    %p108 = scmp.ne.s32.totalorder %s100, %s102
    %p109 = scmp.eq.s32.totalorder %s15, 1
    %p110 = por %p108, %p109
    %p111 = scmp.ne.s32.totalorder %s102, %s103
    %p112 = scmp.eq.s32.totalorder %s15, 0
    %p113 = por %p111, %p112
    %p114 = scmp.ne.s32.totalorder %s102, %s103
    %p115 = scmp.eq.s32.totalorder %s16, 1
    %p116 = por %p114, %p115
    %p118 = scmp.ne.s32.totalorder %s103, %s117
    %p119 = scmp.eq.s32.totalorder %s16, 0
    %p120 = por %p118, %p119
    %s121 = sadd.s32 %s17, %s18
    %s122 = sadd.s32 %s29, %s25
    %s123 = ssub.s32 %s121, %s122
    %p124 = scmp.eq.s32.totalorder %s123, 0
    %s126 = sadd.s32 %s125, 1
    %s127 = scalar_select %p124, %s125, %s126
    %p130 = pneg %p124
    %p131 = scmp.eq.s32.totalorder %s10, 1
    %p132 = por %p130, %p131
    %p133 = scmp.ne.s32.totalorder %s125, %s128
    %p134 = scmp.eq.s32.totalorder %s10, 0
    %p135 = por %p133, %p134
    %p136 = scmp.ne.s32.totalorder %s125, %s128
    %p137 = scmp.eq.s32.totalorder %s15, 1
    %p138 = por %p136, %p137
    %p139 = scmp.ne.s32.totalorder %s128, %s129
    %p140 = scmp.eq.s32.totalorder %s15, 0
    %p141 = por %p139, %p140
    %p142 = scmp.ne.s32.totalorder %s128, %s129
    %p143 = scmp.eq.s32.totalorder %s16, 1
    %p144 = por %p142, %p143
    %p146 = scmp.ne.s32.totalorder %s129, %s145
    %p147 = scmp.eq.s32.totalorder %s16, 0
    %p148 = por %p146, %p147
    %p149 = scmp.le.s32.totalorder 1, %s10
    %p150 = scmp.lt.s32.totalorder %s10, 3
    %p151 = pnand %p149, %p150
    %p152 = pneg %p151
    // Predicated region
    $region9: #{_lambda_.9} parent=5 // pred_check
      _
    $region10: #{_lambda_.9} parent=5 // pred_check_branch
      %154 = sbr.rel (%p151) target = $region12
    $region11: #{_lambda_.9} parent=5 // pred_region
      %s155 = ssub.s32 %s10, 1
      // Predicated region
      $region13: #{_lambda_.9} parent=11 // pred_check
        %p156 = pneg %p71
      $region14: #{_lambda_.9} parent=11 // pred_check_branch
        %158 = sbr.rel (%p156) target = $region16
      $region15: #{_lambda_.9} parent=11 // pred_region
        _
      $region16: #{_lambda_.9} parent=11 // pred_fallthru
        _
      // Predicated region
      $region17: #{_lambda_.9} parent=11 // pred_check
        %p159 = pneg %p92
      $region18: #{_lambda_.9} parent=11 // pred_check_branch
        %161 = sbr.rel (%p159) target = $region20
      $region19: #{_lambda_.9} parent=11 // pred_region
        _
      $region20: #{_lambda_.9} parent=11 // pred_fallthru
        _
      // Predicated region
      $region21: #{_lambda_.9} parent=11 // pred_check
        %p162 = pneg %p113
      $region22: #{_lambda_.9} parent=11 // pred_check_branch
        %164 = sbr.rel (%p162) target = $region24
      $region23: #{_lambda_.9} parent=11 // pred_region
        _
      $region24: #{_lambda_.9} parent=11 // pred_fallthru
        _
    $region12: #{_lambda_.9} parent=5 // pred_fallthru
      _
    %p165 = scmp.lt.s32.totalorder %s10, 2
    // Predicated region
    $region25: #{_lambda_.9} parent=5 // pred_check
      %p166 = pneg %p165
    $region26: #{_lambda_.9} parent=5 // pred_check_branch
      %168 = sbr.rel (%p166) target = $region28
    $region27: #{_lambda_.9} parent=5 // pred_region
      // Predicated region
      $region29: #{_lambda_.9} parent=27 // pred_check
        %p169 = pneg %p44
      $region30: #{_lambda_.9} parent=27 // pred_check_branch
        %171 = sbr.rel (%p169) target = $region32
      $region31: #{_lambda_.9} parent=27 // pred_region
        %s172 = sadd.s32 %s17, %s18
        %s173 = smul.u32 8, %s172
        %p174 = scmp.lt.s32.totalorder %s173, 15
        %s175 = scalar_select %p174, %s173, 15
        %s176 = smul.addr %s175, 4
        %s177 = scalar_lea.vmem %s0, %s176
        %s178 = sadd.s32 %s17, %s18
        %s179 = smul.u32 8, %s178
      $region32: #{_lambda_.9} parent=27 // pred_fallthru
        _
    $region28: #{_lambda_.9} parent=5 // pred_fallthru
      _
    %p180 = scmp.le.s32.totalorder 1, %s10
    %p181 = scmp.lt.s32.totalorder %s10, 3
    %p182 = pnand %p180, %p181
    %p183 = pneg %p182
    // Predicated region
    $region33: #{_lambda_.9} parent=5 // pred_check
      _
    $region34: #{_lambda_.9} parent=5 // pred_check_branch
      %185 = sbr.rel (%p182) target = $region36
    $region35: #{_lambda_.9} parent=5 // pred_region
      %s186 = ssub.s32 %s10, 1
      %s187 = sadd.s32 %s19, %s20
      %s188 = smul.u32 8, %s187
      %p189 = scmp.lt.s32.totalorder %s188, 15
      %s190 = scalar_select %p189, %s188, 15
      %s191 = smul.addr %s190, 4
      %s192 = scalar_lea.vmem %s0, %s191
      %p193 = pneg %p50
      %p194 = pneg %p47
      %p195 = pneg %p71
      %p196 = pneg %p68
      %p197 = pneg %p92
      %p198 = pneg %p89
      %p199 = pneg %p113
      %p200 = pneg %p110
      %p201 = pneg %p141
      %p202 = pneg %p138
      %s203 = sadd.s32 %s19, %s20
      %s204 = smul.u32 8, %s203
      %p205 = scmp.lt.s32.totalorder %s204, 15
      %s206 = scalar_select %p205, %s204, 15
      %s207 = smul.addr %s206, 8
      %s208 = scalar_lea.vmem %s4, %s207
      %s209 = sadd.s32 %s19, %s20
      %s210 = smul.u32 8, %s209
      %p211 = scmp.lt.s32.totalorder %s210, 15
      %s212 = scalar_select %p211, %s210, 15
      %s213 = smul.addr %s212, 4
      %s214 = scalar_lea.vmem %s0, %s213
      %s215 = sadd.s32 %s19, %s20
      %s216 = smul.u32 8, %s215
      %s217 = sadd.s32 %s19, %s20
      %s218 = smul.u32 8, %s217
      %p219 = scmp.lt.s32.totalorder %s218, 15
      %s220 = scalar_select %p219, %s218, 15
      %s221 = smul.addr %s220, 8
      %s222 = scalar_lea.vmem %s4, %s221
      %s223 = sadd.s32 %s19, %s20
      %s224 = smul.u32 8, %s223
      %s226 = smul.u32 %s20, 8
      %v227 = vld [vmem:[%s214] sm:$0xf]
      %v228 = vld [vmem:[%s214 + $0x4] sm:$0xf]
      %v229 = vld [vmem:[%s214 + $0x8] sm:$0xf]
      %v230 = vld [vmem:[%s214 + $0xc] sm:$0xf]
      %v231 = vld [vmem:[%s214 + $0x10] sm:$0xf]
      %v232 = vld [vmem:[%s214 + $0x14] sm:$0xf]
      %v233 = vld [vmem:[%s214 + $0x18] sm:$0xf]
      %v234 = vld [vmem:[%s214 + $0x1c] sm:$0xf]
      %v235 = vld [vmem:[%s1] sm:$0xf]
      %v236 = vld [vmem:[%s1 + $0x4] sm:$0xf]
      %v237 = vld [vmem:[%s1 + $0x8] sm:$0xf]
      %v238 = vld [vmem:[%s1 + $0xc] sm:$0xf]
      %v239 = vld [vmem:[%s1 + $0x10] sm:$0xf]
      %v240 = vld [vmem:[%s1 + $0x14] sm:$0xf]
      %v241 = vld [vmem:[%s1 + $0x18] sm:$0xf]
      %v242 = vld [vmem:[%s1 + $0x1c] sm:$0xf]
      %v243 = vld [vmem:[%s1 + $0x20] sm:$0xf]
      %v244 = vld [vmem:[%s1 + $0x24] sm:$0xf]
      %v245 = vld [vmem:[%s1 + $0x28] sm:$0xf]
      %v246 = vld [vmem:[%s1 + $0x2c] sm:$0xf]
      %v247 = vld [vmem:[%s1 + $0x30] sm:$0xf]
      %v248 = vld [vmem:[%s1 + $0x34] sm:$0xf]
      %v249 = vld [vmem:[%s1 + $0x38] sm:$0xf]
      %v250 = vld [vmem:[%s1 + $0x3c] sm:$0xf]
      %v251 = vld [vmem:[%s2] sm:$0x1]
      %v253 = vlaneseq
      %v254 = vshrl.u32 %v253, 7
      %v255 = vsub.s32 0, %v254
      %v256 = vrot.slane %v251, %v255
      %v266 = vunpack.c.l.b16 %v227
      %v267 = vunpack.c.l.b16 %v228
      %v268 = vunpack.c.l.b16 %v229
      %v269 = vunpack.c.l.b16 %v230
      %v270 = vunpack.c.l.b16 %v231
      %v271 = vunpack.c.l.b16 %v232
      %v272 = vunpack.c.l.b16 %v233
      %v273 = vunpack.c.l.b16 %v234
      %v274 = vpack.c.b16 %v267, %v266
      %v275 = vpack.c.b16 %v269, %v268
      %v276 = vpack.c.b16 %v271, %v270
      %v277 = vpack.c.b16 %v273, %v272
      %v298 = vunpack.c.l.b16 %v235
      %v299 = vunpack.c.l.b16 %v236
      %v300 = vunpack.c.l.b16 %v237
      %v301 = vunpack.c.l.b16 %v238
      %v302 = vunpack.c.l.b16 %v239
      %v303 = vunpack.c.l.b16 %v240
      %v304 = vunpack.c.l.b16 %v241
      %v305 = vunpack.c.l.b16 %v242
      %v306 = vunpack.c.l.b16 %v243
      %v307 = vunpack.c.l.b16 %v244
      %v308 = vunpack.c.l.b16 %v245
      %v309 = vunpack.c.l.b16 %v246
      %v310 = vunpack.c.l.b16 %v247
      %v311 = vunpack.c.l.b16 %v248
      %v312 = vunpack.c.l.b16 %v249
      %v313 = vunpack.c.l.b16 %v250
      %v314 = vpack.c.b16 %v299, %v298
      %v315 = vpack.c.b16 %v301, %v300
      %v316 = vpack.c.b16 %v303, %v302
      %v317 = vpack.c.b16 %v305, %v304
      %v318 = vpack.c.b16 %v307, %v306
      %v319 = vpack.c.b16 %v309, %v308
      %v320 = vpack.c.b16 %v311, %v310
      %v321 = vpack.c.b16 %v313, %v312
      %330 = vmatprep.subr.bf16.mxu0 0
      %331 = vmatpush1.bf16.msra.mxu0 %v314
      %332 = vmatprep.subr.bf16.mxu0 0
      %333 = vmatpush1.bf16.msra.mxu0 %v315
      %334 = vmatprep.subr.bf16.mxu0 0
      %335 = vmatpush1.bf16.msra.mxu0 %v316
      %336 = vmatprep.subr.bf16.mxu0 0
      %337 = vmatpush1.bf16.msra.mxu0 %v317
      %338 = vmatprep.subr.bf16.mxu0 0
      %339 = vmatpush1.bf16.msra.mxu0 %v318
      %340 = vmatprep.subr.bf16.mxu0 0
      %341 = vmatpush1.bf16.msra.mxu0 %v319
      %342 = vmatprep.subr.bf16.mxu0 0
      %343 = vmatpush1.bf16.msra.mxu0 %v320
      %344 = vmatprep.subr.bf16.mxu0 0
      %345 = vmatpush1.bf16.msra.mxu0 %v321
      %346 = vmatprep.subr.bf16.mxu0 0
      %347 = vmatpush1.bf16.msra.mxu0 0
      %348 = vmatprep.subr.bf16.mxu0 0
      %349 = vmatpush1.bf16.msra.mxu0 0
      %350 = vmatprep.subr.bf16.mxu0 0
      %351 = vmatpush1.bf16.msra.mxu0 0
      %352 = vmatprep.subr.bf16.mxu0 0
      %353 = vmatpush1.bf16.msra.mxu0 0
      %354 = vmatprep.subr.bf16.mxu0 0
      %355 = vmatpush1.bf16.msra.mxu0 0
      %356 = vmatprep.subr.bf16.mxu0 0
      %357 = vmatpush1.bf16.msra.mxu0 0
      %358 = vmatprep.subr.bf16.mxu0 0
      %359 = vmatpush1.bf16.msra.mxu0 0
      %360 = vmatprep.subr.bf16.mxu0 0
      %361 = vmatpush1.bf16.msra.mxu0 0
      %362 = vmatprep.mubr.bf16.mxu0 0
      %363 = vmatmul.mubr.bf16.gmra.mrb[0].mxu0 %v274
      %v364 = vpop.f32.mrb[0].mxu0
      %v365 = vadd.f32 %v256, %v364
      %v366 = vpop.f32.mrb[0].mxu0
      %v367 = vpop.f32.mrb[0].mxu0
      %v368 = vadd.f32 %v256, %v367
      %v369 = vpop.f32.mrb[0].mxu0
      %370 = vmatprep.mubr.bf16.mxu0 0
      %371 = vmatmul.mubr.bf16.gmra.mrb[0].mxu0 %v275
      %v372 = vpop.f32.mrb[0].mxu0
      %v373 = vadd.f32 %v256, %v372
      %v374 = vpop.f32.mrb[0].mxu0
      %v375 = vpop.f32.mrb[0].mxu0
      %v376 = vadd.f32 %v256, %v375
      %v377 = vpop.f32.mrb[0].mxu0
      %378 = vmatprep.mubr.bf16.mxu0 0
      %379 = vmatmul.mubr.bf16.gmra.mrb[0].mxu0 %v276
      %v380 = vpop.f32.mrb[0].mxu0
      %v381 = vadd.f32 %v256, %v380
      %v382 = vpop.f32.mrb[0].mxu0
      %v383 = vpop.f32.mrb[0].mxu0
      %v384 = vadd.f32 %v256, %v383
      %v385 = vpop.f32.mrb[0].mxu0
      %386 = vmatprep.mubr.bf16.mxu0 0
      %387 = vmatmul.mubr.bf16.gmra.mrb[0].mxu0 %v277
      %v388 = vpop.f32.mrb[0].mxu0
      %v389 = vadd.f32 %v256, %v388
      %v390 = vpop.f32.mrb[0].mxu0
      %v391 = vpop.f32.mrb[0].mxu0
      %v392 = vadd.f32 %v256, %v391
      %v393 = vpop.f32.mrb[0].mxu0
      %394 = vdwg.mxu0
      %v395 = vld [vmem:[%s3] sm:$0x1]
      %v396 = vld [vmem:[%s3 + $0x1] sm:$0x1]
      %v397 = vld [vmem:[%s3 + $0x2] sm:$0x1]
      %v398 = vld [vmem:[%s3 + $0x3] sm:$0x1]
      %v399 = vstv %s226
      %v400 = vadd.s32 %v399, 1
      %v401 = vadd.s32 %v399, 2
      %v402 = vadd.s32 %v399, 3
      %v403 = vadd.s32 %v399, 4
      %v404 = vadd.s32 %v399, 5
      %v405 = vadd.s32 %v399, 6
      %v406 = vadd.s32 %v399, 7
      %v407 = vcvt.s32.f32 %v399
      %v408 = vcvt.s32.f32 %v400
      %v409 = vcvt.s32.f32 %v401
      %v410 = vcvt.s32.f32 %v402
      %v411 = vcvt.s32.f32 %v403
      %v412 = vcvt.s32.f32 %v404
      %v413 = vcvt.s32.f32 %v405
      %v414 = vcvt.s32.f32 %v406
      %v415 = vlaneseq
      %v416 = vshrl.u32 %v415, 7
      %v417 = vcvt.s32.f32 %v416
      %v418 = vsub.f32 0.0, %v365
      %v419 = vsub.f32 0.0, %v368
      %v420 = vsub.f32 0.0, %v373
      %v421 = vsub.f32 0.0, %v376
      %v422 = vsub.f32 0.0, %v381
      %v423 = vsub.f32 0.0, %v384
      %v424 = vsub.f32 0.0, %v389
      %v425 = vsub.f32 0.0, %v392
      %v426 = vmul.f32 %v418, 1.442695
      %v427 = vpow.pop %v426
      %v428 = vmul.f32 %v419, 1.442695
      %v429 = vpow.pop %v428
      %v430 = vmul.f32 %v420, 1.442695
      %v431 = vpow.pop %v430
      %v432 = vmul.f32 %v421, 1.442695
      %v433 = vpow.pop %v432
      %v434 = vmul.f32 %v422, 1.442695
      %v435 = vpow.pop %v434
      %v436 = vmul.f32 %v423, 1.442695
      %v437 = vpow.pop %v436
      %v438 = vmul.f32 %v424, 1.442695
      %v439 = vpow.pop %v438
      %v440 = vmul.f32 %v425, 1.442695
      %v441 = vpow.pop %v440
      %v442 = vadd.f32 %v427, 1.0
      %v443 = vadd.f32 %v429, 1.0
      %v444 = vadd.f32 %v431, 1.0
      %v445 = vadd.f32 %v433, 1.0
      %v446 = vadd.f32 %v435, 1.0
      %v447 = vadd.f32 %v437, 1.0
      %v448 = vadd.f32 %v439, 1.0
      %v449 = vadd.f32 %v441, 1.0
      %v450 = vrcp.pop %v442
      %v451 = vmul.f32 1.0, %v450
      %v452 = vrcp.pop %v443
      %v453 = vmul.f32 1.0, %v452
      %v454 = vrcp.pop %v444
      %v455 = vmul.f32 1.0, %v454
      %v456 = vrcp.pop %v445
      %v457 = vmul.f32 1.0, %v456
      %v458 = vrcp.pop %v446
      %v459 = vmul.f32 1.0, %v458
      %v460 = vrcp.pop %v447
      %v461 = vmul.f32 1.0, %v460
      %v462 = vrcp.pop %v448
      %v463 = vmul.f32 1.0, %v462
      %v464 = vrcp.pop %v449
      %v465 = vmul.f32 1.0, %v464
      %v466 = vmul.f32 %v365, 1.442695
      %v467 = vpow.pop %v466
      %v468 = vmul.f32 %v368, 1.442695
      %v469 = vpow.pop %v468
      %v470 = vmul.f32 %v373, 1.442695
      %v471 = vpow.pop %v470
      %v472 = vmul.f32 %v376, 1.442695
      %v473 = vpow.pop %v472
      %v474 = vmul.f32 %v381, 1.442695
      %v475 = vpow.pop %v474
      %v476 = vmul.f32 %v384, 1.442695
      %v477 = vpow.pop %v476
      %v478 = vmul.f32 %v389, 1.442695
      %v479 = vpow.pop %v478
      %v480 = vmul.f32 %v392, 1.442695
      %v481 = vpow.pop %v480
      %vm482 = vcmp.gt.f32.partialorder %v398, 0.0
      %v483 = vsel %vm482, 1, 0
      %v484 = vlaneseq
      %v485 = vshrl.u32 %v484, 7
      %v486 = vsub.s32 0, %v485
      %v487 = vrot.slane %v483, %v486
      %vm488 = vcmp.eq.s32.totalorder %v487, 1
      %v489 = vsel %vm488, %v467, %v451
      %v490 = vsel %vm488, %v469, %v453
      %v491 = vsel %vm488, %v471, %v455
      %v492 = vsel %vm488, %v473, %v457
      %v493 = vsel %vm488, %v475, %v459
      %v494 = vsel %vm488, %v477, %v461
      %v495 = vsel %vm488, %v479, %v463
      %v496 = vsel %vm488, %v481, %v465
      %v497 = vlaneseq
      %v498 = vshrl.u32 %v497, 7
      %v499 = vsub.s32 0, %v498
      %v500 = vrot.slane %v395, %v499
      %v501 = vmul.f32 %v489, %v500
      %v502 = vmul.f32 %v490, %v500
      %v503 = vmul.f32 %v491, %v500
      %v504 = vmul.f32 %v492, %v500
      %v505 = vmul.f32 %v493, %v500
      %v506 = vmul.f32 %v494, %v500
      %v507 = vmul.f32 %v495, %v500
      %v508 = vmul.f32 %v496, %v500
      %v509 = vlaneseq
      %v510 = vshrl.u32 %v509, 7
      %v511 = vsub.s32 0, %v510
      %v512 = vrot.slane %v396, %v511
      %v513 = vmul.f32 %v512, %v417
      %v514 = vlaneseq
      %v515 = vshrl.u32 %v514, 7
      %v516 = vsub.s32 0, %v515
      %v517 = vrot.slane %v397, %v516
      %v518 = vmul.f32 %v517, %v407
      %v519 = vmul.f32 %v517, %v408
      %v520 = vmul.f32 %v517, %v409
      %v521 = vmul.f32 %v517, %v410
      %v522 = vmul.f32 %v517, %v411
      %v523 = vmul.f32 %v517, %v412
      %v524 = vmul.f32 %v517, %v413
      %v525 = vmul.f32 %v517, %v414
      %v526 = vadd.f32 %v513, %v518
      %v527 = vadd.f32 %v513, %v519
      %v528 = vadd.f32 %v513, %v520
      %v529 = vadd.f32 %v513, %v521
      %v530 = vadd.f32 %v513, %v522
      %v531 = vadd.f32 %v513, %v523
      %v532 = vadd.f32 %v513, %v524
      %v533 = vadd.f32 %v513, %v525
      %v534 = vmul.f32 %v526, 2.0
      %v535 = vmul.f32 %v527, 2.0
      %v536 = vmul.f32 %v528, 2.0
      %v537 = vmul.f32 %v529, 2.0
      %v538 = vmul.f32 %v530, 2.0
      %v539 = vmul.f32 %v531, 2.0
      %v540 = vmul.f32 %v532, 2.0
      %v541 = vmul.f32 %v533, 2.0
      %v542 = vadd.f32 %v501, %v534
      %v543 = vadd.f32 %v502, %v535
      %v544 = vadd.f32 %v503, %v536
      %v545 = vadd.f32 %v504, %v537
      %v546 = vadd.f32 %v505, %v538
      %v547 = vadd.f32 %v506, %v539
      %v548 = vadd.f32 %v507, %v540
      %v549 = vadd.f32 %v508, %v541
      %550 = vst [vmem:[%s222] sm:$0xff] %v542
      %551 = vst [vmem:[%s222 + $0x8] sm:$0xff] %v543
      %552 = vst [vmem:[%s222 + $0x10] sm:$0xff] %v544
      %553 = vst [vmem:[%s222 + $0x18] sm:$0xff] %v545
      %554 = vst [vmem:[%s222 + $0x20] sm:$0xff] %v546
      %555 = vst [vmem:[%s222 + $0x28] sm:$0xff] %v547
      %556 = vst [vmem:[%s222 + $0x30] sm:$0xff] %v548
      %557 = vst [vmem:[%s222 + $0x38] sm:$0xff] %v549
      %s558 = sadd.s32 %s19, %s20
      %s559 = smul.u32 8, %s558
      %p560 = scmp.lt.s32.totalorder %s559, 15
      %s561 = scalar_select %p560, %s559, 15
      %s562 = smul.addr %s561, 8
      %s563 = scalar_lea.vmem %s4, %s562
      // Predicated region
      $region37: #{_lambda_.9} parent=35 // pred_check
        %p564 = pneg %p138
      $region38: #{_lambda_.9} parent=35 // pred_check_branch
        %566 = sbr.rel (%p564) target = $region40
      $region39: #{_lambda_.9} parent=35 // pred_region
        %s567 = sadd.s32 %s19, %s20
        %s568 = smul.u32 8, %s567
      $region40: #{_lambda_.9} parent=35 // pred_fallthru
        _
    $region36: #{_lambda_.9} parent=5 // pred_fallthru
      _
    %p569 = scmp.le.s32.totalorder 2, %s10
    // Predicated region
    $region41: #{_lambda_.9} parent=5 // pred_check
      %p570 = pneg %p569
    $region42: #{_lambda_.9} parent=5 // pred_check_branch
      %572 = sbr.rel (%p570) target = $region44
    $region43: #{_lambda_.9} parent=5 // pred_region
      %s573 = ssub.s32 %s10, 2
      // Predicated region
      $region45: #{_lambda_.9} parent=43 // pred_check
        %p574 = pneg %p144
      $region46: #{_lambda_.9} parent=43 // pred_check_branch
        %576 = sbr.rel (%p574) target = $region48
      $region47: #{_lambda_.9} parent=43 // pred_region
        %s577 = sadd.s32 %s21, %s22
        %s578 = smul.u32 8, %s577
        %p579 = scmp.lt.s32.totalorder %s578, 15
        %s580 = scalar_select %p579, %s578, 15
        %s581 = smul.addr %s580, 8
        %s582 = scalar_lea.vmem %s4, %s581
      $region48: #{_lambda_.9} parent=43 // pred_fallthru
        _
    $region44: #{_lambda_.9} parent=5 // pred_fallthru
      _
  $region6: #{_lambda_.9} parent=0 // loop_footer
    %s14 = sadd.s32 1, %s10
  $region7: #{_lambda_.9} parent=0 // loop_footer_branch
    %9 = sbr.rel target = $region3
  $region8: #{_lambda_.9} parent=0 // loop_exit
    _

// kernel: _lambda_.8
$region0: #{_lambda_.8}
  #allocation0 [shape = 'u32[]', space=smem, size = 0x4, offset = 0x4, fixed_abs, tag = 'smem constant byte address 0x4 - core index']
  #allocation1 [shape = 'u32[144,128]{1,0:T(1,128)}', space=vmem, size = 0x12000, scoped, tag = 'internal scratch']
  %s0 = inlined_call_operand.vmem [shape: bf16[2,9,9,512], index: 0, kind: input, shape index: {}]
  %s1 = inlined_call_operand.vmem [shape: bf16[9,128,128], index: 1, kind: input, shape index: {}]
  %s2 = inlined_call_operand.vmem [shape: f32[1,128], index: 2, kind: input, shape index: {}]
  %s3 = inlined_call_operand.vmem [shape: bf16[128,128], index: 3, kind: output, shape index: {}]
  %s4 = sld [smem:[#allocation0]]
  $region45: #{_lambda_.8} parent=0
    _
  %s6 = ssub.s32 1, %s4
  %s7 = scalar_select 0, %s6, %s4
  loop: start=0, step=1, limit=4
  $region2: #{_lambda_.8} parent=0 // loop_pre_header
    _
  $region3: #{_lambda_.8} parent=0 // loop_header
    %s9 = sphi 0, %s13
    %p10 = scmp.ge.s32.totalorder %s9, 4
    %s16 = sphi 0, %s28
    %s17 = sphi 0, %s24
    %s18 = sphi 0, %s16
    %s19 = sphi 0, %s17
    %s20 = sphi 0, %s18
    %s21 = sphi 0, %s19
    %s31 = sphi 0, %s33
    %s34 = sphi 0, %s31
    %s35 = sphi 0, %s34
    %s51 = sphi 0, %s35
    %s55 = sphi 0, %s55
    %s57 = sphi 0, %s55
    %s58 = sphi 0, %s57
    %s72 = sphi 0, %s58
    %s76 = sphi 0, %s76
    %s78 = sphi 0, %s76
    %s79 = sphi 0, %s78
    %s93 = sphi 0, %s79
    %s101 = sphi 0, %s103
    %s104 = sphi 0, %s101
    %s105 = sphi 0, %s104
    %s121 = sphi 0, %s105
  $region4: #{_lambda_.8} parent=0 // loop_header_branch
    %12 = sbr.rel (%p10) target = $region8
  $region5: #{_lambda_.8} parent=0 // loop_body
    %s14 = ssub.s32 %s9, 1
    %s15 = ssub.s32 %s9, 2
    %s22 = sadd.s32 1, %s17
    %p23 = scmp.ge.s32.totalorder %s22, 1
    %s24 = scalar_select %p23, 0, %s22
    %s25 = sadd.s32 1, %s16
    %s26 = scalar_select %p23, %s25, %s16
    %p27 = scmp.ge.s32.totalorder %s26, 2
    %s28 = scalar_select %p27, 0, %s26
    %s29 = ssub.s32 %s16, %s28
    %p30 = scmp.eq.s32.totalorder %s29, 0
    %s32 = sadd.s32 %s31, 1
    %s33 = scalar_select %p30, %s31, %s32
    %p36 = pneg %p30
    %p37 = scmp.eq.s32.totalorder %s9, 1
    %p38 = por %p36, %p37
    %p39 = scmp.ne.s32.totalorder %s31, %s34
    %p40 = scmp.eq.s32.totalorder %s9, 0
    %p41 = por %p39, %p40
    %p42 = scmp.ne.s32.totalorder %s31, %s34
    %p43 = scmp.eq.s32.totalorder %s14, 1
    %p44 = por %p42, %p43
    %p45 = scmp.ne.s32.totalorder %s34, %s35
    %p46 = scmp.eq.s32.totalorder %s14, 0
    %p47 = por %p45, %p46
    %p48 = scmp.ne.s32.totalorder %s34, %s35
    %p49 = scmp.eq.s32.totalorder %s15, 1
    %p50 = por %p48, %p49
    %p52 = scmp.ne.s32.totalorder %s35, %s51
    %p53 = scmp.eq.s32.totalorder %s15, 0
    %p54 = por %p52, %p53
    %s56 = sadd.s32 %s55, 1
    %p59 = scmp.eq.s32.totalorder %s9, 1
    %p60 = scmp.ne.s32.totalorder %s55, %s57
    %p61 = scmp.eq.s32.totalorder %s9, 0
    %p62 = por %p60, %p61
    %p63 = scmp.ne.s32.totalorder %s55, %s57
    %p64 = scmp.eq.s32.totalorder %s14, 1
    %p65 = por %p63, %p64
    %p66 = scmp.ne.s32.totalorder %s57, %s58
    %p67 = scmp.eq.s32.totalorder %s14, 0
    %p68 = por %p66, %p67
    %p69 = scmp.ne.s32.totalorder %s57, %s58
    %p70 = scmp.eq.s32.totalorder %s15, 1
    %p71 = por %p69, %p70
    %p73 = scmp.ne.s32.totalorder %s58, %s72
    %p74 = scmp.eq.s32.totalorder %s15, 0
    %p75 = por %p73, %p74
    %s77 = sadd.s32 %s76, 1
    %p80 = scmp.eq.s32.totalorder %s9, 1
    %p81 = scmp.ne.s32.totalorder %s76, %s78
    %p82 = scmp.eq.s32.totalorder %s9, 0
    %p83 = por %p81, %p82
    %p84 = scmp.ne.s32.totalorder %s76, %s78
    %p85 = scmp.eq.s32.totalorder %s14, 1
    %p86 = por %p84, %p85
    %p87 = scmp.ne.s32.totalorder %s78, %s79
    %p88 = scmp.eq.s32.totalorder %s14, 0
    %p89 = por %p87, %p88
    %p90 = scmp.ne.s32.totalorder %s78, %s79
    %p91 = scmp.eq.s32.totalorder %s15, 1
    %p92 = por %p90, %p91
    %p94 = scmp.ne.s32.totalorder %s79, %s93
    %p95 = scmp.eq.s32.totalorder %s15, 0
    %p96 = por %p94, %p95
    %s97 = sadd.s32 %s16, %s17
    %s98 = sadd.s32 %s28, %s24
    %s99 = ssub.s32 %s97, %s98
    %p100 = scmp.eq.s32.totalorder %s99, 0
    %s102 = sadd.s32 %s101, 1
    %s103 = scalar_select %p100, %s101, %s102
    %p106 = pneg %p100
    %p107 = scmp.eq.s32.totalorder %s9, 1
    %p108 = por %p106, %p107
    %p109 = scmp.ne.s32.totalorder %s101, %s104
    %p110 = scmp.eq.s32.totalorder %s9, 0
    %p111 = por %p109, %p110
    %p112 = scmp.ne.s32.totalorder %s101, %s104
    %p113 = scmp.eq.s32.totalorder %s14, 1
    %p114 = por %p112, %p113
    %p115 = scmp.ne.s32.totalorder %s104, %s105
    %p116 = scmp.eq.s32.totalorder %s14, 0
    %p117 = por %p115, %p116
    %p118 = scmp.ne.s32.totalorder %s104, %s105
    %p119 = scmp.eq.s32.totalorder %s15, 1
    %p120 = por %p118, %p119
    %p122 = scmp.ne.s32.totalorder %s105, %s121
    %p123 = scmp.eq.s32.totalorder %s15, 0
    %p124 = por %p122, %p123
    %p125 = scmp.le.s32.totalorder 1, %s9
    %p126 = scmp.lt.s32.totalorder %s9, 3
    %p127 = pnand %p125, %p126
    %p128 = pneg %p127
    // Predicated region
    $region9: #{_lambda_.8} parent=5 // pred_check
      _
    $region10: #{_lambda_.8} parent=5 // pred_check_branch
      %130 = sbr.rel (%p127) target = $region12
    $region11: #{_lambda_.8} parent=5 // pred_region
      %s131 = ssub.s32 %s9, 1
      // Predicated region
      $region13: #{_lambda_.8} parent=11 // pred_check
        %p132 = pneg %p68
      $region14: #{_lambda_.8} parent=11 // pred_check_branch
        %134 = sbr.rel (%p132) target = $region16
      $region15: #{_lambda_.8} parent=11 // pred_region
        _
      $region16: #{_lambda_.8} parent=11 // pred_fallthru
        _
      // Predicated region
      $region17: #{_lambda_.8} parent=11 // pred_check
        %p135 = pneg %p89
      $region18: #{_lambda_.8} parent=11 // pred_check_branch
        %137 = sbr.rel (%p135) target = $region20
      $region19: #{_lambda_.8} parent=11 // pred_region
        _
      $region20: #{_lambda_.8} parent=11 // pred_fallthru
        _
    $region12: #{_lambda_.8} parent=5 // pred_fallthru
      _
    %p138 = scmp.lt.s32.totalorder %s9, 2
    // Predicated region
    $region21: #{_lambda_.8} parent=5 // pred_check
      %p139 = pneg %p138
    $region22: #{_lambda_.8} parent=5 // pred_check_branch
      %141 = sbr.rel (%p139) target = $region24
    $region23: #{_lambda_.8} parent=5 // pred_region
      // Predicated region
      $region25: #{_lambda_.8} parent=23 // pred_check
        %p142 = pneg %p41
      $region26: #{_lambda_.8} parent=23 // pred_check_branch
        %144 = sbr.rel (%p142) target = $region28
      $region27: #{_lambda_.8} parent=23 // pred_region
        %p145 = scmp.lt.s32.totalorder %s16, 1
        %s146 = scalar_select %p145, %s16, 1
        %s147 = smul.addr %s146, 72
        %s148 = smul.addr %s147, 4
        %s149 = scalar_lea.vmem %s0, %s148
      $region28: #{_lambda_.8} parent=23 // pred_fallthru
        _
    $region24: #{_lambda_.8} parent=5 // pred_fallthru
      _
    %p150 = scmp.le.s32.totalorder 1, %s9
    %p151 = scmp.lt.s32.totalorder %s9, 3
    %p152 = pnand %p150, %p151
    %p153 = pneg %p152
    // Predicated region
    $region29: #{_lambda_.8} parent=5 // pred_check
      _
    $region30: #{_lambda_.8} parent=5 // pred_check_branch
      %155 = sbr.rel (%p152) target = $region32
    $region31: #{_lambda_.8} parent=5 // pred_region
      %s156 = ssub.s32 %s9, 1
      %p157 = scmp.lt.s32.totalorder %s18, 1
      %s158 = scalar_select %p157, %s18, 1
      %s159 = smul.addr %s158, 72
      %s160 = smul.addr %s159, 4
      %s161 = scalar_lea.vmem %s0, %s160
      %p162 = pneg %p47
      %p163 = pneg %p44
      %p164 = pneg %p68
      %p165 = pneg %p65
      %p166 = pneg %p89
      %p167 = pneg %p86
      %p168 = pneg %p117
      %p169 = pneg %p114
      %s170 = sadd.s32 %s18, %s19
      %s171 = smul.u32 8, %s170
      %p172 = scmp.lt.s32.totalorder %s171, 15
      %s173 = scalar_select %p172, %s171, 15
      %s174 = smul.addr %s173, 4
      %s175 = scalar_lea.vmem %s3, %s174
      %p176 = scmp.lt.s32.totalorder %s18, 1
      %s177 = scalar_select %p176, %s18, 1
      %s178 = smul.addr %s177, 72
      %s179 = smul.addr %s178, 4
      %s180 = scalar_lea.vmem %s0, %s179
      %s181 = sadd.s32 %s18, %s19
      %s182 = smul.u32 8, %s181
      %p183 = scmp.lt.s32.totalorder %s182, 15
      %s184 = scalar_select %p183, %s182, 15
      %s185 = smul.addr %s184, 4
      %s186 = scalar_lea.vmem %s3, %s185
      %s187 = sadd.s32 %s18, %s19
      %s188 = smul.u32 8, %s187
      %s190 = smul.u32 %s19, 8
      %s191 = smul.u32 %s190, 8
      %s192 = smul.addr %s191, 4
      %s193 = scalar_lea.vmem %s180, %s192
      %v194 = vld [vmem:[%s193] sm:$0xf]
      %v195 = vld [vmem:[%s193 + $0x20] sm:$0xf]
      %v196 = vld [vmem:[%s193 + $0x40] sm:$0xf]
      %v197 = vld [vmem:[%s193 + $0x60] sm:$0xf]
      %v198 = vld [vmem:[%s193 + $0x80] sm:$0xf]
      %v199 = vld [vmem:[%s193 + $0xa0] sm:$0xf]
      %v200 = vld [vmem:[%s193 + $0xc0] sm:$0xf]
      %v201 = vld [vmem:[%s193 + $0xe0] sm:$0xf]
      %v202 = vld [vmem:[%s1] sm:$0xf]
      %v203 = vld [vmem:[%s1 + $0x4] sm:$0xf]
      %v204 = vld [vmem:[%s1 + $0x8] sm:$0xf]
      %v205 = vld [vmem:[%s1 + $0xc] sm:$0xf]
      %v206 = vld [vmem:[%s1 + $0x10] sm:$0xf]
      %v207 = vld [vmem:[%s1 + $0x14] sm:$0xf]
      %v208 = vld [vmem:[%s1 + $0x18] sm:$0xf]
      %v209 = vld [vmem:[%s1 + $0x1c] sm:$0xf]
      %v210 = vld [vmem:[%s1 + $0x20] sm:$0xf]
      %v211 = vld [vmem:[%s1 + $0x24] sm:$0xf]
      %v212 = vld [vmem:[%s1 + $0x28] sm:$0xf]
      %v213 = vld [vmem:[%s1 + $0x2c] sm:$0xf]
      %v214 = vld [vmem:[%s1 + $0x30] sm:$0xf]
      %v215 = vld [vmem:[%s1 + $0x34] sm:$0xf]
      %v216 = vld [vmem:[%s1 + $0x38] sm:$0xf]
      %v217 = vld [vmem:[%s1 + $0x3c] sm:$0xf]
      %v218 = vld [vmem:[%s193 + $0x4] sm:$0xf]
      %v219 = vld [vmem:[%s193 + $0x24] sm:$0xf]
      %v220 = vld [vmem:[%s193 + $0x44] sm:$0xf]
      %v221 = vld [vmem:[%s193 + $0x64] sm:$0xf]
      %v222 = vld [vmem:[%s193 + $0x84] sm:$0xf]
      %v223 = vld [vmem:[%s193 + $0xa4] sm:$0xf]
      %v224 = vld [vmem:[%s193 + $0xc4] sm:$0xf]
      %v225 = vld [vmem:[%s193 + $0xe4] sm:$0xf]
      %s226 = scalar_lea.vmem %s1, 64
      %v227 = vld [vmem:[%s226] sm:$0xf]
      %v228 = vld [vmem:[%s226 + $0x4] sm:$0xf]
      %v229 = vld [vmem:[%s226 + $0x8] sm:$0xf]
      %v230 = vld [vmem:[%s226 + $0xc] sm:$0xf]
      %v231 = vld [vmem:[%s226 + $0x10] sm:$0xf]
      %v232 = vld [vmem:[%s226 + $0x14] sm:$0xf]
      %v233 = vld [vmem:[%s226 + $0x18] sm:$0xf]
      %v234 = vld [vmem:[%s226 + $0x1c] sm:$0xf]
      %v235 = vld [vmem:[%s226 + $0x20] sm:$0xf]
      %v236 = vld [vmem:[%s226 + $0x24] sm:$0xf]
      %v237 = vld [vmem:[%s226 + $0x28] sm:$0xf]
      %v238 = vld [vmem:[%s226 + $0x2c] sm:$0xf]
      %v239 = vld [vmem:[%s226 + $0x30] sm:$0xf]
      %v240 = vld [vmem:[%s226 + $0x34] sm:$0xf]
      %v241 = vld [vmem:[%s226 + $0x38] sm:$0xf]
      %v242 = vld [vmem:[%s226 + $0x3c] sm:$0xf]
      %v251 = vunpack.c.l.b16 %v218
      %v252 = vunpack.c.l.b16 %v219
      %v253 = vunpack.c.l.b16 %v220
      %v254 = vunpack.c.l.b16 %v221
      %v255 = vunpack.c.l.b16 %v222
      %v256 = vunpack.c.l.b16 %v223
      %v257 = vunpack.c.l.b16 %v224
      %v258 = vunpack.c.l.b16 %v225
      %v259 = vpack.c.b16 %v252, %v251
      %v260 = vpack.c.b16 %v254, %v253
      %v261 = vpack.c.b16 %v256, %v255
      %v262 = vpack.c.b16 %v258, %v257
      %v283 = vunpack.c.l.b16 %v227
      %v284 = vunpack.c.l.b16 %v228
      %v285 = vunpack.c.l.b16 %v229
      %v286 = vunpack.c.l.b16 %v230
      %v287 = vunpack.c.l.b16 %v231
      %v288 = vunpack.c.l.b16 %v232
      %v289 = vunpack.c.l.b16 %v233
      %v290 = vunpack.c.l.b16 %v234
      %v291 = vunpack.c.l.b16 %v235
      %v292 = vunpack.c.l.b16 %v236
      %v293 = vunpack.c.l.b16 %v237
      %v294 = vunpack.c.l.b16 %v238
      %v295 = vunpack.c.l.b16 %v239
      %v296 = vunpack.c.l.b16 %v240
      %v297 = vunpack.c.l.b16 %v241
      %v298 = vunpack.c.l.b16 %v242
      %v299 = vpack.c.b16 %v284, %v283
      %v300 = vpack.c.b16 %v286, %v285
      %v301 = vpack.c.b16 %v288, %v287
      %v302 = vpack.c.b16 %v290, %v289
      %v303 = vpack.c.b16 %v292, %v291
      %v304 = vpack.c.b16 %v294, %v293
      %v305 = vpack.c.b16 %v296, %v295
      %v306 = vpack.c.b16 %v298, %v297
      %315 = vmatprep.subr.bf16.mxu0 0
      %316 = vmatpush1.bf16.msra.mxu0 %v299
      %317 = vmatprep.subr.bf16.mxu0 0
      %318 = vmatpush1.bf16.msra.mxu0 %v300
      %319 = vmatprep.subr.bf16.mxu0 0
      %320 = vmatpush1.bf16.msra.mxu0 %v301
      %321 = vmatprep.subr.bf16.mxu0 0
      %322 = vmatpush1.bf16.msra.mxu0 %v302
      %323 = vmatprep.subr.bf16.mxu0 0
      %324 = vmatpush1.bf16.msra.mxu0 %v303
      %325 = vmatprep.subr.bf16.mxu0 0
      %326 = vmatpush1.bf16.msra.mxu0 %v304
      %327 = vmatprep.subr.bf16.mxu0 0
      %328 = vmatpush1.bf16.msra.mxu0 %v305
      %329 = vmatprep.subr.bf16.mxu0 0
      %330 = vmatpush1.bf16.msra.mxu0 %v306
      %331 = vmatprep.subr.bf16.mxu0 0
      %332 = vmatpush1.bf16.msra.mxu0 0
      %333 = vmatprep.subr.bf16.mxu0 0
      %334 = vmatpush1.bf16.msra.mxu0 0
      %335 = vmatprep.subr.bf16.mxu0 0
      %336 = vmatpush1.bf16.msra.mxu0 0
      %337 = vmatprep.subr.bf16.mxu0 0
      %338 = vmatpush1.bf16.msra.mxu0 0
      %339 = vmatprep.subr.bf16.mxu0 0
      %340 = vmatpush1.bf16.msra.mxu0 0
      %341 = vmatprep.subr.bf16.mxu0 0
      %342 = vmatpush1.bf16.msra.mxu0 0
      %343 = vmatprep.subr.bf16.mxu0 0
      %344 = vmatpush1.bf16.msra.mxu0 0
      %345 = vmatprep.subr.bf16.mxu0 0
      %346 = vmatpush1.bf16.msra.mxu0 0
      %347 = vmatprep.mubr.bf16.mxu0 0
      %348 = vmatmul.mubr.bf16.gmra.mrb[0].mxu0 %v259
      %v349 = vpop.f32.mrb[0].mxu0
      %v350 = vadd.f32 0.0, %v349
      %v351 = vpop.f32.mrb[0].mxu0
      %v352 = vpop.f32.mrb[0].mxu0
      %v353 = vadd.f32 0.0, %v352
      %v354 = vpop.f32.mrb[0].mxu0
      %355 = vmatprep.mubr.bf16.mxu0 0
      %356 = vmatmul.mubr.bf16.gmra.mrb[0].mxu0 %v260
      %v357 = vpop.f32.mrb[0].mxu0
      %v358 = vadd.f32 0.0, %v357
      %v359 = vpop.f32.mrb[0].mxu0
      %v360 = vpop.f32.mrb[0].mxu0
      %v361 = vadd.f32 0.0, %v360
      %v362 = vpop.f32.mrb[0].mxu0
      %363 = vmatprep.mubr.bf16.mxu0 0
      %364 = vmatmul.mubr.bf16.gmra.mrb[0].mxu0 %v261
      %v365 = vpop.f32.mrb[0].mxu0
      %v366 = vadd.f32 0.0, %v365
      %v367 = vpop.f32.mrb[0].mxu0
      %v368 = vpop.f32.mrb[0].mxu0
      %v369 = vadd.f32 0.0, %v368
      %v370 = vpop.f32.mrb[0].mxu0
      %371 = vmatprep.mubr.bf16.mxu0 0
      %372 = vmatmul.mubr.bf16.gmra.mrb[0].mxu0 %v262
      %v373 = vpop.f32.mrb[0].mxu0
      %v374 = vadd.f32 0.0, %v373
      %v375 = vpop.f32.mrb[0].mxu0
      %v376 = vpop.f32.mrb[0].mxu0
      %v377 = vadd.f32 0.0, %v376
      %v378 = vpop.f32.mrb[0].mxu0
      %379 = vdwg.mxu0
      %v388 = vunpack.c.l.b16 %v194
      %v389 = vunpack.c.l.b16 %v195
      %v390 = vunpack.c.l.b16 %v196
      %v391 = vunpack.c.l.b16 %v197
      %v392 = vunpack.c.l.b16 %v198
      %v393 = vunpack.c.l.b16 %v199
      %v394 = vunpack.c.l.b16 %v200
      %v395 = vunpack.c.l.b16 %v201
      %v396 = vpack.c.b16 %v389, %v388
      %v397 = vpack.c.b16 %v391, %v390
      %v398 = vpack.c.b16 %v393, %v392
      %v399 = vpack.c.b16 %v395, %v394
      %v420 = vunpack.c.l.b16 %v202
      %v421 = vunpack.c.l.b16 %v203
      %v422 = vunpack.c.l.b16 %v204
      %v423 = vunpack.c.l.b16 %v205
      %v424 = vunpack.c.l.b16 %v206
      %v425 = vunpack.c.l.b16 %v207
      %v426 = vunpack.c.l.b16 %v208
      %v427 = vunpack.c.l.b16 %v209
      %v428 = vunpack.c.l.b16 %v210
      %v429 = vunpack.c.l.b16 %v211
      %v430 = vunpack.c.l.b16 %v212
      %v431 = vunpack.c.l.b16 %v213
      %v432 = vunpack.c.l.b16 %v214
      %v433 = vunpack.c.l.b16 %v215
      %v434 = vunpack.c.l.b16 %v216
      %v435 = vunpack.c.l.b16 %v217
      %v436 = vpack.c.b16 %v421, %v420
      %v437 = vpack.c.b16 %v423, %v422
      %v438 = vpack.c.b16 %v425, %v424
      %v439 = vpack.c.b16 %v427, %v426
      %v440 = vpack.c.b16 %v429, %v428
      %v441 = vpack.c.b16 %v431, %v430
      %v442 = vpack.c.b16 %v433, %v432
      %v443 = vpack.c.b16 %v435, %v434
      %452 = vmatprep.subr.bf16.mxu0 0
      %453 = vmatpush1.bf16.msra.mxu0 %v436
      %454 = vmatprep.subr.bf16.mxu0 0
      %455 = vmatpush1.bf16.msra.mxu0 %v437
      %456 = vmatprep.subr.bf16.mxu0 0
      %457 = vmatpush1.bf16.msra.mxu0 %v438
      %458 = vmatprep.subr.bf16.mxu0 0
      %459 = vmatpush1.bf16.msra.mxu0 %v439
      %460 = vmatprep.subr.bf16.mxu0 0
      %461 = vmatpush1.bf16.msra.mxu0 %v440
      %462 = vmatprep.subr.bf16.mxu0 0
      %463 = vmatpush1.bf16.msra.mxu0 %v441
      %464 = vmatprep.subr.bf16.mxu0 0
      %465 = vmatpush1.bf16.msra.mxu0 %v442
      %466 = vmatprep.subr.bf16.mxu0 0
      %467 = vmatpush1.bf16.msra.mxu0 %v443
      %468 = vmatprep.subr.bf16.mxu0 0
      %469 = vmatpush1.bf16.msra.mxu0 0
      %470 = vmatprep.subr.bf16.mxu0 0
      %471 = vmatpush1.bf16.msra.mxu0 0
      %472 = vmatprep.subr.bf16.mxu0 0
      %473 = vmatpush1.bf16.msra.mxu0 0
      %474 = vmatprep.subr.bf16.mxu0 0
      %475 = vmatpush1.bf16.msra.mxu0 0
      %476 = vmatprep.subr.bf16.mxu0 0
      %477 = vmatpush1.bf16.msra.mxu0 0
      %478 = vmatprep.subr.bf16.mxu0 0
      %479 = vmatpush1.bf16.msra.mxu0 0
      %480 = vmatprep.subr.bf16.mxu0 0
      %481 = vmatpush1.bf16.msra.mxu0 0
      %482 = vmatprep.subr.bf16.mxu0 0
      %483 = vmatpush1.bf16.msra.mxu0 0
      %484 = vmatprep.mubr.bf16.mxu0 0
      %485 = vmatmul.mubr.bf16.gmra.mrb[0].mxu0 %v396
      %v486 = vpop.f32.mrb[0].mxu0
      %v487 = vadd.f32 %v350, %v486
      %v488 = vpop.f32.mrb[0].mxu0
      %v489 = vpop.f32.mrb[0].mxu0
      %v490 = vadd.f32 %v353, %v489
      %v491 = vpop.f32.mrb[0].mxu0
      %492 = vmatprep.mubr.bf16.mxu0 0
      %493 = vmatmul.mubr.bf16.gmra.mrb[0].mxu0 %v397
      %v494 = vpop.f32.mrb[0].mxu0
      %v495 = vadd.f32 %v358, %v494
      %v496 = vpop.f32.mrb[0].mxu0
      %v497 = vpop.f32.mrb[0].mxu0
      %v498 = vadd.f32 %v361, %v497
      %v499 = vpop.f32.mrb[0].mxu0
      %500 = vmatprep.mubr.bf16.mxu0 0
      %501 = vmatmul.mubr.bf16.gmra.mrb[0].mxu0 %v398
      %v502 = vpop.f32.mrb[0].mxu0
      %v503 = vadd.f32 %v366, %v502
      %v504 = vpop.f32.mrb[0].mxu0
      %v505 = vpop.f32.mrb[0].mxu0
      %v506 = vadd.f32 %v369, %v505
      %v507 = vpop.f32.mrb[0].mxu0
      %508 = vmatprep.mubr.bf16.mxu0 0
      %509 = vmatmul.mubr.bf16.gmra.mrb[0].mxu0 %v399
      %v510 = vpop.f32.mrb[0].mxu0
      %v511 = vadd.f32 %v374, %v510
      %v512 = vpop.f32.mrb[0].mxu0
      %v513 = vpop.f32.mrb[0].mxu0
      %v514 = vadd.f32 %v377, %v513
      %v515 = vpop.f32.mrb[0].mxu0
      %516 = vdwg.mxu0
      %v517 = vld [vmem:[%s193] sm:$0xf]
      %v518 = vld [vmem:[%s193 + $0x10] sm:$0x1]
      %v519 = vld [vmem:[%s193 + $0x20] sm:$0xf]
      %v520 = vld [vmem:[%s193 + $0x30] sm:$0x1]
      %v521 = vld [vmem:[%s193 + $0x40] sm:$0xf]
      %v522 = vld [vmem:[%s193 + $0x50] sm:$0x1]
      %v523 = vld [vmem:[%s193 + $0x60] sm:$0xf]
      %v524 = vld [vmem:[%s193 + $0x70] sm:$0x1]
      %v525 = vld [vmem:[%s193 + $0x80] sm:$0xf]
      %v526 = vld [vmem:[%s193 + $0x90] sm:$0x1]
      %v527 = vld [vmem:[%s193 + $0xa0] sm:$0xf]
      %v528 = vld [vmem:[%s193 + $0xb0] sm:$0x1]
      %v529 = vld [vmem:[%s193 + $0xc0] sm:$0xf]
      %v530 = vld [vmem:[%s193 + $0xd0] sm:$0x1]
      %v531 = vld [vmem:[%s193 + $0xe0] sm:$0xf]
      %v532 = vld [vmem:[%s193 + $0xf0] sm:$0x1]
      %vm533 = vsmask.f32 3328
      %vm534 = vsmask.f32 7440
      %vm535 = vmor %vm533, %vm534
      %v537 = vshrl.u32 %v517, 16
      %v539 = vrot.slane %v537, 4
      %v540 = vshll.u32 %v517, 16
      %v542 = vrot.slane %v540, 5
      %v543 = vor.u32 %v539, %v542
      %v544 = vrot.slane %v543, 4
      %v546 = vshll.u32 %v518, 16
      %v548 = vrot.slane %v546, 5
      %v549 = vsel %vm535, %v544, %v548
      %v551 = vshrl.u32 %v519, 16
      %v553 = vrot.slane %v551, 4
      %v554 = vshll.u32 %v519, 16
      %v556 = vrot.slane %v554, 5
      %v557 = vor.u32 %v553, %v556
      %v558 = vrot.slane %v557, 4
      %v560 = vshll.u32 %v520, 16
      %v562 = vrot.slane %v560, 5
      %v563 = vsel %vm535, %v558, %v562
      %v565 = vshrl.u32 %v521, 16
      %v567 = vrot.slane %v565, 4
      %v568 = vshll.u32 %v521, 16
      %v570 = vrot.slane %v568, 5
      %v571 = vor.u32 %v567, %v570
      %v572 = vrot.slane %v571, 4
      %v574 = vshll.u32 %v522, 16
      %v576 = vrot.slane %v574, 5
      %v577 = vsel %vm535, %v572, %v576
      %v579 = vshrl.u32 %v523, 16
      %v581 = vrot.slane %v579, 4
      %v582 = vshll.u32 %v523, 16
      %v584 = vrot.slane %v582, 5
      %v585 = vor.u32 %v581, %v584
      %v586 = vrot.slane %v585, 4
      %v588 = vshll.u32 %v524, 16
      %v590 = vrot.slane %v588, 5
      %v591 = vsel %vm535, %v586, %v590
      %v593 = vshrl.u32 %v525, 16
      %v595 = vrot.slane %v593, 4
      %v596 = vshll.u32 %v525, 16
      %v598 = vrot.slane %v596, 5
      %v599 = vor.u32 %v595, %v598
      %v600 = vrot.slane %v599, 4
      %v602 = vshll.u32 %v526, 16
      %v604 = vrot.slane %v602, 5
      %v605 = vsel %vm535, %v600, %v604
      %v607 = vshrl.u32 %v527, 16
      %v609 = vrot.slane %v607, 4
      %v610 = vshll.u32 %v527, 16
      %v612 = vrot.slane %v610, 5
      %v613 = vor.u32 %v609, %v612
      %v614 = vrot.slane %v613, 4
      %v616 = vshll.u32 %v528, 16
      %v618 = vrot.slane %v616, 5
      %v619 = vsel %vm535, %v614, %v618
      %v621 = vshrl.u32 %v529, 16
      %v623 = vrot.slane %v621, 4
      %v624 = vshll.u32 %v529, 16
      %v626 = vrot.slane %v624, 5
      %v627 = vor.u32 %v623, %v626
      %v628 = vrot.slane %v627, 4
      %v630 = vshll.u32 %v530, 16
      %v632 = vrot.slane %v630, 5
      %v633 = vsel %vm535, %v628, %v632
      %v635 = vshrl.u32 %v531, 16
      %v637 = vrot.slane %v635, 4
      %v638 = vshll.u32 %v531, 16
      %v640 = vrot.slane %v638, 5
      %v641 = vor.u32 %v637, %v640
      %v642 = vrot.slane %v641, 4
      %v644 = vshll.u32 %v532, 16
      %v646 = vrot.slane %v644, 5
      %v647 = vsel %vm535, %v642, %v646
      %s648 = scalar_lea.vmem %s1, 128
      %v649 = vld [vmem:[%s648] sm:$0xf]
      %v650 = vld [vmem:[%s648 + $0x4] sm:$0xf]
      %v651 = vld [vmem:[%s648 + $0x8] sm:$0xf]
      %v652 = vld [vmem:[%s648 + $0xc] sm:$0xf]
      %v653 = vld [vmem:[%s648 + $0x10] sm:$0xf]
      %v654 = vld [vmem:[%s648 + $0x14] sm:$0xf]
      %v655 = vld [vmem:[%s648 + $0x18] sm:$0xf]
      %v656 = vld [vmem:[%s648 + $0x1c] sm:$0xf]
      %v657 = vld [vmem:[%s648 + $0x20] sm:$0xf]
      %v658 = vld [vmem:[%s648 + $0x24] sm:$0xf]
      %v659 = vld [vmem:[%s648 + $0x28] sm:$0xf]
      %v660 = vld [vmem:[%s648 + $0x2c] sm:$0xf]
      %v661 = vld [vmem:[%s648 + $0x30] sm:$0xf]
      %v662 = vld [vmem:[%s648 + $0x34] sm:$0xf]
      %v663 = vld [vmem:[%s648 + $0x38] sm:$0xf]
      %v664 = vld [vmem:[%s648 + $0x3c] sm:$0xf]
      %v665 = vunpack.c.l.b16 %v549
      %v666 = vunpack.c.l.b16 %v563
      %v667 = vunpack.c.l.b16 %v577
      %v668 = vunpack.c.l.b16 %v591
      %v669 = vunpack.c.l.b16 %v605
      %v670 = vunpack.c.l.b16 %v619
      %v671 = vunpack.c.l.b16 %v633
      %v672 = vunpack.c.l.b16 %v647
      %v673 = vpack.c.b16 %v666, %v665
      %v674 = vpack.c.b16 %v668, %v667
      %v675 = vpack.c.b16 %v670, %v669
      %v676 = vpack.c.b16 %v672, %v671
      %v697 = vunpack.c.l.b16 %v649
      %v698 = vunpack.c.l.b16 %v650
      %v699 = vunpack.c.l.b16 %v651
      %v700 = vunpack.c.l.b16 %v652
      %v701 = vunpack.c.l.b16 %v653
      %v702 = vunpack.c.l.b16 %v654
      %v703 = vunpack.c.l.b16 %v655
      %v704 = vunpack.c.l.b16 %v656
      %v705 = vunpack.c.l.b16 %v657
      %v706 = vunpack.c.l.b16 %v658
      %v707 = vunpack.c.l.b16 %v659
      %v708 = vunpack.c.l.b16 %v660
      %v709 = vunpack.c.l.b16 %v661
      %v710 = vunpack.c.l.b16 %v662
      %v711 = vunpack.c.l.b16 %v663
      %v712 = vunpack.c.l.b16 %v664
      %v713 = vpack.c.b16 %v698, %v697
      %v714 = vpack.c.b16 %v700, %v699
      %v715 = vpack.c.b16 %v702, %v701
      %v716 = vpack.c.b16 %v704, %v703
      %v717 = vpack.c.b16 %v706, %v705
      %v718 = vpack.c.b16 %v708, %v707
      %v719 = vpack.c.b16 %v710, %v709
      %v720 = vpack.c.b16 %v712, %v711
      %729 = vmatprep.subr.bf16.mxu0 0
      %730 = vmatpush1.bf16.msra.mxu0 %v713
      %731 = vmatprep.subr.bf16.mxu0 0
      %732 = vmatpush1.bf16.msra.mxu0 %v714
      %733 = vmatprep.subr.bf16.mxu0 0
      %734 = vmatpush1.bf16.msra.mxu0 %v715
      %735 = vmatprep.subr.bf16.mxu0 0
      %736 = vmatpush1.bf16.msra.mxu0 %v716
      %737 = vmatprep.subr.bf16.mxu0 0
      %738 = vmatpush1.bf16.msra.mxu0 %v717
      %739 = vmatprep.subr.bf16.mxu0 0
      %740 = vmatpush1.bf16.msra.mxu0 %v718
      %741 = vmatprep.subr.bf16.mxu0 0
      %742 = vmatpush1.bf16.msra.mxu0 %v719
      %743 = vmatprep.subr.bf16.mxu0 0
      %744 = vmatpush1.bf16.msra.mxu0 %v720
      %745 = vmatprep.subr.bf16.mxu0 0
      %746 = vmatpush1.bf16.msra.mxu0 0
      %747 = vmatprep.subr.bf16.mxu0 0
      %748 = vmatpush1.bf16.msra.mxu0 0
      %749 = vmatprep.subr.bf16.mxu0 0
      %750 = vmatpush1.bf16.msra.mxu0 0
      %751 = vmatprep.subr.bf16.mxu0 0
      %752 = vmatpush1.bf16.msra.mxu0 0
      %753 = vmatprep.subr.bf16.mxu0 0
      %754 = vmatpush1.bf16.msra.mxu0 0
      %755 = vmatprep.subr.bf16.mxu0 0
      %756 = vmatpush1.bf16.msra.mxu0 0
      %757 = vmatprep.subr.bf16.mxu0 0
      %758 = vmatpush1.bf16.msra.mxu0 0
      %759 = vmatprep.subr.bf16.mxu0 0
      %760 = vmatpush1.bf16.msra.mxu0 0
      %761 = vmatprep.mubr.bf16.mxu0 0
      %762 = vmatmul.mubr.bf16.gmra.mrb[0].mxu0 %v673
      %v763 = vpop.f32.mrb[0].mxu0
      %v764 = vadd.f32 0.0, %v763
      %v765 = vpop.f32.mrb[0].mxu0
      %v766 = vpop.f32.mrb[0].mxu0
      %v767 = vadd.f32 0.0, %v766
      %v768 = vpop.f32.mrb[0].mxu0
      %769 = vmatprep.mubr.bf16.mxu0 0
      %770 = vmatmul.mubr.bf16.gmra.mrb[0].mxu0 %v674
      %v771 = vpop.f32.mrb[0].mxu0
      %v772 = vadd.f32 0.0, %v771
      %v773 = vpop.f32.mrb[0].mxu0
      %v774 = vpop.f32.mrb[0].mxu0
      %v775 = vadd.f32 0.0, %v774
      %v776 = vpop.f32.mrb[0].mxu0
      %777 = vmatprep.mubr.bf16.mxu0 0
      %778 = vmatmul.mubr.bf16.gmra.mrb[0].mxu0 %v675
      %v779 = vpop.f32.mrb[0].mxu0
      %v780 = vadd.f32 0.0, %v779
      %v781 = vpop.f32.mrb[0].mxu0
      %v782 = vpop.f32.mrb[0].mxu0
      %v783 = vadd.f32 0.0, %v782
      %v784 = vpop.f32.mrb[0].mxu0
      %785 = vmatprep.mubr.bf16.mxu0 0
      %786 = vmatmul.mubr.bf16.gmra.mrb[0].mxu0 %v676
      %v787 = vpop.f32.mrb[0].mxu0
      %v788 = vadd.f32 0.0, %v787
      %v789 = vpop.f32.mrb[0].mxu0
      %v790 = vpop.f32.mrb[0].mxu0
      %v791 = vadd.f32 0.0, %v790
      %v792 = vpop.f32.mrb[0].mxu0
      %793 = vdwg.mxu0
      %v794 = vadd.f32 %v487, %v764
      %v795 = vadd.f32 %v490, %v767
      %v796 = vadd.f32 %v495, %v772
      %v797 = vadd.f32 %v498, %v775
      %v798 = vadd.f32 %v503, %v780
      %v799 = vadd.f32 %v506, %v783
      %v800 = vadd.f32 %v511, %v788
      %v801 = vadd.f32 %v514, %v791
      %v802 = vld [vmem:[%s193 + $0x8] sm:$0xf]
      %v803 = vld [vmem:[%s193 + $0x28] sm:$0xf]
      %v804 = vld [vmem:[%s193 + $0x48] sm:$0xf]
      %v805 = vld [vmem:[%s193 + $0x68] sm:$0xf]
      %v806 = vld [vmem:[%s193 + $0x88] sm:$0xf]
      %v807 = vld [vmem:[%s193 + $0xa8] sm:$0xf]
      %v808 = vld [vmem:[%s193 + $0xc8] sm:$0xf]
      %v809 = vld [vmem:[%s193 + $0xe8] sm:$0xf]
      %s810 = scalar_lea.vmem %s1, 192
      %v811 = vld [vmem:[%s810] sm:$0xf]
      %v812 = vld [vmem:[%s810 + $0x4] sm:$0xf]
      %v813 = vld [vmem:[%s810 + $0x8] sm:$0xf]
      %v814 = vld [vmem:[%s810 + $0xc] sm:$0xf]
      %v815 = vld [vmem:[%s810 + $0x10] sm:$0xf]
      %v816 = vld [vmem:[%s810 + $0x14] sm:$0xf]
      %v817 = vld [vmem:[%s810 + $0x18] sm:$0xf]
      %v818 = vld [vmem:[%s810 + $0x1c] sm:$0xf]
      %v819 = vld [vmem:[%s810 + $0x20] sm:$0xf]
      %v820 = vld [vmem:[%s810 + $0x24] sm:$0xf]
      %v821 = vld [vmem:[%s810 + $0x28] sm:$0xf]
      %v822 = vld [vmem:[%s810 + $0x2c] sm:$0xf]
      %v823 = vld [vmem:[%s810 + $0x30] sm:$0xf]
      %v824 = vld [vmem:[%s810 + $0x34] sm:$0xf]
      %v825 = vld [vmem:[%s810 + $0x38] sm:$0xf]
      %v826 = vld [vmem:[%s810 + $0x3c] sm:$0xf]
      %v835 = vunpack.c.l.b16 %v802
      %v836 = vunpack.c.l.b16 %v803
      %v837 = vunpack.c.l.b16 %v804
      %v838 = vunpack.c.l.b16 %v805
      %v839 = vunpack.c.l.b16 %v806
      %v840 = vunpack.c.l.b16 %v807
      %v841 = vunpack.c.l.b16 %v808
      %v842 = vunpack.c.l.b16 %v809
      %v843 = vpack.c.b16 %v836, %v835
      %v844 = vpack.c.b16 %v838, %v837
      %v845 = vpack.c.b16 %v840, %v839
      %v846 = vpack.c.b16 %v842, %v841
      %v867 = vunpack.c.l.b16 %v811
      %v868 = vunpack.c.l.b16 %v812
      %v869 = vunpack.c.l.b16 %v813
      %v870 = vunpack.c.l.b16 %v814
      %v871 = vunpack.c.l.b16 %v815
      %v872 = vunpack.c.l.b16 %v816
      %v873 = vunpack.c.l.b16 %v817
      %v874 = vunpack.c.l.b16 %v818
      %v875 = vunpack.c.l.b16 %v819
      %v876 = vunpack.c.l.b16 %v820
      %v877 = vunpack.c.l.b16 %v821
      %v878 = vunpack.c.l.b16 %v822
      %v879 = vunpack.c.l.b16 %v823
      %v880 = vunpack.c.l.b16 %v824
      %v881 = vunpack.c.l.b16 %v825
      %v882 = vunpack.c.l.b16 %v826
      %v883 = vpack.c.b16 %v868, %v867
      %v884 = vpack.c.b16 %v870, %v869
      %v885 = vpack.c.b16 %v872, %v871
      %v886 = vpack.c.b16 %v874, %v873
      %v887 = vpack.c.b16 %v876, %v875
      %v888 = vpack.c.b16 %v878, %v877
      %v889 = vpack.c.b16 %v880, %v879
      %v890 = vpack.c.b16 %v882, %v881
      %899 = vmatprep.subr.bf16.mxu0 0
      %900 = vmatpush1.bf16.msra.mxu0 %v883
      %901 = vmatprep.subr.bf16.mxu0 0
      %902 = vmatpush1.bf16.msra.mxu0 %v884
      %903 = vmatprep.subr.bf16.mxu0 0
      %904 = vmatpush1.bf16.msra.mxu0 %v885
      %905 = vmatprep.subr.bf16.mxu0 0
      %906 = vmatpush1.bf16.msra.mxu0 %v886
      %907 = vmatprep.subr.bf16.mxu0 0
      %908 = vmatpush1.bf16.msra.mxu0 %v887
      %909 = vmatprep.subr.bf16.mxu0 0
      %910 = vmatpush1.bf16.msra.mxu0 %v888
      %911 = vmatprep.subr.bf16.mxu0 0
      %912 = vmatpush1.bf16.msra.mxu0 %v889
      %913 = vmatprep.subr.bf16.mxu0 0
      %914 = vmatpush1.bf16.msra.mxu0 %v890
      %915 = vmatprep.subr.bf16.mxu0 0
      %916 = vmatpush1.bf16.msra.mxu0 0
      %917 = vmatprep.subr.bf16.mxu0 0
      %918 = vmatpush1.bf16.msra.mxu0 0
      %919 = vmatprep.subr.bf16.mxu0 0
      %920 = vmatpush1.bf16.msra.mxu0 0
      %921 = vmatprep.subr.bf16.mxu0 0
      %922 = vmatpush1.bf16.msra.mxu0 0
      %923 = vmatprep.subr.bf16.mxu0 0
      %924 = vmatpush1.bf16.msra.mxu0 0
      %925 = vmatprep.subr.bf16.mxu0 0
      %926 = vmatpush1.bf16.msra.mxu0 0
      %927 = vmatprep.subr.bf16.mxu0 0
      %928 = vmatpush1.bf16.msra.mxu0 0
      %929 = vmatprep.subr.bf16.mxu0 0
      %930 = vmatpush1.bf16.msra.mxu0 0
      %931 = vmatprep.mubr.bf16.mxu0 0
      %932 = vmatmul.mubr.bf16.gmra.mrb[0].mxu0 %v843
      %v933 = vpop.f32.mrb[0].mxu0
      %v934 = vadd.f32 0.0, %v933
      %v935 = vpop.f32.mrb[0].mxu0
      %v936 = vpop.f32.mrb[0].mxu0
      %v937 = vadd.f32 0.0, %v936
      %v938 = vpop.f32.mrb[0].mxu0
      %939 = vmatprep.mubr.bf16.mxu0 0
      %940 = vmatmul.mubr.bf16.gmra.mrb[0].mxu0 %v844
      %v941 = vpop.f32.mrb[0].mxu0
      %v942 = vadd.f32 0.0, %v941
      %v943 = vpop.f32.mrb[0].mxu0
      %v944 = vpop.f32.mrb[0].mxu0
      %v945 = vadd.f32 0.0, %v944
      %v946 = vpop.f32.mrb[0].mxu0
      %947 = vmatprep.mubr.bf16.mxu0 0
      %948 = vmatmul.mubr.bf16.gmra.mrb[0].mxu0 %v845
      %v949 = vpop.f32.mrb[0].mxu0
      %v950 = vadd.f32 0.0, %v949
      %v951 = vpop.f32.mrb[0].mxu0
      %v952 = vpop.f32.mrb[0].mxu0
      %v953 = vadd.f32 0.0, %v952
      %v954 = vpop.f32.mrb[0].mxu0
      %955 = vmatprep.mubr.bf16.mxu0 0
      %956 = vmatmul.mubr.bf16.gmra.mrb[0].mxu0 %v846
      %v957 = vpop.f32.mrb[0].mxu0
      %v958 = vadd.f32 0.0, %v957
      %v959 = vpop.f32.mrb[0].mxu0
      %v960 = vpop.f32.mrb[0].mxu0
      %v961 = vadd.f32 0.0, %v960
      %v962 = vpop.f32.mrb[0].mxu0
      %963 = vdwg.mxu0
      %v964 = vadd.f32 %v794, %v934
      %v965 = vadd.f32 %v795, %v937
      %v966 = vadd.f32 %v796, %v942
      %v967 = vadd.f32 %v797, %v945
      %v968 = vadd.f32 %v798, %v950
      %v969 = vadd.f32 %v799, %v953
      %v970 = vadd.f32 %v800, %v958
      %v971 = vadd.f32 %v801, %v961
      %v972 = vld [vmem:[%s193 + $0xc] sm:$0xf]
      %v973 = vld [vmem:[%s193 + $0x2c] sm:$0xf]
      %v974 = vld [vmem:[%s193 + $0x4c] sm:$0xf]
      %v975 = vld [vmem:[%s193 + $0x6c] sm:$0xf]
      %v976 = vld [vmem:[%s193 + $0x8c] sm:$0xf]
      %v977 = vld [vmem:[%s193 + $0xac] sm:$0xf]
      %v978 = vld [vmem:[%s193 + $0xcc] sm:$0xf]
      %v979 = vld [vmem:[%s193 + $0xec] sm:$0xf]
      %s980 = scalar_lea.vmem %s1, 256
      %v981 = vld [vmem:[%s980] sm:$0xf]
      %v982 = vld [vmem:[%s980 + $0x4] sm:$0xf]
      %v983 = vld [vmem:[%s980 + $0x8] sm:$0xf]
      %v984 = vld [vmem:[%s980 + $0xc] sm:$0xf]
      %v985 = vld [vmem:[%s980 + $0x10] sm:$0xf]
      %v986 = vld [vmem:[%s980 + $0x14] sm:$0xf]
      %v987 = vld [vmem:[%s980 + $0x18] sm:$0xf]
      %v988 = vld [vmem:[%s980 + $0x1c] sm:$0xf]
      %v989 = vld [vmem:[%s980 + $0x20] sm:$0xf]
      %v990 = vld [vmem:[%s980 + $0x24] sm:$0xf]
      %v991 = vld [vmem:[%s980 + $0x28] sm:$0xf]
      %v992 = vld [vmem:[%s980 + $0x2c] sm:$0xf]
      %v993 = vld [vmem:[%s980 + $0x30] sm:$0xf]
      %v994 = vld [vmem:[%s980 + $0x34] sm:$0xf]
      %v995 = vld [vmem:[%s980 + $0x38] sm:$0xf]
      %v996 = vld [vmem:[%s980 + $0x3c] sm:$0xf]
      %v1005 = vunpack.c.l.b16 %v972
      %v1006 = vunpack.c.l.b16 %v973
      %v1007 = vunpack.c.l.b16 %v974
      %v1008 = vunpack.c.l.b16 %v975
      %v1009 = vunpack.c.l.b16 %v976
      %v1010 = vunpack.c.l.b16 %v977
      %v1011 = vunpack.c.l.b16 %v978
      %v1012 = vunpack.c.l.b16 %v979
      %v1013 = vpack.c.b16 %v1006, %v1005
      %v1014 = vpack.c.b16 %v1008, %v1007
      %v1015 = vpack.c.b16 %v1010, %v1009
      %v1016 = vpack.c.b16 %v1012, %v1011
      %v1037 = vunpack.c.l.b16 %v981
      %v1038 = vunpack.c.l.b16 %v982
      %v1039 = vunpack.c.l.b16 %v983
      %v1040 = vunpack.c.l.b16 %v984
      %v1041 = vunpack.c.l.b16 %v985
      %v1042 = vunpack.c.l.b16 %v986
      %v1043 = vunpack.c.l.b16 %v987
      %v1044 = vunpack.c.l.b16 %v988
      %v1045 = vunpack.c.l.b16 %v989
      %v1046 = vunpack.c.l.b16 %v990
      %v1047 = vunpack.c.l.b16 %v991
      %v1048 = vunpack.c.l.b16 %v992
      %v1049 = vunpack.c.l.b16 %v993
      %v1050 = vunpack.c.l.b16 %v994
      %v1051 = vunpack.c.l.b16 %v995
      %v1052 = vunpack.c.l.b16 %v996
      %v1053 = vpack.c.b16 %v1038, %v1037
      %v1054 = vpack.c.b16 %v1040, %v1039
      %v1055 = vpack.c.b16 %v1042, %v1041
      %v1056 = vpack.c.b16 %v1044, %v1043
      %v1057 = vpack.c.b16 %v1046, %v1045
      %v1058 = vpack.c.b16 %v1048, %v1047
      %v1059 = vpack.c.b16 %v1050, %v1049
      %v1060 = vpack.c.b16 %v1052, %v1051
      %1069 = vmatprep.subr.bf16.mxu0 0
      %1070 = vmatpush1.bf16.msra.mxu0 %v1053
      %1071 = vmatprep.subr.bf16.mxu0 0
      %1072 = vmatpush1.bf16.msra.mxu0 %v1054
      %1073 = vmatprep.subr.bf16.mxu0 0
      %1074 = vmatpush1.bf16.msra.mxu0 %v1055
      %1075 = vmatprep.subr.bf16.mxu0 0
      %1076 = vmatpush1.bf16.msra.mxu0 %v1056
      %1077 = vmatprep.subr.bf16.mxu0 0
      %1078 = vmatpush1.bf16.msra.mxu0 %v1057
      %1079 = vmatprep.subr.bf16.mxu0 0
      %1080 = vmatpush1.bf16.msra.mxu0 %v1058
      %1081 = vmatprep.subr.bf16.mxu0 0
      %1082 = vmatpush1.bf16.msra.mxu0 %v1059
      %1083 = vmatprep.subr.bf16.mxu0 0
      %1084 = vmatpush1.bf16.msra.mxu0 %v1060
      %1085 = vmatprep.subr.bf16.mxu0 0
      %1086 = vmatpush1.bf16.msra.mxu0 0
      %1087 = vmatprep.subr.bf16.mxu0 0
      %1088 = vmatpush1.bf16.msra.mxu0 0
      %1089 = vmatprep.subr.bf16.mxu0 0
      %1090 = vmatpush1.bf16.msra.mxu0 0
      %1091 = vmatprep.subr.bf16.mxu0 0
      %1092 = vmatpush1.bf16.msra.mxu0 0
      %1093 = vmatprep.subr.bf16.mxu0 0
      %1094 = vmatpush1.bf16.msra.mxu0 0
      %1095 = vmatprep.subr.bf16.mxu0 0
      %1096 = vmatpush1.bf16.msra.mxu0 0
      %1097 = vmatprep.subr.bf16.mxu0 0
      %1098 = vmatpush1.bf16.msra.mxu0 0
      %1099 = vmatprep.subr.bf16.mxu0 0
      %1100 = vmatpush1.bf16.msra.mxu0 0
      %1101 = vmatprep.mubr.bf16.mxu0 0
      %1102 = vmatmul.mubr.bf16.gmra.mrb[0].mxu0 %v1013
      %v1103 = vpop.f32.mrb[0].mxu0
      %v1104 = vadd.f32 0.0, %v1103
      %v1105 = vpop.f32.mrb[0].mxu0
      %v1106 = vpop.f32.mrb[0].mxu0
      %v1107 = vadd.f32 0.0, %v1106
      %v1108 = vpop.f32.mrb[0].mxu0
      %1109 = vmatprep.mubr.bf16.mxu0 0
      %1110 = vmatmul.mubr.bf16.gmra.mrb[0].mxu0 %v1014
      %v1111 = vpop.f32.mrb[0].mxu0
      %v1112 = vadd.f32 0.0, %v1111
      %v1113 = vpop.f32.mrb[0].mxu0
      %v1114 = vpop.f32.mrb[0].mxu0
      %v1115 = vadd.f32 0.0, %v1114
      %v1116 = vpop.f32.mrb[0].mxu0
      %1117 = vmatprep.mubr.bf16.mxu0 0
      %1118 = vmatmul.mubr.bf16.gmra.mrb[0].mxu0 %v1015
      %v1119 = vpop.f32.mrb[0].mxu0
      %v1120 = vadd.f32 0.0, %v1119
      %v1121 = vpop.f32.mrb[0].mxu0
      %v1122 = vpop.f32.mrb[0].mxu0
      %v1123 = vadd.f32 0.0, %v1122
      %v1124 = vpop.f32.mrb[0].mxu0
      %1125 = vmatprep.mubr.bf16.mxu0 0
      %1126 = vmatmul.mubr.bf16.gmra.mrb[0].mxu0 %v1016
      %v1127 = vpop.f32.mrb[0].mxu0
      %v1128 = vadd.f32 0.0, %v1127
      %v1129 = vpop.f32.mrb[0].mxu0
      %v1130 = vpop.f32.mrb[0].mxu0
      %v1131 = vadd.f32 0.0, %v1130
      %v1132 = vpop.f32.mrb[0].mxu0
      %1133 = vdwg.mxu0
      %v1134 = vadd.f32 %v964, %v1104
      %v1135 = vadd.f32 %v965, %v1107
      %v1136 = vadd.f32 %v966, %v1112
      %v1137 = vadd.f32 %v967, %v1115
      %v1138 = vadd.f32 %v968, %v1120
      %v1139 = vadd.f32 %v969, %v1123
      %v1140 = vadd.f32 %v970, %v1128
      %v1141 = vadd.f32 %v971, %v1131
      %v1142 = vld [vmem:[%s193 + $0x8] sm:$0xf]
      %v1143 = vld [vmem:[%s193 + $0x18] sm:$0x1]
      %v1144 = vld [vmem:[%s193 + $0x28] sm:$0xf]
      %v1145 = vld [vmem:[%s193 + $0x38] sm:$0x1]
      %v1146 = vld [vmem:[%s193 + $0x48] sm:$0xf]
      %v1147 = vld [vmem:[%s193 + $0x58] sm:$0x1]
      %v1148 = vld [vmem:[%s193 + $0x68] sm:$0xf]
      %v1149 = vld [vmem:[%s193 + $0x78] sm:$0x1]
      %v1150 = vld [vmem:[%s193 + $0x88] sm:$0xf]
      %v1151 = vld [vmem:[%s193 + $0x98] sm:$0x1]
      %v1152 = vld [vmem:[%s193 + $0xa8] sm:$0xf]
      %v1153 = vld [vmem:[%s193 + $0xb8] sm:$0x1]
      %v1154 = vld [vmem:[%s193 + $0xc8] sm:$0xf]
      %v1155 = vld [vmem:[%s193 + $0xd8] sm:$0x1]
      %v1156 = vld [vmem:[%s193 + $0xe8] sm:$0xf]
      %v1157 = vld [vmem:[%s193 + $0xf8] sm:$0x1]
      %v1159 = vshrl.u32 %v1142, 16
      %v1161 = vrot.slane %v1159, 4
      %v1162 = vshll.u32 %v1142, 16
      %v1164 = vrot.slane %v1162, 5
      %v1165 = vor.u32 %v1161, %v1164
      %v1166 = vrot.slane %v1165, 4
      %v1168 = vshll.u32 %v1143, 16
      %v1170 = vrot.slane %v1168, 5
      %v1171 = vsel %vm535, %v1166, %v1170
      %v1173 = vshrl.u32 %v1144, 16
      %v1175 = vrot.slane %v1173, 4
      %v1176 = vshll.u32 %v1144, 16
      %v1178 = vrot.slane %v1176, 5
      %v1179 = vor.u32 %v1175, %v1178
      %v1180 = vrot.slane %v1179, 4
      %v1182 = vshll.u32 %v1145, 16
      %v1184 = vrot.slane %v1182, 5
      %v1185 = vsel %vm535, %v1180, %v1184
      %v1187 = vshrl.u32 %v1146, 16
      %v1189 = vrot.slane %v1187, 4
      %v1190 = vshll.u32 %v1146, 16
      %v1192 = vrot.slane %v1190, 5
      %v1193 = vor.u32 %v1189, %v1192
      %v1194 = vrot.slane %v1193, 4
      %v1196 = vshll.u32 %v1147, 16
      %v1198 = vrot.slane %v1196, 5
      %v1199 = vsel %vm535, %v1194, %v1198
      %v1201 = vshrl.u32 %v1148, 16
      %v1203 = vrot.slane %v1201, 4
      %v1204 = vshll.u32 %v1148, 16
      %v1206 = vrot.slane %v1204, 5
      %v1207 = vor.u32 %v1203, %v1206
      %v1208 = vrot.slane %v1207, 4
      %v1210 = vshll.u32 %v1149, 16
      %v1212 = vrot.slane %v1210, 5
      %v1213 = vsel %vm535, %v1208, %v1212
      %v1215 = vshrl.u32 %v1150, 16
      %v1217 = vrot.slane %v1215, 4
      %v1218 = vshll.u32 %v1150, 16
      %v1220 = vrot.slane %v1218, 5
      %v1221 = vor.u32 %v1217, %v1220
      %v1222 = vrot.slane %v1221, 4
      %v1224 = vshll.u32 %v1151, 16
      %v1226 = vrot.slane %v1224, 5
      %v1227 = vsel %vm535, %v1222, %v1226
      %v1229 = vshrl.u32 %v1152, 16
      %v1231 = vrot.slane %v1229, 4
      %v1232 = vshll.u32 %v1152, 16
      %v1234 = vrot.slane %v1232, 5
      %v1235 = vor.u32 %v1231, %v1234
      %v1236 = vrot.slane %v1235, 4
      %v1238 = vshll.u32 %v1153, 16
      %v1240 = vrot.slane %v1238, 5
      %v1241 = vsel %vm535, %v1236, %v1240
      %v1243 = vshrl.u32 %v1154, 16
      %v1245 = vrot.slane %v1243, 4
      %v1246 = vshll.u32 %v1154, 16
      %v1248 = vrot.slane %v1246, 5
      %v1249 = vor.u32 %v1245, %v1248
      %v1250 = vrot.slane %v1249, 4
      %v1252 = vshll.u32 %v1155, 16
      %v1254 = vrot.slane %v1252, 5
      %v1255 = vsel %vm535, %v1250, %v1254
      %v1257 = vshrl.u32 %v1156, 16
      %v1259 = vrot.slane %v1257, 4
      %v1260 = vshll.u32 %v1156, 16
      %v1262 = vrot.slane %v1260, 5
      %v1263 = vor.u32 %v1259, %v1262
      %v1264 = vrot.slane %v1263, 4
      %v1266 = vshll.u32 %v1157, 16
      %v1268 = vrot.slane %v1266, 5
      %v1269 = vsel %vm535, %v1264, %v1268
      %s1270 = scalar_lea.vmem %s1, 320
      %v1271 = vld [vmem:[%s1270] sm:$0xf]
      %v1272 = vld [vmem:[%s1270 + $0x4] sm:$0xf]
      %v1273 = vld [vmem:[%s1270 + $0x8] sm:$0xf]
      %v1274 = vld [vmem:[%s1270 + $0xc] sm:$0xf]
      %v1275 = vld [vmem:[%s1270 + $0x10] sm:$0xf]
      %v1276 = vld [vmem:[%s1270 + $0x14] sm:$0xf]
      %v1277 = vld [vmem:[%s1270 + $0x18] sm:$0xf]
      %v1278 = vld [vmem:[%s1270 + $0x1c] sm:$0xf]
      %v1279 = vld [vmem:[%s1270 + $0x20] sm:$0xf]
      %v1280 = vld [vmem:[%s1270 + $0x24] sm:$0xf]
      %v1281 = vld [vmem:[%s1270 + $0x28] sm:$0xf]
      %v1282 = vld [vmem:[%s1270 + $0x2c] sm:$0xf]
      %v1283 = vld [vmem:[%s1270 + $0x30] sm:$0xf]
      %v1284 = vld [vmem:[%s1270 + $0x34] sm:$0xf]
      %v1285 = vld [vmem:[%s1270 + $0x38] sm:$0xf]
      %v1286 = vld [vmem:[%s1270 + $0x3c] sm:$0xf]
      %v1287 = vunpack.c.l.b16 %v1171
      %v1288 = vunpack.c.l.b16 %v1185
      %v1289 = vunpack.c.l.b16 %v1199
      %v1290 = vunpack.c.l.b16 %v1213
      %v1291 = vunpack.c.l.b16 %v1227
      %v1292 = vunpack.c.l.b16 %v1241
      %v1293 = vunpack.c.l.b16 %v1255
      %v1294 = vunpack.c.l.b16 %v1269
      %v1295 = vpack.c.b16 %v1288, %v1287
      %v1296 = vpack.c.b16 %v1290, %v1289
      %v1297 = vpack.c.b16 %v1292, %v1291
      %v1298 = vpack.c.b16 %v1294, %v1293
      %v1319 = vunpack.c.l.b16 %v1271
      %v1320 = vunpack.c.l.b16 %v1272
      %v1321 = vunpack.c.l.b16 %v1273
      %v1322 = vunpack.c.l.b16 %v1274
      %v1323 = vunpack.c.l.b16 %v1275
      %v1324 = vunpack.c.l.b16 %v1276
      %v1325 = vunpack.c.l.b16 %v1277
      %v1326 = vunpack.c.l.b16 %v1278
      %v1327 = vunpack.c.l.b16 %v1279
      %v1328 = vunpack.c.l.b16 %v1280
      %v1329 = vunpack.c.l.b16 %v1281
      %v1330 = vunpack.c.l.b16 %v1282
      %v1331 = vunpack.c.l.b16 %v1283
      %v1332 = vunpack.c.l.b16 %v1284
      %v1333 = vunpack.c.l.b16 %v1285
      %v1334 = vunpack.c.l.b16 %v1286
      %v1335 = vpack.c.b16 %v1320, %v1319
      %v1336 = vpack.c.b16 %v1322, %v1321
      %v1337 = vpack.c.b16 %v1324, %v1323
      %v1338 = vpack.c.b16 %v1326, %v1325
      %v1339 = vpack.c.b16 %v1328, %v1327
      %v1340 = vpack.c.b16 %v1330, %v1329
      %v1341 = vpack.c.b16 %v1332, %v1331
      %v1342 = vpack.c.b16 %v1334, %v1333
      %1351 = vmatprep.subr.bf16.mxu0 0
      %1352 = vmatpush1.bf16.msra.mxu0 %v1335
      %1353 = vmatprep.subr.bf16.mxu0 0
      %1354 = vmatpush1.bf16.msra.mxu0 %v1336
      %1355 = vmatprep.subr.bf16.mxu0 0
      %1356 = vmatpush1.bf16.msra.mxu0 %v1337
      %1357 = vmatprep.subr.bf16.mxu0 0
      %1358 = vmatpush1.bf16.msra.mxu0 %v1338
      %1359 = vmatprep.subr.bf16.mxu0 0
      %1360 = vmatpush1.bf16.msra.mxu0 %v1339
      %1361 = vmatprep.subr.bf16.mxu0 0
      %1362 = vmatpush1.bf16.msra.mxu0 %v1340
      %1363 = vmatprep.subr.bf16.mxu0 0
      %1364 = vmatpush1.bf16.msra.mxu0 %v1341
      %1365 = vmatprep.subr.bf16.mxu0 0
      %1366 = vmatpush1.bf16.msra.mxu0 %v1342
      %1367 = vmatprep.subr.bf16.mxu0 0
      %1368 = vmatpush1.bf16.msra.mxu0 0
      %1369 = vmatprep.subr.bf16.mxu0 0
      %1370 = vmatpush1.bf16.msra.mxu0 0
      %1371 = vmatprep.subr.bf16.mxu0 0
      %1372 = vmatpush1.bf16.msra.mxu0 0
      %1373 = vmatprep.subr.bf16.mxu0 0
      %1374 = vmatpush1.bf16.msra.mxu0 0
      %1375 = vmatprep.subr.bf16.mxu0 0
      %1376 = vmatpush1.bf16.msra.mxu0 0
      %1377 = vmatprep.subr.bf16.mxu0 0
      %1378 = vmatpush1.bf16.msra.mxu0 0
      %1379 = vmatprep.subr.bf16.mxu0 0
      %1380 = vmatpush1.bf16.msra.mxu0 0
      %1381 = vmatprep.subr.bf16.mxu0 0
      %1382 = vmatpush1.bf16.msra.mxu0 0
      %1383 = vmatprep.mubr.bf16.mxu0 0
      %1384 = vmatmul.mubr.bf16.gmra.mrb[0].mxu0 %v1295
      %v1385 = vpop.f32.mrb[0].mxu0
      %v1386 = vadd.f32 0.0, %v1385
      %v1387 = vpop.f32.mrb[0].mxu0
      %v1388 = vpop.f32.mrb[0].mxu0
      %v1389 = vadd.f32 0.0, %v1388
      %v1390 = vpop.f32.mrb[0].mxu0
      %1391 = vmatprep.mubr.bf16.mxu0 0
      %1392 = vmatmul.mubr.bf16.gmra.mrb[0].mxu0 %v1296
      %v1393 = vpop.f32.mrb[0].mxu0
      %v1394 = vadd.f32 0.0, %v1393
      %v1395 = vpop.f32.mrb[0].mxu0
      %v1396 = vpop.f32.mrb[0].mxu0
      %v1397 = vadd.f32 0.0, %v1396
      %v1398 = vpop.f32.mrb[0].mxu0
      %1399 = vmatprep.mubr.bf16.mxu0 0
      %1400 = vmatmul.mubr.bf16.gmra.mrb[0].mxu0 %v1297
      %v1401 = vpop.f32.mrb[0].mxu0
      %v1402 = vadd.f32 0.0, %v1401
      %v1403 = vpop.f32.mrb[0].mxu0
      %v1404 = vpop.f32.mrb[0].mxu0
      %v1405 = vadd.f32 0.0, %v1404
      %v1406 = vpop.f32.mrb[0].mxu0
      %1407 = vmatprep.mubr.bf16.mxu0 0
      %1408 = vmatmul.mubr.bf16.gmra.mrb[0].mxu0 %v1298
      %v1409 = vpop.f32.mrb[0].mxu0
      %v1410 = vadd.f32 0.0, %v1409
      %v1411 = vpop.f32.mrb[0].mxu0
      %v1412 = vpop.f32.mrb[0].mxu0
      %v1413 = vadd.f32 0.0, %v1412
      %v1414 = vpop.f32.mrb[0].mxu0
      %1415 = vdwg.mxu0
      %v1416 = vadd.f32 %v1134, %v1386
      %v1417 = vadd.f32 %v1135, %v1389
      %v1418 = vadd.f32 %v1136, %v1394
      %v1419 = vadd.f32 %v1137, %v1397
      %v1420 = vadd.f32 %v1138, %v1402
      %v1421 = vadd.f32 %v1139, %v1405
      %v1422 = vadd.f32 %v1140, %v1410
      %v1423 = vadd.f32 %v1141, %v1413
      %s1424 = sadd.s32 %s190, 1
      %s1425 = smul.u32 %s1424, 8
      %s1426 = smul.addr %s1425, 4
      %s1427 = scalar_lea.vmem %s180, %s1426
      %v1428 = vld [vmem:[%s1427] sm:$0xf]
      %v1429 = vld [vmem:[%s1427 + $0x20] sm:$0xf]
      %v1430 = vld [vmem:[%s1427 + $0x40] sm:$0xf]
      %v1431 = vld [vmem:[%s1427 + $0x60] sm:$0xf]
      %v1432 = vld [vmem:[%s1427 + $0x80] sm:$0xf]
      %v1433 = vld [vmem:[%s1427 + $0xa0] sm:$0xf]
      %v1434 = vld [vmem:[%s1427 + $0xc0] sm:$0xf]
      %v1435 = vld [vmem:[%s1427 + $0xe0] sm:$0xf]
      %s1436 = scalar_lea.vmem %s1, 384
      %v1437 = vld [vmem:[%s1436] sm:$0xf]
      %v1438 = vld [vmem:[%s1436 + $0x4] sm:$0xf]
      %v1439 = vld [vmem:[%s1436 + $0x8] sm:$0xf]
      %v1440 = vld [vmem:[%s1436 + $0xc] sm:$0xf]
      %v1441 = vld [vmem:[%s1436 + $0x10] sm:$0xf]
      %v1442 = vld [vmem:[%s1436 + $0x14] sm:$0xf]
      %v1443 = vld [vmem:[%s1436 + $0x18] sm:$0xf]
      %v1444 = vld [vmem:[%s1436 + $0x1c] sm:$0xf]
      %v1445 = vld [vmem:[%s1436 + $0x20] sm:$0xf]
      %v1446 = vld [vmem:[%s1436 + $0x24] sm:$0xf]
      %v1447 = vld [vmem:[%s1436 + $0x28] sm:$0xf]
      %v1448 = vld [vmem:[%s1436 + $0x2c] sm:$0xf]
      %v1449 = vld [vmem:[%s1436 + $0x30] sm:$0xf]
      %v1450 = vld [vmem:[%s1436 + $0x34] sm:$0xf]
      %v1451 = vld [vmem:[%s1436 + $0x38] sm:$0xf]
      %v1452 = vld [vmem:[%s1436 + $0x3c] sm:$0xf]
      %v1461 = vunpack.c.l.b16 %v1428
      %v1462 = vunpack.c.l.b16 %v1429
      %v1463 = vunpack.c.l.b16 %v1430
      %v1464 = vunpack.c.l.b16 %v1431
      %v1465 = vunpack.c.l.b16 %v1432
      %v1466 = vunpack.c.l.b16 %v1433
      %v1467 = vunpack.c.l.b16 %v1434
      %v1468 = vunpack.c.l.b16 %v1435
      %v1469 = vpack.c.b16 %v1462, %v1461
      %v1470 = vpack.c.b16 %v1464, %v1463
      %v1471 = vpack.c.b16 %v1466, %v1465
      %v1472 = vpack.c.b16 %v1468, %v1467
      %v1493 = vunpack.c.l.b16 %v1437
      %v1494 = vunpack.c.l.b16 %v1438
      %v1495 = vunpack.c.l.b16 %v1439
      %v1496 = vunpack.c.l.b16 %v1440
      %v1497 = vunpack.c.l.b16 %v1441
      %v1498 = vunpack.c.l.b16 %v1442
      %v1499 = vunpack.c.l.b16 %v1443
      %v1500 = vunpack.c.l.b16 %v1444
      %v1501 = vunpack.c.l.b16 %v1445
      %v1502 = vunpack.c.l.b16 %v1446
      %v1503 = vunpack.c.l.b16 %v1447
      %v1504 = vunpack.c.l.b16 %v1448
      %v1505 = vunpack.c.l.b16 %v1449
      %v1506 = vunpack.c.l.b16 %v1450
      %v1507 = vunpack.c.l.b16 %v1451
      %v1508 = vunpack.c.l.b16 %v1452
      %v1509 = vpack.c.b16 %v1494, %v1493
      %v1510 = vpack.c.b16 %v1496, %v1495
      %v1511 = vpack.c.b16 %v1498, %v1497
      %v1512 = vpack.c.b16 %v1500, %v1499
      %v1513 = vpack.c.b16 %v1502, %v1501
      %v1514 = vpack.c.b16 %v1504, %v1503
      %v1515 = vpack.c.b16 %v1506, %v1505
      %v1516 = vpack.c.b16 %v1508, %v1507
      %1525 = vmatprep.subr.bf16.mxu0 0
      %1526 = vmatpush1.bf16.msra.mxu0 %v1509
      %1527 = vmatprep.subr.bf16.mxu0 0
      %1528 = vmatpush1.bf16.msra.mxu0 %v1510
      %1529 = vmatprep.subr.bf16.mxu0 0
      %1530 = vmatpush1.bf16.msra.mxu0 %v1511
      %1531 = vmatprep.subr.bf16.mxu0 0
      %1532 = vmatpush1.bf16.msra.mxu0 %v1512
      %1533 = vmatprep.subr.bf16.mxu0 0
      %1534 = vmatpush1.bf16.msra.mxu0 %v1513
      %1535 = vmatprep.subr.bf16.mxu0 0
      %1536 = vmatpush1.bf16.msra.mxu0 %v1514
      %1537 = vmatprep.subr.bf16.mxu0 0
      %1538 = vmatpush1.bf16.msra.mxu0 %v1515
      %1539 = vmatprep.subr.bf16.mxu0 0
      %1540 = vmatpush1.bf16.msra.mxu0 %v1516
      %1541 = vmatprep.subr.bf16.mxu0 0
      %1542 = vmatpush1.bf16.msra.mxu0 0
      %1543 = vmatprep.subr.bf16.mxu0 0
      %1544 = vmatpush1.bf16.msra.mxu0 0
      %1545 = vmatprep.subr.bf16.mxu0 0
      %1546 = vmatpush1.bf16.msra.mxu0 0
      %1547 = vmatprep.subr.bf16.mxu0 0
      %1548 = vmatpush1.bf16.msra.mxu0 0
      %1549 = vmatprep.subr.bf16.mxu0 0
      %1550 = vmatpush1.bf16.msra.mxu0 0
      %1551 = vmatprep.subr.bf16.mxu0 0
      %1552 = vmatpush1.bf16.msra.mxu0 0
      %1553 = vmatprep.subr.bf16.mxu0 0
      %1554 = vmatpush1.bf16.msra.mxu0 0
      %1555 = vmatprep.subr.bf16.mxu0 0
      %1556 = vmatpush1.bf16.msra.mxu0 0
      %1557 = vmatprep.mubr.bf16.mxu0 0
      %1558 = vmatmul.mubr.bf16.gmra.mrb[0].mxu0 %v1469
      %v1559 = vpop.f32.mrb[0].mxu0
      %v1560 = vadd.f32 0.0, %v1559
      %v1561 = vpop.f32.mrb[0].mxu0
      %v1562 = vpop.f32.mrb[0].mxu0
      %v1563 = vadd.f32 0.0, %v1562
      %v1564 = vpop.f32.mrb[0].mxu0
      %1565 = vmatprep.mubr.bf16.mxu0 0
      %1566 = vmatmul.mubr.bf16.gmra.mrb[0].mxu0 %v1470
      %v1567 = vpop.f32.mrb[0].mxu0
      %v1568 = vadd.f32 0.0, %v1567
      %v1569 = vpop.f32.mrb[0].mxu0
      %v1570 = vpop.f32.mrb[0].mxu0
      %v1571 = vadd.f32 0.0, %v1570
      %v1572 = vpop.f32.mrb[0].mxu0
      %1573 = vmatprep.mubr.bf16.mxu0 0
      %1574 = vmatmul.mubr.bf16.gmra.mrb[0].mxu0 %v1471
      %v1575 = vpop.f32.mrb[0].mxu0
      %v1576 = vadd.f32 0.0, %v1575
      %v1577 = vpop.f32.mrb[0].mxu0
      %v1578 = vpop.f32.mrb[0].mxu0
      %v1579 = vadd.f32 0.0, %v1578
      %v1580 = vpop.f32.mrb[0].mxu0
      %1581 = vmatprep.mubr.bf16.mxu0 0
      %1582 = vmatmul.mubr.bf16.gmra.mrb[0].mxu0 %v1472
      %v1583 = vpop.f32.mrb[0].mxu0
      %v1584 = vadd.f32 0.0, %v1583
      %v1585 = vpop.f32.mrb[0].mxu0
      %v1586 = vpop.f32.mrb[0].mxu0
      %v1587 = vadd.f32 0.0, %v1586
      %v1588 = vpop.f32.mrb[0].mxu0
      %1589 = vdwg.mxu0
      %v1590 = vadd.f32 %v1416, %v1560
      %v1591 = vadd.f32 %v1417, %v1563
      %v1592 = vadd.f32 %v1418, %v1568
      %v1593 = vadd.f32 %v1419, %v1571
      %v1594 = vadd.f32 %v1420, %v1576
      %v1595 = vadd.f32 %v1421, %v1579
      %v1596 = vadd.f32 %v1422, %v1584
      %v1597 = vadd.f32 %v1423, %v1587
      %v1598 = vld [vmem:[%s1427 + $0x4] sm:$0xf]
      %v1599 = vld [vmem:[%s1427 + $0x24] sm:$0xf]
      %v1600 = vld [vmem:[%s1427 + $0x44] sm:$0xf]
      %v1601 = vld [vmem:[%s1427 + $0x64] sm:$0xf]
      %v1602 = vld [vmem:[%s1427 + $0x84] sm:$0xf]
      %v1603 = vld [vmem:[%s1427 + $0xa4] sm:$0xf]
      %v1604 = vld [vmem:[%s1427 + $0xc4] sm:$0xf]
      %v1605 = vld [vmem:[%s1427 + $0xe4] sm:$0xf]
      %s1606 = scalar_lea.vmem %s1, 448
      %v1607 = vld [vmem:[%s1606] sm:$0xf]
      %v1608 = vld [vmem:[%s1606 + $0x4] sm:$0xf]
      %v1609 = vld [vmem:[%s1606 + $0x8] sm:$0xf]
      %v1610 = vld [vmem:[%s1606 + $0xc] sm:$0xf]
      %v1611 = vld [vmem:[%s1606 + $0x10] sm:$0xf]
      %v1612 = vld [vmem:[%s1606 + $0x14] sm:$0xf]
      %v1613 = vld [vmem:[%s1606 + $0x18] sm:$0xf]
      %v1614 = vld [vmem:[%s1606 + $0x1c] sm:$0xf]
      %v1615 = vld [vmem:[%s1606 + $0x20] sm:$0xf]
      %v1616 = vld [vmem:[%s1606 + $0x24] sm:$0xf]
      %v1617 = vld [vmem:[%s1606 + $0x28] sm:$0xf]
      %v1618 = vld [vmem:[%s1606 + $0x2c] sm:$0xf]
      %v1619 = vld [vmem:[%s1606 + $0x30] sm:$0xf]
      %v1620 = vld [vmem:[%s1606 + $0x34] sm:$0xf]
      %v1621 = vld [vmem:[%s1606 + $0x38] sm:$0xf]
      %v1622 = vld [vmem:[%s1606 + $0x3c] sm:$0xf]
      %v1631 = vunpack.c.l.b16 %v1598
      %v1632 = vunpack.c.l.b16 %v1599
      %v1633 = vunpack.c.l.b16 %v1600
      %v1634 = vunpack.c.l.b16 %v1601
      %v1635 = vunpack.c.l.b16 %v1602
      %v1636 = vunpack.c.l.b16 %v1603
      %v1637 = vunpack.c.l.b16 %v1604
      %v1638 = vunpack.c.l.b16 %v1605
      %v1639 = vpack.c.b16 %v1632, %v1631
      %v1640 = vpack.c.b16 %v1634, %v1633
      %v1641 = vpack.c.b16 %v1636, %v1635
      %v1642 = vpack.c.b16 %v1638, %v1637
      %v1663 = vunpack.c.l.b16 %v1607
      %v1664 = vunpack.c.l.b16 %v1608
      %v1665 = vunpack.c.l.b16 %v1609
      %v1666 = vunpack.c.l.b16 %v1610
      %v1667 = vunpack.c.l.b16 %v1611
      %v1668 = vunpack.c.l.b16 %v1612
      %v1669 = vunpack.c.l.b16 %v1613
      %v1670 = vunpack.c.l.b16 %v1614
      %v1671 = vunpack.c.l.b16 %v1615
      %v1672 = vunpack.c.l.b16 %v1616
      %v1673 = vunpack.c.l.b16 %v1617
      %v1674 = vunpack.c.l.b16 %v1618
      %v1675 = vunpack.c.l.b16 %v1619
      %v1676 = vunpack.c.l.b16 %v1620
      %v1677 = vunpack.c.l.b16 %v1621
      %v1678 = vunpack.c.l.b16 %v1622
      %v1679 = vpack.c.b16 %v1664, %v1663
      %v1680 = vpack.c.b16 %v1666, %v1665
      %v1681 = vpack.c.b16 %v1668, %v1667
      %v1682 = vpack.c.b16 %v1670, %v1669
      %v1683 = vpack.c.b16 %v1672, %v1671
      %v1684 = vpack.c.b16 %v1674, %v1673
      %v1685 = vpack.c.b16 %v1676, %v1675
      %v1686 = vpack.c.b16 %v1678, %v1677
      %1695 = vmatprep.subr.bf16.mxu0 0
      %1696 = vmatpush1.bf16.msra.mxu0 %v1679
      %1697 = vmatprep.subr.bf16.mxu0 0
      %1698 = vmatpush1.bf16.msra.mxu0 %v1680
      %1699 = vmatprep.subr.bf16.mxu0 0
      %1700 = vmatpush1.bf16.msra.mxu0 %v1681
      %1701 = vmatprep.subr.bf16.mxu0 0
      %1702 = vmatpush1.bf16.msra.mxu0 %v1682
      %1703 = vmatprep.subr.bf16.mxu0 0
      %1704 = vmatpush1.bf16.msra.mxu0 %v1683
      %1705 = vmatprep.subr.bf16.mxu0 0
      %1706 = vmatpush1.bf16.msra.mxu0 %v1684
      %1707 = vmatprep.subr.bf16.mxu0 0
      %1708 = vmatpush1.bf16.msra.mxu0 %v1685
      %1709 = vmatprep.subr.bf16.mxu0 0
      %1710 = vmatpush1.bf16.msra.mxu0 %v1686
      %1711 = vmatprep.subr.bf16.mxu0 0
      %1712 = vmatpush1.bf16.msra.mxu0 0
      %1713 = vmatprep.subr.bf16.mxu0 0
      %1714 = vmatpush1.bf16.msra.mxu0 0
      %1715 = vmatprep.subr.bf16.mxu0 0
      %1716 = vmatpush1.bf16.msra.mxu0 0
      %1717 = vmatprep.subr.bf16.mxu0 0
      %1718 = vmatpush1.bf16.msra.mxu0 0
      %1719 = vmatprep.subr.bf16.mxu0 0
      %1720 = vmatpush1.bf16.msra.mxu0 0
      %1721 = vmatprep.subr.bf16.mxu0 0
      %1722 = vmatpush1.bf16.msra.mxu0 0
      %1723 = vmatprep.subr.bf16.mxu0 0
      %1724 = vmatpush1.bf16.msra.mxu0 0
      %1725 = vmatprep.subr.bf16.mxu0 0
      %1726 = vmatpush1.bf16.msra.mxu0 0
      %1727 = vmatprep.mubr.bf16.mxu0 0
      %1728 = vmatmul.mubr.bf16.gmra.mrb[0].mxu0 %v1639
      %v1729 = vpop.f32.mrb[0].mxu0
      %v1730 = vadd.f32 0.0, %v1729
      %v1731 = vpop.f32.mrb[0].mxu0
      %v1732 = vpop.f32.mrb[0].mxu0
      %v1733 = vadd.f32 0.0, %v1732
      %v1734 = vpop.f32.mrb[0].mxu0
      %1735 = vmatprep.mubr.bf16.mxu0 0
      %1736 = vmatmul.mubr.bf16.gmra.mrb[0].mxu0 %v1640
      %v1737 = vpop.f32.mrb[0].mxu0
      %v1738 = vadd.f32 0.0, %v1737
      %v1739 = vpop.f32.mrb[0].mxu0
      %v1740 = vpop.f32.mrb[0].mxu0
      %v1741 = vadd.f32 0.0, %v1740
      %v1742 = vpop.f32.mrb[0].mxu0
      %1743 = vmatprep.mubr.bf16.mxu0 0
      %1744 = vmatmul.mubr.bf16.gmra.mrb[0].mxu0 %v1641
      %v1745 = vpop.f32.mrb[0].mxu0
      %v1746 = vadd.f32 0.0, %v1745
      %v1747 = vpop.f32.mrb[0].mxu0
      %v1748 = vpop.f32.mrb[0].mxu0
      %v1749 = vadd.f32 0.0, %v1748
      %v1750 = vpop.f32.mrb[0].mxu0
      %1751 = vmatprep.mubr.bf16.mxu0 0
      %1752 = vmatmul.mubr.bf16.gmra.mrb[0].mxu0 %v1642
      %v1753 = vpop.f32.mrb[0].mxu0
      %v1754 = vadd.f32 0.0, %v1753
      %v1755 = vpop.f32.mrb[0].mxu0
      %v1756 = vpop.f32.mrb[0].mxu0
      %v1757 = vadd.f32 0.0, %v1756
      %v1758 = vpop.f32.mrb[0].mxu0
      %1759 = vdwg.mxu0
      %v1760 = vadd.f32 %v1590, %v1730
      %v1761 = vadd.f32 %v1591, %v1733
      %v1762 = vadd.f32 %v1592, %v1738
      %v1763 = vadd.f32 %v1593, %v1741
      %v1764 = vadd.f32 %v1594, %v1746
      %v1765 = vadd.f32 %v1595, %v1749
      %v1766 = vadd.f32 %v1596, %v1754
      %v1767 = vadd.f32 %v1597, %v1757
      %v1768 = vld [vmem:[%s1427] sm:$0xf]
      %v1769 = vld [vmem:[%s1427 + $0x10] sm:$0x1]
      %v1770 = vld [vmem:[%s1427 + $0x20] sm:$0xf]
      %v1771 = vld [vmem:[%s1427 + $0x30] sm:$0x1]
      %v1772 = vld [vmem:[%s1427 + $0x40] sm:$0xf]
      %v1773 = vld [vmem:[%s1427 + $0x50] sm:$0x1]
      %v1774 = vld [vmem:[%s1427 + $0x60] sm:$0xf]
      %v1775 = vld [vmem:[%s1427 + $0x70] sm:$0x1]
      %v1776 = vld [vmem:[%s1427 + $0x80] sm:$0xf]
      %v1777 = vld [vmem:[%s1427 + $0x90] sm:$0x1]
      %v1778 = vld [vmem:[%s1427 + $0xa0] sm:$0xf]
      %v1779 = vld [vmem:[%s1427 + $0xb0] sm:$0x1]
      %v1780 = vld [vmem:[%s1427 + $0xc0] sm:$0xf]
      %v1781 = vld [vmem:[%s1427 + $0xd0] sm:$0x1]
      %v1782 = vld [vmem:[%s1427 + $0xe0] sm:$0xf]
      %v1783 = vld [vmem:[%s1427 + $0xf0] sm:$0x1]
      %v1785 = vshrl.u32 %v1768, 16
      %v1787 = vrot.slane %v1785, 4
      %v1788 = vshll.u32 %v1768, 16
      %v1790 = vrot.slane %v1788, 5
      %v1791 = vor.u32 %v1787, %v1790
      %v1792 = vrot.slane %v1791, 4
      %v1794 = vshll.u32 %v1769, 16
      %v1796 = vrot.slane %v1794, 5
      %v1797 = vsel %vm535, %v1792, %v1796
      %v1799 = vshrl.u32 %v1770, 16
      %v1801 = vrot.slane %v1799, 4
      %v1802 = vshll.u32 %v1770, 16
      %v1804 = vrot.slane %v1802, 5
      %v1805 = vor.u32 %v1801, %v1804
      %v1806 = vrot.slane %v1805, 4
      %v1808 = vshll.u32 %v1771, 16
      %v1810 = vrot.slane %v1808, 5
      %v1811 = vsel %vm535, %v1806, %v1810
      %v1813 = vshrl.u32 %v1772, 16
      %v1815 = vrot.slane %v1813, 4
      %v1816 = vshll.u32 %v1772, 16
      %v1818 = vrot.slane %v1816, 5
      %v1819 = vor.u32 %v1815, %v1818
      %v1820 = vrot.slane %v1819, 4
      %v1822 = vshll.u32 %v1773, 16
      %v1824 = vrot.slane %v1822, 5
      %v1825 = vsel %vm535, %v1820, %v1824
      %v1827 = vshrl.u32 %v1774, 16
      %v1829 = vrot.slane %v1827, 4
      %v1830 = vshll.u32 %v1774, 16
      %v1832 = vrot.slane %v1830, 5
      %v1833 = vor.u32 %v1829, %v1832
      %v1834 = vrot.slane %v1833, 4
      %v1836 = vshll.u32 %v1775, 16
      %v1838 = vrot.slane %v1836, 5
      %v1839 = vsel %vm535, %v1834, %v1838
      %v1841 = vshrl.u32 %v1776, 16
      %v1843 = vrot.slane %v1841, 4
      %v1844 = vshll.u32 %v1776, 16
      %v1846 = vrot.slane %v1844, 5
      %v1847 = vor.u32 %v1843, %v1846
      %v1848 = vrot.slane %v1847, 4
      %v1850 = vshll.u32 %v1777, 16
      %v1852 = vrot.slane %v1850, 5
      %v1853 = vsel %vm535, %v1848, %v1852
      %v1855 = vshrl.u32 %v1778, 16
      %v1857 = vrot.slane %v1855, 4
      %v1858 = vshll.u32 %v1778, 16
      %v1860 = vrot.slane %v1858, 5
      %v1861 = vor.u32 %v1857, %v1860
      %v1862 = vrot.slane %v1861, 4
      %v1864 = vshll.u32 %v1779, 16
      %v1866 = vrot.slane %v1864, 5
      %v1867 = vsel %vm535, %v1862, %v1866
      %v1869 = vshrl.u32 %v1780, 16
      %v1871 = vrot.slane %v1869, 4
      %v1872 = vshll.u32 %v1780, 16
      %v1874 = vrot.slane %v1872, 5
      %v1875 = vor.u32 %v1871, %v1874
      %v1876 = vrot.slane %v1875, 4
      %v1878 = vshll.u32 %v1781, 16
      %v1880 = vrot.slane %v1878, 5
      %v1881 = vsel %vm535, %v1876, %v1880
      %v1883 = vshrl.u32 %v1782, 16
      %v1885 = vrot.slane %v1883, 4
      %v1886 = vshll.u32 %v1782, 16
      %v1888 = vrot.slane %v1886, 5
      %v1889 = vor.u32 %v1885, %v1888
      %v1890 = vrot.slane %v1889, 4
      %v1892 = vshll.u32 %v1783, 16
      %v1894 = vrot.slane %v1892, 5
      %v1895 = vsel %vm535, %v1890, %v1894
      %s1896 = scalar_lea.vmem %s1, 512
      %v1897 = vld [vmem:[%s1896] sm:$0xf]
      %v1898 = vld [vmem:[%s1896 + $0x4] sm:$0xf]
      %v1899 = vld [vmem:[%s1896 + $0x8] sm:$0xf]
      %v1900 = vld [vmem:[%s1896 + $0xc] sm:$0xf]
      %v1901 = vld [vmem:[%s1896 + $0x10] sm:$0xf]
      %v1902 = vld [vmem:[%s1896 + $0x14] sm:$0xf]
      %v1903 = vld [vmem:[%s1896 + $0x18] sm:$0xf]
      %v1904 = vld [vmem:[%s1896 + $0x1c] sm:$0xf]
      %v1905 = vld [vmem:[%s1896 + $0x20] sm:$0xf]
      %v1906 = vld [vmem:[%s1896 + $0x24] sm:$0xf]
      %v1907 = vld [vmem:[%s1896 + $0x28] sm:$0xf]
      %v1908 = vld [vmem:[%s1896 + $0x2c] sm:$0xf]
      %v1909 = vld [vmem:[%s1896 + $0x30] sm:$0xf]
      %v1910 = vld [vmem:[%s1896 + $0x34] sm:$0xf]
      %v1911 = vld [vmem:[%s1896 + $0x38] sm:$0xf]
      %v1912 = vld [vmem:[%s1896 + $0x3c] sm:$0xf]
      %v1913 = vunpack.c.l.b16 %v1797
      %v1914 = vunpack.c.l.b16 %v1811
      %v1915 = vunpack.c.l.b16 %v1825
      %v1916 = vunpack.c.l.b16 %v1839
      %v1917 = vunpack.c.l.b16 %v1853
      %v1918 = vunpack.c.l.b16 %v1867
      %v1919 = vunpack.c.l.b16 %v1881
      %v1920 = vunpack.c.l.b16 %v1895
      %v1921 = vpack.c.b16 %v1914, %v1913
      %v1922 = vpack.c.b16 %v1916, %v1915
      %v1923 = vpack.c.b16 %v1918, %v1917
      %v1924 = vpack.c.b16 %v1920, %v1919
      %v1945 = vunpack.c.l.b16 %v1897
      %v1946 = vunpack.c.l.b16 %v1898
      %v1947 = vunpack.c.l.b16 %v1899
      %v1948 = vunpack.c.l.b16 %v1900
      %v1949 = vunpack.c.l.b16 %v1901
      %v1950 = vunpack.c.l.b16 %v1902
      %v1951 = vunpack.c.l.b16 %v1903
      %v1952 = vunpack.c.l.b16 %v1904
      %v1953 = vunpack.c.l.b16 %v1905
      %v1954 = vunpack.c.l.b16 %v1906
      %v1955 = vunpack.c.l.b16 %v1907
      %v1956 = vunpack.c.l.b16 %v1908
      %v1957 = vunpack.c.l.b16 %v1909
      %v1958 = vunpack.c.l.b16 %v1910
      %v1959 = vunpack.c.l.b16 %v1911
      %v1960 = vunpack.c.l.b16 %v1912
      %v1961 = vpack.c.b16 %v1946, %v1945
      %v1962 = vpack.c.b16 %v1948, %v1947
      %v1963 = vpack.c.b16 %v1950, %v1949
      %v1964 = vpack.c.b16 %v1952, %v1951
      %v1965 = vpack.c.b16 %v1954, %v1953
      %v1966 = vpack.c.b16 %v1956, %v1955
      %v1967 = vpack.c.b16 %v1958, %v1957
      %v1968 = vpack.c.b16 %v1960, %v1959
      %1977 = vmatprep.subr.bf16.mxu0 0
      %1978 = vmatpush1.bf16.msra.mxu0 %v1961
      %1979 = vmatprep.subr.bf16.mxu0 0
      %1980 = vmatpush1.bf16.msra.mxu0 %v1962
      %1981 = vmatprep.subr.bf16.mxu0 0
      %1982 = vmatpush1.bf16.msra.mxu0 %v1963
      %1983 = vmatprep.subr.bf16.mxu0 0
      %1984 = vmatpush1.bf16.msra.mxu0 %v1964
      %1985 = vmatprep.subr.bf16.mxu0 0
      %1986 = vmatpush1.bf16.msra.mxu0 %v1965
      %1987 = vmatprep.subr.bf16.mxu0 0
      %1988 = vmatpush1.bf16.msra.mxu0 %v1966
      %1989 = vmatprep.subr.bf16.mxu0 0
      %1990 = vmatpush1.bf16.msra.mxu0 %v1967
      %1991 = vmatprep.subr.bf16.mxu0 0
      %1992 = vmatpush1.bf16.msra.mxu0 %v1968
      %1993 = vmatprep.subr.bf16.mxu0 0
      %1994 = vmatpush1.bf16.msra.mxu0 0
      %1995 = vmatprep.subr.bf16.mxu0 0
      %1996 = vmatpush1.bf16.msra.mxu0 0
      %1997 = vmatprep.subr.bf16.mxu0 0
      %1998 = vmatpush1.bf16.msra.mxu0 0
      %1999 = vmatprep.subr.bf16.mxu0 0
      %2000 = vmatpush1.bf16.msra.mxu0 0
      %2001 = vmatprep.subr.bf16.mxu0 0
      %2002 = vmatpush1.bf16.msra.mxu0 0
      %2003 = vmatprep.subr.bf16.mxu0 0
      %2004 = vmatpush1.bf16.msra.mxu0 0
      %2005 = vmatprep.subr.bf16.mxu0 0
      %2006 = vmatpush1.bf16.msra.mxu0 0
      %2007 = vmatprep.subr.bf16.mxu0 0
      %2008 = vmatpush1.bf16.msra.mxu0 0
      %2009 = vmatprep.mubr.bf16.mxu0 0
      %2010 = vmatmul.mubr.bf16.gmra.mrb[0].mxu0 %v1921
      %v2011 = vpop.f32.mrb[0].mxu0
      %v2012 = vadd.f32 0.0, %v2011
      %v2013 = vpop.f32.mrb[0].mxu0
      %v2014 = vpop.f32.mrb[0].mxu0
      %v2015 = vadd.f32 0.0, %v2014
      %v2016 = vpop.f32.mrb[0].mxu0
      %2017 = vmatprep.mubr.bf16.mxu0 0
      %2018 = vmatmul.mubr.bf16.gmra.mrb[0].mxu0 %v1922
      %v2019 = vpop.f32.mrb[0].mxu0
      %v2020 = vadd.f32 0.0, %v2019
      %v2021 = vpop.f32.mrb[0].mxu0
      %v2022 = vpop.f32.mrb[0].mxu0
      %v2023 = vadd.f32 0.0, %v2022
      %v2024 = vpop.f32.mrb[0].mxu0
      %2025 = vmatprep.mubr.bf16.mxu0 0
      %2026 = vmatmul.mubr.bf16.gmra.mrb[0].mxu0 %v1923
      %v2027 = vpop.f32.mrb[0].mxu0
      %v2028 = vadd.f32 0.0, %v2027
      %v2029 = vpop.f32.mrb[0].mxu0
      %v2030 = vpop.f32.mrb[0].mxu0
      %v2031 = vadd.f32 0.0, %v2030
      %v2032 = vpop.f32.mrb[0].mxu0
      %2033 = vmatprep.mubr.bf16.mxu0 0
      %2034 = vmatmul.mubr.bf16.gmra.mrb[0].mxu0 %v1924
      %v2035 = vpop.f32.mrb[0].mxu0
      %v2036 = vadd.f32 0.0, %v2035
      %v2037 = vpop.f32.mrb[0].mxu0
      %v2038 = vpop.f32.mrb[0].mxu0
      %v2039 = vadd.f32 0.0, %v2038
      %v2040 = vpop.f32.mrb[0].mxu0
      %2041 = vdwg.mxu0
      %v2042 = vadd.f32 %v1760, %v2012
      %v2043 = vadd.f32 %v1761, %v2015
      %v2044 = vadd.f32 %v1762, %v2020
      %v2045 = vadd.f32 %v1763, %v2023
      %v2046 = vadd.f32 %v1764, %v2028
      %v2047 = vadd.f32 %v1765, %v2031
      %v2048 = vadd.f32 %v1766, %v2036
      %v2049 = vadd.f32 %v1767, %v2039
      %v2050 = vld [vmem:[%s2] sm:$0x1]
      %v2052 = vlaneseq
      %v2053 = vshrl.u32 %v2052, 7
      %v2054 = vsub.s32 0, %v2053
      %v2055 = vrot.slane %v2050, %v2054
      %v2057 = vadd.f32 %v2042, %v2055
      %v2058 = vadd.f32 %v2043, %v2055
      %v2059 = vadd.f32 %v2044, %v2055
      %v2060 = vadd.f32 %v2045, %v2055
      %v2061 = vadd.f32 %v2046, %v2055
      %v2062 = vadd.f32 %v2047, %v2055
      %v2063 = vadd.f32 %v2048, %v2055
      %v2064 = vadd.f32 %v2049, %v2055
      %vm2065 = vcmp.ge.f32.partialorder %v2057, 0.0
      %vm2066 = vcmp.ge.f32.partialorder %v2058, 0.0
      %vm2067 = vcmp.ge.f32.partialorder %v2059, 0.0
      %vm2068 = vcmp.ge.f32.partialorder %v2060, 0.0
      %vm2069 = vcmp.ge.f32.partialorder %v2061, 0.0
      %vm2070 = vcmp.ge.f32.partialorder %v2062, 0.0
      %vm2071 = vcmp.ge.f32.partialorder %v2063, 0.0
      %vm2072 = vcmp.ge.f32.partialorder %v2064, 0.0
      %v2073 = vmul.f32 %v2057, 0.1
      %v2074 = vmul.f32 %v2058, 0.1
      %v2075 = vmul.f32 %v2059, 0.1
      %v2076 = vmul.f32 %v2060, 0.1
      %v2077 = vmul.f32 %v2061, 0.1
      %v2078 = vmul.f32 %v2062, 0.1
      %v2079 = vmul.f32 %v2063, 0.1
      %v2080 = vmul.f32 %v2064, 0.1
      %v2081 = vsel %vm2065, %v2057, %v2073
      %v2082 = vsel %vm2066, %v2058, %v2074
      %v2083 = vsel %vm2067, %v2059, %v2075
      %v2084 = vsel %vm2068, %v2060, %v2076
      %v2085 = vsel %vm2069, %v2061, %v2077
      %v2086 = vsel %vm2070, %v2062, %v2078
      %v2087 = vsel %vm2071, %v2063, %v2079
      %v2088 = vsel %vm2072, %v2064, %v2080
      %v2089 = vpack.c.bf16 %v2082, %v2081
      %v2090 = vpack.c.bf16 %v2084, %v2083
      %v2091 = vpack.c.bf16 %v2086, %v2085
      %v2092 = vpack.c.bf16 %v2088, %v2087
      %v2097 = vunpack.c.l.b16 %v2089
      %v2098 = vunpack.c.h.b16 %v2089
      %v2099 = vunpack.c.l.b16 %v2090
      %v2100 = vunpack.c.h.b16 %v2090
      %v2101 = vunpack.c.l.b16 %v2091
      %v2102 = vunpack.c.h.b16 %v2091
      %v2103 = vunpack.c.l.b16 %v2092
      %v2104 = vunpack.c.h.b16 %v2092
      %v2105 = vpack.c.b16 %v2097, %v2097
      %v2106 = vpack.c.b16 %v2098, %v2098
      %v2107 = vpack.c.b16 %v2099, %v2099
      %v2108 = vpack.c.b16 %v2100, %v2100
      %v2109 = vpack.c.b16 %v2101, %v2101
      %v2110 = vpack.c.b16 %v2102, %v2102
      %v2111 = vpack.c.b16 %v2103, %v2103
      %v2112 = vpack.c.b16 %v2104, %v2104
      %2121 = vst [vmem:[%s186] sm:$0xf] %v2105
      %2122 = vst [vmem:[%s186 + $0x4] sm:$0xf] %v2106
      %2123 = vst [vmem:[%s186 + $0x8] sm:$0xf] %v2107
      %2124 = vst [vmem:[%s186 + $0xc] sm:$0xf] %v2108
      %2125 = vst [vmem:[%s186 + $0x10] sm:$0xf] %v2109
      %2126 = vst [vmem:[%s186 + $0x14] sm:$0xf] %v2110
      %2127 = vst [vmem:[%s186 + $0x18] sm:$0xf] %v2111
      %2128 = vst [vmem:[%s186 + $0x1c] sm:$0xf] %v2112
      %s2129 = sadd.s32 %s18, %s19
      %s2130 = smul.u32 8, %s2129
      %p2131 = scmp.lt.s32.totalorder %s2130, 15
      %s2132 = scalar_select %p2131, %s2130, 15
      %s2133 = smul.addr %s2132, 4
      %s2134 = scalar_lea.vmem %s3, %s2133
      // Predicated region
      $region33: #{_lambda_.8} parent=31 // pred_check
        %p2135 = pneg %p114
      $region34: #{_lambda_.8} parent=31 // pred_check_branch
        %2137 = sbr.rel (%p2135) target = $region36
      $region35: #{_lambda_.8} parent=31 // pred_region
        %s2138 = sadd.s32 %s18, %s19
        %s2139 = smul.u32 8, %s2138
      $region36: #{_lambda_.8} parent=31 // pred_fallthru
        _
    $region32: #{_lambda_.8} parent=5 // pred_fallthru
      _
    %p2140 = scmp.le.s32.totalorder 2, %s9
    // Predicated region
    $region37: #{_lambda_.8} parent=5 // pred_check
      %p2141 = pneg %p2140
    $region38: #{_lambda_.8} parent=5 // pred_check_branch
      %2143 = sbr.rel (%p2141) target = $region40
    $region39: #{_lambda_.8} parent=5 // pred_region
      %s2144 = ssub.s32 %s9, 2
      // Predicated region
      $region41: #{_lambda_.8} parent=39 // pred_check
        %p2145 = pneg %p120
      $region42: #{_lambda_.8} parent=39 // pred_check_branch
        %2147 = sbr.rel (%p2145) target = $region44
      $region43: #{_lambda_.8} parent=39 // pred_region
        %s2148 = sadd.s32 %s20, %s21
        %s2149 = smul.u32 8, %s2148
        %p2150 = scmp.lt.s32.totalorder %s2149, 15
        %s2151 = scalar_select %p2150, %s2149, 15
        %s2152 = smul.addr %s2151, 4
        %s2153 = scalar_lea.vmem %s3, %s2152
      $region44: #{_lambda_.8} parent=39 // pred_fallthru
        _
    $region40: #{_lambda_.8} parent=5 // pred_fallthru
      _
  $region6: #{_lambda_.8} parent=0 // loop_footer
    %s13 = sadd.s32 1, %s9
  $region7: #{_lambda_.8} parent=0 // loop_footer_branch
    %8 = sbr.rel target = $region3
  $region8: #{_lambda_.8} parent=0 // loop_exit
    _

// kernel: _lambda_.7
$region0: #{_lambda_.7}
  #allocation0 [shape = 'u32[]', space=smem, size = 0x4, offset = 0x4, fixed_abs, tag = 'smem constant byte address 0x4 - core index']
  #allocation1 [shape = 'u32[144,128]{1,0:T(1,128)}', space=vmem, size = 0x12000, scoped, tag = 'internal scratch']
  #allocation2 [shape = 'bf16[18,18,128]{2,1,0:T(8,128)(2,1)}', space=vmem, size = 0x1b000, scoped, tag = 'scratch operand']
  %s0 = inlined_call_operand.vmem [shape: bf16[2,16,16,128], index: 0, kind: input, shape index: {}, may-alias: {0,3}]
  %s1 = inlined_call_operand.vmem [shape: bf16[9,128,128], index: 1, kind: input, shape index: {}]
  %s2 = inlined_call_operand.vmem [shape: f32[1,128], index: 2, kind: input, shape index: {}]
  %s3 = inlined_call_operand.vmem [shape: bf16[512,128], index: 3, kind: input, shape index: {}, may-alias: {0,3}]
  %s4 = inlined_call_operand.vmem [shape: bf16[512,128], index: 4, kind: output, shape index: {}]
  %s5 = sld [smem:[#allocation0]]
  $region53: #{_lambda_.7} parent=0
    _
  %s7 = ssub.s32 1, %s5
  %s8 = scalar_select 0, %s7, %s5
  loop: start=0, step=1, limit=6
  $region2: #{_lambda_.7} parent=0 // loop_pre_header
    _
  $region3: #{_lambda_.7} parent=0 // loop_header
    %s10 = sphi 0, %s14
    %p11 = scmp.ge.s32.totalorder %s10, 6
    %s17 = sphi 0, %s29
    %s18 = sphi 0, %s25
    %s19 = sphi 0, %s17
    %s20 = sphi 0, %s18
    %s21 = sphi 0, %s19
    %s22 = sphi 0, %s20
    %s32 = sphi 0, %s34
    %s35 = sphi 0, %s32
    %s36 = sphi 0, %s35
    %s52 = sphi 0, %s36
    %s56 = sphi 0, %s56
    %s58 = sphi 0, %s56
    %s59 = sphi 0, %s58
    %s73 = sphi 0, %s59
    %s77 = sphi 0, %s77
    %s79 = sphi 0, %s77
    %s80 = sphi 0, %s79
    %s94 = sphi 0, %s80
    %s104 = sphi 0, %s106
    %s107 = sphi 0, %s104
    %s108 = sphi 0, %s107
    %s124 = sphi 0, %s108
    %s134 = sphi 0, %s136
    %s137 = sphi 0, %s134
    %s138 = sphi 0, %s137
    %s154 = sphi 0, %s138
  $region4: #{_lambda_.7} parent=0 // loop_header_branch
    %13 = sbr.rel (%p11) target = $region8
  $region5: #{_lambda_.7} parent=0 // loop_body
    %s15 = ssub.s32 %s10, 1
    %s16 = ssub.s32 %s10, 2
    %s23 = sadd.s32 1, %s18
    %p24 = scmp.ge.s32.totalorder %s23, 2
    %s25 = scalar_select %p24, 0, %s23
    %s26 = sadd.s32 1, %s17
    %s27 = scalar_select %p24, %s26, %s17
    %p28 = scmp.ge.s32.totalorder %s27, 2
    %s29 = scalar_select %p28, 0, %s27
    %s30 = ssub.s32 %s17, %s29
    %p31 = scmp.eq.s32.totalorder %s30, 0
    %s33 = sadd.s32 %s32, 1
    %s34 = scalar_select %p31, %s32, %s33
    %p37 = pneg %p31
    %p38 = scmp.eq.s32.totalorder %s10, 3
    %p39 = por %p37, %p38
    %p40 = scmp.ne.s32.totalorder %s32, %s35
    %p41 = scmp.eq.s32.totalorder %s10, 0
    %p42 = por %p40, %p41
    %p43 = scmp.ne.s32.totalorder %s32, %s35
    %p44 = scmp.eq.s32.totalorder %s15, 3
    %p45 = por %p43, %p44
    %p46 = scmp.ne.s32.totalorder %s35, %s36
    %p47 = scmp.eq.s32.totalorder %s15, 0
    %p48 = por %p46, %p47
    %p49 = scmp.ne.s32.totalorder %s35, %s36
    %p50 = scmp.eq.s32.totalorder %s16, 3
    %p51 = por %p49, %p50
    %p53 = scmp.ne.s32.totalorder %s36, %s52
    %p54 = scmp.eq.s32.totalorder %s16, 0
    %p55 = por %p53, %p54
    %s57 = sadd.s32 %s56, 1
    %p60 = scmp.eq.s32.totalorder %s10, 3
    %p61 = scmp.ne.s32.totalorder %s56, %s58
    %p62 = scmp.eq.s32.totalorder %s10, 0
    %p63 = por %p61, %p62
    %p64 = scmp.ne.s32.totalorder %s56, %s58
    %p65 = scmp.eq.s32.totalorder %s15, 3
    %p66 = por %p64, %p65
    %p67 = scmp.ne.s32.totalorder %s58, %s59
    %p68 = scmp.eq.s32.totalorder %s15, 0
    %p69 = por %p67, %p68
    %p70 = scmp.ne.s32.totalorder %s58, %s59
    %p71 = scmp.eq.s32.totalorder %s16, 3
    %p72 = por %p70, %p71
    %p74 = scmp.ne.s32.totalorder %s59, %s73
    %p75 = scmp.eq.s32.totalorder %s16, 0
    %p76 = por %p74, %p75
    %s78 = sadd.s32 %s77, 1
    %p81 = scmp.eq.s32.totalorder %s10, 3
    %p82 = scmp.ne.s32.totalorder %s77, %s79
    %p83 = scmp.eq.s32.totalorder %s10, 0
    %p84 = por %p82, %p83
    %p85 = scmp.ne.s32.totalorder %s77, %s79
    %p86 = scmp.eq.s32.totalorder %s15, 3
    %p87 = por %p85, %p86
    %p88 = scmp.ne.s32.totalorder %s79, %s80
    %p89 = scmp.eq.s32.totalorder %s15, 0
    %p90 = por %p88, %p89
    %p91 = scmp.ne.s32.totalorder %s79, %s80
    %p92 = scmp.eq.s32.totalorder %s16, 3
    %p93 = por %p91, %p92
    %p95 = scmp.ne.s32.totalorder %s80, %s94
    %p96 = scmp.eq.s32.totalorder %s16, 0
    %p97 = por %p95, %p96
    %s98 = smul.u32 %s17, 2
    %s99 = sadd.s32 %s98, %s18
    %s100 = smul.u32 %s29, 2
    %s101 = sadd.s32 %s100, %s25
    %s102 = ssub.s32 %s99, %s101
    %p103 = scmp.eq.s32.totalorder %s102, 0
    %s105 = sadd.s32 %s104, 1
    %s106 = scalar_select %p103, %s104, %s105
    %p109 = pneg %p103
    %p110 = scmp.eq.s32.totalorder %s10, 3
    %p111 = por %p109, %p110
    %p112 = scmp.ne.s32.totalorder %s104, %s107
    %p113 = scmp.eq.s32.totalorder %s10, 0
    %p114 = por %p112, %p113
    %p115 = scmp.ne.s32.totalorder %s104, %s107
    %p116 = scmp.eq.s32.totalorder %s15, 3
    %p117 = por %p115, %p116
    %p118 = scmp.ne.s32.totalorder %s107, %s108
    %p119 = scmp.eq.s32.totalorder %s15, 0
    %p120 = por %p118, %p119
    %p121 = scmp.ne.s32.totalorder %s107, %s108
    %p122 = scmp.eq.s32.totalorder %s16, 3
    %p123 = por %p121, %p122
    %p125 = scmp.ne.s32.totalorder %s108, %s124
    %p126 = scmp.eq.s32.totalorder %s16, 0
    %p127 = por %p125, %p126
    %s128 = smul.u32 %s17, 2
    %s129 = sadd.s32 %s128, %s18
    %s130 = smul.u32 %s29, 2
    %s131 = sadd.s32 %s130, %s25
    %s132 = ssub.s32 %s129, %s131
    %p133 = scmp.eq.s32.totalorder %s132, 0
    %s135 = sadd.s32 %s134, 1
    %s136 = scalar_select %p133, %s134, %s135
    %p139 = pneg %p133
    %p140 = scmp.eq.s32.totalorder %s10, 3
    %p141 = por %p139, %p140
    %p142 = scmp.ne.s32.totalorder %s134, %s137
    %p143 = scmp.eq.s32.totalorder %s10, 0
    %p144 = por %p142, %p143
    %p145 = scmp.ne.s32.totalorder %s134, %s137
    %p146 = scmp.eq.s32.totalorder %s15, 3
    %p147 = por %p145, %p146
    %p148 = scmp.ne.s32.totalorder %s137, %s138
    %p149 = scmp.eq.s32.totalorder %s15, 0
    %p150 = por %p148, %p149
    %p151 = scmp.ne.s32.totalorder %s137, %s138
    %p152 = scmp.eq.s32.totalorder %s16, 3
    %p153 = por %p151, %p152
    %p155 = scmp.ne.s32.totalorder %s138, %s154
    %p156 = scmp.eq.s32.totalorder %s16, 0
    %p157 = por %p155, %p156
    %p158 = scmp.le.s32.totalorder 1, %s10
    %p159 = scmp.lt.s32.totalorder %s10, 5
    %p160 = pnand %p158, %p159
    %p161 = pneg %p160
    // Predicated region
    $region9: #{_lambda_.7} parent=5 // pred_check
      _
    $region10: #{_lambda_.7} parent=5 // pred_check_branch
      %163 = sbr.rel (%p160) target = $region12
    $region11: #{_lambda_.7} parent=5 // pred_region
      %s164 = ssub.s32 %s10, 1
      // Predicated region
      $region13: #{_lambda_.7} parent=11 // pred_check
        %p165 = pneg %p69
      $region14: #{_lambda_.7} parent=11 // pred_check_branch
        %167 = sbr.rel (%p165) target = $region16
      $region15: #{_lambda_.7} parent=11 // pred_region
        _
      $region16: #{_lambda_.7} parent=11 // pred_fallthru
        _
      // Predicated region
      $region17: #{_lambda_.7} parent=11 // pred_check
        %p168 = pneg %p90
      $region18: #{_lambda_.7} parent=11 // pred_check_branch
        %170 = sbr.rel (%p168) target = $region20
      $region19: #{_lambda_.7} parent=11 // pred_region
        _
      $region20: #{_lambda_.7} parent=11 // pred_fallthru
        _
    $region12: #{_lambda_.7} parent=5 // pred_fallthru
      _
    %p171 = scmp.lt.s32.totalorder %s10, 4
    // Predicated region
    $region21: #{_lambda_.7} parent=5 // pred_check
      %p172 = pneg %p171
    $region22: #{_lambda_.7} parent=5 // pred_check_branch
      %174 = sbr.rel (%p172) target = $region24
    $region23: #{_lambda_.7} parent=5 // pred_region
      // Predicated region
      $region25: #{_lambda_.7} parent=23 // pred_check
        %p175 = pneg %p42
      $region26: #{_lambda_.7} parent=23 // pred_check_branch
        %177 = sbr.rel (%p175) target = $region28
      $region27: #{_lambda_.7} parent=23 // pred_region
        %p178 = scmp.lt.s32.totalorder %s17, 1
        %s179 = scalar_select %p178, %s17, 1
        %s180 = smul.addr %s179, 32
        %s181 = smul.addr %s180, 4
        %s182 = scalar_lea.vmem %s0, %s181
      $region28: #{_lambda_.7} parent=23 // pred_fallthru
        _
      // Predicated region
      $region29: #{_lambda_.7} parent=23 // pred_check
        %p183 = pneg %p114
      $region30: #{_lambda_.7} parent=23 // pred_check_branch
        %185 = sbr.rel (%p183) target = $region32
      $region31: #{_lambda_.7} parent=23 // pred_region
        %s186 = smul.u32 %s17, 2
        %s187 = sadd.s32 %s186, %s18
        %s188 = smul.u32 16, %s187
        %p189 = scmp.lt.s32.totalorder %s188, 63
        %s190 = scalar_select %p189, %s188, 63
        %s191 = smul.addr %s190, 4
        %s192 = scalar_lea.vmem %s3, %s191
        %s193 = smul.u32 %s17, 2
        %s194 = sadd.s32 %s193, %s18
        %s195 = smul.u32 16, %s194
      $region32: #{_lambda_.7} parent=23 // pred_fallthru
        _
    $region24: #{_lambda_.7} parent=5 // pred_fallthru
      _
    %p196 = scmp.le.s32.totalorder 1, %s10
    %p197 = scmp.lt.s32.totalorder %s10, 5
    %p198 = pnand %p196, %p197
    %p199 = pneg %p198
    // Predicated region
    $region33: #{_lambda_.7} parent=5 // pred_check
      _
    $region34: #{_lambda_.7} parent=5 // pred_check_branch
      %201 = sbr.rel (%p198) target = $region36
    $region35: #{_lambda_.7} parent=5 // pred_region
      %s202 = ssub.s32 %s10, 1
      %p203 = scmp.lt.s32.totalorder %s19, 1
      %s204 = scalar_select %p203, %s19, 1
      %s205 = smul.addr %s204, 32
      %s206 = smul.addr %s205, 4
      %s207 = scalar_lea.vmem %s0, %s206
      %p208 = pneg %p48
      %p209 = pneg %p45
      %p210 = pneg %p69
      %p211 = pneg %p66
      %p212 = pneg %p90
      %p213 = pneg %p87
      %s214 = smul.u32 %s19, 2
      %s215 = sadd.s32 %s214, %s20
      %s216 = smul.u32 16, %s215
      %p217 = scmp.lt.s32.totalorder %s216, 63
      %s218 = scalar_select %p217, %s216, 63
      %s219 = smul.addr %s218, 4
      %s220 = scalar_lea.vmem %s3, %s219
      %p221 = pneg %p120
      %p222 = pneg %p117
      %p223 = pneg %p150
      %p224 = pneg %p147
      %s225 = smul.u32 %s19, 2
      %s226 = sadd.s32 %s225, %s20
      %s227 = smul.u32 16, %s226
      %p228 = scmp.lt.s32.totalorder %s227, 63
      %s229 = scalar_select %p228, %s227, 63
      %s230 = smul.addr %s229, 4
      %s231 = scalar_lea.vmem %s4, %s230
      %p232 = scmp.lt.s32.totalorder %s19, 1
      %s233 = scalar_select %p232, %s19, 1
      %s234 = smul.addr %s233, 32
      %s235 = smul.addr %s234, 4
      %s236 = scalar_lea.vmem %s0, %s235
      %s237 = smul.u32 %s19, 2
      %s238 = sadd.s32 %s237, %s20
      %s239 = smul.u32 16, %s238
      %p240 = scmp.lt.s32.totalorder %s239, 63
      %s241 = scalar_select %p240, %s239, 63
      %s242 = smul.addr %s241, 4
      %s243 = scalar_lea.vmem %s3, %s242
      %s244 = smul.u32 %s19, 2
      %s245 = sadd.s32 %s244, %s20
      %s246 = smul.u32 16, %s245
      %s247 = smul.u32 %s19, 2
      %s248 = sadd.s32 %s247, %s20
      %s249 = smul.u32 16, %s248
      %p250 = scmp.lt.s32.totalorder %s249, 63
      %s251 = scalar_select %p250, %s249, 63
      %s252 = smul.addr %s251, 4
      %s253 = scalar_lea.vmem %s4, %s252
      %s254 = smul.u32 %s19, 2
      %s255 = sadd.s32 %s254, %s20
      %s256 = smul.u32 16, %s255
      %s258 = smul.u32 %s20, 8
      %p259 = scmp.eq.s32.totalorder %s20, 0
      // Predicated region
      $region37: #{_lambda_.7} parent=35 // pred_check
        %p260 = pneg %p259
      $region38: #{_lambda_.7} parent=35 // pred_check_branch
        %262 = sbr.rel (%p260) target = $region40
      $region39: #{_lambda_.7} parent=35 // pred_region
        %263 = vst [vmem:[#allocation2] sm:$0xf] 0
        %264 = vst [vmem:[#allocation2 + $0x4] sm:$0xf] 0
        %265 = vst [vmem:[#allocation2 + $0x8] sm:$0x1] 0
        %266 = vst [vmem:[#allocation2 + $0xc] sm:$0xf] 0
        %267 = vst [vmem:[#allocation2 + $0x10] sm:$0xf] 0
        %268 = vst [vmem:[#allocation2 + $0x14] sm:$0x1] 0
        %269 = vst [vmem:[#allocation2 + $0x18] sm:$0xf] 0
        %270 = vst [vmem:[#allocation2 + $0x1c] sm:$0xf] 0
        %271 = vst [vmem:[#allocation2 + $0x20] sm:$0x1] 0
        %272 = vst [vmem:[#allocation2 + $0x24] sm:$0xf] 0
        %273 = vst [vmem:[#allocation2 + $0x28] sm:$0xf] 0
        %274 = vst [vmem:[#allocation2 + $0x2c] sm:$0x1] 0
        %275 = vst [vmem:[#allocation2 + $0x30] sm:$0xf] 0
        %276 = vst [vmem:[#allocation2 + $0x34] sm:$0xf] 0
        %277 = vst [vmem:[#allocation2 + $0x38] sm:$0x1] 0
        %278 = vst [vmem:[#allocation2 + $0x3c] sm:$0xf] 0
        %279 = vst [vmem:[#allocation2 + $0x40] sm:$0xf] 0
        %280 = vst [vmem:[#allocation2 + $0x44] sm:$0x1] 0
        %281 = vst [vmem:[#allocation2 + $0x48] sm:$0xf] 0
        %282 = vst [vmem:[#allocation2 + $0x4c] sm:$0xf] 0
        %283 = vst [vmem:[#allocation2 + $0x50] sm:$0x1] 0
        %284 = vst [vmem:[#allocation2 + $0x54] sm:$0xf] 0
        %285 = vst [vmem:[#allocation2 + $0x58] sm:$0xf] 0
        %286 = vst [vmem:[#allocation2 + $0x5c] sm:$0x1] 0
        %287 = vst [vmem:[#allocation2 + $0x60] sm:$0xf] 0
        %288 = vst [vmem:[#allocation2 + $0x64] sm:$0xf] 0
        %289 = vst [vmem:[#allocation2 + $0x68] sm:$0x1] 0
        %290 = vst [vmem:[#allocation2 + $0x6c] sm:$0xf] 0
        %291 = vst [vmem:[#allocation2 + $0x70] sm:$0xf] 0
        %292 = vst [vmem:[#allocation2 + $0x74] sm:$0x1] 0
        %293 = vst [vmem:[#allocation2 + $0x78] sm:$0xf] 0
        %294 = vst [vmem:[#allocation2 + $0x7c] sm:$0xf] 0
        %295 = vst [vmem:[#allocation2 + $0x80] sm:$0x1] 0
        %296 = vst [vmem:[#allocation2 + $0x84] sm:$0xf] 0
        %297 = vst [vmem:[#allocation2 + $0x88] sm:$0xf] 0
        %298 = vst [vmem:[#allocation2 + $0x8c] sm:$0x1] 0
        %299 = vst [vmem:[#allocation2 + $0x90] sm:$0xf] 0
        %300 = vst [vmem:[#allocation2 + $0x94] sm:$0xf] 0
        %301 = vst [vmem:[#allocation2 + $0x98] sm:$0x1] 0
        %302 = vst [vmem:[#allocation2 + $0x9c] sm:$0xf] 0
        %303 = vst [vmem:[#allocation2 + $0xa0] sm:$0xf] 0
        %304 = vst [vmem:[#allocation2 + $0xa4] sm:$0x1] 0
        %305 = vst [vmem:[#allocation2 + $0xa8] sm:$0xf] 0
        %306 = vst [vmem:[#allocation2 + $0xac] sm:$0xf] 0
        %307 = vst [vmem:[#allocation2 + $0xb0] sm:$0x1] 0
        %308 = vst [vmem:[#allocation2 + $0xb4] sm:$0xf] 0
        %309 = vst [vmem:[#allocation2 + $0xb8] sm:$0xf] 0
        %310 = vst [vmem:[#allocation2 + $0xbc] sm:$0x1] 0
        %311 = vst [vmem:[#allocation2 + $0xc0] sm:$0xf] 0
        %312 = vst [vmem:[#allocation2 + $0xc4] sm:$0xf] 0
        %313 = vst [vmem:[#allocation2 + $0xc8] sm:$0x1] 0
        %314 = vst [vmem:[#allocation2 + $0xcc] sm:$0xf] 0
        %315 = vst [vmem:[#allocation2 + $0xd0] sm:$0xf] 0
        %316 = vst [vmem:[#allocation2 + $0xd4] sm:$0x1] 0
        %v317 = vld [vmem:[%s236] sm:$0xf]
        %v318 = vld [vmem:[%s236 + $0x4] sm:$0xf]
        %v319 = vld [vmem:[%s236 + $0x8] sm:$0xf]
        %v320 = vld [vmem:[%s236 + $0xc] sm:$0xf]
        %v321 = vld [vmem:[%s236 + $0x10] sm:$0xf]
        %v322 = vld [vmem:[%s236 + $0x14] sm:$0xf]
        %v323 = vld [vmem:[%s236 + $0x18] sm:$0xf]
        %v324 = vld [vmem:[%s236 + $0x1c] sm:$0xf]
        %v325 = vld [vmem:[%s236 + $0x20] sm:$0xf]
        %v326 = vld [vmem:[%s236 + $0x24] sm:$0xf]
        %v327 = vld [vmem:[%s236 + $0x28] sm:$0xf]
        %v328 = vld [vmem:[%s236 + $0x2c] sm:$0xf]
        %v329 = vld [vmem:[%s236 + $0x30] sm:$0xf]
        %v330 = vld [vmem:[%s236 + $0x34] sm:$0xf]
        %v331 = vld [vmem:[%s236 + $0x38] sm:$0xf]
        %v332 = vld [vmem:[%s236 + $0x3c] sm:$0xf]
        %v333 = vld [vmem:[%s236 + $0x40] sm:$0xf]
        %v334 = vld [vmem:[%s236 + $0x44] sm:$0xf]
        %v335 = vld [vmem:[%s236 + $0x48] sm:$0xf]
        %v336 = vld [vmem:[%s236 + $0x4c] sm:$0xf]
        %v337 = vld [vmem:[%s236 + $0x50] sm:$0xf]
        %v338 = vld [vmem:[%s236 + $0x54] sm:$0xf]
        %v339 = vld [vmem:[%s236 + $0x58] sm:$0xf]
        %v340 = vld [vmem:[%s236 + $0x5c] sm:$0xf]
        %v341 = vld [vmem:[%s236 + $0x60] sm:$0xf]
        %v342 = vld [vmem:[%s236 + $0x64] sm:$0xf]
        %v343 = vld [vmem:[%s236 + $0x68] sm:$0xf]
        %v344 = vld [vmem:[%s236 + $0x6c] sm:$0xf]
        %v345 = vld [vmem:[%s236 + $0x70] sm:$0xf]
        %v346 = vld [vmem:[%s236 + $0x74] sm:$0xf]
        %v347 = vld [vmem:[%s236 + $0x78] sm:$0xf]
        %v348 = vld [vmem:[%s236 + $0x7c] sm:$0xf]
        %vm349 = vsmask.f32 256
        %vm350 = vsmask.f32 4368
        %vm351 = vmor %vm349, %vm350
        %v353 = vshrl.u32 %v317, 16
        %v355 = vrot.slane %v353, 7
        %v356 = vshll.u32 %v317, 16
        %v358 = vor.u32 %v355, %v356
        %v359 = vrot.slane %v355, 4
        %v361 = vshrl.u32 %v318, 16
        %v363 = vrot.slane %v361, 7
        %v364 = vshll.u32 %v318, 16
        %v366 = vor.u32 %v363, %v364
        %v367 = vsel %vm351, %v359, %v366
        %v368 = vrot.slane %v363, 4
        %v370 = vshrl.u32 %v319, 16
        %v372 = vrot.slane %v370, 7
        %v373 = vshll.u32 %v319, 16
        %v375 = vor.u32 %v372, %v373
        %v376 = vrot.slane %v372, 4
        %v378 = vshrl.u32 %v320, 16
        %v380 = vrot.slane %v378, 7
        %v381 = vshll.u32 %v320, 16
        %v383 = vor.u32 %v380, %v381
        %v384 = vsel %vm351, %v376, %v383
        %v385 = vrot.slane %v380, 4
        %v387 = vshrl.u32 %v321, 16
        %v389 = vrot.slane %v387, 7
        %v390 = vshll.u32 %v321, 16
        %v392 = vor.u32 %v389, %v390
        %v393 = vrot.slane %v389, 4
        %v395 = vshrl.u32 %v322, 16
        %v397 = vrot.slane %v395, 7
        %v398 = vshll.u32 %v322, 16
        %v400 = vor.u32 %v397, %v398
        %v401 = vsel %vm351, %v393, %v400
        %v402 = vrot.slane %v397, 4
        %v404 = vshrl.u32 %v323, 16
        %v406 = vrot.slane %v404, 7
        %v407 = vshll.u32 %v323, 16
        %v409 = vor.u32 %v406, %v407
        %v410 = vrot.slane %v406, 4
        %v412 = vshrl.u32 %v324, 16
        %v414 = vrot.slane %v412, 7
        %v415 = vshll.u32 %v324, 16
        %v417 = vor.u32 %v414, %v415
        %v418 = vsel %vm351, %v410, %v417
        %v419 = vrot.slane %v414, 4
        %v421 = vshrl.u32 %v325, 16
        %v423 = vrot.slane %v421, 7
        %v424 = vshll.u32 %v325, 16
        %v426 = vor.u32 %v423, %v424
        %v427 = vrot.slane %v423, 4
        %v429 = vshrl.u32 %v326, 16
        %v431 = vrot.slane %v429, 7
        %v432 = vshll.u32 %v326, 16
        %v434 = vor.u32 %v431, %v432
        %v435 = vsel %vm351, %v427, %v434
        %v436 = vrot.slane %v431, 4
        %v438 = vshrl.u32 %v327, 16
        %v440 = vrot.slane %v438, 7
        %v441 = vshll.u32 %v327, 16
        %v443 = vor.u32 %v440, %v441
        %v444 = vrot.slane %v440, 4
        %v446 = vshrl.u32 %v328, 16
        %v448 = vrot.slane %v446, 7
        %v449 = vshll.u32 %v328, 16
        %v451 = vor.u32 %v448, %v449
        %v452 = vsel %vm351, %v444, %v451
        %v453 = vrot.slane %v448, 4
        %v455 = vshrl.u32 %v329, 16
        %v457 = vrot.slane %v455, 7
        %v458 = vshll.u32 %v329, 16
        %v460 = vor.u32 %v457, %v458
        %v461 = vrot.slane %v457, 4
        %v463 = vshrl.u32 %v330, 16
        %v465 = vrot.slane %v463, 7
        %v466 = vshll.u32 %v330, 16
        %v468 = vor.u32 %v465, %v466
        %v469 = vsel %vm351, %v461, %v468
        %v470 = vrot.slane %v465, 4
        %v472 = vshrl.u32 %v331, 16
        %v474 = vrot.slane %v472, 7
        %v475 = vshll.u32 %v331, 16
        %v477 = vor.u32 %v474, %v475
        %v478 = vrot.slane %v474, 4
        %v480 = vshrl.u32 %v332, 16
        %v482 = vrot.slane %v480, 7
        %v483 = vshll.u32 %v332, 16
        %v485 = vor.u32 %v482, %v483
        %v486 = vsel %vm351, %v478, %v485
        %v487 = vrot.slane %v482, 4
        %v489 = vshrl.u32 %v333, 16
        %v491 = vrot.slane %v489, 7
        %v492 = vshll.u32 %v333, 16
        %v494 = vor.u32 %v491, %v492
        %v495 = vrot.slane %v491, 4
        %v497 = vshrl.u32 %v334, 16
        %v499 = vrot.slane %v497, 7
        %v500 = vshll.u32 %v334, 16
        %v502 = vor.u32 %v499, %v500
        %v503 = vsel %vm351, %v495, %v502
        %v504 = vrot.slane %v499, 4
        %v506 = vshrl.u32 %v335, 16
        %v508 = vrot.slane %v506, 7
        %v509 = vshll.u32 %v335, 16
        %v511 = vor.u32 %v508, %v509
        %v512 = vrot.slane %v508, 4
        %v514 = vshrl.u32 %v336, 16
        %v516 = vrot.slane %v514, 7
        %v517 = vshll.u32 %v336, 16
        %v519 = vor.u32 %v516, %v517
        %v520 = vsel %vm351, %v512, %v519
        %v521 = vrot.slane %v516, 4
        %v523 = vshrl.u32 %v337, 16
        %v525 = vrot.slane %v523, 7
        %v526 = vshll.u32 %v337, 16
        %v528 = vor.u32 %v525, %v526
        %v529 = vrot.slane %v525, 4
        %v531 = vshrl.u32 %v338, 16
        %v533 = vrot.slane %v531, 7
        %v534 = vshll.u32 %v338, 16
        %v536 = vor.u32 %v533, %v534
        %v537 = vsel %vm351, %v529, %v536
        %v538 = vrot.slane %v533, 4
        %v540 = vshrl.u32 %v339, 16
        %v542 = vrot.slane %v540, 7
        %v543 = vshll.u32 %v339, 16
        %v545 = vor.u32 %v542, %v543
        %v546 = vrot.slane %v542, 4
        %v548 = vshrl.u32 %v340, 16
        %v550 = vrot.slane %v548, 7
        %v551 = vshll.u32 %v340, 16
        %v553 = vor.u32 %v550, %v551
        %v554 = vsel %vm351, %v546, %v553
        %v555 = vrot.slane %v550, 4
        %v557 = vshrl.u32 %v341, 16
        %v559 = vrot.slane %v557, 7
        %v560 = vshll.u32 %v341, 16
        %v562 = vor.u32 %v559, %v560
        %v563 = vrot.slane %v559, 4
        %v565 = vshrl.u32 %v342, 16
        %v567 = vrot.slane %v565, 7
        %v568 = vshll.u32 %v342, 16
        %v570 = vor.u32 %v567, %v568
        %v571 = vsel %vm351, %v563, %v570
        %v572 = vrot.slane %v567, 4
        %v574 = vshrl.u32 %v343, 16
        %v576 = vrot.slane %v574, 7
        %v577 = vshll.u32 %v343, 16
        %v579 = vor.u32 %v576, %v577
        %v580 = vrot.slane %v576, 4
        %v582 = vshrl.u32 %v344, 16
        %v584 = vrot.slane %v582, 7
        %v585 = vshll.u32 %v344, 16
        %v587 = vor.u32 %v584, %v585
        %v588 = vsel %vm351, %v580, %v587
        %v589 = vrot.slane %v584, 4
        %v591 = vshrl.u32 %v345, 16
        %v593 = vrot.slane %v591, 7
        %v594 = vshll.u32 %v345, 16
        %v596 = vor.u32 %v593, %v594
        %v597 = vrot.slane %v593, 4
        %v599 = vshrl.u32 %v346, 16
        %v601 = vrot.slane %v599, 7
        %v602 = vshll.u32 %v346, 16
        %v604 = vor.u32 %v601, %v602
        %v605 = vsel %vm351, %v597, %v604
        %v606 = vrot.slane %v601, 4
        %v608 = vshrl.u32 %v347, 16
        %v610 = vrot.slane %v608, 7
        %v611 = vshll.u32 %v347, 16
        %v613 = vor.u32 %v610, %v611
        %v614 = vrot.slane %v610, 4
        %v616 = vshrl.u32 %v348, 16
        %v618 = vrot.slane %v616, 7
        %v619 = vshll.u32 %v348, 16
        %v621 = vor.u32 %v618, %v619
        %v622 = vsel %vm351, %v614, %v621
        %v623 = vrot.slane %v618, 4
        %s672 = scalar_lea.vmem [#allocation2], 12
        %vm673 = vcmask 1043456
        %vm674 = vsmask.f32 7938
        %vm675 = vmand %vm673, %vm674
        %v676 = vld [vmem:[%s672] sm:$0xf]
        %v677 = vsel %vm675, %v358, %v676
        %678 = vst [vmem:[%s672] sm:$0xf] %v677
        %679 = vst [vmem:[%s672 + $0x4] sm:$0xf] %v367
        %vm680 = vcmask 1040384
        %vm681 = vmand %vm680, %vm349
        %v682 = vld [vmem:[%s672 + $0x8] sm:$0x1]
        %v683 = vsel %vm681, %v368, %v682
        %684 = vst [vmem:[%s672 + $0x8] sm:$0x1] %v683
        %v685 = vld [vmem:[%s672 + $0xc] sm:$0xf]
        %v686 = vsel %vm675, %v375, %v685
        %687 = vst [vmem:[%s672 + $0xc] sm:$0xf] %v686
        %688 = vst [vmem:[%s672 + $0x10] sm:$0xf] %v384
        %v689 = vld [vmem:[%s672 + $0x14] sm:$0x1]
        %v690 = vsel %vm681, %v385, %v689
        %691 = vst [vmem:[%s672 + $0x14] sm:$0x1] %v690
        %v692 = vld [vmem:[%s672 + $0x18] sm:$0xf]
        %v693 = vsel %vm675, %v392, %v692
        %694 = vst [vmem:[%s672 + $0x18] sm:$0xf] %v693
        %695 = vst [vmem:[%s672 + $0x1c] sm:$0xf] %v401
        %v696 = vld [vmem:[%s672 + $0x20] sm:$0x1]
        %v697 = vsel %vm681, %v402, %v696
        %698 = vst [vmem:[%s672 + $0x20] sm:$0x1] %v697
        %v699 = vld [vmem:[%s672 + $0x24] sm:$0xf]
        %v700 = vsel %vm675, %v409, %v699
        %701 = vst [vmem:[%s672 + $0x24] sm:$0xf] %v700
        %702 = vst [vmem:[%s672 + $0x28] sm:$0xf] %v418
        %v703 = vld [vmem:[%s672 + $0x2c] sm:$0x1]
        %v704 = vsel %vm681, %v419, %v703
        %705 = vst [vmem:[%s672 + $0x2c] sm:$0x1] %v704
        %v706 = vld [vmem:[%s672 + $0x30] sm:$0xf]
        %v707 = vsel %vm675, %v426, %v706
        %708 = vst [vmem:[%s672 + $0x30] sm:$0xf] %v707
        %709 = vst [vmem:[%s672 + $0x34] sm:$0xf] %v435
        %v710 = vld [vmem:[%s672 + $0x38] sm:$0x1]
        %v711 = vsel %vm681, %v436, %v710
        %712 = vst [vmem:[%s672 + $0x38] sm:$0x1] %v711
        %v713 = vld [vmem:[%s672 + $0x3c] sm:$0xf]
        %v714 = vsel %vm675, %v443, %v713
        %715 = vst [vmem:[%s672 + $0x3c] sm:$0xf] %v714
        %716 = vst [vmem:[%s672 + $0x40] sm:$0xf] %v452
        %v717 = vld [vmem:[%s672 + $0x44] sm:$0x1]
        %v718 = vsel %vm681, %v453, %v717
        %719 = vst [vmem:[%s672 + $0x44] sm:$0x1] %v718
        %v720 = vld [vmem:[%s672 + $0x48] sm:$0xf]
        %v721 = vsel %vm675, %v460, %v720
        %722 = vst [vmem:[%s672 + $0x48] sm:$0xf] %v721
        %723 = vst [vmem:[%s672 + $0x4c] sm:$0xf] %v469
        %v724 = vld [vmem:[%s672 + $0x50] sm:$0x1]
        %v725 = vsel %vm681, %v470, %v724
        %726 = vst [vmem:[%s672 + $0x50] sm:$0x1] %v725
        %v727 = vld [vmem:[%s672 + $0x54] sm:$0xf]
        %v728 = vsel %vm675, %v477, %v727
        %729 = vst [vmem:[%s672 + $0x54] sm:$0xf] %v728
        %730 = vst [vmem:[%s672 + $0x58] sm:$0xf] %v486
        %v731 = vld [vmem:[%s672 + $0x5c] sm:$0x1]
        %v732 = vsel %vm681, %v487, %v731
        %733 = vst [vmem:[%s672 + $0x5c] sm:$0x1] %v732
        %v734 = vld [vmem:[%s672 + $0x60] sm:$0xf]
        %v735 = vsel %vm675, %v494, %v734
        %736 = vst [vmem:[%s672 + $0x60] sm:$0xf] %v735
        %737 = vst [vmem:[%s672 + $0x64] sm:$0xf] %v503
        %v738 = vld [vmem:[%s672 + $0x68] sm:$0x1]
        %v739 = vsel %vm681, %v504, %v738
        %740 = vst [vmem:[%s672 + $0x68] sm:$0x1] %v739
        %v741 = vld [vmem:[%s672 + $0x6c] sm:$0xf]
        %v742 = vsel %vm675, %v511, %v741
        %743 = vst [vmem:[%s672 + $0x6c] sm:$0xf] %v742
        %744 = vst [vmem:[%s672 + $0x70] sm:$0xf] %v520
        %v745 = vld [vmem:[%s672 + $0x74] sm:$0x1]
        %v746 = vsel %vm681, %v521, %v745
        %747 = vst [vmem:[%s672 + $0x74] sm:$0x1] %v746
        %v748 = vld [vmem:[%s672 + $0x78] sm:$0xf]
        %v749 = vsel %vm675, %v528, %v748
        %750 = vst [vmem:[%s672 + $0x78] sm:$0xf] %v749
        %751 = vst [vmem:[%s672 + $0x7c] sm:$0xf] %v537
        %v752 = vld [vmem:[%s672 + $0x80] sm:$0x1]
        %v753 = vsel %vm681, %v538, %v752
        %754 = vst [vmem:[%s672 + $0x80] sm:$0x1] %v753
        %v755 = vld [vmem:[%s672 + $0x84] sm:$0xf]
        %v756 = vsel %vm675, %v545, %v755
        %757 = vst [vmem:[%s672 + $0x84] sm:$0xf] %v756
        %758 = vst [vmem:[%s672 + $0x88] sm:$0xf] %v554
        %v759 = vld [vmem:[%s672 + $0x8c] sm:$0x1]
        %v760 = vsel %vm681, %v555, %v759
        %761 = vst [vmem:[%s672 + $0x8c] sm:$0x1] %v760
        %v762 = vld [vmem:[%s672 + $0x90] sm:$0xf]
        %v763 = vsel %vm675, %v562, %v762
        %764 = vst [vmem:[%s672 + $0x90] sm:$0xf] %v763
        %765 = vst [vmem:[%s672 + $0x94] sm:$0xf] %v571
        %v766 = vld [vmem:[%s672 + $0x98] sm:$0x1]
        %v767 = vsel %vm681, %v572, %v766
        %768 = vst [vmem:[%s672 + $0x98] sm:$0x1] %v767
        %v769 = vld [vmem:[%s672 + $0x9c] sm:$0xf]
        %v770 = vsel %vm675, %v579, %v769
        %771 = vst [vmem:[%s672 + $0x9c] sm:$0xf] %v770
        %772 = vst [vmem:[%s672 + $0xa0] sm:$0xf] %v588
        %v773 = vld [vmem:[%s672 + $0xa4] sm:$0x1]
        %v774 = vsel %vm681, %v589, %v773
        %775 = vst [vmem:[%s672 + $0xa4] sm:$0x1] %v774
        %v776 = vld [vmem:[%s672 + $0xa8] sm:$0xf]
        %v777 = vsel %vm675, %v596, %v776
        %778 = vst [vmem:[%s672 + $0xa8] sm:$0xf] %v777
        %779 = vst [vmem:[%s672 + $0xac] sm:$0xf] %v605
        %v780 = vld [vmem:[%s672 + $0xb0] sm:$0x1]
        %v781 = vsel %vm681, %v606, %v780
        %782 = vst [vmem:[%s672 + $0xb0] sm:$0x1] %v781
        %v783 = vld [vmem:[%s672 + $0xb4] sm:$0xf]
        %v784 = vsel %vm675, %v613, %v783
        %785 = vst [vmem:[%s672 + $0xb4] sm:$0xf] %v784
        %786 = vst [vmem:[%s672 + $0xb8] sm:$0xf] %v622
        %v787 = vld [vmem:[%s672 + $0xbc] sm:$0x1]
        %v788 = vsel %vm681, %v623, %v787
        %789 = vst [vmem:[%s672 + $0xbc] sm:$0x1] %v788
      $region40: #{_lambda_.7} parent=35 // pred_fallthru
        _
      %s790 = smul.u32 %s258, 3
      %s791 = smul.addr %s790, 4
      %s792 = scalar_lea.vmem [#allocation2], %s791
      %v793 = vld [vmem:[%s792] sm:$0xf]
      %v794 = vld [vmem:[%s792 + $0x4] sm:$0xf]
      %v795 = vld [vmem:[%s792 + $0xc] sm:$0xf]
      %v796 = vld [vmem:[%s792 + $0x10] sm:$0xf]
      %v797 = vld [vmem:[%s792 + $0x18] sm:$0xf]
      %v798 = vld [vmem:[%s792 + $0x1c] sm:$0xf]
      %v799 = vld [vmem:[%s792 + $0x24] sm:$0xf]
      %v800 = vld [vmem:[%s792 + $0x28] sm:$0xf]
      %v801 = vld [vmem:[%s792 + $0x30] sm:$0xf]
      %v802 = vld [vmem:[%s792 + $0x34] sm:$0xf]
      %v803 = vld [vmem:[%s792 + $0x3c] sm:$0xf]
      %v804 = vld [vmem:[%s792 + $0x40] sm:$0xf]
      %v805 = vld [vmem:[%s792 + $0x48] sm:$0xf]
      %v806 = vld [vmem:[%s792 + $0x4c] sm:$0xf]
      %v807 = vld [vmem:[%s792 + $0x54] sm:$0xf]
      %v808 = vld [vmem:[%s792 + $0x58] sm:$0xf]
      %v809 = vld [vmem:[%s1] sm:$0xf]
      %v810 = vld [vmem:[%s1 + $0x4] sm:$0xf]
      %v811 = vld [vmem:[%s1 + $0x8] sm:$0xf]
      %v812 = vld [vmem:[%s1 + $0xc] sm:$0xf]
      %v813 = vld [vmem:[%s1 + $0x10] sm:$0xf]
      %v814 = vld [vmem:[%s1 + $0x14] sm:$0xf]
      %v815 = vld [vmem:[%s1 + $0x18] sm:$0xf]
      %v816 = vld [vmem:[%s1 + $0x1c] sm:$0xf]
      %v817 = vld [vmem:[%s1 + $0x20] sm:$0xf]
      %v818 = vld [vmem:[%s1 + $0x24] sm:$0xf]
      %v819 = vld [vmem:[%s1 + $0x28] sm:$0xf]
      %v820 = vld [vmem:[%s1 + $0x2c] sm:$0xf]
      %v821 = vld [vmem:[%s1 + $0x30] sm:$0xf]
      %v822 = vld [vmem:[%s1 + $0x34] sm:$0xf]
      %v823 = vld [vmem:[%s1 + $0x38] sm:$0xf]
      %v824 = vld [vmem:[%s1 + $0x3c] sm:$0xf]
      %v825 = vld [vmem:[%s792 + $0x8] sm:$0x1]
      %v826 = vld [vmem:[%s792 + $0x14] sm:$0x1]
      %v827 = vld [vmem:[%s792 + $0x20] sm:$0x1]
      %v828 = vld [vmem:[%s792 + $0x2c] sm:$0x1]
      %v829 = vld [vmem:[%s792 + $0x38] sm:$0x1]
      %v830 = vld [vmem:[%s792 + $0x44] sm:$0x1]
      %v831 = vld [vmem:[%s792 + $0x50] sm:$0x1]
      %v832 = vld [vmem:[%s792 + $0x5c] sm:$0x1]
      %vm833 = vsmask.f32 3328
      %vm834 = vsmask.f32 7440
      %vm835 = vmor %vm833, %vm834
      %v837 = vshrl.u32 %v793, 16
      %v839 = vrot.slane %v837, 4
      %v840 = vshll.u32 %v793, 16
      %v842 = vrot.slane %v840, 5
      %v843 = vor.u32 %v839, %v842
      %v844 = vrot.slane %v843, 4
      %v846 = vshll.u32 %v794, 16
      %v848 = vrot.slane %v846, 5
      %v849 = vsel %vm835, %v844, %v848
      %v850 = vshrl.u32 %v794, 16
      %v852 = vrot.slane %v850, 4
      %v853 = vor.u32 %v852, %v848
      %v854 = vrot.slane %v853, 4
      %v856 = vshll.u32 %v825, 16
      %v858 = vrot.slane %v856, 5
      %v859 = vsel %vm835, %v854, %v858
      %v861 = vshrl.u32 %v795, 16
      %v863 = vrot.slane %v861, 4
      %v864 = vshll.u32 %v795, 16
      %v866 = vrot.slane %v864, 5
      %v867 = vor.u32 %v863, %v866
      %v868 = vrot.slane %v867, 4
      %v870 = vshll.u32 %v796, 16
      %v872 = vrot.slane %v870, 5
      %v873 = vsel %vm835, %v868, %v872
      %v874 = vshrl.u32 %v796, 16
      %v876 = vrot.slane %v874, 4
      %v877 = vor.u32 %v876, %v872
      %v878 = vrot.slane %v877, 4
      %v880 = vshll.u32 %v826, 16
      %v882 = vrot.slane %v880, 5
      %v883 = vsel %vm835, %v878, %v882
      %v885 = vshrl.u32 %v797, 16
      %v887 = vrot.slane %v885, 4
      %v888 = vshll.u32 %v797, 16
      %v890 = vrot.slane %v888, 5
      %v891 = vor.u32 %v887, %v890
      %v892 = vrot.slane %v891, 4
      %v894 = vshll.u32 %v798, 16
      %v896 = vrot.slane %v894, 5
      %v897 = vsel %vm835, %v892, %v896
      %v898 = vshrl.u32 %v798, 16
      %v900 = vrot.slane %v898, 4
      %v901 = vor.u32 %v900, %v896
      %v902 = vrot.slane %v901, 4
      %v904 = vshll.u32 %v827, 16
      %v906 = vrot.slane %v904, 5
      %v907 = vsel %vm835, %v902, %v906
      %v909 = vshrl.u32 %v799, 16
      %v911 = vrot.slane %v909, 4
      %v912 = vshll.u32 %v799, 16
      %v914 = vrot.slane %v912, 5
      %v915 = vor.u32 %v911, %v914
      %v916 = vrot.slane %v915, 4
      %v918 = vshll.u32 %v800, 16
      %v920 = vrot.slane %v918, 5
      %v921 = vsel %vm835, %v916, %v920
      %v922 = vshrl.u32 %v800, 16
      %v924 = vrot.slane %v922, 4
      %v925 = vor.u32 %v924, %v920
      %v926 = vrot.slane %v925, 4
      %v928 = vshll.u32 %v828, 16
      %v930 = vrot.slane %v928, 5
      %v931 = vsel %vm835, %v926, %v930
      %v933 = vshrl.u32 %v801, 16
      %v935 = vrot.slane %v933, 4
      %v936 = vshll.u32 %v801, 16
      %v938 = vrot.slane %v936, 5
      %v939 = vor.u32 %v935, %v938
      %v940 = vrot.slane %v939, 4
      %v942 = vshll.u32 %v802, 16
      %v944 = vrot.slane %v942, 5
      %v945 = vsel %vm835, %v940, %v944
      %v946 = vshrl.u32 %v802, 16
      %v948 = vrot.slane %v946, 4
      %v949 = vor.u32 %v948, %v944
      %v950 = vrot.slane %v949, 4
      %v952 = vshll.u32 %v829, 16
      %v954 = vrot.slane %v952, 5
      %v955 = vsel %vm835, %v950, %v954
      %v957 = vshrl.u32 %v803, 16
      %v959 = vrot.slane %v957, 4
      %v960 = vshll.u32 %v803, 16
      %v962 = vrot.slane %v960, 5
      %v963 = vor.u32 %v959, %v962
      %v964 = vrot.slane %v963, 4
      %v966 = vshll.u32 %v804, 16
      %v968 = vrot.slane %v966, 5
      %v969 = vsel %vm835, %v964, %v968
      %v970 = vshrl.u32 %v804, 16
      %v972 = vrot.slane %v970, 4
      %v973 = vor.u32 %v972, %v968
      %v974 = vrot.slane %v973, 4
      %v976 = vshll.u32 %v830, 16
      %v978 = vrot.slane %v976, 5
      %v979 = vsel %vm835, %v974, %v978
      %v981 = vshrl.u32 %v805, 16
      %v983 = vrot.slane %v981, 4
      %v984 = vshll.u32 %v805, 16
      %v986 = vrot.slane %v984, 5
      %v987 = vor.u32 %v983, %v986
      %v988 = vrot.slane %v987, 4
      %v990 = vshll.u32 %v806, 16
      %v992 = vrot.slane %v990, 5
      %v993 = vsel %vm835, %v988, %v992
      %v994 = vshrl.u32 %v806, 16
      %v996 = vrot.slane %v994, 4
      %v997 = vor.u32 %v996, %v992
      %v998 = vrot.slane %v997, 4
      %v1000 = vshll.u32 %v831, 16
      %v1002 = vrot.slane %v1000, 5
      %v1003 = vsel %vm835, %v998, %v1002
      %v1005 = vshrl.u32 %v807, 16
      %v1007 = vrot.slane %v1005, 4
      %v1008 = vshll.u32 %v807, 16
      %v1010 = vrot.slane %v1008, 5
      %v1011 = vor.u32 %v1007, %v1010
      %v1012 = vrot.slane %v1011, 4
      %v1014 = vshll.u32 %v808, 16
      %v1016 = vrot.slane %v1014, 5
      %v1017 = vsel %vm835, %v1012, %v1016
      %v1018 = vshrl.u32 %v808, 16
      %v1020 = vrot.slane %v1018, 4
      %v1021 = vor.u32 %v1020, %v1016
      %v1022 = vrot.slane %v1021, 4
      %v1024 = vshll.u32 %v832, 16
      %v1026 = vrot.slane %v1024, 5
      %v1027 = vsel %vm835, %v1022, %v1026
      %s1028 = scalar_lea.vmem %s1, 64
      %v1029 = vld [vmem:[%s1028] sm:$0xf]
      %v1030 = vld [vmem:[%s1028 + $0x4] sm:$0xf]
      %v1031 = vld [vmem:[%s1028 + $0x8] sm:$0xf]
      %v1032 = vld [vmem:[%s1028 + $0xc] sm:$0xf]
      %v1033 = vld [vmem:[%s1028 + $0x10] sm:$0xf]
      %v1034 = vld [vmem:[%s1028 + $0x14] sm:$0xf]
      %v1035 = vld [vmem:[%s1028 + $0x18] sm:$0xf]
      %v1036 = vld [vmem:[%s1028 + $0x1c] sm:$0xf]
      %v1037 = vld [vmem:[%s1028 + $0x20] sm:$0xf]
      %v1038 = vld [vmem:[%s1028 + $0x24] sm:$0xf]
      %v1039 = vld [vmem:[%s1028 + $0x28] sm:$0xf]
      %v1040 = vld [vmem:[%s1028 + $0x2c] sm:$0xf]
      %v1041 = vld [vmem:[%s1028 + $0x30] sm:$0xf]
      %v1042 = vld [vmem:[%s1028 + $0x34] sm:$0xf]
      %v1043 = vld [vmem:[%s1028 + $0x38] sm:$0xf]
      %v1044 = vld [vmem:[%s1028 + $0x3c] sm:$0xf]
      %v1045 = vunpack.c.l.b16 %v849
      %v1046 = vunpack.c.l.b16 %v859
      %v1047 = vunpack.c.l.b16 %v873
      %v1048 = vunpack.c.l.b16 %v883
      %v1049 = vunpack.c.l.b16 %v897
      %v1050 = vunpack.c.l.b16 %v907
      %v1051 = vunpack.c.l.b16 %v921
      %v1052 = vunpack.c.l.b16 %v931
      %v1053 = vunpack.c.l.b16 %v945
      %v1054 = vunpack.c.l.b16 %v955
      %v1055 = vunpack.c.l.b16 %v969
      %v1056 = vunpack.c.l.b16 %v979
      %v1057 = vunpack.c.l.b16 %v993
      %v1058 = vunpack.c.l.b16 %v1003
      %v1059 = vunpack.c.l.b16 %v1017
      %v1060 = vunpack.c.l.b16 %v1027
      %v1061 = vpack.c.b16 %v1046, %v1045
      %v1062 = vpack.c.b16 %v1048, %v1047
      %v1063 = vpack.c.b16 %v1050, %v1049
      %v1064 = vpack.c.b16 %v1052, %v1051
      %v1065 = vpack.c.b16 %v1054, %v1053
      %v1066 = vpack.c.b16 %v1056, %v1055
      %v1067 = vpack.c.b16 %v1058, %v1057
      %v1068 = vpack.c.b16 %v1060, %v1059
      %v1093 = vunpack.c.l.b16 %v1029
      %v1094 = vunpack.c.l.b16 %v1030
      %v1095 = vunpack.c.l.b16 %v1031
      %v1096 = vunpack.c.l.b16 %v1032
      %v1097 = vunpack.c.l.b16 %v1033
      %v1098 = vunpack.c.l.b16 %v1034
      %v1099 = vunpack.c.l.b16 %v1035
      %v1100 = vunpack.c.l.b16 %v1036
      %v1101 = vunpack.c.l.b16 %v1037
      %v1102 = vunpack.c.l.b16 %v1038
      %v1103 = vunpack.c.l.b16 %v1039
      %v1104 = vunpack.c.l.b16 %v1040
      %v1105 = vunpack.c.l.b16 %v1041
      %v1106 = vunpack.c.l.b16 %v1042
      %v1107 = vunpack.c.l.b16 %v1043
      %v1108 = vunpack.c.l.b16 %v1044
      %v1109 = vpack.c.b16 %v1094, %v1093
      %v1110 = vpack.c.b16 %v1096, %v1095
      %v1111 = vpack.c.b16 %v1098, %v1097
      %v1112 = vpack.c.b16 %v1100, %v1099
      %v1113 = vpack.c.b16 %v1102, %v1101
      %v1114 = vpack.c.b16 %v1104, %v1103
      %v1115 = vpack.c.b16 %v1106, %v1105
      %v1116 = vpack.c.b16 %v1108, %v1107
      %1125 = vmatprep.subr.bf16.mxu0 0
      %1126 = vmatpush1.bf16.msra.mxu0 %v1109
      %1127 = vmatprep.subr.bf16.mxu0 0
      %1128 = vmatpush1.bf16.msra.mxu0 %v1110
      %1129 = vmatprep.subr.bf16.mxu0 0
      %1130 = vmatpush1.bf16.msra.mxu0 %v1111
      %1131 = vmatprep.subr.bf16.mxu0 0
      %1132 = vmatpush1.bf16.msra.mxu0 %v1112
      %1133 = vmatprep.subr.bf16.mxu0 0
      %1134 = vmatpush1.bf16.msra.mxu0 %v1113
      %1135 = vmatprep.subr.bf16.mxu0 0
      %1136 = vmatpush1.bf16.msra.mxu0 %v1114
      %1137 = vmatprep.subr.bf16.mxu0 0
      %1138 = vmatpush1.bf16.msra.mxu0 %v1115
      %1139 = vmatprep.subr.bf16.mxu0 0
      %1140 = vmatpush1.bf16.msra.mxu0 %v1116
      %1141 = vmatprep.subr.bf16.mxu0 0
      %1142 = vmatpush1.bf16.msra.mxu0 0
      %1143 = vmatprep.subr.bf16.mxu0 0
      %1144 = vmatpush1.bf16.msra.mxu0 0
      %1145 = vmatprep.subr.bf16.mxu0 0
      %1146 = vmatpush1.bf16.msra.mxu0 0
      %1147 = vmatprep.subr.bf16.mxu0 0
      %1148 = vmatpush1.bf16.msra.mxu0 0
      %1149 = vmatprep.subr.bf16.mxu0 0
      %1150 = vmatpush1.bf16.msra.mxu0 0
      %1151 = vmatprep.subr.bf16.mxu0 0
      %1152 = vmatpush1.bf16.msra.mxu0 0
      %1153 = vmatprep.subr.bf16.mxu0 0
      %1154 = vmatpush1.bf16.msra.mxu0 0
      %1155 = vmatprep.subr.bf16.mxu0 0
      %1156 = vmatpush1.bf16.msra.mxu0 0
      %1157 = vmatprep.mubr.bf16.mxu0 0
      %1158 = vmatmul.mubr.bf16.gmra.mrb[0].mxu0 %v1061
      %v1159 = vpop.f32.mrb[0].mxu0
      %v1160 = vadd.f32 0.0, %v1159
      %v1161 = vpop.f32.mrb[0].mxu0
      %v1162 = vpop.f32.mrb[0].mxu0
      %v1163 = vadd.f32 0.0, %v1162
      %v1164 = vpop.f32.mrb[0].mxu0
      %1165 = vmatprep.mubr.bf16.mxu0 0
      %1166 = vmatmul.mubr.bf16.gmra.mrb[0].mxu0 %v1062
      %v1167 = vpop.f32.mrb[0].mxu0
      %v1168 = vadd.f32 0.0, %v1167
      %v1169 = vpop.f32.mrb[0].mxu0
      %v1170 = vpop.f32.mrb[0].mxu0
      %v1171 = vadd.f32 0.0, %v1170
      %v1172 = vpop.f32.mrb[0].mxu0
      %1173 = vmatprep.mubr.bf16.mxu0 0
      %1174 = vmatmul.mubr.bf16.gmra.mrb[0].mxu0 %v1063
      %v1175 = vpop.f32.mrb[0].mxu0
      %v1176 = vadd.f32 0.0, %v1175
      %v1177 = vpop.f32.mrb[0].mxu0
      %v1178 = vpop.f32.mrb[0].mxu0
      %v1179 = vadd.f32 0.0, %v1178
      %v1180 = vpop.f32.mrb[0].mxu0
      %1181 = vmatprep.mubr.bf16.mxu0 0
      %1182 = vmatmul.mubr.bf16.gmra.mrb[0].mxu0 %v1064
      %v1183 = vpop.f32.mrb[0].mxu0
      %v1184 = vadd.f32 0.0, %v1183
      %v1185 = vpop.f32.mrb[0].mxu0
      %v1186 = vpop.f32.mrb[0].mxu0
      %v1187 = vadd.f32 0.0, %v1186
      %v1188 = vpop.f32.mrb[0].mxu0
      %1189 = vmatprep.mubr.bf16.mxu0 0
      %1190 = vmatmul.mubr.bf16.gmra.mrb[0].mxu0 %v1065
      %v1191 = vpop.f32.mrb[0].mxu0
      %v1192 = vadd.f32 0.0, %v1191
      %v1193 = vpop.f32.mrb[0].mxu0
      %v1194 = vpop.f32.mrb[0].mxu0
      %v1195 = vadd.f32 0.0, %v1194
      %v1196 = vpop.f32.mrb[0].mxu0
      %1197 = vmatprep.mubr.bf16.mxu0 0
      %1198 = vmatmul.mubr.bf16.gmra.mrb[0].mxu0 %v1066
      %v1199 = vpop.f32.mrb[0].mxu0
      %v1200 = vadd.f32 0.0, %v1199
      %v1201 = vpop.f32.mrb[0].mxu0
      %v1202 = vpop.f32.mrb[0].mxu0
      %v1203 = vadd.f32 0.0, %v1202
      %v1204 = vpop.f32.mrb[0].mxu0
      %1205 = vmatprep.mubr.bf16.mxu0 0
      %1206 = vmatmul.mubr.bf16.gmra.mrb[0].mxu0 %v1067
      %v1207 = vpop.f32.mrb[0].mxu0
      %v1208 = vadd.f32 0.0, %v1207
      %v1209 = vpop.f32.mrb[0].mxu0
      %v1210 = vpop.f32.mrb[0].mxu0
      %v1211 = vadd.f32 0.0, %v1210
      %v1212 = vpop.f32.mrb[0].mxu0
      %1213 = vmatprep.mubr.bf16.mxu0 0
      %1214 = vmatmul.mubr.bf16.gmra.mrb[0].mxu0 %v1068
      %v1215 = vpop.f32.mrb[0].mxu0
      %v1216 = vadd.f32 0.0, %v1215
      %v1217 = vpop.f32.mrb[0].mxu0
      %v1218 = vpop.f32.mrb[0].mxu0
      %v1219 = vadd.f32 0.0, %v1218
      %v1220 = vpop.f32.mrb[0].mxu0
      %1221 = vdwg.mxu0
      %v1238 = vunpack.c.l.b16 %v793
      %v1239 = vunpack.c.l.b16 %v794
      %v1240 = vunpack.c.l.b16 %v795
      %v1241 = vunpack.c.l.b16 %v796
      %v1242 = vunpack.c.l.b16 %v797
      %v1243 = vunpack.c.l.b16 %v798
      %v1244 = vunpack.c.l.b16 %v799
      %v1245 = vunpack.c.l.b16 %v800
      %v1246 = vunpack.c.l.b16 %v801
      %v1247 = vunpack.c.l.b16 %v802
      %v1248 = vunpack.c.l.b16 %v803
      %v1249 = vunpack.c.l.b16 %v804
      %v1250 = vunpack.c.l.b16 %v805
      %v1251 = vunpack.c.l.b16 %v806
      %v1252 = vunpack.c.l.b16 %v807
      %v1253 = vunpack.c.l.b16 %v808
      %v1254 = vpack.c.b16 %v1239, %v1238
      %v1255 = vpack.c.b16 %v1241, %v1240
      %v1256 = vpack.c.b16 %v1243, %v1242
      %v1257 = vpack.c.b16 %v1245, %v1244
      %v1258 = vpack.c.b16 %v1247, %v1246
      %v1259 = vpack.c.b16 %v1249, %v1248
      %v1260 = vpack.c.b16 %v1251, %v1250
      %v1261 = vpack.c.b16 %v1253, %v1252
      %v1286 = vunpack.c.l.b16 %v809
      %v1287 = vunpack.c.l.b16 %v810
      %v1288 = vunpack.c.l.b16 %v811
      %v1289 = vunpack.c.l.b16 %v812
      %v1290 = vunpack.c.l.b16 %v813
      %v1291 = vunpack.c.l.b16 %v814
      %v1292 = vunpack.c.l.b16 %v815
      %v1293 = vunpack.c.l.b16 %v816
      %v1294 = vunpack.c.l.b16 %v817
      %v1295 = vunpack.c.l.b16 %v818
      %v1296 = vunpack.c.l.b16 %v819
      %v1297 = vunpack.c.l.b16 %v820
      %v1298 = vunpack.c.l.b16 %v821
      %v1299 = vunpack.c.l.b16 %v822
      %v1300 = vunpack.c.l.b16 %v823
      %v1301 = vunpack.c.l.b16 %v824
      %v1302 = vpack.c.b16 %v1287, %v1286
      %v1303 = vpack.c.b16 %v1289, %v1288
      %v1304 = vpack.c.b16 %v1291, %v1290
      %v1305 = vpack.c.b16 %v1293, %v1292
      %v1306 = vpack.c.b16 %v1295, %v1294
      %v1307 = vpack.c.b16 %v1297, %v1296
      %v1308 = vpack.c.b16 %v1299, %v1298
      %v1309 = vpack.c.b16 %v1301, %v1300
      %1318 = vmatprep.subr.bf16.mxu0 0
      %1319 = vmatpush1.bf16.msra.mxu0 %v1302
      %1320 = vmatprep.subr.bf16.mxu0 0
      %1321 = vmatpush1.bf16.msra.mxu0 %v1303
      %1322 = vmatprep.subr.bf16.mxu0 0
      %1323 = vmatpush1.bf16.msra.mxu0 %v1304
      %1324 = vmatprep.subr.bf16.mxu0 0
      %1325 = vmatpush1.bf16.msra.mxu0 %v1305
      %1326 = vmatprep.subr.bf16.mxu0 0
      %1327 = vmatpush1.bf16.msra.mxu0 %v1306
      %1328 = vmatprep.subr.bf16.mxu0 0
      %1329 = vmatpush1.bf16.msra.mxu0 %v1307
      %1330 = vmatprep.subr.bf16.mxu0 0
      %1331 = vmatpush1.bf16.msra.mxu0 %v1308
      %1332 = vmatprep.subr.bf16.mxu0 0
      %1333 = vmatpush1.bf16.msra.mxu0 %v1309
      %1334 = vmatprep.subr.bf16.mxu0 0
      %1335 = vmatpush1.bf16.msra.mxu0 0
      %1336 = vmatprep.subr.bf16.mxu0 0
      %1337 = vmatpush1.bf16.msra.mxu0 0
      %1338 = vmatprep.subr.bf16.mxu0 0
      %1339 = vmatpush1.bf16.msra.mxu0 0
      %1340 = vmatprep.subr.bf16.mxu0 0
      %1341 = vmatpush1.bf16.msra.mxu0 0
      %1342 = vmatprep.subr.bf16.mxu0 0
      %1343 = vmatpush1.bf16.msra.mxu0 0
      %1344 = vmatprep.subr.bf16.mxu0 0
      %1345 = vmatpush1.bf16.msra.mxu0 0
      %1346 = vmatprep.subr.bf16.mxu0 0
      %1347 = vmatpush1.bf16.msra.mxu0 0
      %1348 = vmatprep.subr.bf16.mxu0 0
      %1349 = vmatpush1.bf16.msra.mxu0 0
      %1350 = vmatprep.mubr.bf16.mxu0 0
      %1351 = vmatmul.mubr.bf16.gmra.mrb[0].mxu0 %v1254
      %v1352 = vpop.f32.mrb[0].mxu0
      %v1353 = vadd.f32 %v1160, %v1352
      %v1354 = vpop.f32.mrb[0].mxu0
      %v1355 = vpop.f32.mrb[0].mxu0
      %v1356 = vadd.f32 %v1163, %v1355
      %v1357 = vpop.f32.mrb[0].mxu0
      %1358 = vmatprep.mubr.bf16.mxu0 0
      %1359 = vmatmul.mubr.bf16.gmra.mrb[0].mxu0 %v1255
      %v1360 = vpop.f32.mrb[0].mxu0
      %v1361 = vadd.f32 %v1168, %v1360
      %v1362 = vpop.f32.mrb[0].mxu0
      %v1363 = vpop.f32.mrb[0].mxu0
      %v1364 = vadd.f32 %v1171, %v1363
      %v1365 = vpop.f32.mrb[0].mxu0
      %1366 = vmatprep.mubr.bf16.mxu0 0
      %1367 = vmatmul.mubr.bf16.gmra.mrb[0].mxu0 %v1256
      %v1368 = vpop.f32.mrb[0].mxu0
      %v1369 = vadd.f32 %v1176, %v1368
      %v1370 = vpop.f32.mrb[0].mxu0
      %v1371 = vpop.f32.mrb[0].mxu0
      %v1372 = vadd.f32 %v1179, %v1371
      %v1373 = vpop.f32.mrb[0].mxu0
      %1374 = vmatprep.mubr.bf16.mxu0 0
      %1375 = vmatmul.mubr.bf16.gmra.mrb[0].mxu0 %v1257
      %v1376 = vpop.f32.mrb[0].mxu0
      %v1377 = vadd.f32 %v1184, %v1376
      %v1378 = vpop.f32.mrb[0].mxu0
      %v1379 = vpop.f32.mrb[0].mxu0
      %v1380 = vadd.f32 %v1187, %v1379
      %v1381 = vpop.f32.mrb[0].mxu0
      %1382 = vmatprep.mubr.bf16.mxu0 0
      %1383 = vmatmul.mubr.bf16.gmra.mrb[0].mxu0 %v1258
      %v1384 = vpop.f32.mrb[0].mxu0
      %v1385 = vadd.f32 %v1192, %v1384
      %v1386 = vpop.f32.mrb[0].mxu0
      %v1387 = vpop.f32.mrb[0].mxu0
      %v1388 = vadd.f32 %v1195, %v1387
      %v1389 = vpop.f32.mrb[0].mxu0
      %1390 = vmatprep.mubr.bf16.mxu0 0
      %1391 = vmatmul.mubr.bf16.gmra.mrb[0].mxu0 %v1259
      %v1392 = vpop.f32.mrb[0].mxu0
      %v1393 = vadd.f32 %v1200, %v1392
      %v1394 = vpop.f32.mrb[0].mxu0
      %v1395 = vpop.f32.mrb[0].mxu0
      %v1396 = vadd.f32 %v1203, %v1395
      %v1397 = vpop.f32.mrb[0].mxu0
      %1398 = vmatprep.mubr.bf16.mxu0 0
      %1399 = vmatmul.mubr.bf16.gmra.mrb[0].mxu0 %v1260
      %v1400 = vpop.f32.mrb[0].mxu0
      %v1401 = vadd.f32 %v1208, %v1400
      %v1402 = vpop.f32.mrb[0].mxu0
      %v1403 = vpop.f32.mrb[0].mxu0
      %v1404 = vadd.f32 %v1211, %v1403
      %v1405 = vpop.f32.mrb[0].mxu0
      %1406 = vmatprep.mubr.bf16.mxu0 0
      %1407 = vmatmul.mubr.bf16.gmra.mrb[0].mxu0 %v1261
      %v1408 = vpop.f32.mrb[0].mxu0
      %v1409 = vadd.f32 %v1216, %v1408
      %v1410 = vpop.f32.mrb[0].mxu0
      %v1411 = vpop.f32.mrb[0].mxu0
      %v1412 = vadd.f32 %v1219, %v1411
      %v1413 = vpop.f32.mrb[0].mxu0
      %1414 = vdwg.mxu0
      %v1415 = vld [vmem:[%s792] sm:$0xe]
      %v1416 = vld [vmem:[%s792 + $0xc] sm:$0xe]
      %v1417 = vld [vmem:[%s792 + $0x18] sm:$0xe]
      %v1418 = vld [vmem:[%s792 + $0x24] sm:$0xe]
      %v1419 = vld [vmem:[%s792 + $0x30] sm:$0xe]
      %v1420 = vld [vmem:[%s792 + $0x3c] sm:$0xe]
      %v1421 = vld [vmem:[%s792 + $0x48] sm:$0xe]
      %v1422 = vld [vmem:[%s792 + $0x54] sm:$0xe]
      %vm1439 = vcmask 1042432
      %vm1440 = vcmask 1046532
      %vm1441 = vmor %vm1439, %vm1440
      %v1442 = vrot.slane %v1415, 5
      %v1443 = vrot.slane %v1442, 4
      %v1444 = vrot.slane %v794, 5
      %v1445 = vsel %vm1441, %v1443, %v1444
      %v1446 = vrot.slane %v1444, 4
      %v1447 = vrot.slane %v825, 5
      %v1448 = vsel %vm1441, %v1446, %v1447
      %v1449 = vrot.slane %v1416, 5
      %v1450 = vrot.slane %v1449, 4
      %v1451 = vrot.slane %v796, 5
      %v1452 = vsel %vm1441, %v1450, %v1451
      %v1453 = vrot.slane %v1451, 4
      %v1454 = vrot.slane %v826, 5
      %v1455 = vsel %vm1441, %v1453, %v1454
      %v1456 = vrot.slane %v1417, 5
      %v1457 = vrot.slane %v1456, 4
      %v1458 = vrot.slane %v798, 5
      %v1459 = vsel %vm1441, %v1457, %v1458
      %v1460 = vrot.slane %v1458, 4
      %v1461 = vrot.slane %v827, 5
      %v1462 = vsel %vm1441, %v1460, %v1461
      %v1463 = vrot.slane %v1418, 5
      %v1464 = vrot.slane %v1463, 4
      %v1465 = vrot.slane %v800, 5
      %v1466 = vsel %vm1441, %v1464, %v1465
      %v1467 = vrot.slane %v1465, 4
      %v1468 = vrot.slane %v828, 5
      %v1469 = vsel %vm1441, %v1467, %v1468
      %v1470 = vrot.slane %v1419, 5
      %v1471 = vrot.slane %v1470, 4
      %v1472 = vrot.slane %v802, 5
      %v1473 = vsel %vm1441, %v1471, %v1472
      %v1474 = vrot.slane %v1472, 4
      %v1475 = vrot.slane %v829, 5
      %v1476 = vsel %vm1441, %v1474, %v1475
      %v1477 = vrot.slane %v1420, 5
      %v1478 = vrot.slane %v1477, 4
      %v1479 = vrot.slane %v804, 5
      %v1480 = vsel %vm1441, %v1478, %v1479
      %v1481 = vrot.slane %v1479, 4
      %v1482 = vrot.slane %v830, 5
      %v1483 = vsel %vm1441, %v1481, %v1482
      %v1484 = vrot.slane %v1421, 5
      %v1485 = vrot.slane %v1484, 4
      %v1486 = vrot.slane %v806, 5
      %v1487 = vsel %vm1441, %v1485, %v1486
      %v1488 = vrot.slane %v1486, 4
      %v1489 = vrot.slane %v831, 5
      %v1490 = vsel %vm1441, %v1488, %v1489
      %v1491 = vrot.slane %v1422, 5
      %v1492 = vrot.slane %v1491, 4
      %v1493 = vrot.slane %v808, 5
      %v1494 = vsel %vm1441, %v1492, %v1493
      %v1495 = vrot.slane %v1493, 4
      %v1496 = vrot.slane %v832, 5
      %v1497 = vsel %vm1441, %v1495, %v1496
      %s1498 = scalar_lea.vmem %s1, 128
      %v1499 = vld [vmem:[%s1498] sm:$0xf]
      %v1500 = vld [vmem:[%s1498 + $0x4] sm:$0xf]
      %v1501 = vld [vmem:[%s1498 + $0x8] sm:$0xf]
      %v1502 = vld [vmem:[%s1498 + $0xc] sm:$0xf]
      %v1503 = vld [vmem:[%s1498 + $0x10] sm:$0xf]
      %v1504 = vld [vmem:[%s1498 + $0x14] sm:$0xf]
      %v1505 = vld [vmem:[%s1498 + $0x18] sm:$0xf]
      %v1506 = vld [vmem:[%s1498 + $0x1c] sm:$0xf]
      %v1507 = vld [vmem:[%s1498 + $0x20] sm:$0xf]
      %v1508 = vld [vmem:[%s1498 + $0x24] sm:$0xf]
      %v1509 = vld [vmem:[%s1498 + $0x28] sm:$0xf]
      %v1510 = vld [vmem:[%s1498 + $0x2c] sm:$0xf]
      %v1511 = vld [vmem:[%s1498 + $0x30] sm:$0xf]
      %v1512 = vld [vmem:[%s1498 + $0x34] sm:$0xf]
      %v1513 = vld [vmem:[%s1498 + $0x38] sm:$0xf]
      %v1514 = vld [vmem:[%s1498 + $0x3c] sm:$0xf]
      %v1515 = vunpack.c.l.b16 %v1445
      %v1516 = vunpack.c.l.b16 %v1448
      %v1517 = vunpack.c.l.b16 %v1452
      %v1518 = vunpack.c.l.b16 %v1455
      %v1519 = vunpack.c.l.b16 %v1459
      %v1520 = vunpack.c.l.b16 %v1462
      %v1521 = vunpack.c.l.b16 %v1466
      %v1522 = vunpack.c.l.b16 %v1469
      %v1523 = vunpack.c.l.b16 %v1473
      %v1524 = vunpack.c.l.b16 %v1476
      %v1525 = vunpack.c.l.b16 %v1480
      %v1526 = vunpack.c.l.b16 %v1483
      %v1527 = vunpack.c.l.b16 %v1487
      %v1528 = vunpack.c.l.b16 %v1490
      %v1529 = vunpack.c.l.b16 %v1494
      %v1530 = vunpack.c.l.b16 %v1497
      %v1531 = vpack.c.b16 %v1516, %v1515
      %v1532 = vpack.c.b16 %v1518, %v1517
      %v1533 = vpack.c.b16 %v1520, %v1519
      %v1534 = vpack.c.b16 %v1522, %v1521
      %v1535 = vpack.c.b16 %v1524, %v1523
      %v1536 = vpack.c.b16 %v1526, %v1525
      %v1537 = vpack.c.b16 %v1528, %v1527
      %v1538 = vpack.c.b16 %v1530, %v1529
      %v1563 = vunpack.c.l.b16 %v1499
      %v1564 = vunpack.c.l.b16 %v1500
      %v1565 = vunpack.c.l.b16 %v1501
      %v1566 = vunpack.c.l.b16 %v1502
      %v1567 = vunpack.c.l.b16 %v1503
      %v1568 = vunpack.c.l.b16 %v1504
      %v1569 = vunpack.c.l.b16 %v1505
      %v1570 = vunpack.c.l.b16 %v1506
      %v1571 = vunpack.c.l.b16 %v1507
      %v1572 = vunpack.c.l.b16 %v1508
      %v1573 = vunpack.c.l.b16 %v1509
      %v1574 = vunpack.c.l.b16 %v1510
      %v1575 = vunpack.c.l.b16 %v1511
      %v1576 = vunpack.c.l.b16 %v1512
      %v1577 = vunpack.c.l.b16 %v1513
      %v1578 = vunpack.c.l.b16 %v1514
      %v1579 = vpack.c.b16 %v1564, %v1563
      %v1580 = vpack.c.b16 %v1566, %v1565
      %v1581 = vpack.c.b16 %v1568, %v1567
      %v1582 = vpack.c.b16 %v1570, %v1569
      %v1583 = vpack.c.b16 %v1572, %v1571
      %v1584 = vpack.c.b16 %v1574, %v1573
      %v1585 = vpack.c.b16 %v1576, %v1575
      %v1586 = vpack.c.b16 %v1578, %v1577
      %1595 = vmatprep.subr.bf16.mxu0 0
      %1596 = vmatpush1.bf16.msra.mxu0 %v1579
      %1597 = vmatprep.subr.bf16.mxu0 0
      %1598 = vmatpush1.bf16.msra.mxu0 %v1580
      %1599 = vmatprep.subr.bf16.mxu0 0
      %1600 = vmatpush1.bf16.msra.mxu0 %v1581
      %1601 = vmatprep.subr.bf16.mxu0 0
      %1602 = vmatpush1.bf16.msra.mxu0 %v1582
      %1603 = vmatprep.subr.bf16.mxu0 0
      %1604 = vmatpush1.bf16.msra.mxu0 %v1583
      %1605 = vmatprep.subr.bf16.mxu0 0
      %1606 = vmatpush1.bf16.msra.mxu0 %v1584
      %1607 = vmatprep.subr.bf16.mxu0 0
      %1608 = vmatpush1.bf16.msra.mxu0 %v1585
      %1609 = vmatprep.subr.bf16.mxu0 0
      %1610 = vmatpush1.bf16.msra.mxu0 %v1586
      %1611 = vmatprep.subr.bf16.mxu0 0
      %1612 = vmatpush1.bf16.msra.mxu0 0
      %1613 = vmatprep.subr.bf16.mxu0 0
      %1614 = vmatpush1.bf16.msra.mxu0 0
      %1615 = vmatprep.subr.bf16.mxu0 0
      %1616 = vmatpush1.bf16.msra.mxu0 0
      %1617 = vmatprep.subr.bf16.mxu0 0
      %1618 = vmatpush1.bf16.msra.mxu0 0
      %1619 = vmatprep.subr.bf16.mxu0 0
      %1620 = vmatpush1.bf16.msra.mxu0 0
      %1621 = vmatprep.subr.bf16.mxu0 0
      %1622 = vmatpush1.bf16.msra.mxu0 0
      %1623 = vmatprep.subr.bf16.mxu0 0
      %1624 = vmatpush1.bf16.msra.mxu0 0
      %1625 = vmatprep.subr.bf16.mxu0 0
      %1626 = vmatpush1.bf16.msra.mxu0 0
      %1627 = vmatprep.mubr.bf16.mxu0 0
      %1628 = vmatmul.mubr.bf16.gmra.mrb[0].mxu0 %v1531
      %v1629 = vpop.f32.mrb[0].mxu0
      %v1630 = vadd.f32 0.0, %v1629
      %v1631 = vpop.f32.mrb[0].mxu0
      %v1632 = vpop.f32.mrb[0].mxu0
      %v1633 = vadd.f32 0.0, %v1632
      %v1634 = vpop.f32.mrb[0].mxu0
      %1635 = vmatprep.mubr.bf16.mxu0 0
      %1636 = vmatmul.mubr.bf16.gmra.mrb[0].mxu0 %v1532
      %v1637 = vpop.f32.mrb[0].mxu0
      %v1638 = vadd.f32 0.0, %v1637
      %v1639 = vpop.f32.mrb[0].mxu0
      %v1640 = vpop.f32.mrb[0].mxu0
      %v1641 = vadd.f32 0.0, %v1640
      %v1642 = vpop.f32.mrb[0].mxu0
      %1643 = vmatprep.mubr.bf16.mxu0 0
      %1644 = vmatmul.mubr.bf16.gmra.mrb[0].mxu0 %v1533
      %v1645 = vpop.f32.mrb[0].mxu0
      %v1646 = vadd.f32 0.0, %v1645
      %v1647 = vpop.f32.mrb[0].mxu0
      %v1648 = vpop.f32.mrb[0].mxu0
      %v1649 = vadd.f32 0.0, %v1648
      %v1650 = vpop.f32.mrb[0].mxu0
      %1651 = vmatprep.mubr.bf16.mxu0 0
      %1652 = vmatmul.mubr.bf16.gmra.mrb[0].mxu0 %v1534
      %v1653 = vpop.f32.mrb[0].mxu0
      %v1654 = vadd.f32 0.0, %v1653
      %v1655 = vpop.f32.mrb[0].mxu0
      %v1656 = vpop.f32.mrb[0].mxu0
      %v1657 = vadd.f32 0.0, %v1656
      %v1658 = vpop.f32.mrb[0].mxu0
      %1659 = vmatprep.mubr.bf16.mxu0 0
      %1660 = vmatmul.mubr.bf16.gmra.mrb[0].mxu0 %v1535
      %v1661 = vpop.f32.mrb[0].mxu0
      %v1662 = vadd.f32 0.0, %v1661
      %v1663 = vpop.f32.mrb[0].mxu0
      %v1664 = vpop.f32.mrb[0].mxu0
      %v1665 = vadd.f32 0.0, %v1664
      %v1666 = vpop.f32.mrb[0].mxu0
      %1667 = vmatprep.mubr.bf16.mxu0 0
      %1668 = vmatmul.mubr.bf16.gmra.mrb[0].mxu0 %v1536
      %v1669 = vpop.f32.mrb[0].mxu0
      %v1670 = vadd.f32 0.0, %v1669
      %v1671 = vpop.f32.mrb[0].mxu0
      %v1672 = vpop.f32.mrb[0].mxu0
      %v1673 = vadd.f32 0.0, %v1672
      %v1674 = vpop.f32.mrb[0].mxu0
      %1675 = vmatprep.mubr.bf16.mxu0 0
      %1676 = vmatmul.mubr.bf16.gmra.mrb[0].mxu0 %v1537
      %v1677 = vpop.f32.mrb[0].mxu0
      %v1678 = vadd.f32 0.0, %v1677
      %v1679 = vpop.f32.mrb[0].mxu0
      %v1680 = vpop.f32.mrb[0].mxu0
      %v1681 = vadd.f32 0.0, %v1680
      %v1682 = vpop.f32.mrb[0].mxu0
      %1683 = vmatprep.mubr.bf16.mxu0 0
      %1684 = vmatmul.mubr.bf16.gmra.mrb[0].mxu0 %v1538
      %v1685 = vpop.f32.mrb[0].mxu0
      %v1686 = vadd.f32 0.0, %v1685
      %v1687 = vpop.f32.mrb[0].mxu0
      %v1688 = vpop.f32.mrb[0].mxu0
      %v1689 = vadd.f32 0.0, %v1688
      %v1690 = vpop.f32.mrb[0].mxu0
      %1691 = vdwg.mxu0
      %v1692 = vadd.f32 %v1353, %v1630
      %v1693 = vadd.f32 %v1356, %v1633
      %v1694 = vadd.f32 %v1361, %v1638
      %v1695 = vadd.f32 %v1364, %v1641
      %v1696 = vadd.f32 %v1369, %v1646
      %v1697 = vadd.f32 %v1372, %v1649
      %v1698 = vadd.f32 %v1377, %v1654
      %v1699 = vadd.f32 %v1380, %v1657
      %v1700 = vadd.f32 %v1385, %v1662
      %v1701 = vadd.f32 %v1388, %v1665
      %v1702 = vadd.f32 %v1393, %v1670
      %v1703 = vadd.f32 %v1396, %v1673
      %v1704 = vadd.f32 %v1401, %v1678
      %v1705 = vadd.f32 %v1404, %v1681
      %v1706 = vadd.f32 %v1409, %v1686
      %v1707 = vadd.f32 %v1412, %v1689
      %s1708 = sadd.s32 %s258, 1
      %s1709 = smul.u32 %s1708, 3
      %s1710 = smul.addr %s1709, 4
      %s1711 = scalar_lea.vmem [#allocation2], %s1710
      %v1712 = vld [vmem:[%s1711] sm:$0xf]
      %v1713 = vld [vmem:[%s1711 + $0x4] sm:$0xf]
      %v1714 = vld [vmem:[%s1711 + $0xc] sm:$0xf]
      %v1715 = vld [vmem:[%s1711 + $0x10] sm:$0xf]
      %v1716 = vld [vmem:[%s1711 + $0x18] sm:$0xf]
      %v1717 = vld [vmem:[%s1711 + $0x1c] sm:$0xf]
      %v1718 = vld [vmem:[%s1711 + $0x24] sm:$0xf]
      %v1719 = vld [vmem:[%s1711 + $0x28] sm:$0xf]
      %v1720 = vld [vmem:[%s1711 + $0x30] sm:$0xf]
      %v1721 = vld [vmem:[%s1711 + $0x34] sm:$0xf]
      %v1722 = vld [vmem:[%s1711 + $0x3c] sm:$0xf]
      %v1723 = vld [vmem:[%s1711 + $0x40] sm:$0xf]
      %v1724 = vld [vmem:[%s1711 + $0x48] sm:$0xf]
      %v1725 = vld [vmem:[%s1711 + $0x4c] sm:$0xf]
      %v1726 = vld [vmem:[%s1711 + $0x54] sm:$0xf]
      %v1727 = vld [vmem:[%s1711 + $0x58] sm:$0xf]
      %s1728 = scalar_lea.vmem %s1, 192
      %v1729 = vld [vmem:[%s1728] sm:$0xf]
      %v1730 = vld [vmem:[%s1728 + $0x4] sm:$0xf]
      %v1731 = vld [vmem:[%s1728 + $0x8] sm:$0xf]
      %v1732 = vld [vmem:[%s1728 + $0xc] sm:$0xf]
      %v1733 = vld [vmem:[%s1728 + $0x10] sm:$0xf]
      %v1734 = vld [vmem:[%s1728 + $0x14] sm:$0xf]
      %v1735 = vld [vmem:[%s1728 + $0x18] sm:$0xf]
      %v1736 = vld [vmem:[%s1728 + $0x1c] sm:$0xf]
      %v1737 = vld [vmem:[%s1728 + $0x20] sm:$0xf]
      %v1738 = vld [vmem:[%s1728 + $0x24] sm:$0xf]
      %v1739 = vld [vmem:[%s1728 + $0x28] sm:$0xf]
      %v1740 = vld [vmem:[%s1728 + $0x2c] sm:$0xf]
      %v1741 = vld [vmem:[%s1728 + $0x30] sm:$0xf]
      %v1742 = vld [vmem:[%s1728 + $0x34] sm:$0xf]
      %v1743 = vld [vmem:[%s1728 + $0x38] sm:$0xf]
      %v1744 = vld [vmem:[%s1728 + $0x3c] sm:$0xf]
      %v1761 = vunpack.c.l.b16 %v1712
      %v1762 = vunpack.c.l.b16 %v1713
      %v1763 = vunpack.c.l.b16 %v1714
      %v1764 = vunpack.c.l.b16 %v1715
      %v1765 = vunpack.c.l.b16 %v1716
      %v1766 = vunpack.c.l.b16 %v1717
      %v1767 = vunpack.c.l.b16 %v1718
      %v1768 = vunpack.c.l.b16 %v1719
      %v1769 = vunpack.c.l.b16 %v1720
      %v1770 = vunpack.c.l.b16 %v1721
      %v1771 = vunpack.c.l.b16 %v1722
      %v1772 = vunpack.c.l.b16 %v1723
      %v1773 = vunpack.c.l.b16 %v1724
      %v1774 = vunpack.c.l.b16 %v1725
      %v1775 = vunpack.c.l.b16 %v1726
      %v1776 = vunpack.c.l.b16 %v1727
      %v1777 = vpack.c.b16 %v1762, %v1761
      %v1778 = vpack.c.b16 %v1764, %v1763
      %v1779 = vpack.c.b16 %v1766, %v1765
      %v1780 = vpack.c.b16 %v1768, %v1767
      %v1781 = vpack.c.b16 %v1770, %v1769
      %v1782 = vpack.c.b16 %v1772, %v1771
      %v1783 = vpack.c.b16 %v1774, %v1773
      %v1784 = vpack.c.b16 %v1776, %v1775
      %v1809 = vunpack.c.l.b16 %v1729
      %v1810 = vunpack.c.l.b16 %v1730
      %v1811 = vunpack.c.l.b16 %v1731
      %v1812 = vunpack.c.l.b16 %v1732
      %v1813 = vunpack.c.l.b16 %v1733
      %v1814 = vunpack.c.l.b16 %v1734
      %v1815 = vunpack.c.l.b16 %v1735
      %v1816 = vunpack.c.l.b16 %v1736
      %v1817 = vunpack.c.l.b16 %v1737
      %v1818 = vunpack.c.l.b16 %v1738
      %v1819 = vunpack.c.l.b16 %v1739
      %v1820 = vunpack.c.l.b16 %v1740
      %v1821 = vunpack.c.l.b16 %v1741
      %v1822 = vunpack.c.l.b16 %v1742
      %v1823 = vunpack.c.l.b16 %v1743
      %v1824 = vunpack.c.l.b16 %v1744
      %v1825 = vpack.c.b16 %v1810, %v1809
      %v1826 = vpack.c.b16 %v1812, %v1811
      %v1827 = vpack.c.b16 %v1814, %v1813
      %v1828 = vpack.c.b16 %v1816, %v1815
      %v1829 = vpack.c.b16 %v1818, %v1817
      %v1830 = vpack.c.b16 %v1820, %v1819
      %v1831 = vpack.c.b16 %v1822, %v1821
      %v1832 = vpack.c.b16 %v1824, %v1823
      %1841 = vmatprep.subr.bf16.mxu0 0
      %1842 = vmatpush1.bf16.msra.mxu0 %v1825
      %1843 = vmatprep.subr.bf16.mxu0 0
      %1844 = vmatpush1.bf16.msra.mxu0 %v1826
      %1845 = vmatprep.subr.bf16.mxu0 0
      %1846 = vmatpush1.bf16.msra.mxu0 %v1827
      %1847 = vmatprep.subr.bf16.mxu0 0
      %1848 = vmatpush1.bf16.msra.mxu0 %v1828
      %1849 = vmatprep.subr.bf16.mxu0 0
      %1850 = vmatpush1.bf16.msra.mxu0 %v1829
      %1851 = vmatprep.subr.bf16.mxu0 0
      %1852 = vmatpush1.bf16.msra.mxu0 %v1830
      %1853 = vmatprep.subr.bf16.mxu0 0
      %1854 = vmatpush1.bf16.msra.mxu0 %v1831
      %1855 = vmatprep.subr.bf16.mxu0 0
      %1856 = vmatpush1.bf16.msra.mxu0 %v1832
      %1857 = vmatprep.subr.bf16.mxu0 0
      %1858 = vmatpush1.bf16.msra.mxu0 0
      %1859 = vmatprep.subr.bf16.mxu0 0
      %1860 = vmatpush1.bf16.msra.mxu0 0
      %1861 = vmatprep.subr.bf16.mxu0 0
      %1862 = vmatpush1.bf16.msra.mxu0 0
      %1863 = vmatprep.subr.bf16.mxu0 0
      %1864 = vmatpush1.bf16.msra.mxu0 0
      %1865 = vmatprep.subr.bf16.mxu0 0
      %1866 = vmatpush1.bf16.msra.mxu0 0
      %1867 = vmatprep.subr.bf16.mxu0 0
      %1868 = vmatpush1.bf16.msra.mxu0 0
      %1869 = vmatprep.subr.bf16.mxu0 0
      %1870 = vmatpush1.bf16.msra.mxu0 0
      %1871 = vmatprep.subr.bf16.mxu0 0
      %1872 = vmatpush1.bf16.msra.mxu0 0
      %1873 = vmatprep.mubr.bf16.mxu0 0
      %1874 = vmatmul.mubr.bf16.gmra.mrb[0].mxu0 %v1777
      %v1875 = vpop.f32.mrb[0].mxu0
      %v1876 = vadd.f32 0.0, %v1875
      %v1877 = vpop.f32.mrb[0].mxu0
      %v1878 = vpop.f32.mrb[0].mxu0
      %v1879 = vadd.f32 0.0, %v1878
      %v1880 = vpop.f32.mrb[0].mxu0
      %1881 = vmatprep.mubr.bf16.mxu0 0
      %1882 = vmatmul.mubr.bf16.gmra.mrb[0].mxu0 %v1778
      %v1883 = vpop.f32.mrb[0].mxu0
      %v1884 = vadd.f32 0.0, %v1883
      %v1885 = vpop.f32.mrb[0].mxu0
      %v1886 = vpop.f32.mrb[0].mxu0
      %v1887 = vadd.f32 0.0, %v1886
      %v1888 = vpop.f32.mrb[0].mxu0
      %1889 = vmatprep.mubr.bf16.mxu0 0
      %1890 = vmatmul.mubr.bf16.gmra.mrb[0].mxu0 %v1779
      %v1891 = vpop.f32.mrb[0].mxu0
      %v1892 = vadd.f32 0.0, %v1891
      %v1893 = vpop.f32.mrb[0].mxu0
      %v1894 = vpop.f32.mrb[0].mxu0
      %v1895 = vadd.f32 0.0, %v1894
      %v1896 = vpop.f32.mrb[0].mxu0
      %1897 = vmatprep.mubr.bf16.mxu0 0
      %1898 = vmatmul.mubr.bf16.gmra.mrb[0].mxu0 %v1780
      %v1899 = vpop.f32.mrb[0].mxu0
      %v1900 = vadd.f32 0.0, %v1899
      %v1901 = vpop.f32.mrb[0].mxu0
      %v1902 = vpop.f32.mrb[0].mxu0
      %v1903 = vadd.f32 0.0, %v1902
      %v1904 = vpop.f32.mrb[0].mxu0
      %1905 = vmatprep.mubr.bf16.mxu0 0
      %1906 = vmatmul.mubr.bf16.gmra.mrb[0].mxu0 %v1781
      %v1907 = vpop.f32.mrb[0].mxu0
      %v1908 = vadd.f32 0.0, %v1907
      %v1909 = vpop.f32.mrb[0].mxu0
      %v1910 = vpop.f32.mrb[0].mxu0
      %v1911 = vadd.f32 0.0, %v1910
      %v1912 = vpop.f32.mrb[0].mxu0
      %1913 = vmatprep.mubr.bf16.mxu0 0
      %1914 = vmatmul.mubr.bf16.gmra.mrb[0].mxu0 %v1782
      %v1915 = vpop.f32.mrb[0].mxu0
      %v1916 = vadd.f32 0.0, %v1915
      %v1917 = vpop.f32.mrb[0].mxu0
      %v1918 = vpop.f32.mrb[0].mxu0
      %v1919 = vadd.f32 0.0, %v1918
      %v1920 = vpop.f32.mrb[0].mxu0
      %1921 = vmatprep.mubr.bf16.mxu0 0
      %1922 = vmatmul.mubr.bf16.gmra.mrb[0].mxu0 %v1783
      %v1923 = vpop.f32.mrb[0].mxu0
      %v1924 = vadd.f32 0.0, %v1923
      %v1925 = vpop.f32.mrb[0].mxu0
      %v1926 = vpop.f32.mrb[0].mxu0
      %v1927 = vadd.f32 0.0, %v1926
      %v1928 = vpop.f32.mrb[0].mxu0
      %1929 = vmatprep.mubr.bf16.mxu0 0
      %1930 = vmatmul.mubr.bf16.gmra.mrb[0].mxu0 %v1784
      %v1931 = vpop.f32.mrb[0].mxu0
      %v1932 = vadd.f32 0.0, %v1931
      %v1933 = vpop.f32.mrb[0].mxu0
      %v1934 = vpop.f32.mrb[0].mxu0
      %v1935 = vadd.f32 0.0, %v1934
      %v1936 = vpop.f32.mrb[0].mxu0
      %1937 = vdwg.mxu0
      %v1938 = vadd.f32 %v1692, %v1876
      %v1939 = vadd.f32 %v1693, %v1879
      %v1940 = vadd.f32 %v1694, %v1884
      %v1941 = vadd.f32 %v1695, %v1887
      %v1942 = vadd.f32 %v1696, %v1892
      %v1943 = vadd.f32 %v1697, %v1895
      %v1944 = vadd.f32 %v1698, %v1900
      %v1945 = vadd.f32 %v1699, %v1903
      %v1946 = vadd.f32 %v1700, %v1908
      %v1947 = vadd.f32 %v1701, %v1911
      %v1948 = vadd.f32 %v1702, %v1916
      %v1949 = vadd.f32 %v1703, %v1919
      %v1950 = vadd.f32 %v1704, %v1924
      %v1951 = vadd.f32 %v1705, %v1927
      %v1952 = vadd.f32 %v1706, %v1932
      %v1953 = vadd.f32 %v1707, %v1935
      %v1954 = vld [vmem:[%s1711] sm:$0xf]
      %v1955 = vld [vmem:[%s1711 + $0x4] sm:$0xf]
      %v1956 = vld [vmem:[%s1711 + $0x8] sm:$0x1]
      %v1957 = vld [vmem:[%s1711 + $0xc] sm:$0xf]
      %v1958 = vld [vmem:[%s1711 + $0x10] sm:$0xf]
      %v1959 = vld [vmem:[%s1711 + $0x14] sm:$0x1]
      %v1960 = vld [vmem:[%s1711 + $0x18] sm:$0xf]
      %v1961 = vld [vmem:[%s1711 + $0x1c] sm:$0xf]
      %v1962 = vld [vmem:[%s1711 + $0x20] sm:$0x1]
      %v1963 = vld [vmem:[%s1711 + $0x24] sm:$0xf]
      %v1964 = vld [vmem:[%s1711 + $0x28] sm:$0xf]
      %v1965 = vld [vmem:[%s1711 + $0x2c] sm:$0x1]
      %v1966 = vld [vmem:[%s1711 + $0x30] sm:$0xf]
      %v1967 = vld [vmem:[%s1711 + $0x34] sm:$0xf]
      %v1968 = vld [vmem:[%s1711 + $0x38] sm:$0x1]
      %v1969 = vld [vmem:[%s1711 + $0x3c] sm:$0xf]
      %v1970 = vld [vmem:[%s1711 + $0x40] sm:$0xf]
      %v1971 = vld [vmem:[%s1711 + $0x44] sm:$0x1]
      %v1972 = vld [vmem:[%s1711 + $0x48] sm:$0xf]
      %v1973 = vld [vmem:[%s1711 + $0x4c] sm:$0xf]
      %v1974 = vld [vmem:[%s1711 + $0x50] sm:$0x1]
      %v1975 = vld [vmem:[%s1711 + $0x54] sm:$0xf]
      %v1976 = vld [vmem:[%s1711 + $0x58] sm:$0xf]
      %v1977 = vld [vmem:[%s1711 + $0x5c] sm:$0x1]
      %v1979 = vshrl.u32 %v1954, 16
      %v1981 = vrot.slane %v1979, 4
      %v1982 = vshll.u32 %v1954, 16
      %v1984 = vrot.slane %v1982, 5
      %v1985 = vor.u32 %v1981, %v1984
      %v1986 = vrot.slane %v1985, 4
      %v1988 = vshll.u32 %v1955, 16
      %v1990 = vrot.slane %v1988, 5
      %v1991 = vsel %vm835, %v1986, %v1990
      %v1992 = vshrl.u32 %v1955, 16
      %v1994 = vrot.slane %v1992, 4
      %v1995 = vor.u32 %v1994, %v1990
      %v1996 = vrot.slane %v1995, 4
      %v1998 = vshll.u32 %v1956, 16
      %v2000 = vrot.slane %v1998, 5
      %v2001 = vsel %vm835, %v1996, %v2000
      %v2003 = vshrl.u32 %v1957, 16
      %v2005 = vrot.slane %v2003, 4
      %v2006 = vshll.u32 %v1957, 16
      %v2008 = vrot.slane %v2006, 5
      %v2009 = vor.u32 %v2005, %v2008
      %v2010 = vrot.slane %v2009, 4
      %v2012 = vshll.u32 %v1958, 16
      %v2014 = vrot.slane %v2012, 5
      %v2015 = vsel %vm835, %v2010, %v2014
      %v2016 = vshrl.u32 %v1958, 16
      %v2018 = vrot.slane %v2016, 4
      %v2019 = vor.u32 %v2018, %v2014
      %v2020 = vrot.slane %v2019, 4
      %v2022 = vshll.u32 %v1959, 16
      %v2024 = vrot.slane %v2022, 5
      %v2025 = vsel %vm835, %v2020, %v2024
      %v2027 = vshrl.u32 %v1960, 16
      %v2029 = vrot.slane %v2027, 4
      %v2030 = vshll.u32 %v1960, 16
      %v2032 = vrot.slane %v2030, 5
      %v2033 = vor.u32 %v2029, %v2032
      %v2034 = vrot.slane %v2033, 4
      %v2036 = vshll.u32 %v1961, 16
      %v2038 = vrot.slane %v2036, 5
      %v2039 = vsel %vm835, %v2034, %v2038
      %v2040 = vshrl.u32 %v1961, 16
      %v2042 = vrot.slane %v2040, 4
      %v2043 = vor.u32 %v2042, %v2038
      %v2044 = vrot.slane %v2043, 4
      %v2046 = vshll.u32 %v1962, 16
      %v2048 = vrot.slane %v2046, 5
      %v2049 = vsel %vm835, %v2044, %v2048
      %v2051 = vshrl.u32 %v1963, 16
      %v2053 = vrot.slane %v2051, 4
      %v2054 = vshll.u32 %v1963, 16
      %v2056 = vrot.slane %v2054, 5
      %v2057 = vor.u32 %v2053, %v2056
      %v2058 = vrot.slane %v2057, 4
      %v2060 = vshll.u32 %v1964, 16
      %v2062 = vrot.slane %v2060, 5
      %v2063 = vsel %vm835, %v2058, %v2062
      %v2064 = vshrl.u32 %v1964, 16
      %v2066 = vrot.slane %v2064, 4
      %v2067 = vor.u32 %v2066, %v2062
      %v2068 = vrot.slane %v2067, 4
      %v2070 = vshll.u32 %v1965, 16
      %v2072 = vrot.slane %v2070, 5
      %v2073 = vsel %vm835, %v2068, %v2072
      %v2075 = vshrl.u32 %v1966, 16
      %v2077 = vrot.slane %v2075, 4
      %v2078 = vshll.u32 %v1966, 16
      %v2080 = vrot.slane %v2078, 5
      %v2081 = vor.u32 %v2077, %v2080
      %v2082 = vrot.slane %v2081, 4
      %v2084 = vshll.u32 %v1967, 16
      %v2086 = vrot.slane %v2084, 5
      %v2087 = vsel %vm835, %v2082, %v2086
      %v2088 = vshrl.u32 %v1967, 16
      %v2090 = vrot.slane %v2088, 4
      %v2091 = vor.u32 %v2090, %v2086
      %v2092 = vrot.slane %v2091, 4
      %v2094 = vshll.u32 %v1968, 16
      %v2096 = vrot.slane %v2094, 5
      %v2097 = vsel %vm835, %v2092, %v2096
      %v2099 = vshrl.u32 %v1969, 16
      %v2101 = vrot.slane %v2099, 4
      %v2102 = vshll.u32 %v1969, 16
      %v2104 = vrot.slane %v2102, 5
      %v2105 = vor.u32 %v2101, %v2104
      %v2106 = vrot.slane %v2105, 4
      %v2108 = vshll.u32 %v1970, 16
      %v2110 = vrot.slane %v2108, 5
      %v2111 = vsel %vm835, %v2106, %v2110
      %v2112 = vshrl.u32 %v1970, 16
      %v2114 = vrot.slane %v2112, 4
      %v2115 = vor.u32 %v2114, %v2110
      %v2116 = vrot.slane %v2115, 4
      %v2118 = vshll.u32 %v1971, 16
      %v2120 = vrot.slane %v2118, 5
      %v2121 = vsel %vm835, %v2116, %v2120
      %v2123 = vshrl.u32 %v1972, 16
      %v2125 = vrot.slane %v2123, 4
      %v2126 = vshll.u32 %v1972, 16
      %v2128 = vrot.slane %v2126, 5
      %v2129 = vor.u32 %v2125, %v2128
      %v2130 = vrot.slane %v2129, 4
      %v2132 = vshll.u32 %v1973, 16
      %v2134 = vrot.slane %v2132, 5
      %v2135 = vsel %vm835, %v2130, %v2134
      %v2136 = vshrl.u32 %v1973, 16
      %v2138 = vrot.slane %v2136, 4
      %v2139 = vor.u32 %v2138, %v2134
      %v2140 = vrot.slane %v2139, 4
      %v2142 = vshll.u32 %v1974, 16
      %v2144 = vrot.slane %v2142, 5
      %v2145 = vsel %vm835, %v2140, %v2144
      %v2147 = vshrl.u32 %v1975, 16
      %v2149 = vrot.slane %v2147, 4
      %v2150 = vshll.u32 %v1975, 16
      %v2152 = vrot.slane %v2150, 5
      %v2153 = vor.u32 %v2149, %v2152
      %v2154 = vrot.slane %v2153, 4
      %v2156 = vshll.u32 %v1976, 16
      %v2158 = vrot.slane %v2156, 5
      %v2159 = vsel %vm835, %v2154, %v2158
      %v2160 = vshrl.u32 %v1976, 16
      %v2162 = vrot.slane %v2160, 4
      %v2163 = vor.u32 %v2162, %v2158
      %v2164 = vrot.slane %v2163, 4
      %v2166 = vshll.u32 %v1977, 16
      %v2168 = vrot.slane %v2166, 5
      %v2169 = vsel %vm835, %v2164, %v2168
      %s2170 = scalar_lea.vmem %s1, 256
      %v2171 = vld [vmem:[%s2170] sm:$0xf]
      %v2172 = vld [vmem:[%s2170 + $0x4] sm:$0xf]
      %v2173 = vld [vmem:[%s2170 + $0x8] sm:$0xf]
      %v2174 = vld [vmem:[%s2170 + $0xc] sm:$0xf]
      %v2175 = vld [vmem:[%s2170 + $0x10] sm:$0xf]
      %v2176 = vld [vmem:[%s2170 + $0x14] sm:$0xf]
      %v2177 = vld [vmem:[%s2170 + $0x18] sm:$0xf]
      %v2178 = vld [vmem:[%s2170 + $0x1c] sm:$0xf]
      %v2179 = vld [vmem:[%s2170 + $0x20] sm:$0xf]
      %v2180 = vld [vmem:[%s2170 + $0x24] sm:$0xf]
      %v2181 = vld [vmem:[%s2170 + $0x28] sm:$0xf]
      %v2182 = vld [vmem:[%s2170 + $0x2c] sm:$0xf]
      %v2183 = vld [vmem:[%s2170 + $0x30] sm:$0xf]
      %v2184 = vld [vmem:[%s2170 + $0x34] sm:$0xf]
      %v2185 = vld [vmem:[%s2170 + $0x38] sm:$0xf]
      %v2186 = vld [vmem:[%s2170 + $0x3c] sm:$0xf]
      %v2187 = vunpack.c.l.b16 %v1991
      %v2188 = vunpack.c.l.b16 %v2001
      %v2189 = vunpack.c.l.b16 %v2015
      %v2190 = vunpack.c.l.b16 %v2025
      %v2191 = vunpack.c.l.b16 %v2039
      %v2192 = vunpack.c.l.b16 %v2049
      %v2193 = vunpack.c.l.b16 %v2063
      %v2194 = vunpack.c.l.b16 %v2073
      %v2195 = vunpack.c.l.b16 %v2087
      %v2196 = vunpack.c.l.b16 %v2097
      %v2197 = vunpack.c.l.b16 %v2111
      %v2198 = vunpack.c.l.b16 %v2121
      %v2199 = vunpack.c.l.b16 %v2135
      %v2200 = vunpack.c.l.b16 %v2145
      %v2201 = vunpack.c.l.b16 %v2159
      %v2202 = vunpack.c.l.b16 %v2169
      %v2203 = vpack.c.b16 %v2188, %v2187
      %v2204 = vpack.c.b16 %v2190, %v2189
      %v2205 = vpack.c.b16 %v2192, %v2191
      %v2206 = vpack.c.b16 %v2194, %v2193
      %v2207 = vpack.c.b16 %v2196, %v2195
      %v2208 = vpack.c.b16 %v2198, %v2197
      %v2209 = vpack.c.b16 %v2200, %v2199
      %v2210 = vpack.c.b16 %v2202, %v2201
      %v2235 = vunpack.c.l.b16 %v2171
      %v2236 = vunpack.c.l.b16 %v2172
      %v2237 = vunpack.c.l.b16 %v2173
      %v2238 = vunpack.c.l.b16 %v2174
      %v2239 = vunpack.c.l.b16 %v2175
      %v2240 = vunpack.c.l.b16 %v2176
      %v2241 = vunpack.c.l.b16 %v2177
      %v2242 = vunpack.c.l.b16 %v2178
      %v2243 = vunpack.c.l.b16 %v2179
      %v2244 = vunpack.c.l.b16 %v2180
      %v2245 = vunpack.c.l.b16 %v2181
      %v2246 = vunpack.c.l.b16 %v2182
      %v2247 = vunpack.c.l.b16 %v2183
      %v2248 = vunpack.c.l.b16 %v2184
      %v2249 = vunpack.c.l.b16 %v2185
      %v2250 = vunpack.c.l.b16 %v2186
      %v2251 = vpack.c.b16 %v2236, %v2235
      %v2252 = vpack.c.b16 %v2238, %v2237
      %v2253 = vpack.c.b16 %v2240, %v2239
      %v2254 = vpack.c.b16 %v2242, %v2241
      %v2255 = vpack.c.b16 %v2244, %v2243
      %v2256 = vpack.c.b16 %v2246, %v2245
      %v2257 = vpack.c.b16 %v2248, %v2247
      %v2258 = vpack.c.b16 %v2250, %v2249
      %2267 = vmatprep.subr.bf16.mxu0 0
      %2268 = vmatpush1.bf16.msra.mxu0 %v2251
      %2269 = vmatprep.subr.bf16.mxu0 0
      %2270 = vmatpush1.bf16.msra.mxu0 %v2252
      %2271 = vmatprep.subr.bf16.mxu0 0
      %2272 = vmatpush1.bf16.msra.mxu0 %v2253
      %2273 = vmatprep.subr.bf16.mxu0 0
      %2274 = vmatpush1.bf16.msra.mxu0 %v2254
      %2275 = vmatprep.subr.bf16.mxu0 0
      %2276 = vmatpush1.bf16.msra.mxu0 %v2255
      %2277 = vmatprep.subr.bf16.mxu0 0
      %2278 = vmatpush1.bf16.msra.mxu0 %v2256
      %2279 = vmatprep.subr.bf16.mxu0 0
      %2280 = vmatpush1.bf16.msra.mxu0 %v2257
      %2281 = vmatprep.subr.bf16.mxu0 0
      %2282 = vmatpush1.bf16.msra.mxu0 %v2258
      %2283 = vmatprep.subr.bf16.mxu0 0
      %2284 = vmatpush1.bf16.msra.mxu0 0
      %2285 = vmatprep.subr.bf16.mxu0 0
      %2286 = vmatpush1.bf16.msra.mxu0 0
      %2287 = vmatprep.subr.bf16.mxu0 0
      %2288 = vmatpush1.bf16.msra.mxu0 0
      %2289 = vmatprep.subr.bf16.mxu0 0
      %2290 = vmatpush1.bf16.msra.mxu0 0
      %2291 = vmatprep.subr.bf16.mxu0 0
      %2292 = vmatpush1.bf16.msra.mxu0 0
      %2293 = vmatprep.subr.bf16.mxu0 0
      %2294 = vmatpush1.bf16.msra.mxu0 0
      %2295 = vmatprep.subr.bf16.mxu0 0
      %2296 = vmatpush1.bf16.msra.mxu0 0
      %2297 = vmatprep.subr.bf16.mxu0 0
      %2298 = vmatpush1.bf16.msra.mxu0 0
      %2299 = vmatprep.mubr.bf16.mxu0 0
      %2300 = vmatmul.mubr.bf16.gmra.mrb[0].mxu0 %v2203
      %v2301 = vpop.f32.mrb[0].mxu0
      %v2302 = vadd.f32 0.0, %v2301
      %v2303 = vpop.f32.mrb[0].mxu0
      %v2304 = vpop.f32.mrb[0].mxu0
      %v2305 = vadd.f32 0.0, %v2304
      %v2306 = vpop.f32.mrb[0].mxu0
      %2307 = vmatprep.mubr.bf16.mxu0 0
      %2308 = vmatmul.mubr.bf16.gmra.mrb[0].mxu0 %v2204
      %v2309 = vpop.f32.mrb[0].mxu0
      %v2310 = vadd.f32 0.0, %v2309
      %v2311 = vpop.f32.mrb[0].mxu0
      %v2312 = vpop.f32.mrb[0].mxu0
      %v2313 = vadd.f32 0.0, %v2312
      %v2314 = vpop.f32.mrb[0].mxu0
      %2315 = vmatprep.mubr.bf16.mxu0 0
      %2316 = vmatmul.mubr.bf16.gmra.mrb[0].mxu0 %v2205
      %v2317 = vpop.f32.mrb[0].mxu0
      %v2318 = vadd.f32 0.0, %v2317
      %v2319 = vpop.f32.mrb[0].mxu0
      %v2320 = vpop.f32.mrb[0].mxu0
      %v2321 = vadd.f32 0.0, %v2320
      %v2322 = vpop.f32.mrb[0].mxu0
      %2323 = vmatprep.mubr.bf16.mxu0 0
      %2324 = vmatmul.mubr.bf16.gmra.mrb[0].mxu0 %v2206
      %v2325 = vpop.f32.mrb[0].mxu0
      %v2326 = vadd.f32 0.0, %v2325
      %v2327 = vpop.f32.mrb[0].mxu0
      %v2328 = vpop.f32.mrb[0].mxu0
      %v2329 = vadd.f32 0.0, %v2328
      %v2330 = vpop.f32.mrb[0].mxu0
      %2331 = vmatprep.mubr.bf16.mxu0 0
      %2332 = vmatmul.mubr.bf16.gmra.mrb[0].mxu0 %v2207
      %v2333 = vpop.f32.mrb[0].mxu0
      %v2334 = vadd.f32 0.0, %v2333
      %v2335 = vpop.f32.mrb[0].mxu0
      %v2336 = vpop.f32.mrb[0].mxu0
      %v2337 = vadd.f32 0.0, %v2336
      %v2338 = vpop.f32.mrb[0].mxu0
      %2339 = vmatprep.mubr.bf16.mxu0 0
      %2340 = vmatmul.mubr.bf16.gmra.mrb[0].mxu0 %v2208
      %v2341 = vpop.f32.mrb[0].mxu0
      %v2342 = vadd.f32 0.0, %v2341
      %v2343 = vpop.f32.mrb[0].mxu0
      %v2344 = vpop.f32.mrb[0].mxu0
      %v2345 = vadd.f32 0.0, %v2344
      %v2346 = vpop.f32.mrb[0].mxu0
      %2347 = vmatprep.mubr.bf16.mxu0 0
      %2348 = vmatmul.mubr.bf16.gmra.mrb[0].mxu0 %v2209
      %v2349 = vpop.f32.mrb[0].mxu0
      %v2350 = vadd.f32 0.0, %v2349
      %v2351 = vpop.f32.mrb[0].mxu0
      %v2352 = vpop.f32.mrb[0].mxu0
      %v2353 = vadd.f32 0.0, %v2352
      %v2354 = vpop.f32.mrb[0].mxu0
      %2355 = vmatprep.mubr.bf16.mxu0 0
      %2356 = vmatmul.mubr.bf16.gmra.mrb[0].mxu0 %v2210
      %v2357 = vpop.f32.mrb[0].mxu0
      %v2358 = vadd.f32 0.0, %v2357
      %v2359 = vpop.f32.mrb[0].mxu0
      %v2360 = vpop.f32.mrb[0].mxu0
      %v2361 = vadd.f32 0.0, %v2360
      %v2362 = vpop.f32.mrb[0].mxu0
      %2363 = vdwg.mxu0
      %v2364 = vadd.f32 %v1938, %v2302
      %v2365 = vadd.f32 %v1939, %v2305
      %v2366 = vadd.f32 %v1940, %v2310
      %v2367 = vadd.f32 %v1941, %v2313
      %v2368 = vadd.f32 %v1942, %v2318
      %v2369 = vadd.f32 %v1943, %v2321
      %v2370 = vadd.f32 %v1944, %v2326
      %v2371 = vadd.f32 %v1945, %v2329
      %v2372 = vadd.f32 %v1946, %v2334
      %v2373 = vadd.f32 %v1947, %v2337
      %v2374 = vadd.f32 %v1948, %v2342
      %v2375 = vadd.f32 %v1949, %v2345
      %v2376 = vadd.f32 %v1950, %v2350
      %v2377 = vadd.f32 %v1951, %v2353
      %v2378 = vadd.f32 %v1952, %v2358
      %v2379 = vadd.f32 %v1953, %v2361
      %v2380 = vld [vmem:[%s1711] sm:$0xe]
      %v2381 = vld [vmem:[%s1711 + $0xc] sm:$0xe]
      %v2382 = vld [vmem:[%s1711 + $0x18] sm:$0xe]
      %v2383 = vld [vmem:[%s1711 + $0x24] sm:$0xe]
      %v2384 = vld [vmem:[%s1711 + $0x30] sm:$0xe]
      %v2385 = vld [vmem:[%s1711 + $0x3c] sm:$0xe]
      %v2386 = vld [vmem:[%s1711 + $0x48] sm:$0xe]
      %v2387 = vld [vmem:[%s1711 + $0x54] sm:$0xe]
      %v2412 = vrot.slane %v2380, 5
      %v2413 = vrot.slane %v2412, 4
      %v2414 = vrot.slane %v1955, 5
      %v2415 = vsel %vm1441, %v2413, %v2414
      %v2416 = vrot.slane %v2414, 4
      %v2417 = vrot.slane %v1956, 5
      %v2418 = vsel %vm1441, %v2416, %v2417
      %v2419 = vrot.slane %v2381, 5
      %v2420 = vrot.slane %v2419, 4
      %v2421 = vrot.slane %v1958, 5
      %v2422 = vsel %vm1441, %v2420, %v2421
      %v2423 = vrot.slane %v2421, 4
      %v2424 = vrot.slane %v1959, 5
      %v2425 = vsel %vm1441, %v2423, %v2424
      %v2426 = vrot.slane %v2382, 5
      %v2427 = vrot.slane %v2426, 4
      %v2428 = vrot.slane %v1961, 5
      %v2429 = vsel %vm1441, %v2427, %v2428
      %v2430 = vrot.slane %v2428, 4
      %v2431 = vrot.slane %v1962, 5
      %v2432 = vsel %vm1441, %v2430, %v2431
      %v2433 = vrot.slane %v2383, 5
      %v2434 = vrot.slane %v2433, 4
      %v2435 = vrot.slane %v1964, 5
      %v2436 = vsel %vm1441, %v2434, %v2435
      %v2437 = vrot.slane %v2435, 4
      %v2438 = vrot.slane %v1965, 5
      %v2439 = vsel %vm1441, %v2437, %v2438
      %v2440 = vrot.slane %v2384, 5
      %v2441 = vrot.slane %v2440, 4
      %v2442 = vrot.slane %v1967, 5
      %v2443 = vsel %vm1441, %v2441, %v2442
      %v2444 = vrot.slane %v2442, 4
      %v2445 = vrot.slane %v1968, 5
      %v2446 = vsel %vm1441, %v2444, %v2445
      %v2447 = vrot.slane %v2385, 5
      %v2448 = vrot.slane %v2447, 4
      %v2449 = vrot.slane %v1970, 5
      %v2450 = vsel %vm1441, %v2448, %v2449
      %v2451 = vrot.slane %v2449, 4
      %v2452 = vrot.slane %v1971, 5
      %v2453 = vsel %vm1441, %v2451, %v2452
      %v2454 = vrot.slane %v2386, 5
      %v2455 = vrot.slane %v2454, 4
      %v2456 = vrot.slane %v1973, 5
      %v2457 = vsel %vm1441, %v2455, %v2456
      %v2458 = vrot.slane %v2456, 4
      %v2459 = vrot.slane %v1974, 5
      %v2460 = vsel %vm1441, %v2458, %v2459
      %v2461 = vrot.slane %v2387, 5
      %v2462 = vrot.slane %v2461, 4
      %v2463 = vrot.slane %v1976, 5
      %v2464 = vsel %vm1441, %v2462, %v2463
      %v2465 = vrot.slane %v2463, 4
      %v2466 = vrot.slane %v1977, 5
      %v2467 = vsel %vm1441, %v2465, %v2466
      %s2468 = scalar_lea.vmem %s1, 320
      %v2469 = vld [vmem:[%s2468] sm:$0xf]
      %v2470 = vld [vmem:[%s2468 + $0x4] sm:$0xf]
      %v2471 = vld [vmem:[%s2468 + $0x8] sm:$0xf]
      %v2472 = vld [vmem:[%s2468 + $0xc] sm:$0xf]
      %v2473 = vld [vmem:[%s2468 + $0x10] sm:$0xf]
      %v2474 = vld [vmem:[%s2468 + $0x14] sm:$0xf]
      %v2475 = vld [vmem:[%s2468 + $0x18] sm:$0xf]
      %v2476 = vld [vmem:[%s2468 + $0x1c] sm:$0xf]
      %v2477 = vld [vmem:[%s2468 + $0x20] sm:$0xf]
      %v2478 = vld [vmem:[%s2468 + $0x24] sm:$0xf]
      %v2479 = vld [vmem:[%s2468 + $0x28] sm:$0xf]
      %v2480 = vld [vmem:[%s2468 + $0x2c] sm:$0xf]
      %v2481 = vld [vmem:[%s2468 + $0x30] sm:$0xf]
      %v2482 = vld [vmem:[%s2468 + $0x34] sm:$0xf]
      %v2483 = vld [vmem:[%s2468 + $0x38] sm:$0xf]
      %v2484 = vld [vmem:[%s2468 + $0x3c] sm:$0xf]
      %v2485 = vunpack.c.l.b16 %v2415
      %v2486 = vunpack.c.l.b16 %v2418
      %v2487 = vunpack.c.l.b16 %v2422
      %v2488 = vunpack.c.l.b16 %v2425
      %v2489 = vunpack.c.l.b16 %v2429
      %v2490 = vunpack.c.l.b16 %v2432
      %v2491 = vunpack.c.l.b16 %v2436
      %v2492 = vunpack.c.l.b16 %v2439
      %v2493 = vunpack.c.l.b16 %v2443
      %v2494 = vunpack.c.l.b16 %v2446
      %v2495 = vunpack.c.l.b16 %v2450
      %v2496 = vunpack.c.l.b16 %v2453
      %v2497 = vunpack.c.l.b16 %v2457
      %v2498 = vunpack.c.l.b16 %v2460
      %v2499 = vunpack.c.l.b16 %v2464
      %v2500 = vunpack.c.l.b16 %v2467
      %v2501 = vpack.c.b16 %v2486, %v2485
      %v2502 = vpack.c.b16 %v2488, %v2487
      %v2503 = vpack.c.b16 %v2490, %v2489
      %v2504 = vpack.c.b16 %v2492, %v2491
      %v2505 = vpack.c.b16 %v2494, %v2493
      %v2506 = vpack.c.b16 %v2496, %v2495
      %v2507 = vpack.c.b16 %v2498, %v2497
      %v2508 = vpack.c.b16 %v2500, %v2499
      %v2533 = vunpack.c.l.b16 %v2469
      %v2534 = vunpack.c.l.b16 %v2470
      %v2535 = vunpack.c.l.b16 %v2471
      %v2536 = vunpack.c.l.b16 %v2472
      %v2537 = vunpack.c.l.b16 %v2473
      %v2538 = vunpack.c.l.b16 %v2474
      %v2539 = vunpack.c.l.b16 %v2475
      %v2540 = vunpack.c.l.b16 %v2476
      %v2541 = vunpack.c.l.b16 %v2477
      %v2542 = vunpack.c.l.b16 %v2478
      %v2543 = vunpack.c.l.b16 %v2479
      %v2544 = vunpack.c.l.b16 %v2480
      %v2545 = vunpack.c.l.b16 %v2481
      %v2546 = vunpack.c.l.b16 %v2482
      %v2547 = vunpack.c.l.b16 %v2483
      %v2548 = vunpack.c.l.b16 %v2484
      %v2549 = vpack.c.b16 %v2534, %v2533
      %v2550 = vpack.c.b16 %v2536, %v2535
      %v2551 = vpack.c.b16 %v2538, %v2537
      %v2552 = vpack.c.b16 %v2540, %v2539
      %v2553 = vpack.c.b16 %v2542, %v2541
      %v2554 = vpack.c.b16 %v2544, %v2543
      %v2555 = vpack.c.b16 %v2546, %v2545
      %v2556 = vpack.c.b16 %v2548, %v2547
      %2565 = vmatprep.subr.bf16.mxu0 0
      %2566 = vmatpush1.bf16.msra.mxu0 %v2549
      %2567 = vmatprep.subr.bf16.mxu0 0
      %2568 = vmatpush1.bf16.msra.mxu0 %v2550
      %2569 = vmatprep.subr.bf16.mxu0 0
      %2570 = vmatpush1.bf16.msra.mxu0 %v2551
      %2571 = vmatprep.subr.bf16.mxu0 0
      %2572 = vmatpush1.bf16.msra.mxu0 %v2552
      %2573 = vmatprep.subr.bf16.mxu0 0
      %2574 = vmatpush1.bf16.msra.mxu0 %v2553
      %2575 = vmatprep.subr.bf16.mxu0 0
      %2576 = vmatpush1.bf16.msra.mxu0 %v2554
      %2577 = vmatprep.subr.bf16.mxu0 0
      %2578 = vmatpush1.bf16.msra.mxu0 %v2555
      %2579 = vmatprep.subr.bf16.mxu0 0
      %2580 = vmatpush1.bf16.msra.mxu0 %v2556
      %2581 = vmatprep.subr.bf16.mxu0 0
      %2582 = vmatpush1.bf16.msra.mxu0 0
      %2583 = vmatprep.subr.bf16.mxu0 0
      %2584 = vmatpush1.bf16.msra.mxu0 0
      %2585 = vmatprep.subr.bf16.mxu0 0
      %2586 = vmatpush1.bf16.msra.mxu0 0
      %2587 = vmatprep.subr.bf16.mxu0 0
      %2588 = vmatpush1.bf16.msra.mxu0 0
      %2589 = vmatprep.subr.bf16.mxu0 0
      %2590 = vmatpush1.bf16.msra.mxu0 0
      %2591 = vmatprep.subr.bf16.mxu0 0
      %2592 = vmatpush1.bf16.msra.mxu0 0
      %2593 = vmatprep.subr.bf16.mxu0 0
      %2594 = vmatpush1.bf16.msra.mxu0 0
      %2595 = vmatprep.subr.bf16.mxu0 0
      %2596 = vmatpush1.bf16.msra.mxu0 0
      %2597 = vmatprep.mubr.bf16.mxu0 0
      %2598 = vmatmul.mubr.bf16.gmra.mrb[0].mxu0 %v2501
      %v2599 = vpop.f32.mrb[0].mxu0
      %v2600 = vadd.f32 0.0, %v2599
      %v2601 = vpop.f32.mrb[0].mxu0
      %v2602 = vpop.f32.mrb[0].mxu0
      %v2603 = vadd.f32 0.0, %v2602
      %v2604 = vpop.f32.mrb[0].mxu0
      %2605 = vmatprep.mubr.bf16.mxu0 0
      %2606 = vmatmul.mubr.bf16.gmra.mrb[0].mxu0 %v2502
      %v2607 = vpop.f32.mrb[0].mxu0
      %v2608 = vadd.f32 0.0, %v2607
      %v2609 = vpop.f32.mrb[0].mxu0
      %v2610 = vpop.f32.mrb[0].mxu0
      %v2611 = vadd.f32 0.0, %v2610
      %v2612 = vpop.f32.mrb[0].mxu0
      %2613 = vmatprep.mubr.bf16.mxu0 0
      %2614 = vmatmul.mubr.bf16.gmra.mrb[0].mxu0 %v2503
      %v2615 = vpop.f32.mrb[0].mxu0
      %v2616 = vadd.f32 0.0, %v2615
      %v2617 = vpop.f32.mrb[0].mxu0
      %v2618 = vpop.f32.mrb[0].mxu0
      %v2619 = vadd.f32 0.0, %v2618
      %v2620 = vpop.f32.mrb[0].mxu0
      %2621 = vmatprep.mubr.bf16.mxu0 0
      %2622 = vmatmul.mubr.bf16.gmra.mrb[0].mxu0 %v2504
      %v2623 = vpop.f32.mrb[0].mxu0
      %v2624 = vadd.f32 0.0, %v2623
      %v2625 = vpop.f32.mrb[0].mxu0
      %v2626 = vpop.f32.mrb[0].mxu0
      %v2627 = vadd.f32 0.0, %v2626
      %v2628 = vpop.f32.mrb[0].mxu0
      %2629 = vmatprep.mubr.bf16.mxu0 0
      %2630 = vmatmul.mubr.bf16.gmra.mrb[0].mxu0 %v2505
      %v2631 = vpop.f32.mrb[0].mxu0
      %v2632 = vadd.f32 0.0, %v2631
      %v2633 = vpop.f32.mrb[0].mxu0
      %v2634 = vpop.f32.mrb[0].mxu0
      %v2635 = vadd.f32 0.0, %v2634
      %v2636 = vpop.f32.mrb[0].mxu0
      %2637 = vmatprep.mubr.bf16.mxu0 0
      %2638 = vmatmul.mubr.bf16.gmra.mrb[0].mxu0 %v2506
      %v2639 = vpop.f32.mrb[0].mxu0
      %v2640 = vadd.f32 0.0, %v2639
      %v2641 = vpop.f32.mrb[0].mxu0
      %v2642 = vpop.f32.mrb[0].mxu0
      %v2643 = vadd.f32 0.0, %v2642
      %v2644 = vpop.f32.mrb[0].mxu0
      %2645 = vmatprep.mubr.bf16.mxu0 0
      %2646 = vmatmul.mubr.bf16.gmra.mrb[0].mxu0 %v2507
      %v2647 = vpop.f32.mrb[0].mxu0
      %v2648 = vadd.f32 0.0, %v2647
      %v2649 = vpop.f32.mrb[0].mxu0
      %v2650 = vpop.f32.mrb[0].mxu0
      %v2651 = vadd.f32 0.0, %v2650
      %v2652 = vpop.f32.mrb[0].mxu0
      %2653 = vmatprep.mubr.bf16.mxu0 0
      %2654 = vmatmul.mubr.bf16.gmra.mrb[0].mxu0 %v2508
      %v2655 = vpop.f32.mrb[0].mxu0
      %v2656 = vadd.f32 0.0, %v2655
      %v2657 = vpop.f32.mrb[0].mxu0
      %v2658 = vpop.f32.mrb[0].mxu0
      %v2659 = vadd.f32 0.0, %v2658
      %v2660 = vpop.f32.mrb[0].mxu0
      %2661 = vdwg.mxu0
      %v2662 = vadd.f32 %v2364, %v2600
      %v2663 = vadd.f32 %v2365, %v2603
      %v2664 = vadd.f32 %v2366, %v2608
      %v2665 = vadd.f32 %v2367, %v2611
      %v2666 = vadd.f32 %v2368, %v2616
      %v2667 = vadd.f32 %v2369, %v2619
      %v2668 = vadd.f32 %v2370, %v2624
      %v2669 = vadd.f32 %v2371, %v2627
      %v2670 = vadd.f32 %v2372, %v2632
      %v2671 = vadd.f32 %v2373, %v2635
      %v2672 = vadd.f32 %v2374, %v2640
      %v2673 = vadd.f32 %v2375, %v2643
      %v2674 = vadd.f32 %v2376, %v2648
      %v2675 = vadd.f32 %v2377, %v2651
      %v2676 = vadd.f32 %v2378, %v2656
      %v2677 = vadd.f32 %v2379, %v2659
      %s2678 = sadd.s32 %s258, 2
      %s2679 = smul.u32 %s2678, 3
      %s2680 = smul.addr %s2679, 4
      %s2681 = scalar_lea.vmem [#allocation2], %s2680
      %v2682 = vld [vmem:[%s2681] sm:$0xf]
      %v2683 = vld [vmem:[%s2681 + $0x4] sm:$0xf]
      %v2684 = vld [vmem:[%s2681 + $0xc] sm:$0xf]
      %v2685 = vld [vmem:[%s2681 + $0x10] sm:$0xf]
      %v2686 = vld [vmem:[%s2681 + $0x18] sm:$0xf]
      %v2687 = vld [vmem:[%s2681 + $0x1c] sm:$0xf]
      %v2688 = vld [vmem:[%s2681 + $0x24] sm:$0xf]
      %v2689 = vld [vmem:[%s2681 + $0x28] sm:$0xf]
      %v2690 = vld [vmem:[%s2681 + $0x30] sm:$0xf]
      %v2691 = vld [vmem:[%s2681 + $0x34] sm:$0xf]
      %v2692 = vld [vmem:[%s2681 + $0x3c] sm:$0xf]
      %v2693 = vld [vmem:[%s2681 + $0x40] sm:$0xf]
      %v2694 = vld [vmem:[%s2681 + $0x48] sm:$0xf]
      %v2695 = vld [vmem:[%s2681 + $0x4c] sm:$0xf]
      %v2696 = vld [vmem:[%s2681 + $0x54] sm:$0xf]
      %v2697 = vld [vmem:[%s2681 + $0x58] sm:$0xf]
      %s2698 = scalar_lea.vmem %s1, 384
      %v2699 = vld [vmem:[%s2698] sm:$0xf]
      %v2700 = vld [vmem:[%s2698 + $0x4] sm:$0xf]
      %v2701 = vld [vmem:[%s2698 + $0x8] sm:$0xf]
      %v2702 = vld [vmem:[%s2698 + $0xc] sm:$0xf]
      %v2703 = vld [vmem:[%s2698 + $0x10] sm:$0xf]
      %v2704 = vld [vmem:[%s2698 + $0x14] sm:$0xf]
      %v2705 = vld [vmem:[%s2698 + $0x18] sm:$0xf]
      %v2706 = vld [vmem:[%s2698 + $0x1c] sm:$0xf]
      %v2707 = vld [vmem:[%s2698 + $0x20] sm:$0xf]
      %v2708 = vld [vmem:[%s2698 + $0x24] sm:$0xf]
      %v2709 = vld [vmem:[%s2698 + $0x28] sm:$0xf]
      %v2710 = vld [vmem:[%s2698 + $0x2c] sm:$0xf]
      %v2711 = vld [vmem:[%s2698 + $0x30] sm:$0xf]
      %v2712 = vld [vmem:[%s2698 + $0x34] sm:$0xf]
      %v2713 = vld [vmem:[%s2698 + $0x38] sm:$0xf]
      %v2714 = vld [vmem:[%s2698 + $0x3c] sm:$0xf]
      %v2731 = vunpack.c.l.b16 %v2682
      %v2732 = vunpack.c.l.b16 %v2683
      %v2733 = vunpack.c.l.b16 %v2684
      %v2734 = vunpack.c.l.b16 %v2685
      %v2735 = vunpack.c.l.b16 %v2686
      %v2736 = vunpack.c.l.b16 %v2687
      %v2737 = vunpack.c.l.b16 %v2688
      %v2738 = vunpack.c.l.b16 %v2689
      %v2739 = vunpack.c.l.b16 %v2690
      %v2740 = vunpack.c.l.b16 %v2691
      %v2741 = vunpack.c.l.b16 %v2692
      %v2742 = vunpack.c.l.b16 %v2693
      %v2743 = vunpack.c.l.b16 %v2694
      %v2744 = vunpack.c.l.b16 %v2695
      %v2745 = vunpack.c.l.b16 %v2696
      %v2746 = vunpack.c.l.b16 %v2697
      %v2747 = vpack.c.b16 %v2732, %v2731
      %v2748 = vpack.c.b16 %v2734, %v2733
      %v2749 = vpack.c.b16 %v2736, %v2735
      %v2750 = vpack.c.b16 %v2738, %v2737
      %v2751 = vpack.c.b16 %v2740, %v2739
      %v2752 = vpack.c.b16 %v2742, %v2741
      %v2753 = vpack.c.b16 %v2744, %v2743
      %v2754 = vpack.c.b16 %v2746, %v2745
      %v2779 = vunpack.c.l.b16 %v2699
      %v2780 = vunpack.c.l.b16 %v2700
      %v2781 = vunpack.c.l.b16 %v2701
      %v2782 = vunpack.c.l.b16 %v2702
      %v2783 = vunpack.c.l.b16 %v2703
      %v2784 = vunpack.c.l.b16 %v2704
      %v2785 = vunpack.c.l.b16 %v2705
      %v2786 = vunpack.c.l.b16 %v2706
      %v2787 = vunpack.c.l.b16 %v2707
      %v2788 = vunpack.c.l.b16 %v2708
      %v2789 = vunpack.c.l.b16 %v2709
      %v2790 = vunpack.c.l.b16 %v2710
      %v2791 = vunpack.c.l.b16 %v2711
      %v2792 = vunpack.c.l.b16 %v2712
      %v2793 = vunpack.c.l.b16 %v2713
      %v2794 = vunpack.c.l.b16 %v2714
      %v2795 = vpack.c.b16 %v2780, %v2779
      %v2796 = vpack.c.b16 %v2782, %v2781
      %v2797 = vpack.c.b16 %v2784, %v2783
      %v2798 = vpack.c.b16 %v2786, %v2785
      %v2799 = vpack.c.b16 %v2788, %v2787
      %v2800 = vpack.c.b16 %v2790, %v2789
      %v2801 = vpack.c.b16 %v2792, %v2791
      %v2802 = vpack.c.b16 %v2794, %v2793
      %2811 = vmatprep.subr.bf16.mxu0 0
      %2812 = vmatpush1.bf16.msra.mxu0 %v2795
      %2813 = vmatprep.subr.bf16.mxu0 0
      %2814 = vmatpush1.bf16.msra.mxu0 %v2796
      %2815 = vmatprep.subr.bf16.mxu0 0
      %2816 = vmatpush1.bf16.msra.mxu0 %v2797
      %2817 = vmatprep.subr.bf16.mxu0 0
      %2818 = vmatpush1.bf16.msra.mxu0 %v2798
      %2819 = vmatprep.subr.bf16.mxu0 0
      %2820 = vmatpush1.bf16.msra.mxu0 %v2799
      %2821 = vmatprep.subr.bf16.mxu0 0
      %2822 = vmatpush1.bf16.msra.mxu0 %v2800
      %2823 = vmatprep.subr.bf16.mxu0 0
      %2824 = vmatpush1.bf16.msra.mxu0 %v2801
      %2825 = vmatprep.subr.bf16.mxu0 0
      %2826 = vmatpush1.bf16.msra.mxu0 %v2802
      %2827 = vmatprep.subr.bf16.mxu0 0
      %2828 = vmatpush1.bf16.msra.mxu0 0
      %2829 = vmatprep.subr.bf16.mxu0 0
      %2830 = vmatpush1.bf16.msra.mxu0 0
      %2831 = vmatprep.subr.bf16.mxu0 0
      %2832 = vmatpush1.bf16.msra.mxu0 0
      %2833 = vmatprep.subr.bf16.mxu0 0
      %2834 = vmatpush1.bf16.msra.mxu0 0
      %2835 = vmatprep.subr.bf16.mxu0 0
      %2836 = vmatpush1.bf16.msra.mxu0 0
      %2837 = vmatprep.subr.bf16.mxu0 0
      %2838 = vmatpush1.bf16.msra.mxu0 0
      %2839 = vmatprep.subr.bf16.mxu0 0
      %2840 = vmatpush1.bf16.msra.mxu0 0
      %2841 = vmatprep.subr.bf16.mxu0 0
      %2842 = vmatpush1.bf16.msra.mxu0 0
      %2843 = vmatprep.mubr.bf16.mxu0 0
      %2844 = vmatmul.mubr.bf16.gmra.mrb[0].mxu0 %v2747
      %v2845 = vpop.f32.mrb[0].mxu0
      %v2846 = vadd.f32 0.0, %v2845
      %v2847 = vpop.f32.mrb[0].mxu0
      %v2848 = vpop.f32.mrb[0].mxu0
      %v2849 = vadd.f32 0.0, %v2848
      %v2850 = vpop.f32.mrb[0].mxu0
      %2851 = vmatprep.mubr.bf16.mxu0 0
      %2852 = vmatmul.mubr.bf16.gmra.mrb[0].mxu0 %v2748
      %v2853 = vpop.f32.mrb[0].mxu0
      %v2854 = vadd.f32 0.0, %v2853
      %v2855 = vpop.f32.mrb[0].mxu0
      %v2856 = vpop.f32.mrb[0].mxu0
      %v2857 = vadd.f32 0.0, %v2856
      %v2858 = vpop.f32.mrb[0].mxu0
      %2859 = vmatprep.mubr.bf16.mxu0 0
      %2860 = vmatmul.mubr.bf16.gmra.mrb[0].mxu0 %v2749
      %v2861 = vpop.f32.mrb[0].mxu0
      %v2862 = vadd.f32 0.0, %v2861
      %v2863 = vpop.f32.mrb[0].mxu0
      %v2864 = vpop.f32.mrb[0].mxu0
      %v2865 = vadd.f32 0.0, %v2864
      %v2866 = vpop.f32.mrb[0].mxu0
      %2867 = vmatprep.mubr.bf16.mxu0 0
      %2868 = vmatmul.mubr.bf16.gmra.mrb[0].mxu0 %v2750
      %v2869 = vpop.f32.mrb[0].mxu0
      %v2870 = vadd.f32 0.0, %v2869
      %v2871 = vpop.f32.mrb[0].mxu0
      %v2872 = vpop.f32.mrb[0].mxu0
      %v2873 = vadd.f32 0.0, %v2872
      %v2874 = vpop.f32.mrb[0].mxu0
      %2875 = vmatprep.mubr.bf16.mxu0 0
      %2876 = vmatmul.mubr.bf16.gmra.mrb[0].mxu0 %v2751
      %v2877 = vpop.f32.mrb[0].mxu0
      %v2878 = vadd.f32 0.0, %v2877
      %v2879 = vpop.f32.mrb[0].mxu0
      %v2880 = vpop.f32.mrb[0].mxu0
      %v2881 = vadd.f32 0.0, %v2880
      %v2882 = vpop.f32.mrb[0].mxu0
      %2883 = vmatprep.mubr.bf16.mxu0 0
      %2884 = vmatmul.mubr.bf16.gmra.mrb[0].mxu0 %v2752
      %v2885 = vpop.f32.mrb[0].mxu0
      %v2886 = vadd.f32 0.0, %v2885
      %v2887 = vpop.f32.mrb[0].mxu0
      %v2888 = vpop.f32.mrb[0].mxu0
      %v2889 = vadd.f32 0.0, %v2888
      %v2890 = vpop.f32.mrb[0].mxu0
      %2891 = vmatprep.mubr.bf16.mxu0 0
      %2892 = vmatmul.mubr.bf16.gmra.mrb[0].mxu0 %v2753
      %v2893 = vpop.f32.mrb[0].mxu0
      %v2894 = vadd.f32 0.0, %v2893
      %v2895 = vpop.f32.mrb[0].mxu0
      %v2896 = vpop.f32.mrb[0].mxu0
      %v2897 = vadd.f32 0.0, %v2896
      %v2898 = vpop.f32.mrb[0].mxu0
      %2899 = vmatprep.mubr.bf16.mxu0 0
      %2900 = vmatmul.mubr.bf16.gmra.mrb[0].mxu0 %v2754
      %v2901 = vpop.f32.mrb[0].mxu0
      %v2902 = vadd.f32 0.0, %v2901
      %v2903 = vpop.f32.mrb[0].mxu0
      %v2904 = vpop.f32.mrb[0].mxu0
      %v2905 = vadd.f32 0.0, %v2904
      %v2906 = vpop.f32.mrb[0].mxu0
      %2907 = vdwg.mxu0
      %v2908 = vadd.f32 %v2662, %v2846
      %v2909 = vadd.f32 %v2663, %v2849
      %v2910 = vadd.f32 %v2664, %v2854
      %v2911 = vadd.f32 %v2665, %v2857
      %v2912 = vadd.f32 %v2666, %v2862
      %v2913 = vadd.f32 %v2667, %v2865
      %v2914 = vadd.f32 %v2668, %v2870
      %v2915 = vadd.f32 %v2669, %v2873
      %v2916 = vadd.f32 %v2670, %v2878
      %v2917 = vadd.f32 %v2671, %v2881
      %v2918 = vadd.f32 %v2672, %v2886
      %v2919 = vadd.f32 %v2673, %v2889
      %v2920 = vadd.f32 %v2674, %v2894
      %v2921 = vadd.f32 %v2675, %v2897
      %v2922 = vadd.f32 %v2676, %v2902
      %v2923 = vadd.f32 %v2677, %v2905
      %v2924 = vld [vmem:[%s2681] sm:$0xf]
      %v2925 = vld [vmem:[%s2681 + $0x4] sm:$0xf]
      %v2926 = vld [vmem:[%s2681 + $0x8] sm:$0x1]
      %v2927 = vld [vmem:[%s2681 + $0xc] sm:$0xf]
      %v2928 = vld [vmem:[%s2681 + $0x10] sm:$0xf]
      %v2929 = vld [vmem:[%s2681 + $0x14] sm:$0x1]
      %v2930 = vld [vmem:[%s2681 + $0x18] sm:$0xf]
      %v2931 = vld [vmem:[%s2681 + $0x1c] sm:$0xf]
      %v2932 = vld [vmem:[%s2681 + $0x20] sm:$0x1]
      %v2933 = vld [vmem:[%s2681 + $0x24] sm:$0xf]
      %v2934 = vld [vmem:[%s2681 + $0x28] sm:$0xf]
      %v2935 = vld [vmem:[%s2681 + $0x2c] sm:$0x1]
      %v2936 = vld [vmem:[%s2681 + $0x30] sm:$0xf]
      %v2937 = vld [vmem:[%s2681 + $0x34] sm:$0xf]
      %v2938 = vld [vmem:[%s2681 + $0x38] sm:$0x1]
      %v2939 = vld [vmem:[%s2681 + $0x3c] sm:$0xf]
      %v2940 = vld [vmem:[%s2681 + $0x40] sm:$0xf]
      %v2941 = vld [vmem:[%s2681 + $0x44] sm:$0x1]
      %v2942 = vld [vmem:[%s2681 + $0x48] sm:$0xf]
      %v2943 = vld [vmem:[%s2681 + $0x4c] sm:$0xf]
      %v2944 = vld [vmem:[%s2681 + $0x50] sm:$0x1]
      %v2945 = vld [vmem:[%s2681 + $0x54] sm:$0xf]
      %v2946 = vld [vmem:[%s2681 + $0x58] sm:$0xf]
      %v2947 = vld [vmem:[%s2681 + $0x5c] sm:$0x1]
      %v2949 = vshrl.u32 %v2924, 16
      %v2951 = vrot.slane %v2949, 4
      %v2952 = vshll.u32 %v2924, 16
      %v2954 = vrot.slane %v2952, 5
      %v2955 = vor.u32 %v2951, %v2954
      %v2956 = vrot.slane %v2955, 4
      %v2958 = vshll.u32 %v2925, 16
      %v2960 = vrot.slane %v2958, 5
      %v2961 = vsel %vm835, %v2956, %v2960
      %v2962 = vshrl.u32 %v2925, 16
      %v2964 = vrot.slane %v2962, 4
      %v2965 = vor.u32 %v2964, %v2960
      %v2966 = vrot.slane %v2965, 4
      %v2968 = vshll.u32 %v2926, 16
      %v2970 = vrot.slane %v2968, 5
      %v2971 = vsel %vm835, %v2966, %v2970
      %v2973 = vshrl.u32 %v2927, 16
      %v2975 = vrot.slane %v2973, 4
      %v2976 = vshll.u32 %v2927, 16
      %v2978 = vrot.slane %v2976, 5
      %v2979 = vor.u32 %v2975, %v2978
      %v2980 = vrot.slane %v2979, 4
      %v2982 = vshll.u32 %v2928, 16
      %v2984 = vrot.slane %v2982, 5
      %v2985 = vsel %vm835, %v2980, %v2984
      %v2986 = vshrl.u32 %v2928, 16
      %v2988 = vrot.slane %v2986, 4
      %v2989 = vor.u32 %v2988, %v2984
      %v2990 = vrot.slane %v2989, 4
      %v2992 = vshll.u32 %v2929, 16
      %v2994 = vrot.slane %v2992, 5
      %v2995 = vsel %vm835, %v2990, %v2994
      %v2997 = vshrl.u32 %v2930, 16
      %v2999 = vrot.slane %v2997, 4
      %v3000 = vshll.u32 %v2930, 16
      %v3002 = vrot.slane %v3000, 5
      %v3003 = vor.u32 %v2999, %v3002
      %v3004 = vrot.slane %v3003, 4
      %v3006 = vshll.u32 %v2931, 16
      %v3008 = vrot.slane %v3006, 5
      %v3009 = vsel %vm835, %v3004, %v3008
      %v3010 = vshrl.u32 %v2931, 16
      %v3012 = vrot.slane %v3010, 4
      %v3013 = vor.u32 %v3012, %v3008
      %v3014 = vrot.slane %v3013, 4
      %v3016 = vshll.u32 %v2932, 16
      %v3018 = vrot.slane %v3016, 5
      %v3019 = vsel %vm835, %v3014, %v3018
      %v3021 = vshrl.u32 %v2933, 16
      %v3023 = vrot.slane %v3021, 4
      %v3024 = vshll.u32 %v2933, 16
      %v3026 = vrot.slane %v3024, 5
      %v3027 = vor.u32 %v3023, %v3026
      %v3028 = vrot.slane %v3027, 4
      %v3030 = vshll.u32 %v2934, 16
      %v3032 = vrot.slane %v3030, 5
      %v3033 = vsel %vm835, %v3028, %v3032
      %v3034 = vshrl.u32 %v2934, 16
      %v3036 = vrot.slane %v3034, 4
      %v3037 = vor.u32 %v3036, %v3032
      %v3038 = vrot.slane %v3037, 4
      %v3040 = vshll.u32 %v2935, 16
      %v3042 = vrot.slane %v3040, 5
      %v3043 = vsel %vm835, %v3038, %v3042
      %v3045 = vshrl.u32 %v2936, 16
      %v3047 = vrot.slane %v3045, 4
      %v3048 = vshll.u32 %v2936, 16
      %v3050 = vrot.slane %v3048, 5
      %v3051 = vor.u32 %v3047, %v3050
      %v3052 = vrot.slane %v3051, 4
      %v3054 = vshll.u32 %v2937, 16
      %v3056 = vrot.slane %v3054, 5
      %v3057 = vsel %vm835, %v3052, %v3056
      %v3058 = vshrl.u32 %v2937, 16
      %v3060 = vrot.slane %v3058, 4
      %v3061 = vor.u32 %v3060, %v3056
      %v3062 = vrot.slane %v3061, 4
      %v3064 = vshll.u32 %v2938, 16
      %v3066 = vrot.slane %v3064, 5
      %v3067 = vsel %vm835, %v3062, %v3066
      %v3069 = vshrl.u32 %v2939, 16
      %v3071 = vrot.slane %v3069, 4
      %v3072 = vshll.u32 %v2939, 16
      %v3074 = vrot.slane %v3072, 5
      %v3075 = vor.u32 %v3071, %v3074
      %v3076 = vrot.slane %v3075, 4
      %v3078 = vshll.u32 %v2940, 16
      %v3080 = vrot.slane %v3078, 5
      %v3081 = vsel %vm835, %v3076, %v3080
      %v3082 = vshrl.u32 %v2940, 16
      %v3084 = vrot.slane %v3082, 4
      %v3085 = vor.u32 %v3084, %v3080
      %v3086 = vrot.slane %v3085, 4
      %v3088 = vshll.u32 %v2941, 16
      %v3090 = vrot.slane %v3088, 5
      %v3091 = vsel %vm835, %v3086, %v3090
      %v3093 = vshrl.u32 %v2942, 16
      %v3095 = vrot.slane %v3093, 4
      %v3096 = vshll.u32 %v2942, 16
      %v3098 = vrot.slane %v3096, 5
      %v3099 = vor.u32 %v3095, %v3098
      %v3100 = vrot.slane %v3099, 4
      %v3102 = vshll.u32 %v2943, 16
      %v3104 = vrot.slane %v3102, 5
      %v3105 = vsel %vm835, %v3100, %v3104
      %v3106 = vshrl.u32 %v2943, 16
      %v3108 = vrot.slane %v3106, 4
      %v3109 = vor.u32 %v3108, %v3104
      %v3110 = vrot.slane %v3109, 4
      %v3112 = vshll.u32 %v2944, 16
      %v3114 = vrot.slane %v3112, 5
      %v3115 = vsel %vm835, %v3110, %v3114
      %v3117 = vshrl.u32 %v2945, 16
      %v3119 = vrot.slane %v3117, 4
      %v3120 = vshll.u32 %v2945, 16
      %v3122 = vrot.slane %v3120, 5
      %v3123 = vor.u32 %v3119, %v3122
      %v3124 = vrot.slane %v3123, 4
      %v3126 = vshll.u32 %v2946, 16
      %v3128 = vrot.slane %v3126, 5
      %v3129 = vsel %vm835, %v3124, %v3128
      %v3130 = vshrl.u32 %v2946, 16
      %v3132 = vrot.slane %v3130, 4
      %v3133 = vor.u32 %v3132, %v3128
      %v3134 = vrot.slane %v3133, 4
      %v3136 = vshll.u32 %v2947, 16
      %v3138 = vrot.slane %v3136, 5
      %v3139 = vsel %vm835, %v3134, %v3138
      %s3140 = scalar_lea.vmem %s1, 448
      %v3141 = vld [vmem:[%s3140] sm:$0xf]
      %v3142 = vld [vmem:[%s3140 + $0x4] sm:$0xf]
      %v3143 = vld [vmem:[%s3140 + $0x8] sm:$0xf]
      %v3144 = vld [vmem:[%s3140 + $0xc] sm:$0xf]
      %v3145 = vld [vmem:[%s3140 + $0x10] sm:$0xf]
      %v3146 = vld [vmem:[%s3140 + $0x14] sm:$0xf]
      %v3147 = vld [vmem:[%s3140 + $0x18] sm:$0xf]
      %v3148 = vld [vmem:[%s3140 + $0x1c] sm:$0xf]
      %v3149 = vld [vmem:[%s3140 + $0x20] sm:$0xf]
      %v3150 = vld [vmem:[%s3140 + $0x24] sm:$0xf]
      %v3151 = vld [vmem:[%s3140 + $0x28] sm:$0xf]
      %v3152 = vld [vmem:[%s3140 + $0x2c] sm:$0xf]
      %v3153 = vld [vmem:[%s3140 + $0x30] sm:$0xf]
      %v3154 = vld [vmem:[%s3140 + $0x34] sm:$0xf]
      %v3155 = vld [vmem:[%s3140 + $0x38] sm:$0xf]
      %v3156 = vld [vmem:[%s3140 + $0x3c] sm:$0xf]
      %v3157 = vunpack.c.l.b16 %v2961
      %v3158 = vunpack.c.l.b16 %v2971
      %v3159 = vunpack.c.l.b16 %v2985
      %v3160 = vunpack.c.l.b16 %v2995
      %v3161 = vunpack.c.l.b16 %v3009
      %v3162 = vunpack.c.l.b16 %v3019
      %v3163 = vunpack.c.l.b16 %v3033
      %v3164 = vunpack.c.l.b16 %v3043
      %v3165 = vunpack.c.l.b16 %v3057
      %v3166 = vunpack.c.l.b16 %v3067
      %v3167 = vunpack.c.l.b16 %v3081
      %v3168 = vunpack.c.l.b16 %v3091
      %v3169 = vunpack.c.l.b16 %v3105
      %v3170 = vunpack.c.l.b16 %v3115
      %v3171 = vunpack.c.l.b16 %v3129
      %v3172 = vunpack.c.l.b16 %v3139
      %v3173 = vpack.c.b16 %v3158, %v3157
      %v3174 = vpack.c.b16 %v3160, %v3159
      %v3175 = vpack.c.b16 %v3162, %v3161
      %v3176 = vpack.c.b16 %v3164, %v3163
      %v3177 = vpack.c.b16 %v3166, %v3165
      %v3178 = vpack.c.b16 %v3168, %v3167
      %v3179 = vpack.c.b16 %v3170, %v3169
      %v3180 = vpack.c.b16 %v3172, %v3171
      %v3205 = vunpack.c.l.b16 %v3141
      %v3206 = vunpack.c.l.b16 %v3142
      %v3207 = vunpack.c.l.b16 %v3143
      %v3208 = vunpack.c.l.b16 %v3144
      %v3209 = vunpack.c.l.b16 %v3145
      %v3210 = vunpack.c.l.b16 %v3146
      %v3211 = vunpack.c.l.b16 %v3147
      %v3212 = vunpack.c.l.b16 %v3148
      %v3213 = vunpack.c.l.b16 %v3149
      %v3214 = vunpack.c.l.b16 %v3150
      %v3215 = vunpack.c.l.b16 %v3151
      %v3216 = vunpack.c.l.b16 %v3152
      %v3217 = vunpack.c.l.b16 %v3153
      %v3218 = vunpack.c.l.b16 %v3154
      %v3219 = vunpack.c.l.b16 %v3155
      %v3220 = vunpack.c.l.b16 %v3156
      %v3221 = vpack.c.b16 %v3206, %v3205
      %v3222 = vpack.c.b16 %v3208, %v3207
      %v3223 = vpack.c.b16 %v3210, %v3209
      %v3224 = vpack.c.b16 %v3212, %v3211
      %v3225 = vpack.c.b16 %v3214, %v3213
      %v3226 = vpack.c.b16 %v3216, %v3215
      %v3227 = vpack.c.b16 %v3218, %v3217
      %v3228 = vpack.c.b16 %v3220, %v3219
      %3237 = vmatprep.subr.bf16.mxu0 0
      %3238 = vmatpush1.bf16.msra.mxu0 %v3221
      %3239 = vmatprep.subr.bf16.mxu0 0
      %3240 = vmatpush1.bf16.msra.mxu0 %v3222
      %3241 = vmatprep.subr.bf16.mxu0 0
      %3242 = vmatpush1.bf16.msra.mxu0 %v3223
      %3243 = vmatprep.subr.bf16.mxu0 0
      %3244 = vmatpush1.bf16.msra.mxu0 %v3224
      %3245 = vmatprep.subr.bf16.mxu0 0
      %3246 = vmatpush1.bf16.msra.mxu0 %v3225
      %3247 = vmatprep.subr.bf16.mxu0 0
      %3248 = vmatpush1.bf16.msra.mxu0 %v3226
      %3249 = vmatprep.subr.bf16.mxu0 0
      %3250 = vmatpush1.bf16.msra.mxu0 %v3227
      %3251 = vmatprep.subr.bf16.mxu0 0
      %3252 = vmatpush1.bf16.msra.mxu0 %v3228
      %3253 = vmatprep.subr.bf16.mxu0 0
      %3254 = vmatpush1.bf16.msra.mxu0 0
      %3255 = vmatprep.subr.bf16.mxu0 0
      %3256 = vmatpush1.bf16.msra.mxu0 0
      %3257 = vmatprep.subr.bf16.mxu0 0
      %3258 = vmatpush1.bf16.msra.mxu0 0
      %3259 = vmatprep.subr.bf16.mxu0 0
      %3260 = vmatpush1.bf16.msra.mxu0 0
      %3261 = vmatprep.subr.bf16.mxu0 0
      %3262 = vmatpush1.bf16.msra.mxu0 0
      %3263 = vmatprep.subr.bf16.mxu0 0
      %3264 = vmatpush1.bf16.msra.mxu0 0
      %3265 = vmatprep.subr.bf16.mxu0 0
      %3266 = vmatpush1.bf16.msra.mxu0 0
      %3267 = vmatprep.subr.bf16.mxu0 0
      %3268 = vmatpush1.bf16.msra.mxu0 0
      %3269 = vmatprep.mubr.bf16.mxu0 0
      %3270 = vmatmul.mubr.bf16.gmra.mrb[0].mxu0 %v3173
      %v3271 = vpop.f32.mrb[0].mxu0
      %v3272 = vadd.f32 0.0, %v3271
      %v3273 = vpop.f32.mrb[0].mxu0
      %v3274 = vpop.f32.mrb[0].mxu0
      %v3275 = vadd.f32 0.0, %v3274
      %v3276 = vpop.f32.mrb[0].mxu0
      %3277 = vmatprep.mubr.bf16.mxu0 0
      %3278 = vmatmul.mubr.bf16.gmra.mrb[0].mxu0 %v3174
      %v3279 = vpop.f32.mrb[0].mxu0
      %v3280 = vadd.f32 0.0, %v3279
      %v3281 = vpop.f32.mrb[0].mxu0
      %v3282 = vpop.f32.mrb[0].mxu0
      %v3283 = vadd.f32 0.0, %v3282
      %v3284 = vpop.f32.mrb[0].mxu0
      %3285 = vmatprep.mubr.bf16.mxu0 0
      %3286 = vmatmul.mubr.bf16.gmra.mrb[0].mxu0 %v3175
      %v3287 = vpop.f32.mrb[0].mxu0
      %v3288 = vadd.f32 0.0, %v3287
      %v3289 = vpop.f32.mrb[0].mxu0
      %v3290 = vpop.f32.mrb[0].mxu0
      %v3291 = vadd.f32 0.0, %v3290
      %v3292 = vpop.f32.mrb[0].mxu0
      %3293 = vmatprep.mubr.bf16.mxu0 0
      %3294 = vmatmul.mubr.bf16.gmra.mrb[0].mxu0 %v3176
      %v3295 = vpop.f32.mrb[0].mxu0
      %v3296 = vadd.f32 0.0, %v3295
      %v3297 = vpop.f32.mrb[0].mxu0
      %v3298 = vpop.f32.mrb[0].mxu0
      %v3299 = vadd.f32 0.0, %v3298
      %v3300 = vpop.f32.mrb[0].mxu0
      %3301 = vmatprep.mubr.bf16.mxu0 0
      %3302 = vmatmul.mubr.bf16.gmra.mrb[0].mxu0 %v3177
      %v3303 = vpop.f32.mrb[0].mxu0
      %v3304 = vadd.f32 0.0, %v3303
      %v3305 = vpop.f32.mrb[0].mxu0
      %v3306 = vpop.f32.mrb[0].mxu0
      %v3307 = vadd.f32 0.0, %v3306
      %v3308 = vpop.f32.mrb[0].mxu0
      %3309 = vmatprep.mubr.bf16.mxu0 0
      %3310 = vmatmul.mubr.bf16.gmra.mrb[0].mxu0 %v3178
      %v3311 = vpop.f32.mrb[0].mxu0
      %v3312 = vadd.f32 0.0, %v3311
      %v3313 = vpop.f32.mrb[0].mxu0
      %v3314 = vpop.f32.mrb[0].mxu0
      %v3315 = vadd.f32 0.0, %v3314
      %v3316 = vpop.f32.mrb[0].mxu0
      %3317 = vmatprep.mubr.bf16.mxu0 0
      %3318 = vmatmul.mubr.bf16.gmra.mrb[0].mxu0 %v3179
      %v3319 = vpop.f32.mrb[0].mxu0
      %v3320 = vadd.f32 0.0, %v3319
      %v3321 = vpop.f32.mrb[0].mxu0
      %v3322 = vpop.f32.mrb[0].mxu0
      %v3323 = vadd.f32 0.0, %v3322
      %v3324 = vpop.f32.mrb[0].mxu0
      %3325 = vmatprep.mubr.bf16.mxu0 0
      %3326 = vmatmul.mubr.bf16.gmra.mrb[0].mxu0 %v3180
      %v3327 = vpop.f32.mrb[0].mxu0
      %v3328 = vadd.f32 0.0, %v3327
      %v3329 = vpop.f32.mrb[0].mxu0
      %v3330 = vpop.f32.mrb[0].mxu0
      %v3331 = vadd.f32 0.0, %v3330
      %v3332 = vpop.f32.mrb[0].mxu0
      %3333 = vdwg.mxu0
      %v3334 = vadd.f32 %v2908, %v3272
      %v3335 = vadd.f32 %v2909, %v3275
      %v3336 = vadd.f32 %v2910, %v3280
      %v3337 = vadd.f32 %v2911, %v3283
      %v3338 = vadd.f32 %v2912, %v3288
      %v3339 = vadd.f32 %v2913, %v3291
      %v3340 = vadd.f32 %v2914, %v3296
      %v3341 = vadd.f32 %v2915, %v3299
      %v3342 = vadd.f32 %v2916, %v3304
      %v3343 = vadd.f32 %v2917, %v3307
      %v3344 = vadd.f32 %v2918, %v3312
      %v3345 = vadd.f32 %v2919, %v3315
      %v3346 = vadd.f32 %v2920, %v3320
      %v3347 = vadd.f32 %v2921, %v3323
      %v3348 = vadd.f32 %v2922, %v3328
      %v3349 = vadd.f32 %v2923, %v3331
      %v3350 = vld [vmem:[%s2681] sm:$0xe]
      %v3351 = vld [vmem:[%s2681 + $0xc] sm:$0xe]
      %v3352 = vld [vmem:[%s2681 + $0x18] sm:$0xe]
      %v3353 = vld [vmem:[%s2681 + $0x24] sm:$0xe]
      %v3354 = vld [vmem:[%s2681 + $0x30] sm:$0xe]
      %v3355 = vld [vmem:[%s2681 + $0x3c] sm:$0xe]
      %v3356 = vld [vmem:[%s2681 + $0x48] sm:$0xe]
      %v3357 = vld [vmem:[%s2681 + $0x54] sm:$0xe]
      %v3382 = vrot.slane %v3350, 5
      %v3383 = vrot.slane %v3382, 4
      %v3384 = vrot.slane %v2925, 5
      %v3385 = vsel %vm1441, %v3383, %v3384
      %v3386 = vrot.slane %v3384, 4
      %v3387 = vrot.slane %v2926, 5
      %v3388 = vsel %vm1441, %v3386, %v3387
      %v3389 = vrot.slane %v3351, 5
      %v3390 = vrot.slane %v3389, 4
      %v3391 = vrot.slane %v2928, 5
      %v3392 = vsel %vm1441, %v3390, %v3391
      %v3393 = vrot.slane %v3391, 4
      %v3394 = vrot.slane %v2929, 5
      %v3395 = vsel %vm1441, %v3393, %v3394
      %v3396 = vrot.slane %v3352, 5
      %v3397 = vrot.slane %v3396, 4
      %v3398 = vrot.slane %v2931, 5
      %v3399 = vsel %vm1441, %v3397, %v3398
      %v3400 = vrot.slane %v3398, 4
      %v3401 = vrot.slane %v2932, 5
      %v3402 = vsel %vm1441, %v3400, %v3401
      %v3403 = vrot.slane %v3353, 5
      %v3404 = vrot.slane %v3403, 4
      %v3405 = vrot.slane %v2934, 5
      %v3406 = vsel %vm1441, %v3404, %v3405
      %v3407 = vrot.slane %v3405, 4
      %v3408 = vrot.slane %v2935, 5
      %v3409 = vsel %vm1441, %v3407, %v3408
      %v3410 = vrot.slane %v3354, 5
      %v3411 = vrot.slane %v3410, 4
      %v3412 = vrot.slane %v2937, 5
      %v3413 = vsel %vm1441, %v3411, %v3412
      %v3414 = vrot.slane %v3412, 4
      %v3415 = vrot.slane %v2938, 5
      %v3416 = vsel %vm1441, %v3414, %v3415
      %v3417 = vrot.slane %v3355, 5
      %v3418 = vrot.slane %v3417, 4
      %v3419 = vrot.slane %v2940, 5
      %v3420 = vsel %vm1441, %v3418, %v3419
      %v3421 = vrot.slane %v3419, 4
      %v3422 = vrot.slane %v2941, 5
      %v3423 = vsel %vm1441, %v3421, %v3422
      %v3424 = vrot.slane %v3356, 5
      %v3425 = vrot.slane %v3424, 4
      %v3426 = vrot.slane %v2943, 5
      %v3427 = vsel %vm1441, %v3425, %v3426
      %v3428 = vrot.slane %v3426, 4
      %v3429 = vrot.slane %v2944, 5
      %v3430 = vsel %vm1441, %v3428, %v3429
      %v3431 = vrot.slane %v3357, 5
      %v3432 = vrot.slane %v3431, 4
      %v3433 = vrot.slane %v2946, 5
      %v3434 = vsel %vm1441, %v3432, %v3433
      %v3435 = vrot.slane %v3433, 4
      %v3436 = vrot.slane %v2947, 5
      %v3437 = vsel %vm1441, %v3435, %v3436
      %s3438 = scalar_lea.vmem %s1, 512
      %v3439 = vld [vmem:[%s3438] sm:$0xf]
      %v3440 = vld [vmem:[%s3438 + $0x4] sm:$0xf]
      %v3441 = vld [vmem:[%s3438 + $0x8] sm:$0xf]
      %v3442 = vld [vmem:[%s3438 + $0xc] sm:$0xf]
      %v3443 = vld [vmem:[%s3438 + $0x10] sm:$0xf]
      %v3444 = vld [vmem:[%s3438 + $0x14] sm:$0xf]
      %v3445 = vld [vmem:[%s3438 + $0x18] sm:$0xf]
      %v3446 = vld [vmem:[%s3438 + $0x1c] sm:$0xf]
      %v3447 = vld [vmem:[%s3438 + $0x20] sm:$0xf]
      %v3448 = vld [vmem:[%s3438 + $0x24] sm:$0xf]
      %v3449 = vld [vmem:[%s3438 + $0x28] sm:$0xf]
      %v3450 = vld [vmem:[%s3438 + $0x2c] sm:$0xf]
      %v3451 = vld [vmem:[%s3438 + $0x30] sm:$0xf]
      %v3452 = vld [vmem:[%s3438 + $0x34] sm:$0xf]
      %v3453 = vld [vmem:[%s3438 + $0x38] sm:$0xf]
      %v3454 = vld [vmem:[%s3438 + $0x3c] sm:$0xf]
      %v3455 = vunpack.c.l.b16 %v3385
      %v3456 = vunpack.c.l.b16 %v3388
      %v3457 = vunpack.c.l.b16 %v3392
      %v3458 = vunpack.c.l.b16 %v3395
      %v3459 = vunpack.c.l.b16 %v3399
      %v3460 = vunpack.c.l.b16 %v3402
      %v3461 = vunpack.c.l.b16 %v3406
      %v3462 = vunpack.c.l.b16 %v3409
      %v3463 = vunpack.c.l.b16 %v3413
      %v3464 = vunpack.c.l.b16 %v3416
      %v3465 = vunpack.c.l.b16 %v3420
      %v3466 = vunpack.c.l.b16 %v3423
      %v3467 = vunpack.c.l.b16 %v3427
      %v3468 = vunpack.c.l.b16 %v3430
      %v3469 = vunpack.c.l.b16 %v3434
      %v3470 = vunpack.c.l.b16 %v3437
      %v3471 = vpack.c.b16 %v3456, %v3455
      %v3472 = vpack.c.b16 %v3458, %v3457
      %v3473 = vpack.c.b16 %v3460, %v3459
      %v3474 = vpack.c.b16 %v3462, %v3461
      %v3475 = vpack.c.b16 %v3464, %v3463
      %v3476 = vpack.c.b16 %v3466, %v3465
      %v3477 = vpack.c.b16 %v3468, %v3467
      %v3478 = vpack.c.b16 %v3470, %v3469
      %v3503 = vunpack.c.l.b16 %v3439
      %v3504 = vunpack.c.l.b16 %v3440
      %v3505 = vunpack.c.l.b16 %v3441
      %v3506 = vunpack.c.l.b16 %v3442
      %v3507 = vunpack.c.l.b16 %v3443
      %v3508 = vunpack.c.l.b16 %v3444
      %v3509 = vunpack.c.l.b16 %v3445
      %v3510 = vunpack.c.l.b16 %v3446
      %v3511 = vunpack.c.l.b16 %v3447
      %v3512 = vunpack.c.l.b16 %v3448
      %v3513 = vunpack.c.l.b16 %v3449
      %v3514 = vunpack.c.l.b16 %v3450
      %v3515 = vunpack.c.l.b16 %v3451
      %v3516 = vunpack.c.l.b16 %v3452
      %v3517 = vunpack.c.l.b16 %v3453
      %v3518 = vunpack.c.l.b16 %v3454
      %v3519 = vpack.c.b16 %v3504, %v3503
      %v3520 = vpack.c.b16 %v3506, %v3505
      %v3521 = vpack.c.b16 %v3508, %v3507
      %v3522 = vpack.c.b16 %v3510, %v3509
      %v3523 = vpack.c.b16 %v3512, %v3511
      %v3524 = vpack.c.b16 %v3514, %v3513
      %v3525 = vpack.c.b16 %v3516, %v3515
      %v3526 = vpack.c.b16 %v3518, %v3517
      %3535 = vmatprep.subr.bf16.mxu0 0
      %3536 = vmatpush1.bf16.msra.mxu0 %v3519
      %3537 = vmatprep.subr.bf16.mxu0 0
      %3538 = vmatpush1.bf16.msra.mxu0 %v3520
      %3539 = vmatprep.subr.bf16.mxu0 0
      %3540 = vmatpush1.bf16.msra.mxu0 %v3521
      %3541 = vmatprep.subr.bf16.mxu0 0
      %3542 = vmatpush1.bf16.msra.mxu0 %v3522
      %3543 = vmatprep.subr.bf16.mxu0 0
      %3544 = vmatpush1.bf16.msra.mxu0 %v3523
      %3545 = vmatprep.subr.bf16.mxu0 0
      %3546 = vmatpush1.bf16.msra.mxu0 %v3524
      %3547 = vmatprep.subr.bf16.mxu0 0
      %3548 = vmatpush1.bf16.msra.mxu0 %v3525
      %3549 = vmatprep.subr.bf16.mxu0 0
      %3550 = vmatpush1.bf16.msra.mxu0 %v3526
      %3551 = vmatprep.subr.bf16.mxu0 0
      %3552 = vmatpush1.bf16.msra.mxu0 0
      %3553 = vmatprep.subr.bf16.mxu0 0
      %3554 = vmatpush1.bf16.msra.mxu0 0
      %3555 = vmatprep.subr.bf16.mxu0 0
      %3556 = vmatpush1.bf16.msra.mxu0 0
      %3557 = vmatprep.subr.bf16.mxu0 0
      %3558 = vmatpush1.bf16.msra.mxu0 0
      %3559 = vmatprep.subr.bf16.mxu0 0
      %3560 = vmatpush1.bf16.msra.mxu0 0
      %3561 = vmatprep.subr.bf16.mxu0 0
      %3562 = vmatpush1.bf16.msra.mxu0 0
      %3563 = vmatprep.subr.bf16.mxu0 0
      %3564 = vmatpush1.bf16.msra.mxu0 0
      %3565 = vmatprep.subr.bf16.mxu0 0
      %3566 = vmatpush1.bf16.msra.mxu0 0
      %3567 = vmatprep.mubr.bf16.mxu0 0
      %3568 = vmatmul.mubr.bf16.gmra.mrb[0].mxu0 %v3471
      %v3569 = vpop.f32.mrb[0].mxu0
      %v3570 = vadd.f32 0.0, %v3569
      %v3571 = vpop.f32.mrb[0].mxu0
      %v3572 = vpop.f32.mrb[0].mxu0
      %v3573 = vadd.f32 0.0, %v3572
      %v3574 = vpop.f32.mrb[0].mxu0
      %3575 = vmatprep.mubr.bf16.mxu0 0
      %3576 = vmatmul.mubr.bf16.gmra.mrb[0].mxu0 %v3472
      %v3577 = vpop.f32.mrb[0].mxu0
      %v3578 = vadd.f32 0.0, %v3577
      %v3579 = vpop.f32.mrb[0].mxu0
      %v3580 = vpop.f32.mrb[0].mxu0
      %v3581 = vadd.f32 0.0, %v3580
      %v3582 = vpop.f32.mrb[0].mxu0
      %3583 = vmatprep.mubr.bf16.mxu0 0
      %3584 = vmatmul.mubr.bf16.gmra.mrb[0].mxu0 %v3473
      %v3585 = vpop.f32.mrb[0].mxu0
      %v3586 = vadd.f32 0.0, %v3585
      %v3587 = vpop.f32.mrb[0].mxu0
      %v3588 = vpop.f32.mrb[0].mxu0
      %v3589 = vadd.f32 0.0, %v3588
      %v3590 = vpop.f32.mrb[0].mxu0
      %3591 = vmatprep.mubr.bf16.mxu0 0
      %3592 = vmatmul.mubr.bf16.gmra.mrb[0].mxu0 %v3474
      %v3593 = vpop.f32.mrb[0].mxu0
      %v3594 = vadd.f32 0.0, %v3593
      %v3595 = vpop.f32.mrb[0].mxu0
      %v3596 = vpop.f32.mrb[0].mxu0
      %v3597 = vadd.f32 0.0, %v3596
      %v3598 = vpop.f32.mrb[0].mxu0
      %3599 = vmatprep.mubr.bf16.mxu0 0
      %3600 = vmatmul.mubr.bf16.gmra.mrb[0].mxu0 %v3475
      %v3601 = vpop.f32.mrb[0].mxu0
      %v3602 = vadd.f32 0.0, %v3601
      %v3603 = vpop.f32.mrb[0].mxu0
      %v3604 = vpop.f32.mrb[0].mxu0
      %v3605 = vadd.f32 0.0, %v3604
      %v3606 = vpop.f32.mrb[0].mxu0
      %3607 = vmatprep.mubr.bf16.mxu0 0
      %3608 = vmatmul.mubr.bf16.gmra.mrb[0].mxu0 %v3476
      %v3609 = vpop.f32.mrb[0].mxu0
      %v3610 = vadd.f32 0.0, %v3609
      %v3611 = vpop.f32.mrb[0].mxu0
      %v3612 = vpop.f32.mrb[0].mxu0
      %v3613 = vadd.f32 0.0, %v3612
      %v3614 = vpop.f32.mrb[0].mxu0
      %3615 = vmatprep.mubr.bf16.mxu0 0
      %3616 = vmatmul.mubr.bf16.gmra.mrb[0].mxu0 %v3477
      %v3617 = vpop.f32.mrb[0].mxu0
      %v3618 = vadd.f32 0.0, %v3617
      %v3619 = vpop.f32.mrb[0].mxu0
      %v3620 = vpop.f32.mrb[0].mxu0
      %v3621 = vadd.f32 0.0, %v3620
      %v3622 = vpop.f32.mrb[0].mxu0
      %3623 = vmatprep.mubr.bf16.mxu0 0
      %3624 = vmatmul.mubr.bf16.gmra.mrb[0].mxu0 %v3478
      %v3625 = vpop.f32.mrb[0].mxu0
      %v3626 = vadd.f32 0.0, %v3625
      %v3627 = vpop.f32.mrb[0].mxu0
      %v3628 = vpop.f32.mrb[0].mxu0
      %v3629 = vadd.f32 0.0, %v3628
      %v3630 = vpop.f32.mrb[0].mxu0
      %3631 = vdwg.mxu0
      %v3632 = vadd.f32 %v3334, %v3570
      %v3633 = vadd.f32 %v3335, %v3573
      %v3634 = vadd.f32 %v3336, %v3578
      %v3635 = vadd.f32 %v3337, %v3581
      %v3636 = vadd.f32 %v3338, %v3586
      %v3637 = vadd.f32 %v3339, %v3589
      %v3638 = vadd.f32 %v3340, %v3594
      %v3639 = vadd.f32 %v3341, %v3597
      %v3640 = vadd.f32 %v3342, %v3602
      %v3641 = vadd.f32 %v3343, %v3605
      %v3642 = vadd.f32 %v3344, %v3610
      %v3643 = vadd.f32 %v3345, %v3613
      %v3644 = vadd.f32 %v3346, %v3618
      %v3645 = vadd.f32 %v3347, %v3621
      %v3646 = vadd.f32 %v3348, %v3626
      %v3647 = vadd.f32 %v3349, %v3629
      %v3648 = vld [vmem:[%s2] sm:$0x1]
      %v3650 = vlaneseq
      %v3651 = vshrl.u32 %v3650, 7
      %v3652 = vsub.s32 0, %v3651
      %v3653 = vrot.slane %v3648, %v3652
      %v3655 = vadd.f32 %v3632, %v3653
      %v3656 = vadd.f32 %v3633, %v3653
      %v3657 = vadd.f32 %v3634, %v3653
      %v3658 = vadd.f32 %v3635, %v3653
      %v3659 = vadd.f32 %v3636, %v3653
      %v3660 = vadd.f32 %v3637, %v3653
      %v3661 = vadd.f32 %v3638, %v3653
      %v3662 = vadd.f32 %v3639, %v3653
      %v3663 = vadd.f32 %v3640, %v3653
      %v3664 = vadd.f32 %v3641, %v3653
      %v3665 = vadd.f32 %v3642, %v3653
      %v3666 = vadd.f32 %v3643, %v3653
      %v3667 = vadd.f32 %v3644, %v3653
      %v3668 = vadd.f32 %v3645, %v3653
      %v3669 = vadd.f32 %v3646, %v3653
      %v3670 = vadd.f32 %v3647, %v3653
      %vm3671 = vcmp.ge.f32.partialorder %v3655, 0.0
      %vm3672 = vcmp.ge.f32.partialorder %v3656, 0.0
      %vm3673 = vcmp.ge.f32.partialorder %v3657, 0.0
      %vm3674 = vcmp.ge.f32.partialorder %v3658, 0.0
      %vm3675 = vcmp.ge.f32.partialorder %v3659, 0.0
      %vm3676 = vcmp.ge.f32.partialorder %v3660, 0.0
      %vm3677 = vcmp.ge.f32.partialorder %v3661, 0.0
      %vm3678 = vcmp.ge.f32.partialorder %v3662, 0.0
      %vm3679 = vcmp.ge.f32.partialorder %v3663, 0.0
      %vm3680 = vcmp.ge.f32.partialorder %v3664, 0.0
      %vm3681 = vcmp.ge.f32.partialorder %v3665, 0.0
      %vm3682 = vcmp.ge.f32.partialorder %v3666, 0.0
      %vm3683 = vcmp.ge.f32.partialorder %v3667, 0.0
      %vm3684 = vcmp.ge.f32.partialorder %v3668, 0.0
      %vm3685 = vcmp.ge.f32.partialorder %v3669, 0.0
      %vm3686 = vcmp.ge.f32.partialorder %v3670, 0.0
      %v3687 = vmul.f32 %v3655, 0.1
      %v3688 = vmul.f32 %v3656, 0.1
      %v3689 = vmul.f32 %v3657, 0.1
      %v3690 = vmul.f32 %v3658, 0.1
      %v3691 = vmul.f32 %v3659, 0.1
      %v3692 = vmul.f32 %v3660, 0.1
      %v3693 = vmul.f32 %v3661, 0.1
      %v3694 = vmul.f32 %v3662, 0.1
      %v3695 = vmul.f32 %v3663, 0.1
      %v3696 = vmul.f32 %v3664, 0.1
      %v3697 = vmul.f32 %v3665, 0.1
      %v3698 = vmul.f32 %v3666, 0.1
      %v3699 = vmul.f32 %v3667, 0.1
      %v3700 = vmul.f32 %v3668, 0.1
      %v3701 = vmul.f32 %v3669, 0.1
      %v3702 = vmul.f32 %v3670, 0.1
      %v3703 = vsel %vm3671, %v3655, %v3687
      %v3704 = vsel %vm3672, %v3656, %v3688
      %v3705 = vsel %vm3673, %v3657, %v3689
      %v3706 = vsel %vm3674, %v3658, %v3690
      %v3707 = vsel %vm3675, %v3659, %v3691
      %v3708 = vsel %vm3676, %v3660, %v3692
      %v3709 = vsel %vm3677, %v3661, %v3693
      %v3710 = vsel %vm3678, %v3662, %v3694
      %v3711 = vsel %vm3679, %v3663, %v3695
      %v3712 = vsel %vm3680, %v3664, %v3696
      %v3713 = vsel %vm3681, %v3665, %v3697
      %v3714 = vsel %vm3682, %v3666, %v3698
      %v3715 = vsel %vm3683, %v3667, %v3699
      %v3716 = vsel %vm3684, %v3668, %v3700
      %v3717 = vsel %vm3685, %v3669, %v3701
      %v3718 = vsel %vm3686, %v3670, %v3702
      %v3719 = vld [vmem:[%s243] sm:$0xf]
      %v3720 = vld [vmem:[%s243 + $0x4] sm:$0xf]
      %v3721 = vld [vmem:[%s243 + $0x8] sm:$0xf]
      %v3722 = vld [vmem:[%s243 + $0xc] sm:$0xf]
      %v3723 = vld [vmem:[%s243 + $0x10] sm:$0xf]
      %v3724 = vld [vmem:[%s243 + $0x14] sm:$0xf]
      %v3725 = vld [vmem:[%s243 + $0x18] sm:$0xf]
      %v3726 = vld [vmem:[%s243 + $0x1c] sm:$0xf]
      %v3727 = vld [vmem:[%s243 + $0x20] sm:$0xf]
      %v3728 = vld [vmem:[%s243 + $0x24] sm:$0xf]
      %v3729 = vld [vmem:[%s243 + $0x28] sm:$0xf]
      %v3730 = vld [vmem:[%s243 + $0x2c] sm:$0xf]
      %v3731 = vld [vmem:[%s243 + $0x30] sm:$0xf]
      %v3732 = vld [vmem:[%s243 + $0x34] sm:$0xf]
      %v3733 = vld [vmem:[%s243 + $0x38] sm:$0xf]
      %v3734 = vld [vmem:[%s243 + $0x3c] sm:$0xf]
      %v3735 = vunpack.c.l.bf16 %v3719
      %v3736 = vunpack.c.l.bf16 %v3720
      %v3737 = vunpack.c.l.bf16 %v3721
      %v3738 = vunpack.c.l.bf16 %v3722
      %v3739 = vunpack.c.l.bf16 %v3723
      %v3740 = vunpack.c.l.bf16 %v3724
      %v3741 = vunpack.c.l.bf16 %v3725
      %v3742 = vunpack.c.l.bf16 %v3726
      %v3743 = vunpack.c.l.bf16 %v3727
      %v3744 = vunpack.c.l.bf16 %v3728
      %v3745 = vunpack.c.l.bf16 %v3729
      %v3746 = vunpack.c.l.bf16 %v3730
      %v3747 = vunpack.c.l.bf16 %v3731
      %v3748 = vunpack.c.l.bf16 %v3732
      %v3749 = vunpack.c.l.bf16 %v3733
      %v3750 = vunpack.c.l.bf16 %v3734
      %v3751 = vadd.f32 %v3703, %v3735
      %v3752 = vadd.f32 %v3704, %v3736
      %v3753 = vadd.f32 %v3705, %v3737
      %v3754 = vadd.f32 %v3706, %v3738
      %v3755 = vadd.f32 %v3707, %v3739
      %v3756 = vadd.f32 %v3708, %v3740
      %v3757 = vadd.f32 %v3709, %v3741
      %v3758 = vadd.f32 %v3710, %v3742
      %v3759 = vadd.f32 %v3711, %v3743
      %v3760 = vadd.f32 %v3712, %v3744
      %v3761 = vadd.f32 %v3713, %v3745
      %v3762 = vadd.f32 %v3714, %v3746
      %v3763 = vadd.f32 %v3715, %v3747
      %v3764 = vadd.f32 %v3716, %v3748
      %v3765 = vadd.f32 %v3717, %v3749
      %v3766 = vadd.f32 %v3718, %v3750
      %v3767 = vpack.c.bf16 %v3752, %v3751
      %v3768 = vpack.c.bf16 %v3754, %v3753
      %v3769 = vpack.c.bf16 %v3756, %v3755
      %v3770 = vpack.c.bf16 %v3758, %v3757
      %v3771 = vpack.c.bf16 %v3760, %v3759
      %v3772 = vpack.c.bf16 %v3762, %v3761
      %v3773 = vpack.c.bf16 %v3764, %v3763
      %v3774 = vpack.c.bf16 %v3766, %v3765
      %v3783 = vunpack.c.l.b16 %v3767
      %v3784 = vunpack.c.h.b16 %v3767
      %v3785 = vunpack.c.l.b16 %v3768
      %v3786 = vunpack.c.h.b16 %v3768
      %v3787 = vunpack.c.l.b16 %v3769
      %v3788 = vunpack.c.h.b16 %v3769
      %v3789 = vunpack.c.l.b16 %v3770
      %v3790 = vunpack.c.h.b16 %v3770
      %v3791 = vunpack.c.l.b16 %v3771
      %v3792 = vunpack.c.h.b16 %v3771
      %v3793 = vunpack.c.l.b16 %v3772
      %v3794 = vunpack.c.h.b16 %v3772
      %v3795 = vunpack.c.l.b16 %v3773
      %v3796 = vunpack.c.h.b16 %v3773
      %v3797 = vunpack.c.l.b16 %v3774
      %v3798 = vunpack.c.h.b16 %v3774
      %v3799 = vpack.c.b16 %v3783, %v3783
      %v3800 = vpack.c.b16 %v3784, %v3784
      %v3801 = vpack.c.b16 %v3785, %v3785
      %v3802 = vpack.c.b16 %v3786, %v3786
      %v3803 = vpack.c.b16 %v3787, %v3787
      %v3804 = vpack.c.b16 %v3788, %v3788
      %v3805 = vpack.c.b16 %v3789, %v3789
      %v3806 = vpack.c.b16 %v3790, %v3790
      %v3807 = vpack.c.b16 %v3791, %v3791
      %v3808 = vpack.c.b16 %v3792, %v3792
      %v3809 = vpack.c.b16 %v3793, %v3793
      %v3810 = vpack.c.b16 %v3794, %v3794
      %v3811 = vpack.c.b16 %v3795, %v3795
      %v3812 = vpack.c.b16 %v3796, %v3796
      %v3813 = vpack.c.b16 %v3797, %v3797
      %v3814 = vpack.c.b16 %v3798, %v3798
      %3831 = vst [vmem:[%s253] sm:$0xf] %v3799
      %3832 = vst [vmem:[%s253 + $0x4] sm:$0xf] %v3800
      %3833 = vst [vmem:[%s253 + $0x8] sm:$0xf] %v3801
      %3834 = vst [vmem:[%s253 + $0xc] sm:$0xf] %v3802
      %3835 = vst [vmem:[%s253 + $0x10] sm:$0xf] %v3803
      %3836 = vst [vmem:[%s253 + $0x14] sm:$0xf] %v3804
      %3837 = vst [vmem:[%s253 + $0x18] sm:$0xf] %v3805
      %3838 = vst [vmem:[%s253 + $0x1c] sm:$0xf] %v3806
      %3839 = vst [vmem:[%s253 + $0x20] sm:$0xf] %v3807
      %3840 = vst [vmem:[%s253 + $0x24] sm:$0xf] %v3808
      %3841 = vst [vmem:[%s253 + $0x28] sm:$0xf] %v3809
      %3842 = vst [vmem:[%s253 + $0x2c] sm:$0xf] %v3810
      %3843 = vst [vmem:[%s253 + $0x30] sm:$0xf] %v3811
      %3844 = vst [vmem:[%s253 + $0x34] sm:$0xf] %v3812
      %3845 = vst [vmem:[%s253 + $0x38] sm:$0xf] %v3813
      %3846 = vst [vmem:[%s253 + $0x3c] sm:$0xf] %v3814
      %s3847 = smul.u32 %s19, 2
      %s3848 = sadd.s32 %s3847, %s20
      %s3849 = smul.u32 16, %s3848
      %p3850 = scmp.lt.s32.totalorder %s3849, 63
      %s3851 = scalar_select %p3850, %s3849, 63
      %s3852 = smul.addr %s3851, 4
      %s3853 = scalar_lea.vmem %s4, %s3852
      // Predicated region
      $region41: #{_lambda_.7} parent=35 // pred_check
        %p3854 = pneg %p147
      $region42: #{_lambda_.7} parent=35 // pred_check_branch
        %3856 = sbr.rel (%p3854) target = $region44
      $region43: #{_lambda_.7} parent=35 // pred_region
        %s3857 = smul.u32 %s19, 2
        %s3858 = sadd.s32 %s3857, %s20
        %s3859 = smul.u32 16, %s3858
      $region44: #{_lambda_.7} parent=35 // pred_fallthru
        _
    $region36: #{_lambda_.7} parent=5 // pred_fallthru
      _
    %p3860 = scmp.le.s32.totalorder 2, %s10
    // Predicated region
    $region45: #{_lambda_.7} parent=5 // pred_check
      %p3861 = pneg %p3860
    $region46: #{_lambda_.7} parent=5 // pred_check_branch
      %3863 = sbr.rel (%p3861) target = $region48
    $region47: #{_lambda_.7} parent=5 // pred_region
      %s3864 = ssub.s32 %s10, 2
      // Predicated region
      $region49: #{_lambda_.7} parent=47 // pred_check
        %p3865 = pneg %p153
      $region50: #{_lambda_.7} parent=47 // pred_check_branch
        %3867 = sbr.rel (%p3865) target = $region52
      $region51: #{_lambda_.7} parent=47 // pred_region
        %s3868 = smul.u32 %s21, 2
        %s3869 = sadd.s32 %s3868, %s22
        %s3870 = smul.u32 16, %s3869
        %p3871 = scmp.lt.s32.totalorder %s3870, 63
        %s3872 = scalar_select %p3871, %s3870, 63
        %s3873 = smul.addr %s3872, 4
        %s3874 = scalar_lea.vmem %s4, %s3873
      $region52: #{_lambda_.7} parent=47 // pred_fallthru
        _
    $region48: #{_lambda_.7} parent=5 // pred_fallthru
      _
  $region6: #{_lambda_.7} parent=0 // loop_footer
    %s14 = sadd.s32 1, %s10
  $region7: #{_lambda_.7} parent=0 // loop_footer_branch
    %9 = sbr.rel target = $region3
  $region8: #{_lambda_.7} parent=0 // loop_exit
    _

// kernel: _lambda_.6
$region0: #{_lambda_.6}
  #allocation0 [shape = 'u32[]', space=smem, size = 0x4, offset = 0x4, fixed_abs, tag = 'smem constant byte address 0x4 - core index']
  #allocation1 [shape = 'u32[144,128]{1,0:T(1,128)}', space=vmem, size = 0x12000, scoped, tag = 'internal scratch']
  #allocation2 [shape = 'bf16[18,18,8]{2,1,0:T(8,128)(2,1)}', space=vmem, size = 0x1b000, scoped, tag = 'scratch operand']
  %s0 = inlined_call_operand.vmem [shape: bf16[2,16,16,8], index: 0, kind: input, shape index: {}]
  %s1 = inlined_call_operand.vmem [shape: bf16[9,8,128], index: 1, kind: input, shape index: {}]
  %s2 = inlined_call_operand.vmem [shape: f32[1,128], index: 2, kind: input, shape index: {}]
  %s3 = inlined_call_operand.vmem [shape: bf16[512,128], index: 3, kind: output, shape index: {}]
  %s4 = sld [smem:[#allocation0]]
  $region49: #{_lambda_.6} parent=0
    _
  %s6 = ssub.s32 1, %s4
  %s7 = scalar_select 0, %s6, %s4
  loop: start=0, step=1, limit=6
  $region2: #{_lambda_.6} parent=0 // loop_pre_header
    _
  $region3: #{_lambda_.6} parent=0 // loop_header
    %s9 = sphi 0, %s13
    %p10 = scmp.ge.s32.totalorder %s9, 6
    %s16 = sphi 0, %s28
    %s17 = sphi 0, %s24
    %s18 = sphi 0, %s16
    %s19 = sphi 0, %s17
    %s20 = sphi 0, %s18
    %s21 = sphi 0, %s19
    %s31 = sphi 0, %s33
    %s34 = sphi 0, %s31
    %s35 = sphi 0, %s34
    %s51 = sphi 0, %s35
    %s55 = sphi 0, %s55
    %s57 = sphi 0, %s55
    %s58 = sphi 0, %s57
    %s72 = sphi 0, %s58
    %s76 = sphi 0, %s76
    %s78 = sphi 0, %s76
    %s79 = sphi 0, %s78
    %s93 = sphi 0, %s79
    %s103 = sphi 0, %s105
    %s106 = sphi 0, %s103
    %s107 = sphi 0, %s106
    %s123 = sphi 0, %s107
  $region4: #{_lambda_.6} parent=0 // loop_header_branch
    %12 = sbr.rel (%p10) target = $region8
  $region5: #{_lambda_.6} parent=0 // loop_body
    %s14 = ssub.s32 %s9, 1
    %s15 = ssub.s32 %s9, 2
    %s22 = sadd.s32 1, %s17
    %p23 = scmp.ge.s32.totalorder %s22, 2
    %s24 = scalar_select %p23, 0, %s22
    %s25 = sadd.s32 1, %s16
    %s26 = scalar_select %p23, %s25, %s16
    %p27 = scmp.ge.s32.totalorder %s26, 2
    %s28 = scalar_select %p27, 0, %s26
    %s29 = ssub.s32 %s16, %s28
    %p30 = scmp.eq.s32.totalorder %s29, 0
    %s32 = sadd.s32 %s31, 1
    %s33 = scalar_select %p30, %s31, %s32
    %p36 = pneg %p30
    %p37 = scmp.eq.s32.totalorder %s9, 3
    %p38 = por %p36, %p37
    %p39 = scmp.ne.s32.totalorder %s31, %s34
    %p40 = scmp.eq.s32.totalorder %s9, 0
    %p41 = por %p39, %p40
    %p42 = scmp.ne.s32.totalorder %s31, %s34
    %p43 = scmp.eq.s32.totalorder %s14, 3
    %p44 = por %p42, %p43
    %p45 = scmp.ne.s32.totalorder %s34, %s35
    %p46 = scmp.eq.s32.totalorder %s14, 0
    %p47 = por %p45, %p46
    %p48 = scmp.ne.s32.totalorder %s34, %s35
    %p49 = scmp.eq.s32.totalorder %s15, 3
    %p50 = por %p48, %p49
    %p52 = scmp.ne.s32.totalorder %s35, %s51
    %p53 = scmp.eq.s32.totalorder %s15, 0
    %p54 = por %p52, %p53
    %s56 = sadd.s32 %s55, 1
    %p59 = scmp.eq.s32.totalorder %s9, 3
    %p60 = scmp.ne.s32.totalorder %s55, %s57
    %p61 = scmp.eq.s32.totalorder %s9, 0
    %p62 = por %p60, %p61
    %p63 = scmp.ne.s32.totalorder %s55, %s57
    %p64 = scmp.eq.s32.totalorder %s14, 3
    %p65 = por %p63, %p64
    %p66 = scmp.ne.s32.totalorder %s57, %s58
    %p67 = scmp.eq.s32.totalorder %s14, 0
    %p68 = por %p66, %p67
    %p69 = scmp.ne.s32.totalorder %s57, %s58
    %p70 = scmp.eq.s32.totalorder %s15, 3
    %p71 = por %p69, %p70
    %p73 = scmp.ne.s32.totalorder %s58, %s72
    %p74 = scmp.eq.s32.totalorder %s15, 0
    %p75 = por %p73, %p74
    %s77 = sadd.s32 %s76, 1
    %p80 = scmp.eq.s32.totalorder %s9, 3
    %p81 = scmp.ne.s32.totalorder %s76, %s78
    %p82 = scmp.eq.s32.totalorder %s9, 0
    %p83 = por %p81, %p82
    %p84 = scmp.ne.s32.totalorder %s76, %s78
    %p85 = scmp.eq.s32.totalorder %s14, 3
    %p86 = por %p84, %p85
    %p87 = scmp.ne.s32.totalorder %s78, %s79
    %p88 = scmp.eq.s32.totalorder %s14, 0
    %p89 = por %p87, %p88
    %p90 = scmp.ne.s32.totalorder %s78, %s79
    %p91 = scmp.eq.s32.totalorder %s15, 3
    %p92 = por %p90, %p91
    %p94 = scmp.ne.s32.totalorder %s79, %s93
    %p95 = scmp.eq.s32.totalorder %s15, 0
    %p96 = por %p94, %p95
    %s97 = smul.u32 %s16, 2
    %s98 = sadd.s32 %s97, %s17
    %s99 = smul.u32 %s28, 2
    %s100 = sadd.s32 %s99, %s24
    %s101 = ssub.s32 %s98, %s100
    %p102 = scmp.eq.s32.totalorder %s101, 0
    %s104 = sadd.s32 %s103, 1
    %s105 = scalar_select %p102, %s103, %s104
    %p108 = pneg %p102
    %p109 = scmp.eq.s32.totalorder %s9, 3
    %p110 = por %p108, %p109
    %p111 = scmp.ne.s32.totalorder %s103, %s106
    %p112 = scmp.eq.s32.totalorder %s9, 0
    %p113 = por %p111, %p112
    %p114 = scmp.ne.s32.totalorder %s103, %s106
    %p115 = scmp.eq.s32.totalorder %s14, 3
    %p116 = por %p114, %p115
    %p117 = scmp.ne.s32.totalorder %s106, %s107
    %p118 = scmp.eq.s32.totalorder %s14, 0
    %p119 = por %p117, %p118
    %p120 = scmp.ne.s32.totalorder %s106, %s107
    %p121 = scmp.eq.s32.totalorder %s15, 3
    %p122 = por %p120, %p121
    %p124 = scmp.ne.s32.totalorder %s107, %s123
    %p125 = scmp.eq.s32.totalorder %s15, 0
    %p126 = por %p124, %p125
    %p127 = scmp.le.s32.totalorder 1, %s9
    %p128 = scmp.lt.s32.totalorder %s9, 5
    %p129 = pnand %p127, %p128
    %p130 = pneg %p129
    // Predicated region
    $region9: #{_lambda_.6} parent=5 // pred_check
      _
    $region10: #{_lambda_.6} parent=5 // pred_check_branch
      %132 = sbr.rel (%p129) target = $region12
    $region11: #{_lambda_.6} parent=5 // pred_region
      %s133 = ssub.s32 %s9, 1
      // Predicated region
      $region13: #{_lambda_.6} parent=11 // pred_check
        %p134 = pneg %p68
      $region14: #{_lambda_.6} parent=11 // pred_check_branch
        %136 = sbr.rel (%p134) target = $region16
      $region15: #{_lambda_.6} parent=11 // pred_region
        _
      $region16: #{_lambda_.6} parent=11 // pred_fallthru
        _
      // Predicated region
      $region17: #{_lambda_.6} parent=11 // pred_check
        %p137 = pneg %p89
      $region18: #{_lambda_.6} parent=11 // pred_check_branch
        %139 = sbr.rel (%p137) target = $region20
      $region19: #{_lambda_.6} parent=11 // pred_region
        _
      $region20: #{_lambda_.6} parent=11 // pred_fallthru
        _
    $region12: #{_lambda_.6} parent=5 // pred_fallthru
      _
    %p140 = scmp.lt.s32.totalorder %s9, 4
    // Predicated region
    $region21: #{_lambda_.6} parent=5 // pred_check
      %p141 = pneg %p140
    $region22: #{_lambda_.6} parent=5 // pred_check_branch
      %143 = sbr.rel (%p141) target = $region24
    $region23: #{_lambda_.6} parent=5 // pred_region
      // Predicated region
      $region25: #{_lambda_.6} parent=23 // pred_check
        %p144 = pneg %p41
      $region26: #{_lambda_.6} parent=23 // pred_check_branch
        %146 = sbr.rel (%p144) target = $region28
      $region27: #{_lambda_.6} parent=23 // pred_region
        %p147 = scmp.lt.s32.totalorder %s16, 1
        %s148 = scalar_select %p147, %s16, 1
        %s149 = smul.addr %s148, 32
        %s150 = smul.addr %s149, 4
        %s151 = scalar_lea.vmem %s0, %s150
      $region28: #{_lambda_.6} parent=23 // pred_fallthru
        _
    $region24: #{_lambda_.6} parent=5 // pred_fallthru
      _
    %p152 = scmp.le.s32.totalorder 1, %s9
    %p153 = scmp.lt.s32.totalorder %s9, 5
    %p154 = pnand %p152, %p153
    %p155 = pneg %p154
    // Predicated region
    $region29: #{_lambda_.6} parent=5 // pred_check
      _
    $region30: #{_lambda_.6} parent=5 // pred_check_branch
      %157 = sbr.rel (%p154) target = $region32
    $region31: #{_lambda_.6} parent=5 // pred_region
      %s158 = ssub.s32 %s9, 1
      %p159 = scmp.lt.s32.totalorder %s18, 1
      %s160 = scalar_select %p159, %s18, 1
      %s161 = smul.addr %s160, 32
      %s162 = smul.addr %s161, 4
      %s163 = scalar_lea.vmem %s0, %s162
      %p164 = pneg %p47
      %p165 = pneg %p44
      %p166 = pneg %p68
      %p167 = pneg %p65
      %p168 = pneg %p89
      %p169 = pneg %p86
      %p170 = pneg %p119
      %p171 = pneg %p116
      %s172 = smul.u32 %s18, 2
      %s173 = sadd.s32 %s172, %s19
      %s174 = smul.u32 16, %s173
      %p175 = scmp.lt.s32.totalorder %s174, 63
      %s176 = scalar_select %p175, %s174, 63
      %s177 = smul.addr %s176, 4
      %s178 = scalar_lea.vmem %s3, %s177
      %p179 = scmp.lt.s32.totalorder %s18, 1
      %s180 = scalar_select %p179, %s18, 1
      %s181 = smul.addr %s180, 32
      %s182 = smul.addr %s181, 4
      %s183 = scalar_lea.vmem %s0, %s182
      %s184 = smul.u32 %s18, 2
      %s185 = sadd.s32 %s184, %s19
      %s186 = smul.u32 16, %s185
      %p187 = scmp.lt.s32.totalorder %s186, 63
      %s188 = scalar_select %p187, %s186, 63
      %s189 = smul.addr %s188, 4
      %s190 = scalar_lea.vmem %s3, %s189
      %s191 = smul.u32 %s18, 2
      %s192 = sadd.s32 %s191, %s19
      %s193 = smul.u32 16, %s192
      %s195 = smul.u32 %s19, 8
      %p196 = scmp.eq.s32.totalorder %s19, 0
      // Predicated region
      $region33: #{_lambda_.6} parent=31 // pred_check
        %p197 = pneg %p196
      $region34: #{_lambda_.6} parent=31 // pred_check_branch
        %199 = sbr.rel (%p197) target = $region36
      $region35: #{_lambda_.6} parent=31 // pred_region
        %vm200 = vcmask 60416
        %201 = vst.msk [vmem:[#allocation2] sm:$0xf] %vm200, 0
        %202 = vst.msk [vmem:[#allocation2 + $0x4] sm:$0xf] %vm200, 0
        %vm203 = vcmask 57344
        %204 = vst.msk [vmem:[#allocation2 + $0x8] sm:$0x1] %vm203, 0
        %205 = vst.msk [vmem:[#allocation2 + $0xc] sm:$0xf] %vm200, 0
        %206 = vst.msk [vmem:[#allocation2 + $0x10] sm:$0xf] %vm200, 0
        %207 = vst.msk [vmem:[#allocation2 + $0x14] sm:$0x1] %vm203, 0
        %208 = vst.msk [vmem:[#allocation2 + $0x18] sm:$0xf] %vm200, 0
        %209 = vst.msk [vmem:[#allocation2 + $0x1c] sm:$0xf] %vm200, 0
        %210 = vst.msk [vmem:[#allocation2 + $0x20] sm:$0x1] %vm203, 0
        %211 = vst.msk [vmem:[#allocation2 + $0x24] sm:$0xf] %vm200, 0
        %212 = vst.msk [vmem:[#allocation2 + $0x28] sm:$0xf] %vm200, 0
        %213 = vst.msk [vmem:[#allocation2 + $0x2c] sm:$0x1] %vm203, 0
        %214 = vst.msk [vmem:[#allocation2 + $0x30] sm:$0xf] %vm200, 0
        %215 = vst.msk [vmem:[#allocation2 + $0x34] sm:$0xf] %vm200, 0
        %216 = vst.msk [vmem:[#allocation2 + $0x38] sm:$0x1] %vm203, 0
        %217 = vst.msk [vmem:[#allocation2 + $0x3c] sm:$0xf] %vm200, 0
        %218 = vst.msk [vmem:[#allocation2 + $0x40] sm:$0xf] %vm200, 0
        %219 = vst.msk [vmem:[#allocation2 + $0x44] sm:$0x1] %vm203, 0
        %220 = vst.msk [vmem:[#allocation2 + $0x48] sm:$0xf] %vm200, 0
        %221 = vst.msk [vmem:[#allocation2 + $0x4c] sm:$0xf] %vm200, 0
        %222 = vst.msk [vmem:[#allocation2 + $0x50] sm:$0x1] %vm203, 0
        %223 = vst.msk [vmem:[#allocation2 + $0x54] sm:$0xf] %vm200, 0
        %224 = vst.msk [vmem:[#allocation2 + $0x58] sm:$0xf] %vm200, 0
        %225 = vst.msk [vmem:[#allocation2 + $0x5c] sm:$0x1] %vm203, 0
        %226 = vst.msk [vmem:[#allocation2 + $0x60] sm:$0xf] %vm200, 0
        %227 = vst.msk [vmem:[#allocation2 + $0x64] sm:$0xf] %vm200, 0
        %228 = vst.msk [vmem:[#allocation2 + $0x68] sm:$0x1] %vm203, 0
        %229 = vst.msk [vmem:[#allocation2 + $0x6c] sm:$0xf] %vm200, 0
        %230 = vst.msk [vmem:[#allocation2 + $0x70] sm:$0xf] %vm200, 0
        %231 = vst.msk [vmem:[#allocation2 + $0x74] sm:$0x1] %vm203, 0
        %232 = vst.msk [vmem:[#allocation2 + $0x78] sm:$0xf] %vm200, 0
        %233 = vst.msk [vmem:[#allocation2 + $0x7c] sm:$0xf] %vm200, 0
        %234 = vst.msk [vmem:[#allocation2 + $0x80] sm:$0x1] %vm203, 0
        %235 = vst.msk [vmem:[#allocation2 + $0x84] sm:$0xf] %vm200, 0
        %236 = vst.msk [vmem:[#allocation2 + $0x88] sm:$0xf] %vm200, 0
        %237 = vst.msk [vmem:[#allocation2 + $0x8c] sm:$0x1] %vm203, 0
        %238 = vst.msk [vmem:[#allocation2 + $0x90] sm:$0xf] %vm200, 0
        %239 = vst.msk [vmem:[#allocation2 + $0x94] sm:$0xf] %vm200, 0
        %240 = vst.msk [vmem:[#allocation2 + $0x98] sm:$0x1] %vm203, 0
        %241 = vst.msk [vmem:[#allocation2 + $0x9c] sm:$0xf] %vm200, 0
        %242 = vst.msk [vmem:[#allocation2 + $0xa0] sm:$0xf] %vm200, 0
        %243 = vst.msk [vmem:[#allocation2 + $0xa4] sm:$0x1] %vm203, 0
        %244 = vst.msk [vmem:[#allocation2 + $0xa8] sm:$0xf] %vm200, 0
        %245 = vst.msk [vmem:[#allocation2 + $0xac] sm:$0xf] %vm200, 0
        %246 = vst.msk [vmem:[#allocation2 + $0xb0] sm:$0x1] %vm203, 0
        %247 = vst.msk [vmem:[#allocation2 + $0xb4] sm:$0xf] %vm200, 0
        %248 = vst.msk [vmem:[#allocation2 + $0xb8] sm:$0xf] %vm200, 0
        %249 = vst.msk [vmem:[#allocation2 + $0xbc] sm:$0x1] %vm203, 0
        %250 = vst.msk [vmem:[#allocation2 + $0xc0] sm:$0xf] %vm200, 0
        %251 = vst.msk [vmem:[#allocation2 + $0xc4] sm:$0xf] %vm200, 0
        %252 = vst.msk [vmem:[#allocation2 + $0xc8] sm:$0x1] %vm203, 0
        %253 = vst.msk [vmem:[#allocation2 + $0xcc] sm:$0xf] %vm200, 0
        %254 = vst.msk [vmem:[#allocation2 + $0xd0] sm:$0xf] %vm200, 0
        %255 = vst.msk [vmem:[#allocation2 + $0xd4] sm:$0x1] %vm203, 0
        %v256 = vld [vmem:[%s183] sm:$0xf]
        %v257 = vld [vmem:[%s183 + $0x4] sm:$0xf]
        %v258 = vld [vmem:[%s183 + $0x8] sm:$0xf]
        %v259 = vld [vmem:[%s183 + $0xc] sm:$0xf]
        %v260 = vld [vmem:[%s183 + $0x10] sm:$0xf]
        %v261 = vld [vmem:[%s183 + $0x14] sm:$0xf]
        %v262 = vld [vmem:[%s183 + $0x18] sm:$0xf]
        %v263 = vld [vmem:[%s183 + $0x1c] sm:$0xf]
        %v264 = vld [vmem:[%s183 + $0x20] sm:$0xf]
        %v265 = vld [vmem:[%s183 + $0x24] sm:$0xf]
        %v266 = vld [vmem:[%s183 + $0x28] sm:$0xf]
        %v267 = vld [vmem:[%s183 + $0x2c] sm:$0xf]
        %v268 = vld [vmem:[%s183 + $0x30] sm:$0xf]
        %v269 = vld [vmem:[%s183 + $0x34] sm:$0xf]
        %v270 = vld [vmem:[%s183 + $0x38] sm:$0xf]
        %v271 = vld [vmem:[%s183 + $0x3c] sm:$0xf]
        %v272 = vld [vmem:[%s183 + $0x40] sm:$0xf]
        %v273 = vld [vmem:[%s183 + $0x44] sm:$0xf]
        %v274 = vld [vmem:[%s183 + $0x48] sm:$0xf]
        %v275 = vld [vmem:[%s183 + $0x4c] sm:$0xf]
        %v276 = vld [vmem:[%s183 + $0x50] sm:$0xf]
        %v277 = vld [vmem:[%s183 + $0x54] sm:$0xf]
        %v278 = vld [vmem:[%s183 + $0x58] sm:$0xf]
        %v279 = vld [vmem:[%s183 + $0x5c] sm:$0xf]
        %v280 = vld [vmem:[%s183 + $0x60] sm:$0xf]
        %v281 = vld [vmem:[%s183 + $0x64] sm:$0xf]
        %v282 = vld [vmem:[%s183 + $0x68] sm:$0xf]
        %v283 = vld [vmem:[%s183 + $0x6c] sm:$0xf]
        %v284 = vld [vmem:[%s183 + $0x70] sm:$0xf]
        %v285 = vld [vmem:[%s183 + $0x74] sm:$0xf]
        %v286 = vld [vmem:[%s183 + $0x78] sm:$0xf]
        %v287 = vld [vmem:[%s183 + $0x7c] sm:$0xf]
        %vm288 = vsmask.f32 256
        %vm289 = vsmask.f32 4368
        %vm290 = vmor %vm288, %vm289
        %v292 = vshrl.u32 %v256, 16
        %v294 = vrot.slane %v292, 7
        %v295 = vshll.u32 %v256, 16
        %v297 = vor.u32 %v294, %v295
        %v298 = vrot.slane %v294, 4
        %v300 = vshrl.u32 %v257, 16
        %v302 = vrot.slane %v300, 7
        %v303 = vshll.u32 %v257, 16
        %v305 = vor.u32 %v302, %v303
        %v306 = vsel %vm290, %v298, %v305
        %v307 = vrot.slane %v302, 4
        %v309 = vshrl.u32 %v258, 16
        %v311 = vrot.slane %v309, 7
        %v312 = vshll.u32 %v258, 16
        %v314 = vor.u32 %v311, %v312
        %v315 = vrot.slane %v311, 4
        %v317 = vshrl.u32 %v259, 16
        %v319 = vrot.slane %v317, 7
        %v320 = vshll.u32 %v259, 16
        %v322 = vor.u32 %v319, %v320
        %v323 = vsel %vm290, %v315, %v322
        %v324 = vrot.slane %v319, 4
        %v326 = vshrl.u32 %v260, 16
        %v328 = vrot.slane %v326, 7
        %v329 = vshll.u32 %v260, 16
        %v331 = vor.u32 %v328, %v329
        %v332 = vrot.slane %v328, 4
        %v334 = vshrl.u32 %v261, 16
        %v336 = vrot.slane %v334, 7
        %v337 = vshll.u32 %v261, 16
        %v339 = vor.u32 %v336, %v337
        %v340 = vsel %vm290, %v332, %v339
        %v341 = vrot.slane %v336, 4
        %v343 = vshrl.u32 %v262, 16
        %v345 = vrot.slane %v343, 7
        %v346 = vshll.u32 %v262, 16
        %v348 = vor.u32 %v345, %v346
        %v349 = vrot.slane %v345, 4
        %v351 = vshrl.u32 %v263, 16
        %v353 = vrot.slane %v351, 7
        %v354 = vshll.u32 %v263, 16
        %v356 = vor.u32 %v353, %v354
        %v357 = vsel %vm290, %v349, %v356
        %v358 = vrot.slane %v353, 4
        %v360 = vshrl.u32 %v264, 16
        %v362 = vrot.slane %v360, 7
        %v363 = vshll.u32 %v264, 16
        %v365 = vor.u32 %v362, %v363
        %v366 = vrot.slane %v362, 4
        %v368 = vshrl.u32 %v265, 16
        %v370 = vrot.slane %v368, 7
        %v371 = vshll.u32 %v265, 16
        %v373 = vor.u32 %v370, %v371
        %v374 = vsel %vm290, %v366, %v373
        %v375 = vrot.slane %v370, 4
        %v377 = vshrl.u32 %v266, 16
        %v379 = vrot.slane %v377, 7
        %v380 = vshll.u32 %v266, 16
        %v382 = vor.u32 %v379, %v380
        %v383 = vrot.slane %v379, 4
        %v385 = vshrl.u32 %v267, 16
        %v387 = vrot.slane %v385, 7
        %v388 = vshll.u32 %v267, 16
        %v390 = vor.u32 %v387, %v388
        %v391 = vsel %vm290, %v383, %v390
        %v392 = vrot.slane %v387, 4
        %v394 = vshrl.u32 %v268, 16
        %v396 = vrot.slane %v394, 7
        %v397 = vshll.u32 %v268, 16
        %v399 = vor.u32 %v396, %v397
        %v400 = vrot.slane %v396, 4
        %v402 = vshrl.u32 %v269, 16
        %v404 = vrot.slane %v402, 7
        %v405 = vshll.u32 %v269, 16
        %v407 = vor.u32 %v404, %v405
        %v408 = vsel %vm290, %v400, %v407
        %v409 = vrot.slane %v404, 4
        %v411 = vshrl.u32 %v270, 16
        %v413 = vrot.slane %v411, 7
        %v414 = vshll.u32 %v270, 16
        %v416 = vor.u32 %v413, %v414
        %v417 = vrot.slane %v413, 4
        %v419 = vshrl.u32 %v271, 16
        %v421 = vrot.slane %v419, 7
        %v422 = vshll.u32 %v271, 16
        %v424 = vor.u32 %v421, %v422
        %v425 = vsel %vm290, %v417, %v424
        %v426 = vrot.slane %v421, 4
        %v428 = vshrl.u32 %v272, 16
        %v430 = vrot.slane %v428, 7
        %v431 = vshll.u32 %v272, 16
        %v433 = vor.u32 %v430, %v431
        %v434 = vrot.slane %v430, 4
        %v436 = vshrl.u32 %v273, 16
        %v438 = vrot.slane %v436, 7
        %v439 = vshll.u32 %v273, 16
        %v441 = vor.u32 %v438, %v439
        %v442 = vsel %vm290, %v434, %v441
        %v443 = vrot.slane %v438, 4
        %v445 = vshrl.u32 %v274, 16
        %v447 = vrot.slane %v445, 7
        %v448 = vshll.u32 %v274, 16
        %v450 = vor.u32 %v447, %v448
        %v451 = vrot.slane %v447, 4
        %v453 = vshrl.u32 %v275, 16
        %v455 = vrot.slane %v453, 7
        %v456 = vshll.u32 %v275, 16
        %v458 = vor.u32 %v455, %v456
        %v459 = vsel %vm290, %v451, %v458
        %v460 = vrot.slane %v455, 4
        %v462 = vshrl.u32 %v276, 16
        %v464 = vrot.slane %v462, 7
        %v465 = vshll.u32 %v276, 16
        %v467 = vor.u32 %v464, %v465
        %v468 = vrot.slane %v464, 4
        %v470 = vshrl.u32 %v277, 16
        %v472 = vrot.slane %v470, 7
        %v473 = vshll.u32 %v277, 16
        %v475 = vor.u32 %v472, %v473
        %v476 = vsel %vm290, %v468, %v475
        %v477 = vrot.slane %v472, 4
        %v479 = vshrl.u32 %v278, 16
        %v481 = vrot.slane %v479, 7
        %v482 = vshll.u32 %v278, 16
        %v484 = vor.u32 %v481, %v482
        %v485 = vrot.slane %v481, 4
        %v487 = vshrl.u32 %v279, 16
        %v489 = vrot.slane %v487, 7
        %v490 = vshll.u32 %v279, 16
        %v492 = vor.u32 %v489, %v490
        %v493 = vsel %vm290, %v485, %v492
        %v494 = vrot.slane %v489, 4
        %v496 = vshrl.u32 %v280, 16
        %v498 = vrot.slane %v496, 7
        %v499 = vshll.u32 %v280, 16
        %v501 = vor.u32 %v498, %v499
        %v502 = vrot.slane %v498, 4
        %v504 = vshrl.u32 %v281, 16
        %v506 = vrot.slane %v504, 7
        %v507 = vshll.u32 %v281, 16
        %v509 = vor.u32 %v506, %v507
        %v510 = vsel %vm290, %v502, %v509
        %v511 = vrot.slane %v506, 4
        %v513 = vshrl.u32 %v282, 16
        %v515 = vrot.slane %v513, 7
        %v516 = vshll.u32 %v282, 16
        %v518 = vor.u32 %v515, %v516
        %v519 = vrot.slane %v515, 4
        %v521 = vshrl.u32 %v283, 16
        %v523 = vrot.slane %v521, 7
        %v524 = vshll.u32 %v283, 16
        %v526 = vor.u32 %v523, %v524
        %v527 = vsel %vm290, %v519, %v526
        %v528 = vrot.slane %v523, 4
        %v530 = vshrl.u32 %v284, 16
        %v532 = vrot.slane %v530, 7
        %v533 = vshll.u32 %v284, 16
        %v535 = vor.u32 %v532, %v533
        %v536 = vrot.slane %v532, 4
        %v538 = vshrl.u32 %v285, 16
        %v540 = vrot.slane %v538, 7
        %v541 = vshll.u32 %v285, 16
        %v543 = vor.u32 %v540, %v541
        %v544 = vsel %vm290, %v536, %v543
        %v545 = vrot.slane %v540, 4
        %v547 = vshrl.u32 %v286, 16
        %v549 = vrot.slane %v547, 7
        %v550 = vshll.u32 %v286, 16
        %v552 = vor.u32 %v549, %v550
        %v553 = vrot.slane %v549, 4
        %v555 = vshrl.u32 %v287, 16
        %v557 = vrot.slane %v555, 7
        %v558 = vshll.u32 %v287, 16
        %v560 = vor.u32 %v557, %v558
        %v561 = vsel %vm290, %v553, %v560
        %v562 = vrot.slane %v557, 4
        %s611 = scalar_lea.vmem [#allocation2], 12
        %vm612 = vcmask 60416
        %vm613 = vsmask.f32 7938
        %vm614 = vmand %vm612, %vm613
        %v615 = vld [vmem:[%s611] sm:$0xf]
        %v616 = vsel %vm614, %v297, %v615
        %617 = vst [vmem:[%s611] sm:$0xf] %v616
        %618 = vst.msk [vmem:[%s611 + $0x4] sm:$0xf] %vm200, %v306
        %vm619 = vcmask 57344
        %vm620 = vmand %vm619, %vm288
        %v621 = vld [vmem:[%s611 + $0x8] sm:$0x1]
        %v622 = vsel %vm620, %v307, %v621
        %623 = vst [vmem:[%s611 + $0x8] sm:$0x1] %v622
        %v624 = vld [vmem:[%s611 + $0xc] sm:$0xf]
        %v625 = vsel %vm614, %v314, %v624
        %626 = vst [vmem:[%s611 + $0xc] sm:$0xf] %v625
        %627 = vst.msk [vmem:[%s611 + $0x10] sm:$0xf] %vm200, %v323
        %v628 = vld [vmem:[%s611 + $0x14] sm:$0x1]
        %v629 = vsel %vm620, %v324, %v628
        %630 = vst [vmem:[%s611 + $0x14] sm:$0x1] %v629
        %v631 = vld [vmem:[%s611 + $0x18] sm:$0xf]
        %v632 = vsel %vm614, %v331, %v631
        %633 = vst [vmem:[%s611 + $0x18] sm:$0xf] %v632
        %634 = vst.msk [vmem:[%s611 + $0x1c] sm:$0xf] %vm200, %v340
        %v635 = vld [vmem:[%s611 + $0x20] sm:$0x1]
        %v636 = vsel %vm620, %v341, %v635
        %637 = vst [vmem:[%s611 + $0x20] sm:$0x1] %v636
        %v638 = vld [vmem:[%s611 + $0x24] sm:$0xf]
        %v639 = vsel %vm614, %v348, %v638
        %640 = vst [vmem:[%s611 + $0x24] sm:$0xf] %v639
        %641 = vst.msk [vmem:[%s611 + $0x28] sm:$0xf] %vm200, %v357
        %v642 = vld [vmem:[%s611 + $0x2c] sm:$0x1]
        %v643 = vsel %vm620, %v358, %v642
        %644 = vst [vmem:[%s611 + $0x2c] sm:$0x1] %v643
        %v645 = vld [vmem:[%s611 + $0x30] sm:$0xf]
        %v646 = vsel %vm614, %v365, %v645
        %647 = vst [vmem:[%s611 + $0x30] sm:$0xf] %v646
        %648 = vst.msk [vmem:[%s611 + $0x34] sm:$0xf] %vm200, %v374
        %v649 = vld [vmem:[%s611 + $0x38] sm:$0x1]
        %v650 = vsel %vm620, %v375, %v649
        %651 = vst [vmem:[%s611 + $0x38] sm:$0x1] %v650
        %v652 = vld [vmem:[%s611 + $0x3c] sm:$0xf]
        %v653 = vsel %vm614, %v382, %v652
        %654 = vst [vmem:[%s611 + $0x3c] sm:$0xf] %v653
        %655 = vst.msk [vmem:[%s611 + $0x40] sm:$0xf] %vm200, %v391
        %v656 = vld [vmem:[%s611 + $0x44] sm:$0x1]
        %v657 = vsel %vm620, %v392, %v656
        %658 = vst [vmem:[%s611 + $0x44] sm:$0x1] %v657
        %v659 = vld [vmem:[%s611 + $0x48] sm:$0xf]
        %v660 = vsel %vm614, %v399, %v659
        %661 = vst [vmem:[%s611 + $0x48] sm:$0xf] %v660
        %662 = vst.msk [vmem:[%s611 + $0x4c] sm:$0xf] %vm200, %v408
        %v663 = vld [vmem:[%s611 + $0x50] sm:$0x1]
        %v664 = vsel %vm620, %v409, %v663
        %665 = vst [vmem:[%s611 + $0x50] sm:$0x1] %v664
        %v666 = vld [vmem:[%s611 + $0x54] sm:$0xf]
        %v667 = vsel %vm614, %v416, %v666
        %668 = vst [vmem:[%s611 + $0x54] sm:$0xf] %v667
        %669 = vst.msk [vmem:[%s611 + $0x58] sm:$0xf] %vm200, %v425
        %v670 = vld [vmem:[%s611 + $0x5c] sm:$0x1]
        %v671 = vsel %vm620, %v426, %v670
        %672 = vst [vmem:[%s611 + $0x5c] sm:$0x1] %v671
        %v673 = vld [vmem:[%s611 + $0x60] sm:$0xf]
        %v674 = vsel %vm614, %v433, %v673
        %675 = vst [vmem:[%s611 + $0x60] sm:$0xf] %v674
        %676 = vst.msk [vmem:[%s611 + $0x64] sm:$0xf] %vm200, %v442
        %v677 = vld [vmem:[%s611 + $0x68] sm:$0x1]
        %v678 = vsel %vm620, %v443, %v677
        %679 = vst [vmem:[%s611 + $0x68] sm:$0x1] %v678
        %v680 = vld [vmem:[%s611 + $0x6c] sm:$0xf]
        %v681 = vsel %vm614, %v450, %v680
        %682 = vst [vmem:[%s611 + $0x6c] sm:$0xf] %v681
        %683 = vst.msk [vmem:[%s611 + $0x70] sm:$0xf] %vm200, %v459
        %v684 = vld [vmem:[%s611 + $0x74] sm:$0x1]
        %v685 = vsel %vm620, %v460, %v684
        %686 = vst [vmem:[%s611 + $0x74] sm:$0x1] %v685
        %v687 = vld [vmem:[%s611 + $0x78] sm:$0xf]
        %v688 = vsel %vm614, %v467, %v687
        %689 = vst [vmem:[%s611 + $0x78] sm:$0xf] %v688
        %690 = vst.msk [vmem:[%s611 + $0x7c] sm:$0xf] %vm200, %v476
        %v691 = vld [vmem:[%s611 + $0x80] sm:$0x1]
        %v692 = vsel %vm620, %v477, %v691
        %693 = vst [vmem:[%s611 + $0x80] sm:$0x1] %v692
        %v694 = vld [vmem:[%s611 + $0x84] sm:$0xf]
        %v695 = vsel %vm614, %v484, %v694
        %696 = vst [vmem:[%s611 + $0x84] sm:$0xf] %v695
        %697 = vst.msk [vmem:[%s611 + $0x88] sm:$0xf] %vm200, %v493
        %v698 = vld [vmem:[%s611 + $0x8c] sm:$0x1]
        %v699 = vsel %vm620, %v494, %v698
        %700 = vst [vmem:[%s611 + $0x8c] sm:$0x1] %v699
        %v701 = vld [vmem:[%s611 + $0x90] sm:$0xf]
        %v702 = vsel %vm614, %v501, %v701
        %703 = vst [vmem:[%s611 + $0x90] sm:$0xf] %v702
        %704 = vst.msk [vmem:[%s611 + $0x94] sm:$0xf] %vm200, %v510
        %v705 = vld [vmem:[%s611 + $0x98] sm:$0x1]
        %v706 = vsel %vm620, %v511, %v705
        %707 = vst [vmem:[%s611 + $0x98] sm:$0x1] %v706
        %v708 = vld [vmem:[%s611 + $0x9c] sm:$0xf]
        %v709 = vsel %vm614, %v518, %v708
        %710 = vst [vmem:[%s611 + $0x9c] sm:$0xf] %v709
        %711 = vst.msk [vmem:[%s611 + $0xa0] sm:$0xf] %vm200, %v527
        %v712 = vld [vmem:[%s611 + $0xa4] sm:$0x1]
        %v713 = vsel %vm620, %v528, %v712
        %714 = vst [vmem:[%s611 + $0xa4] sm:$0x1] %v713
        %v715 = vld [vmem:[%s611 + $0xa8] sm:$0xf]
        %v716 = vsel %vm614, %v535, %v715
        %717 = vst [vmem:[%s611 + $0xa8] sm:$0xf] %v716
        %718 = vst.msk [vmem:[%s611 + $0xac] sm:$0xf] %vm200, %v544
        %v719 = vld [vmem:[%s611 + $0xb0] sm:$0x1]
        %v720 = vsel %vm620, %v545, %v719
        %721 = vst [vmem:[%s611 + $0xb0] sm:$0x1] %v720
        %v722 = vld [vmem:[%s611 + $0xb4] sm:$0xf]
        %v723 = vsel %vm614, %v552, %v722
        %724 = vst [vmem:[%s611 + $0xb4] sm:$0xf] %v723
        %725 = vst.msk [vmem:[%s611 + $0xb8] sm:$0xf] %vm200, %v561
        %v726 = vld [vmem:[%s611 + $0xbc] sm:$0x1]
        %v727 = vsel %vm620, %v562, %v726
        %728 = vst [vmem:[%s611 + $0xbc] sm:$0x1] %v727
      $region36: #{_lambda_.6} parent=31 // pred_fallthru
        _
      %s729 = smul.u32 %s195, 3
      %s730 = smul.addr %s729, 4
      %s731 = scalar_lea.vmem [#allocation2], %s730
      %v732 = vld [vmem:[%s731] sm:$0xf]
      %v733 = vld [vmem:[%s731 + $0x4] sm:$0xf]
      %v734 = vld [vmem:[%s731 + $0xc] sm:$0xf]
      %v735 = vld [vmem:[%s731 + $0x10] sm:$0xf]
      %v736 = vld [vmem:[%s731 + $0x18] sm:$0xf]
      %v737 = vld [vmem:[%s731 + $0x1c] sm:$0xf]
      %v738 = vld [vmem:[%s731 + $0x24] sm:$0xf]
      %v739 = vld [vmem:[%s731 + $0x28] sm:$0xf]
      %v740 = vld [vmem:[%s731 + $0x30] sm:$0xf]
      %v741 = vld [vmem:[%s731 + $0x34] sm:$0xf]
      %v742 = vld [vmem:[%s731 + $0x3c] sm:$0xf]
      %v743 = vld [vmem:[%s731 + $0x40] sm:$0xf]
      %v744 = vld [vmem:[%s731 + $0x48] sm:$0xf]
      %v745 = vld [vmem:[%s731 + $0x4c] sm:$0xf]
      %v746 = vld [vmem:[%s731 + $0x54] sm:$0xf]
      %v747 = vld [vmem:[%s731 + $0x58] sm:$0xf]
      %v748 = vld [vmem:[%s1] sm:$0xf]
      %v749 = vld [vmem:[%s731 + $0x8] sm:$0x1]
      %v750 = vld [vmem:[%s731 + $0x14] sm:$0x1]
      %v751 = vld [vmem:[%s731 + $0x20] sm:$0x1]
      %v752 = vld [vmem:[%s731 + $0x2c] sm:$0x1]
      %v753 = vld [vmem:[%s731 + $0x38] sm:$0x1]
      %v754 = vld [vmem:[%s731 + $0x44] sm:$0x1]
      %v755 = vld [vmem:[%s731 + $0x50] sm:$0x1]
      %v756 = vld [vmem:[%s731 + $0x5c] sm:$0x1]
      %vm757 = vsmask.f32 3328
      %vm758 = vsmask.f32 7440
      %vm759 = vmor %vm757, %vm758
      %v761 = vshrl.u32 %v732, 16
      %v763 = vrot.slane %v761, 4
      %v764 = vshll.u32 %v732, 16
      %v766 = vrot.slane %v764, 5
      %v767 = vor.u32 %v763, %v766
      %v768 = vrot.slane %v767, 4
      %v770 = vshll.u32 %v733, 16
      %v772 = vrot.slane %v770, 5
      %v773 = vsel %vm759, %v768, %v772
      %v774 = vshrl.u32 %v733, 16
      %v776 = vrot.slane %v774, 4
      %v777 = vor.u32 %v776, %v772
      %v778 = vrot.slane %v777, 4
      %v780 = vshll.u32 %v749, 16
      %v782 = vrot.slane %v780, 5
      %v783 = vsel %vm759, %v778, %v782
      %v785 = vshrl.u32 %v734, 16
      %v787 = vrot.slane %v785, 4
      %v788 = vshll.u32 %v734, 16
      %v790 = vrot.slane %v788, 5
      %v791 = vor.u32 %v787, %v790
      %v792 = vrot.slane %v791, 4
      %v794 = vshll.u32 %v735, 16
      %v796 = vrot.slane %v794, 5
      %v797 = vsel %vm759, %v792, %v796
      %v798 = vshrl.u32 %v735, 16
      %v800 = vrot.slane %v798, 4
      %v801 = vor.u32 %v800, %v796
      %v802 = vrot.slane %v801, 4
      %v804 = vshll.u32 %v750, 16
      %v806 = vrot.slane %v804, 5
      %v807 = vsel %vm759, %v802, %v806
      %v809 = vshrl.u32 %v736, 16
      %v811 = vrot.slane %v809, 4
      %v812 = vshll.u32 %v736, 16
      %v814 = vrot.slane %v812, 5
      %v815 = vor.u32 %v811, %v814
      %v816 = vrot.slane %v815, 4
      %v818 = vshll.u32 %v737, 16
      %v820 = vrot.slane %v818, 5
      %v821 = vsel %vm759, %v816, %v820
      %v822 = vshrl.u32 %v737, 16
      %v824 = vrot.slane %v822, 4
      %v825 = vor.u32 %v824, %v820
      %v826 = vrot.slane %v825, 4
      %v828 = vshll.u32 %v751, 16
      %v830 = vrot.slane %v828, 5
      %v831 = vsel %vm759, %v826, %v830
      %v833 = vshrl.u32 %v738, 16
      %v835 = vrot.slane %v833, 4
      %v836 = vshll.u32 %v738, 16
      %v838 = vrot.slane %v836, 5
      %v839 = vor.u32 %v835, %v838
      %v840 = vrot.slane %v839, 4
      %v842 = vshll.u32 %v739, 16
      %v844 = vrot.slane %v842, 5
      %v845 = vsel %vm759, %v840, %v844
      %v846 = vshrl.u32 %v739, 16
      %v848 = vrot.slane %v846, 4
      %v849 = vor.u32 %v848, %v844
      %v850 = vrot.slane %v849, 4
      %v852 = vshll.u32 %v752, 16
      %v854 = vrot.slane %v852, 5
      %v855 = vsel %vm759, %v850, %v854
      %v857 = vshrl.u32 %v740, 16
      %v859 = vrot.slane %v857, 4
      %v860 = vshll.u32 %v740, 16
      %v862 = vrot.slane %v860, 5
      %v863 = vor.u32 %v859, %v862
      %v864 = vrot.slane %v863, 4
      %v866 = vshll.u32 %v741, 16
      %v868 = vrot.slane %v866, 5
      %v869 = vsel %vm759, %v864, %v868
      %v870 = vshrl.u32 %v741, 16
      %v872 = vrot.slane %v870, 4
      %v873 = vor.u32 %v872, %v868
      %v874 = vrot.slane %v873, 4
      %v876 = vshll.u32 %v753, 16
      %v878 = vrot.slane %v876, 5
      %v879 = vsel %vm759, %v874, %v878
      %v881 = vshrl.u32 %v742, 16
      %v883 = vrot.slane %v881, 4
      %v884 = vshll.u32 %v742, 16
      %v886 = vrot.slane %v884, 5
      %v887 = vor.u32 %v883, %v886
      %v888 = vrot.slane %v887, 4
      %v890 = vshll.u32 %v743, 16
      %v892 = vrot.slane %v890, 5
      %v893 = vsel %vm759, %v888, %v892
      %v894 = vshrl.u32 %v743, 16
      %v896 = vrot.slane %v894, 4
      %v897 = vor.u32 %v896, %v892
      %v898 = vrot.slane %v897, 4
      %v900 = vshll.u32 %v754, 16
      %v902 = vrot.slane %v900, 5
      %v903 = vsel %vm759, %v898, %v902
      %v905 = vshrl.u32 %v744, 16
      %v907 = vrot.slane %v905, 4
      %v908 = vshll.u32 %v744, 16
      %v910 = vrot.slane %v908, 5
      %v911 = vor.u32 %v907, %v910
      %v912 = vrot.slane %v911, 4
      %v914 = vshll.u32 %v745, 16
      %v916 = vrot.slane %v914, 5
      %v917 = vsel %vm759, %v912, %v916
      %v918 = vshrl.u32 %v745, 16
      %v920 = vrot.slane %v918, 4
      %v921 = vor.u32 %v920, %v916
      %v922 = vrot.slane %v921, 4
      %v924 = vshll.u32 %v755, 16
      %v926 = vrot.slane %v924, 5
      %v927 = vsel %vm759, %v922, %v926
      %v929 = vshrl.u32 %v746, 16
      %v931 = vrot.slane %v929, 4
      %v932 = vshll.u32 %v746, 16
      %v934 = vrot.slane %v932, 5
      %v935 = vor.u32 %v931, %v934
      %v936 = vrot.slane %v935, 4
      %v938 = vshll.u32 %v747, 16
      %v940 = vrot.slane %v938, 5
      %v941 = vsel %vm759, %v936, %v940
      %v942 = vshrl.u32 %v747, 16
      %v944 = vrot.slane %v942, 4
      %v945 = vor.u32 %v944, %v940
      %v946 = vrot.slane %v945, 4
      %v948 = vshll.u32 %v756, 16
      %v950 = vrot.slane %v948, 5
      %v951 = vsel %vm759, %v946, %v950
      %s952 = scalar_lea.vmem %s1, 4
      %v953 = vld [vmem:[%s952] sm:$0xf]
      %v954 = vunpack.c.l.b16 %v773
      %v955 = vunpack.c.l.b16 %v783
      %v956 = vunpack.c.l.b16 %v797
      %v957 = vunpack.c.l.b16 %v807
      %v958 = vunpack.c.l.b16 %v821
      %v959 = vunpack.c.l.b16 %v831
      %v960 = vunpack.c.l.b16 %v845
      %v961 = vunpack.c.l.b16 %v855
      %v962 = vunpack.c.l.b16 %v869
      %v963 = vunpack.c.l.b16 %v879
      %v964 = vunpack.c.l.b16 %v893
      %v965 = vunpack.c.l.b16 %v903
      %v966 = vunpack.c.l.b16 %v917
      %v967 = vunpack.c.l.b16 %v927
      %v968 = vunpack.c.l.b16 %v941
      %v969 = vunpack.c.l.b16 %v951
      %v970 = vpack.c.b16 %v955, %v954
      %v971 = vpack.c.b16 %v957, %v956
      %v972 = vpack.c.b16 %v959, %v958
      %v973 = vpack.c.b16 %v961, %v960
      %v974 = vpack.c.b16 %v963, %v962
      %v975 = vpack.c.b16 %v965, %v964
      %v976 = vpack.c.b16 %v967, %v966
      %v977 = vpack.c.b16 %v969, %v968
      %vm978 = vcmask 64512
      %v980 = vsel %vm978, %v970, 0
      %v983 = vsel %vm978, %v971, 0
      %v986 = vsel %vm978, %v972, 0
      %v989 = vsel %vm978, %v973, 0
      %v992 = vsel %vm978, %v974, 0
      %v995 = vsel %vm978, %v975, 0
      %v998 = vsel %vm978, %v976, 0
      %v1001 = vsel %vm978, %v977, 0
      %vm1003 = vcmask 1043456
      %v1005 = vsel %vm1003, %v953, 0
      %1007 = vmatprep.subr.bf16.mxu0 0
      %1008 = vmatpush1.bf16.msra.mxu0 %v1005
      %1009 = vmatprep.subr.bf16.mxu0 0
      %1010 = vmatpush1.bf16.msra.mxu0 0
      %1011 = vmatprep.subr.bf16.mxu0 0
      %1012 = vmatpush1.bf16.msra.mxu0 0
      %1013 = vmatprep.subr.bf16.mxu0 0
      %1014 = vmatpush1.bf16.msra.mxu0 0
      %1015 = vmatprep.subr.bf16.mxu0 0
      %1016 = vmatpush1.bf16.msra.mxu0 0
      %1017 = vmatprep.subr.bf16.mxu0 0
      %1018 = vmatpush1.bf16.msra.mxu0 0
      %1019 = vmatprep.subr.bf16.mxu0 0
      %1020 = vmatpush1.bf16.msra.mxu0 0
      %1021 = vmatprep.subr.bf16.mxu0 0
      %1022 = vmatpush1.bf16.msra.mxu0 0
      %1023 = vmatprep.subr.bf16.mxu0 0
      %1024 = vmatpush1.bf16.msra.mxu0 0
      %1025 = vmatprep.subr.bf16.mxu0 0
      %1026 = vmatpush1.bf16.msra.mxu0 0
      %1027 = vmatprep.subr.bf16.mxu0 0
      %1028 = vmatpush1.bf16.msra.mxu0 0
      %1029 = vmatprep.subr.bf16.mxu0 0
      %1030 = vmatpush1.bf16.msra.mxu0 0
      %1031 = vmatprep.subr.bf16.mxu0 0
      %1032 = vmatpush1.bf16.msra.mxu0 0
      %1033 = vmatprep.subr.bf16.mxu0 0
      %1034 = vmatpush1.bf16.msra.mxu0 0
      %1035 = vmatprep.subr.bf16.mxu0 0
      %1036 = vmatpush1.bf16.msra.mxu0 0
      %1037 = vmatprep.subr.bf16.mxu0 0
      %1038 = vmatpush1.bf16.msra.mxu0 0
      %1039 = vmatprep.mubr.bf16.mxu0 0
      %1040 = vmatmul.mubr.bf16.gmra.mrb[0].mxu0 %v980
      %v1041 = vpop.f32.mrb[0].mxu0
      %v1042 = vadd.f32 0.0, %v1041
      %v1043 = vpop.f32.mrb[0].mxu0
      %v1044 = vpop.f32.mrb[0].mxu0
      %v1045 = vadd.f32 0.0, %v1044
      %v1046 = vpop.f32.mrb[0].mxu0
      %1047 = vmatprep.mubr.bf16.mxu0 0
      %1048 = vmatmul.mubr.bf16.gmra.mrb[0].mxu0 %v983
      %v1049 = vpop.f32.mrb[0].mxu0
      %v1050 = vadd.f32 0.0, %v1049
      %v1051 = vpop.f32.mrb[0].mxu0
      %v1052 = vpop.f32.mrb[0].mxu0
      %v1053 = vadd.f32 0.0, %v1052
      %v1054 = vpop.f32.mrb[0].mxu0
      %1055 = vmatprep.mubr.bf16.mxu0 0
      %1056 = vmatmul.mubr.bf16.gmra.mrb[0].mxu0 %v986
      %v1057 = vpop.f32.mrb[0].mxu0
      %v1058 = vadd.f32 0.0, %v1057
      %v1059 = vpop.f32.mrb[0].mxu0
      %v1060 = vpop.f32.mrb[0].mxu0
      %v1061 = vadd.f32 0.0, %v1060
      %v1062 = vpop.f32.mrb[0].mxu0
      %1063 = vmatprep.mubr.bf16.mxu0 0
      %1064 = vmatmul.mubr.bf16.gmra.mrb[0].mxu0 %v989
      %v1065 = vpop.f32.mrb[0].mxu0
      %v1066 = vadd.f32 0.0, %v1065
      %v1067 = vpop.f32.mrb[0].mxu0
      %v1068 = vpop.f32.mrb[0].mxu0
      %v1069 = vadd.f32 0.0, %v1068
      %v1070 = vpop.f32.mrb[0].mxu0
      %1071 = vmatprep.mubr.bf16.mxu0 0
      %1072 = vmatmul.mubr.bf16.gmra.mrb[0].mxu0 %v992
      %v1073 = vpop.f32.mrb[0].mxu0
      %v1074 = vadd.f32 0.0, %v1073
      %v1075 = vpop.f32.mrb[0].mxu0
      %v1076 = vpop.f32.mrb[0].mxu0
      %v1077 = vadd.f32 0.0, %v1076
      %v1078 = vpop.f32.mrb[0].mxu0
      %1079 = vmatprep.mubr.bf16.mxu0 0
      %1080 = vmatmul.mubr.bf16.gmra.mrb[0].mxu0 %v995
      %v1081 = vpop.f32.mrb[0].mxu0
      %v1082 = vadd.f32 0.0, %v1081
      %v1083 = vpop.f32.mrb[0].mxu0
      %v1084 = vpop.f32.mrb[0].mxu0
      %v1085 = vadd.f32 0.0, %v1084
      %v1086 = vpop.f32.mrb[0].mxu0
      %1087 = vmatprep.mubr.bf16.mxu0 0
      %1088 = vmatmul.mubr.bf16.gmra.mrb[0].mxu0 %v998
      %v1089 = vpop.f32.mrb[0].mxu0
      %v1090 = vadd.f32 0.0, %v1089
      %v1091 = vpop.f32.mrb[0].mxu0
      %v1092 = vpop.f32.mrb[0].mxu0
      %v1093 = vadd.f32 0.0, %v1092
      %v1094 = vpop.f32.mrb[0].mxu0
      %1095 = vmatprep.mubr.bf16.mxu0 0
      %1096 = vmatmul.mubr.bf16.gmra.mrb[0].mxu0 %v1001
      %v1097 = vpop.f32.mrb[0].mxu0
      %v1098 = vadd.f32 0.0, %v1097
      %v1099 = vpop.f32.mrb[0].mxu0
      %v1100 = vpop.f32.mrb[0].mxu0
      %v1101 = vadd.f32 0.0, %v1100
      %v1102 = vpop.f32.mrb[0].mxu0
      %1103 = vdwg.mxu0
      %v1120 = vunpack.c.l.b16 %v732
      %v1121 = vunpack.c.l.b16 %v733
      %v1122 = vunpack.c.l.b16 %v734
      %v1123 = vunpack.c.l.b16 %v735
      %v1124 = vunpack.c.l.b16 %v736
      %v1125 = vunpack.c.l.b16 %v737
      %v1126 = vunpack.c.l.b16 %v738
      %v1127 = vunpack.c.l.b16 %v739
      %v1128 = vunpack.c.l.b16 %v740
      %v1129 = vunpack.c.l.b16 %v741
      %v1130 = vunpack.c.l.b16 %v742
      %v1131 = vunpack.c.l.b16 %v743
      %v1132 = vunpack.c.l.b16 %v744
      %v1133 = vunpack.c.l.b16 %v745
      %v1134 = vunpack.c.l.b16 %v746
      %v1135 = vunpack.c.l.b16 %v747
      %v1136 = vpack.c.b16 %v1121, %v1120
      %v1137 = vpack.c.b16 %v1123, %v1122
      %v1138 = vpack.c.b16 %v1125, %v1124
      %v1139 = vpack.c.b16 %v1127, %v1126
      %v1140 = vpack.c.b16 %v1129, %v1128
      %v1141 = vpack.c.b16 %v1131, %v1130
      %v1142 = vpack.c.b16 %v1133, %v1132
      %v1143 = vpack.c.b16 %v1135, %v1134
      %v1145 = vsel %vm978, %v1136, 0
      %v1148 = vsel %vm978, %v1137, 0
      %v1151 = vsel %vm978, %v1138, 0
      %v1154 = vsel %vm978, %v1139, 0
      %v1157 = vsel %vm978, %v1140, 0
      %v1160 = vsel %vm978, %v1141, 0
      %v1163 = vsel %vm978, %v1142, 0
      %v1166 = vsel %vm978, %v1143, 0
      %v1169 = vsel %vm1003, %v748, 0
      %1171 = vmatprep.subr.bf16.mxu0 0
      %1172 = vmatpush1.bf16.msra.mxu0 %v1169
      %1173 = vmatprep.subr.bf16.mxu0 0
      %1174 = vmatpush1.bf16.msra.mxu0 0
      %1175 = vmatprep.subr.bf16.mxu0 0
      %1176 = vmatpush1.bf16.msra.mxu0 0
      %1177 = vmatprep.subr.bf16.mxu0 0
      %1178 = vmatpush1.bf16.msra.mxu0 0
      %1179 = vmatprep.subr.bf16.mxu0 0
      %1180 = vmatpush1.bf16.msra.mxu0 0
      %1181 = vmatprep.subr.bf16.mxu0 0
      %1182 = vmatpush1.bf16.msra.mxu0 0
      %1183 = vmatprep.subr.bf16.mxu0 0
      %1184 = vmatpush1.bf16.msra.mxu0 0
      %1185 = vmatprep.subr.bf16.mxu0 0
      %1186 = vmatpush1.bf16.msra.mxu0 0
      %1187 = vmatprep.subr.bf16.mxu0 0
      %1188 = vmatpush1.bf16.msra.mxu0 0
      %1189 = vmatprep.subr.bf16.mxu0 0
      %1190 = vmatpush1.bf16.msra.mxu0 0
      %1191 = vmatprep.subr.bf16.mxu0 0
      %1192 = vmatpush1.bf16.msra.mxu0 0
      %1193 = vmatprep.subr.bf16.mxu0 0
      %1194 = vmatpush1.bf16.msra.mxu0 0
      %1195 = vmatprep.subr.bf16.mxu0 0
      %1196 = vmatpush1.bf16.msra.mxu0 0
      %1197 = vmatprep.subr.bf16.mxu0 0
      %1198 = vmatpush1.bf16.msra.mxu0 0
      %1199 = vmatprep.subr.bf16.mxu0 0
      %1200 = vmatpush1.bf16.msra.mxu0 0
      %1201 = vmatprep.subr.bf16.mxu0 0
      %1202 = vmatpush1.bf16.msra.mxu0 0
      %1203 = vmatprep.mubr.bf16.mxu0 0
      %1204 = vmatmul.mubr.bf16.gmra.mrb[0].mxu0 %v1145
      %v1205 = vpop.f32.mrb[0].mxu0
      %v1206 = vadd.f32 %v1042, %v1205
      %v1207 = vpop.f32.mrb[0].mxu0
      %v1208 = vpop.f32.mrb[0].mxu0
      %v1209 = vadd.f32 %v1045, %v1208
      %v1210 = vpop.f32.mrb[0].mxu0
      %1211 = vmatprep.mubr.bf16.mxu0 0
      %1212 = vmatmul.mubr.bf16.gmra.mrb[0].mxu0 %v1148
      %v1213 = vpop.f32.mrb[0].mxu0
      %v1214 = vadd.f32 %v1050, %v1213
      %v1215 = vpop.f32.mrb[0].mxu0
      %v1216 = vpop.f32.mrb[0].mxu0
      %v1217 = vadd.f32 %v1053, %v1216
      %v1218 = vpop.f32.mrb[0].mxu0
      %1219 = vmatprep.mubr.bf16.mxu0 0
      %1220 = vmatmul.mubr.bf16.gmra.mrb[0].mxu0 %v1151
      %v1221 = vpop.f32.mrb[0].mxu0
      %v1222 = vadd.f32 %v1058, %v1221
      %v1223 = vpop.f32.mrb[0].mxu0
      %v1224 = vpop.f32.mrb[0].mxu0
      %v1225 = vadd.f32 %v1061, %v1224
      %v1226 = vpop.f32.mrb[0].mxu0
      %1227 = vmatprep.mubr.bf16.mxu0 0
      %1228 = vmatmul.mubr.bf16.gmra.mrb[0].mxu0 %v1154
      %v1229 = vpop.f32.mrb[0].mxu0
      %v1230 = vadd.f32 %v1066, %v1229
      %v1231 = vpop.f32.mrb[0].mxu0
      %v1232 = vpop.f32.mrb[0].mxu0
      %v1233 = vadd.f32 %v1069, %v1232
      %v1234 = vpop.f32.mrb[0].mxu0
      %1235 = vmatprep.mubr.bf16.mxu0 0
      %1236 = vmatmul.mubr.bf16.gmra.mrb[0].mxu0 %v1157
      %v1237 = vpop.f32.mrb[0].mxu0
      %v1238 = vadd.f32 %v1074, %v1237
      %v1239 = vpop.f32.mrb[0].mxu0
      %v1240 = vpop.f32.mrb[0].mxu0
      %v1241 = vadd.f32 %v1077, %v1240
      %v1242 = vpop.f32.mrb[0].mxu0
      %1243 = vmatprep.mubr.bf16.mxu0 0
      %1244 = vmatmul.mubr.bf16.gmra.mrb[0].mxu0 %v1160
      %v1245 = vpop.f32.mrb[0].mxu0
      %v1246 = vadd.f32 %v1082, %v1245
      %v1247 = vpop.f32.mrb[0].mxu0
      %v1248 = vpop.f32.mrb[0].mxu0
      %v1249 = vadd.f32 %v1085, %v1248
      %v1250 = vpop.f32.mrb[0].mxu0
      %1251 = vmatprep.mubr.bf16.mxu0 0
      %1252 = vmatmul.mubr.bf16.gmra.mrb[0].mxu0 %v1163
      %v1253 = vpop.f32.mrb[0].mxu0
      %v1254 = vadd.f32 %v1090, %v1253
      %v1255 = vpop.f32.mrb[0].mxu0
      %v1256 = vpop.f32.mrb[0].mxu0
      %v1257 = vadd.f32 %v1093, %v1256
      %v1258 = vpop.f32.mrb[0].mxu0
      %1259 = vmatprep.mubr.bf16.mxu0 0
      %1260 = vmatmul.mubr.bf16.gmra.mrb[0].mxu0 %v1166
      %v1261 = vpop.f32.mrb[0].mxu0
      %v1262 = vadd.f32 %v1098, %v1261
      %v1263 = vpop.f32.mrb[0].mxu0
      %v1264 = vpop.f32.mrb[0].mxu0
      %v1265 = vadd.f32 %v1101, %v1264
      %v1266 = vpop.f32.mrb[0].mxu0
      %1267 = vdwg.mxu0
      %v1268 = vld [vmem:[%s731] sm:$0xe]
      %v1269 = vld [vmem:[%s731 + $0xc] sm:$0xe]
      %v1270 = vld [vmem:[%s731 + $0x18] sm:$0xe]
      %v1271 = vld [vmem:[%s731 + $0x24] sm:$0xe]
      %v1272 = vld [vmem:[%s731 + $0x30] sm:$0xe]
      %v1273 = vld [vmem:[%s731 + $0x3c] sm:$0xe]
      %v1274 = vld [vmem:[%s731 + $0x48] sm:$0xe]
      %v1275 = vld [vmem:[%s731 + $0x54] sm:$0xe]
      %vm1292 = vcmask 1042432
      %vm1293 = vcmask 1046532
      %vm1294 = vmor %vm1292, %vm1293
      %v1295 = vrot.slane %v1268, 5
      %v1296 = vrot.slane %v1295, 4
      %v1297 = vrot.slane %v733, 5
      %v1298 = vsel %vm1294, %v1296, %v1297
      %v1299 = vrot.slane %v1297, 4
      %v1300 = vrot.slane %v749, 5
      %v1301 = vsel %vm1294, %v1299, %v1300
      %v1302 = vrot.slane %v1269, 5
      %v1303 = vrot.slane %v1302, 4
      %v1304 = vrot.slane %v735, 5
      %v1305 = vsel %vm1294, %v1303, %v1304
      %v1306 = vrot.slane %v1304, 4
      %v1307 = vrot.slane %v750, 5
      %v1308 = vsel %vm1294, %v1306, %v1307
      %v1309 = vrot.slane %v1270, 5
      %v1310 = vrot.slane %v1309, 4
      %v1311 = vrot.slane %v737, 5
      %v1312 = vsel %vm1294, %v1310, %v1311
      %v1313 = vrot.slane %v1311, 4
      %v1314 = vrot.slane %v751, 5
      %v1315 = vsel %vm1294, %v1313, %v1314
      %v1316 = vrot.slane %v1271, 5
      %v1317 = vrot.slane %v1316, 4
      %v1318 = vrot.slane %v739, 5
      %v1319 = vsel %vm1294, %v1317, %v1318
      %v1320 = vrot.slane %v1318, 4
      %v1321 = vrot.slane %v752, 5
      %v1322 = vsel %vm1294, %v1320, %v1321
      %v1323 = vrot.slane %v1272, 5
      %v1324 = vrot.slane %v1323, 4
      %v1325 = vrot.slane %v741, 5
      %v1326 = vsel %vm1294, %v1324, %v1325
      %v1327 = vrot.slane %v1325, 4
      %v1328 = vrot.slane %v753, 5
      %v1329 = vsel %vm1294, %v1327, %v1328
      %v1330 = vrot.slane %v1273, 5
      %v1331 = vrot.slane %v1330, 4
      %v1332 = vrot.slane %v743, 5
      %v1333 = vsel %vm1294, %v1331, %v1332
      %v1334 = vrot.slane %v1332, 4
      %v1335 = vrot.slane %v754, 5
      %v1336 = vsel %vm1294, %v1334, %v1335
      %v1337 = vrot.slane %v1274, 5
      %v1338 = vrot.slane %v1337, 4
      %v1339 = vrot.slane %v745, 5
      %v1340 = vsel %vm1294, %v1338, %v1339
      %v1341 = vrot.slane %v1339, 4
      %v1342 = vrot.slane %v755, 5
      %v1343 = vsel %vm1294, %v1341, %v1342
      %v1344 = vrot.slane %v1275, 5
      %v1345 = vrot.slane %v1344, 4
      %v1346 = vrot.slane %v747, 5
      %v1347 = vsel %vm1294, %v1345, %v1346
      %v1348 = vrot.slane %v1346, 4
      %v1349 = vrot.slane %v756, 5
      %v1350 = vsel %vm1294, %v1348, %v1349
      %s1351 = scalar_lea.vmem %s1, 8
      %v1352 = vld [vmem:[%s1351] sm:$0xf]
      %v1353 = vunpack.c.l.b16 %v1298
      %v1354 = vunpack.c.l.b16 %v1301
      %v1355 = vunpack.c.l.b16 %v1305
      %v1356 = vunpack.c.l.b16 %v1308
      %v1357 = vunpack.c.l.b16 %v1312
      %v1358 = vunpack.c.l.b16 %v1315
      %v1359 = vunpack.c.l.b16 %v1319
      %v1360 = vunpack.c.l.b16 %v1322
      %v1361 = vunpack.c.l.b16 %v1326
      %v1362 = vunpack.c.l.b16 %v1329
      %v1363 = vunpack.c.l.b16 %v1333
      %v1364 = vunpack.c.l.b16 %v1336
      %v1365 = vunpack.c.l.b16 %v1340
      %v1366 = vunpack.c.l.b16 %v1343
      %v1367 = vunpack.c.l.b16 %v1347
      %v1368 = vunpack.c.l.b16 %v1350
      %v1369 = vpack.c.b16 %v1354, %v1353
      %v1370 = vpack.c.b16 %v1356, %v1355
      %v1371 = vpack.c.b16 %v1358, %v1357
      %v1372 = vpack.c.b16 %v1360, %v1359
      %v1373 = vpack.c.b16 %v1362, %v1361
      %v1374 = vpack.c.b16 %v1364, %v1363
      %v1375 = vpack.c.b16 %v1366, %v1365
      %v1376 = vpack.c.b16 %v1368, %v1367
      %v1378 = vsel %vm978, %v1369, 0
      %v1381 = vsel %vm978, %v1370, 0
      %v1384 = vsel %vm978, %v1371, 0
      %v1387 = vsel %vm978, %v1372, 0
      %v1390 = vsel %vm978, %v1373, 0
      %v1393 = vsel %vm978, %v1374, 0
      %v1396 = vsel %vm978, %v1375, 0
      %v1399 = vsel %vm978, %v1376, 0
      %v1402 = vsel %vm1003, %v1352, 0
      %1404 = vmatprep.subr.bf16.mxu0 0
      %1405 = vmatpush1.bf16.msra.mxu0 %v1402
      %1406 = vmatprep.subr.bf16.mxu0 0
      %1407 = vmatpush1.bf16.msra.mxu0 0
      %1408 = vmatprep.subr.bf16.mxu0 0
      %1409 = vmatpush1.bf16.msra.mxu0 0
      %1410 = vmatprep.subr.bf16.mxu0 0
      %1411 = vmatpush1.bf16.msra.mxu0 0
      %1412 = vmatprep.subr.bf16.mxu0 0
      %1413 = vmatpush1.bf16.msra.mxu0 0
      %1414 = vmatprep.subr.bf16.mxu0 0
      %1415 = vmatpush1.bf16.msra.mxu0 0
      %1416 = vmatprep.subr.bf16.mxu0 0
      %1417 = vmatpush1.bf16.msra.mxu0 0
      %1418 = vmatprep.subr.bf16.mxu0 0
      %1419 = vmatpush1.bf16.msra.mxu0 0
      %1420 = vmatprep.subr.bf16.mxu0 0
      %1421 = vmatpush1.bf16.msra.mxu0 0
      %1422 = vmatprep.subr.bf16.mxu0 0
      %1423 = vmatpush1.bf16.msra.mxu0 0
      %1424 = vmatprep.subr.bf16.mxu0 0
      %1425 = vmatpush1.bf16.msra.mxu0 0
      %1426 = vmatprep.subr.bf16.mxu0 0
      %1427 = vmatpush1.bf16.msra.mxu0 0
      %1428 = vmatprep.subr.bf16.mxu0 0
      %1429 = vmatpush1.bf16.msra.mxu0 0
      %1430 = vmatprep.subr.bf16.mxu0 0
      %1431 = vmatpush1.bf16.msra.mxu0 0
      %1432 = vmatprep.subr.bf16.mxu0 0
      %1433 = vmatpush1.bf16.msra.mxu0 0
      %1434 = vmatprep.subr.bf16.mxu0 0
      %1435 = vmatpush1.bf16.msra.mxu0 0
      %1436 = vmatprep.mubr.bf16.mxu0 0
      %1437 = vmatmul.mubr.bf16.gmra.mrb[0].mxu0 %v1378
      %v1438 = vpop.f32.mrb[0].mxu0
      %v1439 = vadd.f32 0.0, %v1438
      %v1440 = vpop.f32.mrb[0].mxu0
      %v1441 = vpop.f32.mrb[0].mxu0
      %v1442 = vadd.f32 0.0, %v1441
      %v1443 = vpop.f32.mrb[0].mxu0
      %1444 = vmatprep.mubr.bf16.mxu0 0
      %1445 = vmatmul.mubr.bf16.gmra.mrb[0].mxu0 %v1381
      %v1446 = vpop.f32.mrb[0].mxu0
      %v1447 = vadd.f32 0.0, %v1446
      %v1448 = vpop.f32.mrb[0].mxu0
      %v1449 = vpop.f32.mrb[0].mxu0
      %v1450 = vadd.f32 0.0, %v1449
      %v1451 = vpop.f32.mrb[0].mxu0
      %1452 = vmatprep.mubr.bf16.mxu0 0
      %1453 = vmatmul.mubr.bf16.gmra.mrb[0].mxu0 %v1384
      %v1454 = vpop.f32.mrb[0].mxu0
      %v1455 = vadd.f32 0.0, %v1454
      %v1456 = vpop.f32.mrb[0].mxu0
      %v1457 = vpop.f32.mrb[0].mxu0
      %v1458 = vadd.f32 0.0, %v1457
      %v1459 = vpop.f32.mrb[0].mxu0
      %1460 = vmatprep.mubr.bf16.mxu0 0
      %1461 = vmatmul.mubr.bf16.gmra.mrb[0].mxu0 %v1387
      %v1462 = vpop.f32.mrb[0].mxu0
      %v1463 = vadd.f32 0.0, %v1462
      %v1464 = vpop.f32.mrb[0].mxu0
      %v1465 = vpop.f32.mrb[0].mxu0
      %v1466 = vadd.f32 0.0, %v1465
      %v1467 = vpop.f32.mrb[0].mxu0
      %1468 = vmatprep.mubr.bf16.mxu0 0
      %1469 = vmatmul.mubr.bf16.gmra.mrb[0].mxu0 %v1390
      %v1470 = vpop.f32.mrb[0].mxu0
      %v1471 = vadd.f32 0.0, %v1470
      %v1472 = vpop.f32.mrb[0].mxu0
      %v1473 = vpop.f32.mrb[0].mxu0
      %v1474 = vadd.f32 0.0, %v1473
      %v1475 = vpop.f32.mrb[0].mxu0
      %1476 = vmatprep.mubr.bf16.mxu0 0
      %1477 = vmatmul.mubr.bf16.gmra.mrb[0].mxu0 %v1393
      %v1478 = vpop.f32.mrb[0].mxu0
      %v1479 = vadd.f32 0.0, %v1478
      %v1480 = vpop.f32.mrb[0].mxu0
      %v1481 = vpop.f32.mrb[0].mxu0
      %v1482 = vadd.f32 0.0, %v1481
      %v1483 = vpop.f32.mrb[0].mxu0
      %1484 = vmatprep.mubr.bf16.mxu0 0
      %1485 = vmatmul.mubr.bf16.gmra.mrb[0].mxu0 %v1396
      %v1486 = vpop.f32.mrb[0].mxu0
      %v1487 = vadd.f32 0.0, %v1486
      %v1488 = vpop.f32.mrb[0].mxu0
      %v1489 = vpop.f32.mrb[0].mxu0
      %v1490 = vadd.f32 0.0, %v1489
      %v1491 = vpop.f32.mrb[0].mxu0
      %1492 = vmatprep.mubr.bf16.mxu0 0
      %1493 = vmatmul.mubr.bf16.gmra.mrb[0].mxu0 %v1399
      %v1494 = vpop.f32.mrb[0].mxu0
      %v1495 = vadd.f32 0.0, %v1494
      %v1496 = vpop.f32.mrb[0].mxu0
      %v1497 = vpop.f32.mrb[0].mxu0
      %v1498 = vadd.f32 0.0, %v1497
      %v1499 = vpop.f32.mrb[0].mxu0
      %1500 = vdwg.mxu0
      %v1501 = vadd.f32 %v1206, %v1439
      %v1502 = vadd.f32 %v1209, %v1442
      %v1503 = vadd.f32 %v1214, %v1447
      %v1504 = vadd.f32 %v1217, %v1450
      %v1505 = vadd.f32 %v1222, %v1455
      %v1506 = vadd.f32 %v1225, %v1458
      %v1507 = vadd.f32 %v1230, %v1463
      %v1508 = vadd.f32 %v1233, %v1466
      %v1509 = vadd.f32 %v1238, %v1471
      %v1510 = vadd.f32 %v1241, %v1474
      %v1511 = vadd.f32 %v1246, %v1479
      %v1512 = vadd.f32 %v1249, %v1482
      %v1513 = vadd.f32 %v1254, %v1487
      %v1514 = vadd.f32 %v1257, %v1490
      %v1515 = vadd.f32 %v1262, %v1495
      %v1516 = vadd.f32 %v1265, %v1498
      %s1517 = sadd.s32 %s195, 1
      %s1518 = smul.u32 %s1517, 3
      %s1519 = smul.addr %s1518, 4
      %s1520 = scalar_lea.vmem [#allocation2], %s1519
      %v1521 = vld [vmem:[%s1520] sm:$0xf]
      %v1522 = vld [vmem:[%s1520 + $0x4] sm:$0xf]
      %v1523 = vld [vmem:[%s1520 + $0xc] sm:$0xf]
      %v1524 = vld [vmem:[%s1520 + $0x10] sm:$0xf]
      %v1525 = vld [vmem:[%s1520 + $0x18] sm:$0xf]
      %v1526 = vld [vmem:[%s1520 + $0x1c] sm:$0xf]
      %v1527 = vld [vmem:[%s1520 + $0x24] sm:$0xf]
      %v1528 = vld [vmem:[%s1520 + $0x28] sm:$0xf]
      %v1529 = vld [vmem:[%s1520 + $0x30] sm:$0xf]
      %v1530 = vld [vmem:[%s1520 + $0x34] sm:$0xf]
      %v1531 = vld [vmem:[%s1520 + $0x3c] sm:$0xf]
      %v1532 = vld [vmem:[%s1520 + $0x40] sm:$0xf]
      %v1533 = vld [vmem:[%s1520 + $0x48] sm:$0xf]
      %v1534 = vld [vmem:[%s1520 + $0x4c] sm:$0xf]
      %v1535 = vld [vmem:[%s1520 + $0x54] sm:$0xf]
      %v1536 = vld [vmem:[%s1520 + $0x58] sm:$0xf]
      %s1537 = scalar_lea.vmem %s1, 12
      %v1538 = vld [vmem:[%s1537] sm:$0xf]
      %v1555 = vunpack.c.l.b16 %v1521
      %v1556 = vunpack.c.l.b16 %v1522
      %v1557 = vunpack.c.l.b16 %v1523
      %v1558 = vunpack.c.l.b16 %v1524
      %v1559 = vunpack.c.l.b16 %v1525
      %v1560 = vunpack.c.l.b16 %v1526
      %v1561 = vunpack.c.l.b16 %v1527
      %v1562 = vunpack.c.l.b16 %v1528
      %v1563 = vunpack.c.l.b16 %v1529
      %v1564 = vunpack.c.l.b16 %v1530
      %v1565 = vunpack.c.l.b16 %v1531
      %v1566 = vunpack.c.l.b16 %v1532
      %v1567 = vunpack.c.l.b16 %v1533
      %v1568 = vunpack.c.l.b16 %v1534
      %v1569 = vunpack.c.l.b16 %v1535
      %v1570 = vunpack.c.l.b16 %v1536
      %v1571 = vpack.c.b16 %v1556, %v1555
      %v1572 = vpack.c.b16 %v1558, %v1557
      %v1573 = vpack.c.b16 %v1560, %v1559
      %v1574 = vpack.c.b16 %v1562, %v1561
      %v1575 = vpack.c.b16 %v1564, %v1563
      %v1576 = vpack.c.b16 %v1566, %v1565
      %v1577 = vpack.c.b16 %v1568, %v1567
      %v1578 = vpack.c.b16 %v1570, %v1569
      %v1580 = vsel %vm978, %v1571, 0
      %v1583 = vsel %vm978, %v1572, 0
      %v1586 = vsel %vm978, %v1573, 0
      %v1589 = vsel %vm978, %v1574, 0
      %v1592 = vsel %vm978, %v1575, 0
      %v1595 = vsel %vm978, %v1576, 0
      %v1598 = vsel %vm978, %v1577, 0
      %v1601 = vsel %vm978, %v1578, 0
      %v1604 = vsel %vm1003, %v1538, 0
      %1606 = vmatprep.subr.bf16.mxu0 0
      %1607 = vmatpush1.bf16.msra.mxu0 %v1604
      %1608 = vmatprep.subr.bf16.mxu0 0
      %1609 = vmatpush1.bf16.msra.mxu0 0
      %1610 = vmatprep.subr.bf16.mxu0 0
      %1611 = vmatpush1.bf16.msra.mxu0 0
      %1612 = vmatprep.subr.bf16.mxu0 0
      %1613 = vmatpush1.bf16.msra.mxu0 0
      %1614 = vmatprep.subr.bf16.mxu0 0
      %1615 = vmatpush1.bf16.msra.mxu0 0
      %1616 = vmatprep.subr.bf16.mxu0 0
      %1617 = vmatpush1.bf16.msra.mxu0 0
      %1618 = vmatprep.subr.bf16.mxu0 0
      %1619 = vmatpush1.bf16.msra.mxu0 0
      %1620 = vmatprep.subr.bf16.mxu0 0
      %1621 = vmatpush1.bf16.msra.mxu0 0
      %1622 = vmatprep.subr.bf16.mxu0 0
      %1623 = vmatpush1.bf16.msra.mxu0 0
      %1624 = vmatprep.subr.bf16.mxu0 0
      %1625 = vmatpush1.bf16.msra.mxu0 0
      %1626 = vmatprep.subr.bf16.mxu0 0
      %1627 = vmatpush1.bf16.msra.mxu0 0
      %1628 = vmatprep.subr.bf16.mxu0 0
      %1629 = vmatpush1.bf16.msra.mxu0 0
      %1630 = vmatprep.subr.bf16.mxu0 0
      %1631 = vmatpush1.bf16.msra.mxu0 0
      %1632 = vmatprep.subr.bf16.mxu0 0
      %1633 = vmatpush1.bf16.msra.mxu0 0
      %1634 = vmatprep.subr.bf16.mxu0 0
      %1635 = vmatpush1.bf16.msra.mxu0 0
      %1636 = vmatprep.subr.bf16.mxu0 0
      %1637 = vmatpush1.bf16.msra.mxu0 0
      %1638 = vmatprep.mubr.bf16.mxu0 0
      %1639 = vmatmul.mubr.bf16.gmra.mrb[0].mxu0 %v1580
      %v1640 = vpop.f32.mrb[0].mxu0
      %v1641 = vadd.f32 0.0, %v1640
      %v1642 = vpop.f32.mrb[0].mxu0
      %v1643 = vpop.f32.mrb[0].mxu0
      %v1644 = vadd.f32 0.0, %v1643
      %v1645 = vpop.f32.mrb[0].mxu0
      %1646 = vmatprep.mubr.bf16.mxu0 0
      %1647 = vmatmul.mubr.bf16.gmra.mrb[0].mxu0 %v1583
      %v1648 = vpop.f32.mrb[0].mxu0
      %v1649 = vadd.f32 0.0, %v1648
      %v1650 = vpop.f32.mrb[0].mxu0
      %v1651 = vpop.f32.mrb[0].mxu0
      %v1652 = vadd.f32 0.0, %v1651
      %v1653 = vpop.f32.mrb[0].mxu0
      %1654 = vmatprep.mubr.bf16.mxu0 0
      %1655 = vmatmul.mubr.bf16.gmra.mrb[0].mxu0 %v1586
      %v1656 = vpop.f32.mrb[0].mxu0
      %v1657 = vadd.f32 0.0, %v1656
      %v1658 = vpop.f32.mrb[0].mxu0
      %v1659 = vpop.f32.mrb[0].mxu0
      %v1660 = vadd.f32 0.0, %v1659
      %v1661 = vpop.f32.mrb[0].mxu0
      %1662 = vmatprep.mubr.bf16.mxu0 0
      %1663 = vmatmul.mubr.bf16.gmra.mrb[0].mxu0 %v1589
      %v1664 = vpop.f32.mrb[0].mxu0
      %v1665 = vadd.f32 0.0, %v1664
      %v1666 = vpop.f32.mrb[0].mxu0
      %v1667 = vpop.f32.mrb[0].mxu0
      %v1668 = vadd.f32 0.0, %v1667
      %v1669 = vpop.f32.mrb[0].mxu0
      %1670 = vmatprep.mubr.bf16.mxu0 0
      %1671 = vmatmul.mubr.bf16.gmra.mrb[0].mxu0 %v1592
      %v1672 = vpop.f32.mrb[0].mxu0
      %v1673 = vadd.f32 0.0, %v1672
      %v1674 = vpop.f32.mrb[0].mxu0
      %v1675 = vpop.f32.mrb[0].mxu0
      %v1676 = vadd.f32 0.0, %v1675
      %v1677 = vpop.f32.mrb[0].mxu0
      %1678 = vmatprep.mubr.bf16.mxu0 0
      %1679 = vmatmul.mubr.bf16.gmra.mrb[0].mxu0 %v1595
      %v1680 = vpop.f32.mrb[0].mxu0
      %v1681 = vadd.f32 0.0, %v1680
      %v1682 = vpop.f32.mrb[0].mxu0
      %v1683 = vpop.f32.mrb[0].mxu0
      %v1684 = vadd.f32 0.0, %v1683
      %v1685 = vpop.f32.mrb[0].mxu0
      %1686 = vmatprep.mubr.bf16.mxu0 0
      %1687 = vmatmul.mubr.bf16.gmra.mrb[0].mxu0 %v1598
      %v1688 = vpop.f32.mrb[0].mxu0
      %v1689 = vadd.f32 0.0, %v1688
      %v1690 = vpop.f32.mrb[0].mxu0
      %v1691 = vpop.f32.mrb[0].mxu0
      %v1692 = vadd.f32 0.0, %v1691
      %v1693 = vpop.f32.mrb[0].mxu0
      %1694 = vmatprep.mubr.bf16.mxu0 0
      %1695 = vmatmul.mubr.bf16.gmra.mrb[0].mxu0 %v1601
      %v1696 = vpop.f32.mrb[0].mxu0
      %v1697 = vadd.f32 0.0, %v1696
      %v1698 = vpop.f32.mrb[0].mxu0
      %v1699 = vpop.f32.mrb[0].mxu0
      %v1700 = vadd.f32 0.0, %v1699
      %v1701 = vpop.f32.mrb[0].mxu0
      %1702 = vdwg.mxu0
      %v1703 = vadd.f32 %v1501, %v1641
      %v1704 = vadd.f32 %v1502, %v1644
      %v1705 = vadd.f32 %v1503, %v1649
      %v1706 = vadd.f32 %v1504, %v1652
      %v1707 = vadd.f32 %v1505, %v1657
      %v1708 = vadd.f32 %v1506, %v1660
      %v1709 = vadd.f32 %v1507, %v1665
      %v1710 = vadd.f32 %v1508, %v1668
      %v1711 = vadd.f32 %v1509, %v1673
      %v1712 = vadd.f32 %v1510, %v1676
      %v1713 = vadd.f32 %v1511, %v1681
      %v1714 = vadd.f32 %v1512, %v1684
      %v1715 = vadd.f32 %v1513, %v1689
      %v1716 = vadd.f32 %v1514, %v1692
      %v1717 = vadd.f32 %v1515, %v1697
      %v1718 = vadd.f32 %v1516, %v1700
      %v1719 = vld [vmem:[%s1520] sm:$0xf]
      %v1720 = vld [vmem:[%s1520 + $0x4] sm:$0xf]
      %v1721 = vld [vmem:[%s1520 + $0x8] sm:$0x1]
      %v1722 = vld [vmem:[%s1520 + $0xc] sm:$0xf]
      %v1723 = vld [vmem:[%s1520 + $0x10] sm:$0xf]
      %v1724 = vld [vmem:[%s1520 + $0x14] sm:$0x1]
      %v1725 = vld [vmem:[%s1520 + $0x18] sm:$0xf]
      %v1726 = vld [vmem:[%s1520 + $0x1c] sm:$0xf]
      %v1727 = vld [vmem:[%s1520 + $0x20] sm:$0x1]
      %v1728 = vld [vmem:[%s1520 + $0x24] sm:$0xf]
      %v1729 = vld [vmem:[%s1520 + $0x28] sm:$0xf]
      %v1730 = vld [vmem:[%s1520 + $0x2c] sm:$0x1]
      %v1731 = vld [vmem:[%s1520 + $0x30] sm:$0xf]
      %v1732 = vld [vmem:[%s1520 + $0x34] sm:$0xf]
      %v1733 = vld [vmem:[%s1520 + $0x38] sm:$0x1]
      %v1734 = vld [vmem:[%s1520 + $0x3c] sm:$0xf]
      %v1735 = vld [vmem:[%s1520 + $0x40] sm:$0xf]
      %v1736 = vld [vmem:[%s1520 + $0x44] sm:$0x1]
      %v1737 = vld [vmem:[%s1520 + $0x48] sm:$0xf]
      %v1738 = vld [vmem:[%s1520 + $0x4c] sm:$0xf]
      %v1739 = vld [vmem:[%s1520 + $0x50] sm:$0x1]
      %v1740 = vld [vmem:[%s1520 + $0x54] sm:$0xf]
      %v1741 = vld [vmem:[%s1520 + $0x58] sm:$0xf]
      %v1742 = vld [vmem:[%s1520 + $0x5c] sm:$0x1]
      %v1744 = vshrl.u32 %v1719, 16
      %v1746 = vrot.slane %v1744, 4
      %v1747 = vshll.u32 %v1719, 16
      %v1749 = vrot.slane %v1747, 5
      %v1750 = vor.u32 %v1746, %v1749
      %v1751 = vrot.slane %v1750, 4
      %v1753 = vshll.u32 %v1720, 16
      %v1755 = vrot.slane %v1753, 5
      %v1756 = vsel %vm759, %v1751, %v1755
      %v1757 = vshrl.u32 %v1720, 16
      %v1759 = vrot.slane %v1757, 4
      %v1760 = vor.u32 %v1759, %v1755
      %v1761 = vrot.slane %v1760, 4
      %v1763 = vshll.u32 %v1721, 16
      %v1765 = vrot.slane %v1763, 5
      %v1766 = vsel %vm759, %v1761, %v1765
      %v1768 = vshrl.u32 %v1722, 16
      %v1770 = vrot.slane %v1768, 4
      %v1771 = vshll.u32 %v1722, 16
      %v1773 = vrot.slane %v1771, 5
      %v1774 = vor.u32 %v1770, %v1773
      %v1775 = vrot.slane %v1774, 4
      %v1777 = vshll.u32 %v1723, 16
      %v1779 = vrot.slane %v1777, 5
      %v1780 = vsel %vm759, %v1775, %v1779
      %v1781 = vshrl.u32 %v1723, 16
      %v1783 = vrot.slane %v1781, 4
      %v1784 = vor.u32 %v1783, %v1779
      %v1785 = vrot.slane %v1784, 4
      %v1787 = vshll.u32 %v1724, 16
      %v1789 = vrot.slane %v1787, 5
      %v1790 = vsel %vm759, %v1785, %v1789
      %v1792 = vshrl.u32 %v1725, 16
      %v1794 = vrot.slane %v1792, 4
      %v1795 = vshll.u32 %v1725, 16
      %v1797 = vrot.slane %v1795, 5
      %v1798 = vor.u32 %v1794, %v1797
      %v1799 = vrot.slane %v1798, 4
      %v1801 = vshll.u32 %v1726, 16
      %v1803 = vrot.slane %v1801, 5
      %v1804 = vsel %vm759, %v1799, %v1803
      %v1805 = vshrl.u32 %v1726, 16
      %v1807 = vrot.slane %v1805, 4
      %v1808 = vor.u32 %v1807, %v1803
      %v1809 = vrot.slane %v1808, 4
      %v1811 = vshll.u32 %v1727, 16
      %v1813 = vrot.slane %v1811, 5
      %v1814 = vsel %vm759, %v1809, %v1813
      %v1816 = vshrl.u32 %v1728, 16
      %v1818 = vrot.slane %v1816, 4
      %v1819 = vshll.u32 %v1728, 16
      %v1821 = vrot.slane %v1819, 5
      %v1822 = vor.u32 %v1818, %v1821
      %v1823 = vrot.slane %v1822, 4
      %v1825 = vshll.u32 %v1729, 16
      %v1827 = vrot.slane %v1825, 5
      %v1828 = vsel %vm759, %v1823, %v1827
      %v1829 = vshrl.u32 %v1729, 16
      %v1831 = vrot.slane %v1829, 4
      %v1832 = vor.u32 %v1831, %v1827
      %v1833 = vrot.slane %v1832, 4
      %v1835 = vshll.u32 %v1730, 16
      %v1837 = vrot.slane %v1835, 5
      %v1838 = vsel %vm759, %v1833, %v1837
      %v1840 = vshrl.u32 %v1731, 16
      %v1842 = vrot.slane %v1840, 4
      %v1843 = vshll.u32 %v1731, 16
      %v1845 = vrot.slane %v1843, 5
      %v1846 = vor.u32 %v1842, %v1845
      %v1847 = vrot.slane %v1846, 4
      %v1849 = vshll.u32 %v1732, 16
      %v1851 = vrot.slane %v1849, 5
      %v1852 = vsel %vm759, %v1847, %v1851
      %v1853 = vshrl.u32 %v1732, 16
      %v1855 = vrot.slane %v1853, 4
      %v1856 = vor.u32 %v1855, %v1851
      %v1857 = vrot.slane %v1856, 4
      %v1859 = vshll.u32 %v1733, 16
      %v1861 = vrot.slane %v1859, 5
      %v1862 = vsel %vm759, %v1857, %v1861
      %v1864 = vshrl.u32 %v1734, 16
      %v1866 = vrot.slane %v1864, 4
      %v1867 = vshll.u32 %v1734, 16
      %v1869 = vrot.slane %v1867, 5
      %v1870 = vor.u32 %v1866, %v1869
      %v1871 = vrot.slane %v1870, 4
      %v1873 = vshll.u32 %v1735, 16
      %v1875 = vrot.slane %v1873, 5
      %v1876 = vsel %vm759, %v1871, %v1875
      %v1877 = vshrl.u32 %v1735, 16
      %v1879 = vrot.slane %v1877, 4
      %v1880 = vor.u32 %v1879, %v1875
      %v1881 = vrot.slane %v1880, 4
      %v1883 = vshll.u32 %v1736, 16
      %v1885 = vrot.slane %v1883, 5
      %v1886 = vsel %vm759, %v1881, %v1885
      %v1888 = vshrl.u32 %v1737, 16
      %v1890 = vrot.slane %v1888, 4
      %v1891 = vshll.u32 %v1737, 16
      %v1893 = vrot.slane %v1891, 5
      %v1894 = vor.u32 %v1890, %v1893
      %v1895 = vrot.slane %v1894, 4
      %v1897 = vshll.u32 %v1738, 16
      %v1899 = vrot.slane %v1897, 5
      %v1900 = vsel %vm759, %v1895, %v1899
      %v1901 = vshrl.u32 %v1738, 16
      %v1903 = vrot.slane %v1901, 4
      %v1904 = vor.u32 %v1903, %v1899
      %v1905 = vrot.slane %v1904, 4
      %v1907 = vshll.u32 %v1739, 16
      %v1909 = vrot.slane %v1907, 5
      %v1910 = vsel %vm759, %v1905, %v1909
      %v1912 = vshrl.u32 %v1740, 16
      %v1914 = vrot.slane %v1912, 4
      %v1915 = vshll.u32 %v1740, 16
      %v1917 = vrot.slane %v1915, 5
      %v1918 = vor.u32 %v1914, %v1917
      %v1919 = vrot.slane %v1918, 4
      %v1921 = vshll.u32 %v1741, 16
      %v1923 = vrot.slane %v1921, 5
      %v1924 = vsel %vm759, %v1919, %v1923
      %v1925 = vshrl.u32 %v1741, 16
      %v1927 = vrot.slane %v1925, 4
      %v1928 = vor.u32 %v1927, %v1923
      %v1929 = vrot.slane %v1928, 4
      %v1931 = vshll.u32 %v1742, 16
      %v1933 = vrot.slane %v1931, 5
      %v1934 = vsel %vm759, %v1929, %v1933
      %s1935 = scalar_lea.vmem %s1, 16
      %v1936 = vld [vmem:[%s1935] sm:$0xf]
      %v1937 = vunpack.c.l.b16 %v1756
      %v1938 = vunpack.c.l.b16 %v1766
      %v1939 = vunpack.c.l.b16 %v1780
      %v1940 = vunpack.c.l.b16 %v1790
      %v1941 = vunpack.c.l.b16 %v1804
      %v1942 = vunpack.c.l.b16 %v1814
      %v1943 = vunpack.c.l.b16 %v1828
      %v1944 = vunpack.c.l.b16 %v1838
      %v1945 = vunpack.c.l.b16 %v1852
      %v1946 = vunpack.c.l.b16 %v1862
      %v1947 = vunpack.c.l.b16 %v1876
      %v1948 = vunpack.c.l.b16 %v1886
      %v1949 = vunpack.c.l.b16 %v1900
      %v1950 = vunpack.c.l.b16 %v1910
      %v1951 = vunpack.c.l.b16 %v1924
      %v1952 = vunpack.c.l.b16 %v1934
      %v1953 = vpack.c.b16 %v1938, %v1937
      %v1954 = vpack.c.b16 %v1940, %v1939
      %v1955 = vpack.c.b16 %v1942, %v1941
      %v1956 = vpack.c.b16 %v1944, %v1943
      %v1957 = vpack.c.b16 %v1946, %v1945
      %v1958 = vpack.c.b16 %v1948, %v1947
      %v1959 = vpack.c.b16 %v1950, %v1949
      %v1960 = vpack.c.b16 %v1952, %v1951
      %v1962 = vsel %vm978, %v1953, 0
      %v1965 = vsel %vm978, %v1954, 0
      %v1968 = vsel %vm978, %v1955, 0
      %v1971 = vsel %vm978, %v1956, 0
      %v1974 = vsel %vm978, %v1957, 0
      %v1977 = vsel %vm978, %v1958, 0
      %v1980 = vsel %vm978, %v1959, 0
      %v1983 = vsel %vm978, %v1960, 0
      %v1986 = vsel %vm1003, %v1936, 0
      %1988 = vmatprep.subr.bf16.mxu0 0
      %1989 = vmatpush1.bf16.msra.mxu0 %v1986
      %1990 = vmatprep.subr.bf16.mxu0 0
      %1991 = vmatpush1.bf16.msra.mxu0 0
      %1992 = vmatprep.subr.bf16.mxu0 0
      %1993 = vmatpush1.bf16.msra.mxu0 0
      %1994 = vmatprep.subr.bf16.mxu0 0
      %1995 = vmatpush1.bf16.msra.mxu0 0
      %1996 = vmatprep.subr.bf16.mxu0 0
      %1997 = vmatpush1.bf16.msra.mxu0 0
      %1998 = vmatprep.subr.bf16.mxu0 0
      %1999 = vmatpush1.bf16.msra.mxu0 0
      %2000 = vmatprep.subr.bf16.mxu0 0
      %2001 = vmatpush1.bf16.msra.mxu0 0
      %2002 = vmatprep.subr.bf16.mxu0 0
      %2003 = vmatpush1.bf16.msra.mxu0 0
      %2004 = vmatprep.subr.bf16.mxu0 0
      %2005 = vmatpush1.bf16.msra.mxu0 0
      %2006 = vmatprep.subr.bf16.mxu0 0
      %2007 = vmatpush1.bf16.msra.mxu0 0
      %2008 = vmatprep.subr.bf16.mxu0 0
      %2009 = vmatpush1.bf16.msra.mxu0 0
      %2010 = vmatprep.subr.bf16.mxu0 0
      %2011 = vmatpush1.bf16.msra.mxu0 0
      %2012 = vmatprep.subr.bf16.mxu0 0
      %2013 = vmatpush1.bf16.msra.mxu0 0
      %2014 = vmatprep.subr.bf16.mxu0 0
      %2015 = vmatpush1.bf16.msra.mxu0 0
      %2016 = vmatprep.subr.bf16.mxu0 0
      %2017 = vmatpush1.bf16.msra.mxu0 0
      %2018 = vmatprep.subr.bf16.mxu0 0
      %2019 = vmatpush1.bf16.msra.mxu0 0
      %2020 = vmatprep.mubr.bf16.mxu0 0
      %2021 = vmatmul.mubr.bf16.gmra.mrb[0].mxu0 %v1962
      %v2022 = vpop.f32.mrb[0].mxu0
      %v2023 = vadd.f32 0.0, %v2022
      %v2024 = vpop.f32.mrb[0].mxu0
      %v2025 = vpop.f32.mrb[0].mxu0
      %v2026 = vadd.f32 0.0, %v2025
      %v2027 = vpop.f32.mrb[0].mxu0
      %2028 = vmatprep.mubr.bf16.mxu0 0
      %2029 = vmatmul.mubr.bf16.gmra.mrb[0].mxu0 %v1965
      %v2030 = vpop.f32.mrb[0].mxu0
      %v2031 = vadd.f32 0.0, %v2030
      %v2032 = vpop.f32.mrb[0].mxu0
      %v2033 = vpop.f32.mrb[0].mxu0
      %v2034 = vadd.f32 0.0, %v2033
      %v2035 = vpop.f32.mrb[0].mxu0
      %2036 = vmatprep.mubr.bf16.mxu0 0
      %2037 = vmatmul.mubr.bf16.gmra.mrb[0].mxu0 %v1968
      %v2038 = vpop.f32.mrb[0].mxu0
      %v2039 = vadd.f32 0.0, %v2038
      %v2040 = vpop.f32.mrb[0].mxu0
      %v2041 = vpop.f32.mrb[0].mxu0
      %v2042 = vadd.f32 0.0, %v2041
      %v2043 = vpop.f32.mrb[0].mxu0
      %2044 = vmatprep.mubr.bf16.mxu0 0
      %2045 = vmatmul.mubr.bf16.gmra.mrb[0].mxu0 %v1971
      %v2046 = vpop.f32.mrb[0].mxu0
      %v2047 = vadd.f32 0.0, %v2046
      %v2048 = vpop.f32.mrb[0].mxu0
      %v2049 = vpop.f32.mrb[0].mxu0
      %v2050 = vadd.f32 0.0, %v2049
      %v2051 = vpop.f32.mrb[0].mxu0
      %2052 = vmatprep.mubr.bf16.mxu0 0
      %2053 = vmatmul.mubr.bf16.gmra.mrb[0].mxu0 %v1974
      %v2054 = vpop.f32.mrb[0].mxu0
      %v2055 = vadd.f32 0.0, %v2054
      %v2056 = vpop.f32.mrb[0].mxu0
      %v2057 = vpop.f32.mrb[0].mxu0
      %v2058 = vadd.f32 0.0, %v2057
      %v2059 = vpop.f32.mrb[0].mxu0
      %2060 = vmatprep.mubr.bf16.mxu0 0
      %2061 = vmatmul.mubr.bf16.gmra.mrb[0].mxu0 %v1977
      %v2062 = vpop.f32.mrb[0].mxu0
      %v2063 = vadd.f32 0.0, %v2062
      %v2064 = vpop.f32.mrb[0].mxu0
      %v2065 = vpop.f32.mrb[0].mxu0
      %v2066 = vadd.f32 0.0, %v2065
      %v2067 = vpop.f32.mrb[0].mxu0
      %2068 = vmatprep.mubr.bf16.mxu0 0
      %2069 = vmatmul.mubr.bf16.gmra.mrb[0].mxu0 %v1980
      %v2070 = vpop.f32.mrb[0].mxu0
      %v2071 = vadd.f32 0.0, %v2070
      %v2072 = vpop.f32.mrb[0].mxu0
      %v2073 = vpop.f32.mrb[0].mxu0
      %v2074 = vadd.f32 0.0, %v2073
      %v2075 = vpop.f32.mrb[0].mxu0
      %2076 = vmatprep.mubr.bf16.mxu0 0
      %2077 = vmatmul.mubr.bf16.gmra.mrb[0].mxu0 %v1983
      %v2078 = vpop.f32.mrb[0].mxu0
      %v2079 = vadd.f32 0.0, %v2078
      %v2080 = vpop.f32.mrb[0].mxu0
      %v2081 = vpop.f32.mrb[0].mxu0
      %v2082 = vadd.f32 0.0, %v2081
      %v2083 = vpop.f32.mrb[0].mxu0
      %2084 = vdwg.mxu0
      %v2085 = vadd.f32 %v1703, %v2023
      %v2086 = vadd.f32 %v1704, %v2026
      %v2087 = vadd.f32 %v1705, %v2031
      %v2088 = vadd.f32 %v1706, %v2034
      %v2089 = vadd.f32 %v1707, %v2039
      %v2090 = vadd.f32 %v1708, %v2042
      %v2091 = vadd.f32 %v1709, %v2047
      %v2092 = vadd.f32 %v1710, %v2050
      %v2093 = vadd.f32 %v1711, %v2055
      %v2094 = vadd.f32 %v1712, %v2058
      %v2095 = vadd.f32 %v1713, %v2063
      %v2096 = vadd.f32 %v1714, %v2066
      %v2097 = vadd.f32 %v1715, %v2071
      %v2098 = vadd.f32 %v1716, %v2074
      %v2099 = vadd.f32 %v1717, %v2079
      %v2100 = vadd.f32 %v1718, %v2082
      %v2101 = vld [vmem:[%s1520] sm:$0xe]
      %v2102 = vld [vmem:[%s1520 + $0xc] sm:$0xe]
      %v2103 = vld [vmem:[%s1520 + $0x18] sm:$0xe]
      %v2104 = vld [vmem:[%s1520 + $0x24] sm:$0xe]
      %v2105 = vld [vmem:[%s1520 + $0x30] sm:$0xe]
      %v2106 = vld [vmem:[%s1520 + $0x3c] sm:$0xe]
      %v2107 = vld [vmem:[%s1520 + $0x48] sm:$0xe]
      %v2108 = vld [vmem:[%s1520 + $0x54] sm:$0xe]
      %v2133 = vrot.slane %v2101, 5
      %v2134 = vrot.slane %v2133, 4
      %v2135 = vrot.slane %v1720, 5
      %v2136 = vsel %vm1294, %v2134, %v2135
      %v2137 = vrot.slane %v2135, 4
      %v2138 = vrot.slane %v1721, 5
      %v2139 = vsel %vm1294, %v2137, %v2138
      %v2140 = vrot.slane %v2102, 5
      %v2141 = vrot.slane %v2140, 4
      %v2142 = vrot.slane %v1723, 5
      %v2143 = vsel %vm1294, %v2141, %v2142
      %v2144 = vrot.slane %v2142, 4
      %v2145 = vrot.slane %v1724, 5
      %v2146 = vsel %vm1294, %v2144, %v2145
      %v2147 = vrot.slane %v2103, 5
      %v2148 = vrot.slane %v2147, 4
      %v2149 = vrot.slane %v1726, 5
      %v2150 = vsel %vm1294, %v2148, %v2149
      %v2151 = vrot.slane %v2149, 4
      %v2152 = vrot.slane %v1727, 5
      %v2153 = vsel %vm1294, %v2151, %v2152
      %v2154 = vrot.slane %v2104, 5
      %v2155 = vrot.slane %v2154, 4
      %v2156 = vrot.slane %v1729, 5
      %v2157 = vsel %vm1294, %v2155, %v2156
      %v2158 = vrot.slane %v2156, 4
      %v2159 = vrot.slane %v1730, 5
      %v2160 = vsel %vm1294, %v2158, %v2159
      %v2161 = vrot.slane %v2105, 5
      %v2162 = vrot.slane %v2161, 4
      %v2163 = vrot.slane %v1732, 5
      %v2164 = vsel %vm1294, %v2162, %v2163
      %v2165 = vrot.slane %v2163, 4
      %v2166 = vrot.slane %v1733, 5
      %v2167 = vsel %vm1294, %v2165, %v2166
      %v2168 = vrot.slane %v2106, 5
      %v2169 = vrot.slane %v2168, 4
      %v2170 = vrot.slane %v1735, 5
      %v2171 = vsel %vm1294, %v2169, %v2170
      %v2172 = vrot.slane %v2170, 4
      %v2173 = vrot.slane %v1736, 5
      %v2174 = vsel %vm1294, %v2172, %v2173
      %v2175 = vrot.slane %v2107, 5
      %v2176 = vrot.slane %v2175, 4
      %v2177 = vrot.slane %v1738, 5
      %v2178 = vsel %vm1294, %v2176, %v2177
      %v2179 = vrot.slane %v2177, 4
      %v2180 = vrot.slane %v1739, 5
      %v2181 = vsel %vm1294, %v2179, %v2180
      %v2182 = vrot.slane %v2108, 5
      %v2183 = vrot.slane %v2182, 4
      %v2184 = vrot.slane %v1741, 5
      %v2185 = vsel %vm1294, %v2183, %v2184
      %v2186 = vrot.slane %v2184, 4
      %v2187 = vrot.slane %v1742, 5
      %v2188 = vsel %vm1294, %v2186, %v2187
      %s2189 = scalar_lea.vmem %s1, 20
      %v2190 = vld [vmem:[%s2189] sm:$0xf]
      %v2191 = vunpack.c.l.b16 %v2136
      %v2192 = vunpack.c.l.b16 %v2139
      %v2193 = vunpack.c.l.b16 %v2143
      %v2194 = vunpack.c.l.b16 %v2146
      %v2195 = vunpack.c.l.b16 %v2150
      %v2196 = vunpack.c.l.b16 %v2153
      %v2197 = vunpack.c.l.b16 %v2157
      %v2198 = vunpack.c.l.b16 %v2160
      %v2199 = vunpack.c.l.b16 %v2164
      %v2200 = vunpack.c.l.b16 %v2167
      %v2201 = vunpack.c.l.b16 %v2171
      %v2202 = vunpack.c.l.b16 %v2174
      %v2203 = vunpack.c.l.b16 %v2178
      %v2204 = vunpack.c.l.b16 %v2181
      %v2205 = vunpack.c.l.b16 %v2185
      %v2206 = vunpack.c.l.b16 %v2188
      %v2207 = vpack.c.b16 %v2192, %v2191
      %v2208 = vpack.c.b16 %v2194, %v2193
      %v2209 = vpack.c.b16 %v2196, %v2195
      %v2210 = vpack.c.b16 %v2198, %v2197
      %v2211 = vpack.c.b16 %v2200, %v2199
      %v2212 = vpack.c.b16 %v2202, %v2201
      %v2213 = vpack.c.b16 %v2204, %v2203
      %v2214 = vpack.c.b16 %v2206, %v2205
      %v2216 = vsel %vm978, %v2207, 0
      %v2219 = vsel %vm978, %v2208, 0
      %v2222 = vsel %vm978, %v2209, 0
      %v2225 = vsel %vm978, %v2210, 0
      %v2228 = vsel %vm978, %v2211, 0
      %v2231 = vsel %vm978, %v2212, 0
      %v2234 = vsel %vm978, %v2213, 0
      %v2237 = vsel %vm978, %v2214, 0
      %v2240 = vsel %vm1003, %v2190, 0
      %2242 = vmatprep.subr.bf16.mxu0 0
      %2243 = vmatpush1.bf16.msra.mxu0 %v2240
      %2244 = vmatprep.subr.bf16.mxu0 0
      %2245 = vmatpush1.bf16.msra.mxu0 0
      %2246 = vmatprep.subr.bf16.mxu0 0
      %2247 = vmatpush1.bf16.msra.mxu0 0
      %2248 = vmatprep.subr.bf16.mxu0 0
      %2249 = vmatpush1.bf16.msra.mxu0 0
      %2250 = vmatprep.subr.bf16.mxu0 0
      %2251 = vmatpush1.bf16.msra.mxu0 0
      %2252 = vmatprep.subr.bf16.mxu0 0
      %2253 = vmatpush1.bf16.msra.mxu0 0
      %2254 = vmatprep.subr.bf16.mxu0 0
      %2255 = vmatpush1.bf16.msra.mxu0 0
      %2256 = vmatprep.subr.bf16.mxu0 0
      %2257 = vmatpush1.bf16.msra.mxu0 0
      %2258 = vmatprep.subr.bf16.mxu0 0
      %2259 = vmatpush1.bf16.msra.mxu0 0
      %2260 = vmatprep.subr.bf16.mxu0 0
      %2261 = vmatpush1.bf16.msra.mxu0 0
      %2262 = vmatprep.subr.bf16.mxu0 0
      %2263 = vmatpush1.bf16.msra.mxu0 0
      %2264 = vmatprep.subr.bf16.mxu0 0
      %2265 = vmatpush1.bf16.msra.mxu0 0
      %2266 = vmatprep.subr.bf16.mxu0 0
      %2267 = vmatpush1.bf16.msra.mxu0 0
      %2268 = vmatprep.subr.bf16.mxu0 0
      %2269 = vmatpush1.bf16.msra.mxu0 0
      %2270 = vmatprep.subr.bf16.mxu0 0
      %2271 = vmatpush1.bf16.msra.mxu0 0
      %2272 = vmatprep.subr.bf16.mxu0 0
      %2273 = vmatpush1.bf16.msra.mxu0 0
      %2274 = vmatprep.mubr.bf16.mxu0 0
      %2275 = vmatmul.mubr.bf16.gmra.mrb[0].mxu0 %v2216
      %v2276 = vpop.f32.mrb[0].mxu0
      %v2277 = vadd.f32 0.0, %v2276
      %v2278 = vpop.f32.mrb[0].mxu0
      %v2279 = vpop.f32.mrb[0].mxu0
      %v2280 = vadd.f32 0.0, %v2279
      %v2281 = vpop.f32.mrb[0].mxu0
      %2282 = vmatprep.mubr.bf16.mxu0 0
      %2283 = vmatmul.mubr.bf16.gmra.mrb[0].mxu0 %v2219
      %v2284 = vpop.f32.mrb[0].mxu0
      %v2285 = vadd.f32 0.0, %v2284
      %v2286 = vpop.f32.mrb[0].mxu0
      %v2287 = vpop.f32.mrb[0].mxu0
      %v2288 = vadd.f32 0.0, %v2287
      %v2289 = vpop.f32.mrb[0].mxu0
      %2290 = vmatprep.mubr.bf16.mxu0 0
      %2291 = vmatmul.mubr.bf16.gmra.mrb[0].mxu0 %v2222
      %v2292 = vpop.f32.mrb[0].mxu0
      %v2293 = vadd.f32 0.0, %v2292
      %v2294 = vpop.f32.mrb[0].mxu0
      %v2295 = vpop.f32.mrb[0].mxu0
      %v2296 = vadd.f32 0.0, %v2295
      %v2297 = vpop.f32.mrb[0].mxu0
      %2298 = vmatprep.mubr.bf16.mxu0 0
      %2299 = vmatmul.mubr.bf16.gmra.mrb[0].mxu0 %v2225
      %v2300 = vpop.f32.mrb[0].mxu0
      %v2301 = vadd.f32 0.0, %v2300
      %v2302 = vpop.f32.mrb[0].mxu0
      %v2303 = vpop.f32.mrb[0].mxu0
      %v2304 = vadd.f32 0.0, %v2303
      %v2305 = vpop.f32.mrb[0].mxu0
      %2306 = vmatprep.mubr.bf16.mxu0 0
      %2307 = vmatmul.mubr.bf16.gmra.mrb[0].mxu0 %v2228
      %v2308 = vpop.f32.mrb[0].mxu0
      %v2309 = vadd.f32 0.0, %v2308
      %v2310 = vpop.f32.mrb[0].mxu0
      %v2311 = vpop.f32.mrb[0].mxu0
      %v2312 = vadd.f32 0.0, %v2311
      %v2313 = vpop.f32.mrb[0].mxu0
      %2314 = vmatprep.mubr.bf16.mxu0 0
      %2315 = vmatmul.mubr.bf16.gmra.mrb[0].mxu0 %v2231
      %v2316 = vpop.f32.mrb[0].mxu0
      %v2317 = vadd.f32 0.0, %v2316
      %v2318 = vpop.f32.mrb[0].mxu0
      %v2319 = vpop.f32.mrb[0].mxu0
      %v2320 = vadd.f32 0.0, %v2319
      %v2321 = vpop.f32.mrb[0].mxu0
      %2322 = vmatprep.mubr.bf16.mxu0 0
      %2323 = vmatmul.mubr.bf16.gmra.mrb[0].mxu0 %v2234
      %v2324 = vpop.f32.mrb[0].mxu0
      %v2325 = vadd.f32 0.0, %v2324
      %v2326 = vpop.f32.mrb[0].mxu0
      %v2327 = vpop.f32.mrb[0].mxu0
      %v2328 = vadd.f32 0.0, %v2327
      %v2329 = vpop.f32.mrb[0].mxu0
      %2330 = vmatprep.mubr.bf16.mxu0 0
      %2331 = vmatmul.mubr.bf16.gmra.mrb[0].mxu0 %v2237
      %v2332 = vpop.f32.mrb[0].mxu0
      %v2333 = vadd.f32 0.0, %v2332
      %v2334 = vpop.f32.mrb[0].mxu0
      %v2335 = vpop.f32.mrb[0].mxu0
      %v2336 = vadd.f32 0.0, %v2335
      %v2337 = vpop.f32.mrb[0].mxu0
      %2338 = vdwg.mxu0
      %v2339 = vadd.f32 %v2085, %v2277
      %v2340 = vadd.f32 %v2086, %v2280
      %v2341 = vadd.f32 %v2087, %v2285
      %v2342 = vadd.f32 %v2088, %v2288
      %v2343 = vadd.f32 %v2089, %v2293
      %v2344 = vadd.f32 %v2090, %v2296
      %v2345 = vadd.f32 %v2091, %v2301
      %v2346 = vadd.f32 %v2092, %v2304
      %v2347 = vadd.f32 %v2093, %v2309
      %v2348 = vadd.f32 %v2094, %v2312
      %v2349 = vadd.f32 %v2095, %v2317
      %v2350 = vadd.f32 %v2096, %v2320
      %v2351 = vadd.f32 %v2097, %v2325
      %v2352 = vadd.f32 %v2098, %v2328
      %v2353 = vadd.f32 %v2099, %v2333
      %v2354 = vadd.f32 %v2100, %v2336
      %s2355 = sadd.s32 %s195, 2
      %s2356 = smul.u32 %s2355, 3
      %s2357 = smul.addr %s2356, 4
      %s2358 = scalar_lea.vmem [#allocation2], %s2357
      %v2359 = vld [vmem:[%s2358] sm:$0xf]
      %v2360 = vld [vmem:[%s2358 + $0x4] sm:$0xf]
      %v2361 = vld [vmem:[%s2358 + $0xc] sm:$0xf]
      %v2362 = vld [vmem:[%s2358 + $0x10] sm:$0xf]
      %v2363 = vld [vmem:[%s2358 + $0x18] sm:$0xf]
      %v2364 = vld [vmem:[%s2358 + $0x1c] sm:$0xf]
      %v2365 = vld [vmem:[%s2358 + $0x24] sm:$0xf]
      %v2366 = vld [vmem:[%s2358 + $0x28] sm:$0xf]
      %v2367 = vld [vmem:[%s2358 + $0x30] sm:$0xf]
      %v2368 = vld [vmem:[%s2358 + $0x34] sm:$0xf]
      %v2369 = vld [vmem:[%s2358 + $0x3c] sm:$0xf]
      %v2370 = vld [vmem:[%s2358 + $0x40] sm:$0xf]
      %v2371 = vld [vmem:[%s2358 + $0x48] sm:$0xf]
      %v2372 = vld [vmem:[%s2358 + $0x4c] sm:$0xf]
      %v2373 = vld [vmem:[%s2358 + $0x54] sm:$0xf]
      %v2374 = vld [vmem:[%s2358 + $0x58] sm:$0xf]
      %s2375 = scalar_lea.vmem %s1, 24
      %v2376 = vld [vmem:[%s2375] sm:$0xf]
      %v2393 = vunpack.c.l.b16 %v2359
      %v2394 = vunpack.c.l.b16 %v2360
      %v2395 = vunpack.c.l.b16 %v2361
      %v2396 = vunpack.c.l.b16 %v2362
      %v2397 = vunpack.c.l.b16 %v2363
      %v2398 = vunpack.c.l.b16 %v2364
      %v2399 = vunpack.c.l.b16 %v2365
      %v2400 = vunpack.c.l.b16 %v2366
      %v2401 = vunpack.c.l.b16 %v2367
      %v2402 = vunpack.c.l.b16 %v2368
      %v2403 = vunpack.c.l.b16 %v2369
      %v2404 = vunpack.c.l.b16 %v2370
      %v2405 = vunpack.c.l.b16 %v2371
      %v2406 = vunpack.c.l.b16 %v2372
      %v2407 = vunpack.c.l.b16 %v2373
      %v2408 = vunpack.c.l.b16 %v2374
      %v2409 = vpack.c.b16 %v2394, %v2393
      %v2410 = vpack.c.b16 %v2396, %v2395
      %v2411 = vpack.c.b16 %v2398, %v2397
      %v2412 = vpack.c.b16 %v2400, %v2399
      %v2413 = vpack.c.b16 %v2402, %v2401
      %v2414 = vpack.c.b16 %v2404, %v2403
      %v2415 = vpack.c.b16 %v2406, %v2405
      %v2416 = vpack.c.b16 %v2408, %v2407
      %v2418 = vsel %vm978, %v2409, 0
      %v2421 = vsel %vm978, %v2410, 0
      %v2424 = vsel %vm978, %v2411, 0
      %v2427 = vsel %vm978, %v2412, 0
      %v2430 = vsel %vm978, %v2413, 0
      %v2433 = vsel %vm978, %v2414, 0
      %v2436 = vsel %vm978, %v2415, 0
      %v2439 = vsel %vm978, %v2416, 0
      %v2442 = vsel %vm1003, %v2376, 0
      %2444 = vmatprep.subr.bf16.mxu0 0
      %2445 = vmatpush1.bf16.msra.mxu0 %v2442
      %2446 = vmatprep.subr.bf16.mxu0 0
      %2447 = vmatpush1.bf16.msra.mxu0 0
      %2448 = vmatprep.subr.bf16.mxu0 0
      %2449 = vmatpush1.bf16.msra.mxu0 0
      %2450 = vmatprep.subr.bf16.mxu0 0
      %2451 = vmatpush1.bf16.msra.mxu0 0
      %2452 = vmatprep.subr.bf16.mxu0 0
      %2453 = vmatpush1.bf16.msra.mxu0 0
      %2454 = vmatprep.subr.bf16.mxu0 0
      %2455 = vmatpush1.bf16.msra.mxu0 0
      %2456 = vmatprep.subr.bf16.mxu0 0
      %2457 = vmatpush1.bf16.msra.mxu0 0
      %2458 = vmatprep.subr.bf16.mxu0 0
      %2459 = vmatpush1.bf16.msra.mxu0 0
      %2460 = vmatprep.subr.bf16.mxu0 0
      %2461 = vmatpush1.bf16.msra.mxu0 0
      %2462 = vmatprep.subr.bf16.mxu0 0
      %2463 = vmatpush1.bf16.msra.mxu0 0
      %2464 = vmatprep.subr.bf16.mxu0 0
      %2465 = vmatpush1.bf16.msra.mxu0 0
      %2466 = vmatprep.subr.bf16.mxu0 0
      %2467 = vmatpush1.bf16.msra.mxu0 0
      %2468 = vmatprep.subr.bf16.mxu0 0
      %2469 = vmatpush1.bf16.msra.mxu0 0
      %2470 = vmatprep.subr.bf16.mxu0 0
      %2471 = vmatpush1.bf16.msra.mxu0 0
      %2472 = vmatprep.subr.bf16.mxu0 0
      %2473 = vmatpush1.bf16.msra.mxu0 0
      %2474 = vmatprep.subr.bf16.mxu0 0
      %2475 = vmatpush1.bf16.msra.mxu0 0
      %2476 = vmatprep.mubr.bf16.mxu0 0
      %2477 = vmatmul.mubr.bf16.gmra.mrb[0].mxu0 %v2418
      %v2478 = vpop.f32.mrb[0].mxu0
      %v2479 = vadd.f32 0.0, %v2478
      %v2480 = vpop.f32.mrb[0].mxu0
      %v2481 = vpop.f32.mrb[0].mxu0
      %v2482 = vadd.f32 0.0, %v2481
      %v2483 = vpop.f32.mrb[0].mxu0
      %2484 = vmatprep.mubr.bf16.mxu0 0
      %2485 = vmatmul.mubr.bf16.gmra.mrb[0].mxu0 %v2421
      %v2486 = vpop.f32.mrb[0].mxu0
      %v2487 = vadd.f32 0.0, %v2486
      %v2488 = vpop.f32.mrb[0].mxu0
      %v2489 = vpop.f32.mrb[0].mxu0
      %v2490 = vadd.f32 0.0, %v2489
      %v2491 = vpop.f32.mrb[0].mxu0
      %2492 = vmatprep.mubr.bf16.mxu0 0
      %2493 = vmatmul.mubr.bf16.gmra.mrb[0].mxu0 %v2424
      %v2494 = vpop.f32.mrb[0].mxu0
      %v2495 = vadd.f32 0.0, %v2494
      %v2496 = vpop.f32.mrb[0].mxu0
      %v2497 = vpop.f32.mrb[0].mxu0
      %v2498 = vadd.f32 0.0, %v2497
      %v2499 = vpop.f32.mrb[0].mxu0
      %2500 = vmatprep.mubr.bf16.mxu0 0
      %2501 = vmatmul.mubr.bf16.gmra.mrb[0].mxu0 %v2427
      %v2502 = vpop.f32.mrb[0].mxu0
      %v2503 = vadd.f32 0.0, %v2502
      %v2504 = vpop.f32.mrb[0].mxu0
      %v2505 = vpop.f32.mrb[0].mxu0
      %v2506 = vadd.f32 0.0, %v2505
      %v2507 = vpop.f32.mrb[0].mxu0
      %2508 = vmatprep.mubr.bf16.mxu0 0
      %2509 = vmatmul.mubr.bf16.gmra.mrb[0].mxu0 %v2430
      %v2510 = vpop.f32.mrb[0].mxu0
      %v2511 = vadd.f32 0.0, %v2510
      %v2512 = vpop.f32.mrb[0].mxu0
      %v2513 = vpop.f32.mrb[0].mxu0
      %v2514 = vadd.f32 0.0, %v2513
      %v2515 = vpop.f32.mrb[0].mxu0
      %2516 = vmatprep.mubr.bf16.mxu0 0
      %2517 = vmatmul.mubr.bf16.gmra.mrb[0].mxu0 %v2433
      %v2518 = vpop.f32.mrb[0].mxu0
      %v2519 = vadd.f32 0.0, %v2518
      %v2520 = vpop.f32.mrb[0].mxu0
      %v2521 = vpop.f32.mrb[0].mxu0
      %v2522 = vadd.f32 0.0, %v2521
      %v2523 = vpop.f32.mrb[0].mxu0
      %2524 = vmatprep.mubr.bf16.mxu0 0
      %2525 = vmatmul.mubr.bf16.gmra.mrb[0].mxu0 %v2436
      %v2526 = vpop.f32.mrb[0].mxu0
      %v2527 = vadd.f32 0.0, %v2526
      %v2528 = vpop.f32.mrb[0].mxu0
      %v2529 = vpop.f32.mrb[0].mxu0
      %v2530 = vadd.f32 0.0, %v2529
      %v2531 = vpop.f32.mrb[0].mxu0
      %2532 = vmatprep.mubr.bf16.mxu0 0
      %2533 = vmatmul.mubr.bf16.gmra.mrb[0].mxu0 %v2439
      %v2534 = vpop.f32.mrb[0].mxu0
      %v2535 = vadd.f32 0.0, %v2534
      %v2536 = vpop.f32.mrb[0].mxu0
      %v2537 = vpop.f32.mrb[0].mxu0
      %v2538 = vadd.f32 0.0, %v2537
      %v2539 = vpop.f32.mrb[0].mxu0
      %2540 = vdwg.mxu0
      %v2541 = vadd.f32 %v2339, %v2479
      %v2542 = vadd.f32 %v2340, %v2482
      %v2543 = vadd.f32 %v2341, %v2487
      %v2544 = vadd.f32 %v2342, %v2490
      %v2545 = vadd.f32 %v2343, %v2495
      %v2546 = vadd.f32 %v2344, %v2498
      %v2547 = vadd.f32 %v2345, %v2503
      %v2548 = vadd.f32 %v2346, %v2506
      %v2549 = vadd.f32 %v2347, %v2511
      %v2550 = vadd.f32 %v2348, %v2514
      %v2551 = vadd.f32 %v2349, %v2519
      %v2552 = vadd.f32 %v2350, %v2522
      %v2553 = vadd.f32 %v2351, %v2527
      %v2554 = vadd.f32 %v2352, %v2530
      %v2555 = vadd.f32 %v2353, %v2535
      %v2556 = vadd.f32 %v2354, %v2538
      %v2557 = vld [vmem:[%s2358] sm:$0xf]
      %v2558 = vld [vmem:[%s2358 + $0x4] sm:$0xf]
      %v2559 = vld [vmem:[%s2358 + $0x8] sm:$0x1]
      %v2560 = vld [vmem:[%s2358 + $0xc] sm:$0xf]
      %v2561 = vld [vmem:[%s2358 + $0x10] sm:$0xf]
      %v2562 = vld [vmem:[%s2358 + $0x14] sm:$0x1]
      %v2563 = vld [vmem:[%s2358 + $0x18] sm:$0xf]
      %v2564 = vld [vmem:[%s2358 + $0x1c] sm:$0xf]
      %v2565 = vld [vmem:[%s2358 + $0x20] sm:$0x1]
      %v2566 = vld [vmem:[%s2358 + $0x24] sm:$0xf]
      %v2567 = vld [vmem:[%s2358 + $0x28] sm:$0xf]
      %v2568 = vld [vmem:[%s2358 + $0x2c] sm:$0x1]
      %v2569 = vld [vmem:[%s2358 + $0x30] sm:$0xf]
      %v2570 = vld [vmem:[%s2358 + $0x34] sm:$0xf]
      %v2571 = vld [vmem:[%s2358 + $0x38] sm:$0x1]
      %v2572 = vld [vmem:[%s2358 + $0x3c] sm:$0xf]
      %v2573 = vld [vmem:[%s2358 + $0x40] sm:$0xf]
      %v2574 = vld [vmem:[%s2358 + $0x44] sm:$0x1]
      %v2575 = vld [vmem:[%s2358 + $0x48] sm:$0xf]
      %v2576 = vld [vmem:[%s2358 + $0x4c] sm:$0xf]
      %v2577 = vld [vmem:[%s2358 + $0x50] sm:$0x1]
      %v2578 = vld [vmem:[%s2358 + $0x54] sm:$0xf]
      %v2579 = vld [vmem:[%s2358 + $0x58] sm:$0xf]
      %v2580 = vld [vmem:[%s2358 + $0x5c] sm:$0x1]
      %v2582 = vshrl.u32 %v2557, 16
      %v2584 = vrot.slane %v2582, 4
      %v2585 = vshll.u32 %v2557, 16
      %v2587 = vrot.slane %v2585, 5
      %v2588 = vor.u32 %v2584, %v2587
      %v2589 = vrot.slane %v2588, 4
      %v2591 = vshll.u32 %v2558, 16
      %v2593 = vrot.slane %v2591, 5
      %v2594 = vsel %vm759, %v2589, %v2593
      %v2595 = vshrl.u32 %v2558, 16
      %v2597 = vrot.slane %v2595, 4
      %v2598 = vor.u32 %v2597, %v2593
      %v2599 = vrot.slane %v2598, 4
      %v2601 = vshll.u32 %v2559, 16
      %v2603 = vrot.slane %v2601, 5
      %v2604 = vsel %vm759, %v2599, %v2603
      %v2606 = vshrl.u32 %v2560, 16
      %v2608 = vrot.slane %v2606, 4
      %v2609 = vshll.u32 %v2560, 16
      %v2611 = vrot.slane %v2609, 5
      %v2612 = vor.u32 %v2608, %v2611
      %v2613 = vrot.slane %v2612, 4
      %v2615 = vshll.u32 %v2561, 16
      %v2617 = vrot.slane %v2615, 5
      %v2618 = vsel %vm759, %v2613, %v2617
      %v2619 = vshrl.u32 %v2561, 16
      %v2621 = vrot.slane %v2619, 4
      %v2622 = vor.u32 %v2621, %v2617
      %v2623 = vrot.slane %v2622, 4
      %v2625 = vshll.u32 %v2562, 16
      %v2627 = vrot.slane %v2625, 5
      %v2628 = vsel %vm759, %v2623, %v2627
      %v2630 = vshrl.u32 %v2563, 16
      %v2632 = vrot.slane %v2630, 4
      %v2633 = vshll.u32 %v2563, 16
      %v2635 = vrot.slane %v2633, 5
      %v2636 = vor.u32 %v2632, %v2635
      %v2637 = vrot.slane %v2636, 4
      %v2639 = vshll.u32 %v2564, 16
      %v2641 = vrot.slane %v2639, 5
      %v2642 = vsel %vm759, %v2637, %v2641
      %v2643 = vshrl.u32 %v2564, 16
      %v2645 = vrot.slane %v2643, 4
      %v2646 = vor.u32 %v2645, %v2641
      %v2647 = vrot.slane %v2646, 4
      %v2649 = vshll.u32 %v2565, 16
      %v2651 = vrot.slane %v2649, 5
      %v2652 = vsel %vm759, %v2647, %v2651
      %v2654 = vshrl.u32 %v2566, 16
      %v2656 = vrot.slane %v2654, 4
      %v2657 = vshll.u32 %v2566, 16
      %v2659 = vrot.slane %v2657, 5
      %v2660 = vor.u32 %v2656, %v2659
      %v2661 = vrot.slane %v2660, 4
      %v2663 = vshll.u32 %v2567, 16
      %v2665 = vrot.slane %v2663, 5
      %v2666 = vsel %vm759, %v2661, %v2665
      %v2667 = vshrl.u32 %v2567, 16
      %v2669 = vrot.slane %v2667, 4
      %v2670 = vor.u32 %v2669, %v2665
      %v2671 = vrot.slane %v2670, 4
      %v2673 = vshll.u32 %v2568, 16
      %v2675 = vrot.slane %v2673, 5
      %v2676 = vsel %vm759, %v2671, %v2675
      %v2678 = vshrl.u32 %v2569, 16
      %v2680 = vrot.slane %v2678, 4
      %v2681 = vshll.u32 %v2569, 16
      %v2683 = vrot.slane %v2681, 5
      %v2684 = vor.u32 %v2680, %v2683
      %v2685 = vrot.slane %v2684, 4
      %v2687 = vshll.u32 %v2570, 16
      %v2689 = vrot.slane %v2687, 5
      %v2690 = vsel %vm759, %v2685, %v2689
      %v2691 = vshrl.u32 %v2570, 16
      %v2693 = vrot.slane %v2691, 4
      %v2694 = vor.u32 %v2693, %v2689
      %v2695 = vrot.slane %v2694, 4
      %v2697 = vshll.u32 %v2571, 16
      %v2699 = vrot.slane %v2697, 5
      %v2700 = vsel %vm759, %v2695, %v2699
      %v2702 = vshrl.u32 %v2572, 16
      %v2704 = vrot.slane %v2702, 4
      %v2705 = vshll.u32 %v2572, 16
      %v2707 = vrot.slane %v2705, 5
      %v2708 = vor.u32 %v2704, %v2707
      %v2709 = vrot.slane %v2708, 4
      %v2711 = vshll.u32 %v2573, 16
      %v2713 = vrot.slane %v2711, 5
      %v2714 = vsel %vm759, %v2709, %v2713
      %v2715 = vshrl.u32 %v2573, 16
      %v2717 = vrot.slane %v2715, 4
      %v2718 = vor.u32 %v2717, %v2713
      %v2719 = vrot.slane %v2718, 4
      %v2721 = vshll.u32 %v2574, 16
      %v2723 = vrot.slane %v2721, 5
      %v2724 = vsel %vm759, %v2719, %v2723
      %v2726 = vshrl.u32 %v2575, 16
      %v2728 = vrot.slane %v2726, 4
      %v2729 = vshll.u32 %v2575, 16
      %v2731 = vrot.slane %v2729, 5
      %v2732 = vor.u32 %v2728, %v2731
      %v2733 = vrot.slane %v2732, 4
      %v2735 = vshll.u32 %v2576, 16
      %v2737 = vrot.slane %v2735, 5
      %v2738 = vsel %vm759, %v2733, %v2737
      %v2739 = vshrl.u32 %v2576, 16
      %v2741 = vrot.slane %v2739, 4
      %v2742 = vor.u32 %v2741, %v2737
      %v2743 = vrot.slane %v2742, 4
      %v2745 = vshll.u32 %v2577, 16
      %v2747 = vrot.slane %v2745, 5
      %v2748 = vsel %vm759, %v2743, %v2747
      %v2750 = vshrl.u32 %v2578, 16
      %v2752 = vrot.slane %v2750, 4
      %v2753 = vshll.u32 %v2578, 16
      %v2755 = vrot.slane %v2753, 5
      %v2756 = vor.u32 %v2752, %v2755
      %v2757 = vrot.slane %v2756, 4
      %v2759 = vshll.u32 %v2579, 16
      %v2761 = vrot.slane %v2759, 5
      %v2762 = vsel %vm759, %v2757, %v2761
      %v2763 = vshrl.u32 %v2579, 16
      %v2765 = vrot.slane %v2763, 4
      %v2766 = vor.u32 %v2765, %v2761
      %v2767 = vrot.slane %v2766, 4
      %v2769 = vshll.u32 %v2580, 16
      %v2771 = vrot.slane %v2769, 5
      %v2772 = vsel %vm759, %v2767, %v2771
      %s2773 = scalar_lea.vmem %s1, 28
      %v2774 = vld [vmem:[%s2773] sm:$0xf]
      %v2775 = vunpack.c.l.b16 %v2594
      %v2776 = vunpack.c.l.b16 %v2604
      %v2777 = vunpack.c.l.b16 %v2618
      %v2778 = vunpack.c.l.b16 %v2628
      %v2779 = vunpack.c.l.b16 %v2642
      %v2780 = vunpack.c.l.b16 %v2652
      %v2781 = vunpack.c.l.b16 %v2666
      %v2782 = vunpack.c.l.b16 %v2676
      %v2783 = vunpack.c.l.b16 %v2690
      %v2784 = vunpack.c.l.b16 %v2700
      %v2785 = vunpack.c.l.b16 %v2714
      %v2786 = vunpack.c.l.b16 %v2724
      %v2787 = vunpack.c.l.b16 %v2738
      %v2788 = vunpack.c.l.b16 %v2748
      %v2789 = vunpack.c.l.b16 %v2762
      %v2790 = vunpack.c.l.b16 %v2772
      %v2791 = vpack.c.b16 %v2776, %v2775
      %v2792 = vpack.c.b16 %v2778, %v2777
      %v2793 = vpack.c.b16 %v2780, %v2779
      %v2794 = vpack.c.b16 %v2782, %v2781
      %v2795 = vpack.c.b16 %v2784, %v2783
      %v2796 = vpack.c.b16 %v2786, %v2785
      %v2797 = vpack.c.b16 %v2788, %v2787
      %v2798 = vpack.c.b16 %v2790, %v2789
      %v2800 = vsel %vm978, %v2791, 0
      %v2803 = vsel %vm978, %v2792, 0
      %v2806 = vsel %vm978, %v2793, 0
      %v2809 = vsel %vm978, %v2794, 0
      %v2812 = vsel %vm978, %v2795, 0
      %v2815 = vsel %vm978, %v2796, 0
      %v2818 = vsel %vm978, %v2797, 0
      %v2821 = vsel %vm978, %v2798, 0
      %v2824 = vsel %vm1003, %v2774, 0
      %2826 = vmatprep.subr.bf16.mxu0 0
      %2827 = vmatpush1.bf16.msra.mxu0 %v2824
      %2828 = vmatprep.subr.bf16.mxu0 0
      %2829 = vmatpush1.bf16.msra.mxu0 0
      %2830 = vmatprep.subr.bf16.mxu0 0
      %2831 = vmatpush1.bf16.msra.mxu0 0
      %2832 = vmatprep.subr.bf16.mxu0 0
      %2833 = vmatpush1.bf16.msra.mxu0 0
      %2834 = vmatprep.subr.bf16.mxu0 0
      %2835 = vmatpush1.bf16.msra.mxu0 0
      %2836 = vmatprep.subr.bf16.mxu0 0
      %2837 = vmatpush1.bf16.msra.mxu0 0
      %2838 = vmatprep.subr.bf16.mxu0 0
      %2839 = vmatpush1.bf16.msra.mxu0 0
      %2840 = vmatprep.subr.bf16.mxu0 0
      %2841 = vmatpush1.bf16.msra.mxu0 0
      %2842 = vmatprep.subr.bf16.mxu0 0
      %2843 = vmatpush1.bf16.msra.mxu0 0
      %2844 = vmatprep.subr.bf16.mxu0 0
      %2845 = vmatpush1.bf16.msra.mxu0 0
      %2846 = vmatprep.subr.bf16.mxu0 0
      %2847 = vmatpush1.bf16.msra.mxu0 0
      %2848 = vmatprep.subr.bf16.mxu0 0
      %2849 = vmatpush1.bf16.msra.mxu0 0
      %2850 = vmatprep.subr.bf16.mxu0 0
      %2851 = vmatpush1.bf16.msra.mxu0 0
      %2852 = vmatprep.subr.bf16.mxu0 0
      %2853 = vmatpush1.bf16.msra.mxu0 0
      %2854 = vmatprep.subr.bf16.mxu0 0
      %2855 = vmatpush1.bf16.msra.mxu0 0
      %2856 = vmatprep.subr.bf16.mxu0 0
      %2857 = vmatpush1.bf16.msra.mxu0 0
      %2858 = vmatprep.mubr.bf16.mxu0 0
      %2859 = vmatmul.mubr.bf16.gmra.mrb[0].mxu0 %v2800
      %v2860 = vpop.f32.mrb[0].mxu0
      %v2861 = vadd.f32 0.0, %v2860
      %v2862 = vpop.f32.mrb[0].mxu0
      %v2863 = vpop.f32.mrb[0].mxu0
      %v2864 = vadd.f32 0.0, %v2863
      %v2865 = vpop.f32.mrb[0].mxu0
      %2866 = vmatprep.mubr.bf16.mxu0 0
      %2867 = vmatmul.mubr.bf16.gmra.mrb[0].mxu0 %v2803
      %v2868 = vpop.f32.mrb[0].mxu0
      %v2869 = vadd.f32 0.0, %v2868
      %v2870 = vpop.f32.mrb[0].mxu0
      %v2871 = vpop.f32.mrb[0].mxu0
      %v2872 = vadd.f32 0.0, %v2871
      %v2873 = vpop.f32.mrb[0].mxu0
      %2874 = vmatprep.mubr.bf16.mxu0 0
      %2875 = vmatmul.mubr.bf16.gmra.mrb[0].mxu0 %v2806
      %v2876 = vpop.f32.mrb[0].mxu0
      %v2877 = vadd.f32 0.0, %v2876
      %v2878 = vpop.f32.mrb[0].mxu0
      %v2879 = vpop.f32.mrb[0].mxu0
      %v2880 = vadd.f32 0.0, %v2879
      %v2881 = vpop.f32.mrb[0].mxu0
      %2882 = vmatprep.mubr.bf16.mxu0 0
      %2883 = vmatmul.mubr.bf16.gmra.mrb[0].mxu0 %v2809
      %v2884 = vpop.f32.mrb[0].mxu0
      %v2885 = vadd.f32 0.0, %v2884
      %v2886 = vpop.f32.mrb[0].mxu0
      %v2887 = vpop.f32.mrb[0].mxu0
      %v2888 = vadd.f32 0.0, %v2887
      %v2889 = vpop.f32.mrb[0].mxu0
      %2890 = vmatprep.mubr.bf16.mxu0 0
      %2891 = vmatmul.mubr.bf16.gmra.mrb[0].mxu0 %v2812
      %v2892 = vpop.f32.mrb[0].mxu0
      %v2893 = vadd.f32 0.0, %v2892
      %v2894 = vpop.f32.mrb[0].mxu0
      %v2895 = vpop.f32.mrb[0].mxu0
      %v2896 = vadd.f32 0.0, %v2895
      %v2897 = vpop.f32.mrb[0].mxu0
      %2898 = vmatprep.mubr.bf16.mxu0 0
      %2899 = vmatmul.mubr.bf16.gmra.mrb[0].mxu0 %v2815
      %v2900 = vpop.f32.mrb[0].mxu0
      %v2901 = vadd.f32 0.0, %v2900
      %v2902 = vpop.f32.mrb[0].mxu0
      %v2903 = vpop.f32.mrb[0].mxu0
      %v2904 = vadd.f32 0.0, %v2903
      %v2905 = vpop.f32.mrb[0].mxu0
      %2906 = vmatprep.mubr.bf16.mxu0 0
      %2907 = vmatmul.mubr.bf16.gmra.mrb[0].mxu0 %v2818
      %v2908 = vpop.f32.mrb[0].mxu0
      %v2909 = vadd.f32 0.0, %v2908
      %v2910 = vpop.f32.mrb[0].mxu0
      %v2911 = vpop.f32.mrb[0].mxu0
      %v2912 = vadd.f32 0.0, %v2911
      %v2913 = vpop.f32.mrb[0].mxu0
      %2914 = vmatprep.mubr.bf16.mxu0 0
      %2915 = vmatmul.mubr.bf16.gmra.mrb[0].mxu0 %v2821
      %v2916 = vpop.f32.mrb[0].mxu0
      %v2917 = vadd.f32 0.0, %v2916
      %v2918 = vpop.f32.mrb[0].mxu0
      %v2919 = vpop.f32.mrb[0].mxu0
      %v2920 = vadd.f32 0.0, %v2919
      %v2921 = vpop.f32.mrb[0].mxu0
      %2922 = vdwg.mxu0
      %v2923 = vadd.f32 %v2541, %v2861
      %v2924 = vadd.f32 %v2542, %v2864
      %v2925 = vadd.f32 %v2543, %v2869
      %v2926 = vadd.f32 %v2544, %v2872
      %v2927 = vadd.f32 %v2545, %v2877
      %v2928 = vadd.f32 %v2546, %v2880
      %v2929 = vadd.f32 %v2547, %v2885
      %v2930 = vadd.f32 %v2548, %v2888
      %v2931 = vadd.f32 %v2549, %v2893
      %v2932 = vadd.f32 %v2550, %v2896
      %v2933 = vadd.f32 %v2551, %v2901
      %v2934 = vadd.f32 %v2552, %v2904
      %v2935 = vadd.f32 %v2553, %v2909
      %v2936 = vadd.f32 %v2554, %v2912
      %v2937 = vadd.f32 %v2555, %v2917
      %v2938 = vadd.f32 %v2556, %v2920
      %v2939 = vld [vmem:[%s2358] sm:$0xe]
      %v2940 = vld [vmem:[%s2358 + $0xc] sm:$0xe]
      %v2941 = vld [vmem:[%s2358 + $0x18] sm:$0xe]
      %v2942 = vld [vmem:[%s2358 + $0x24] sm:$0xe]
      %v2943 = vld [vmem:[%s2358 + $0x30] sm:$0xe]
      %v2944 = vld [vmem:[%s2358 + $0x3c] sm:$0xe]
      %v2945 = vld [vmem:[%s2358 + $0x48] sm:$0xe]
      %v2946 = vld [vmem:[%s2358 + $0x54] sm:$0xe]
      %v2971 = vrot.slane %v2939, 5
      %v2972 = vrot.slane %v2971, 4
      %v2973 = vrot.slane %v2558, 5
      %v2974 = vsel %vm1294, %v2972, %v2973
      %v2975 = vrot.slane %v2973, 4
      %v2976 = vrot.slane %v2559, 5
      %v2977 = vsel %vm1294, %v2975, %v2976
      %v2978 = vrot.slane %v2940, 5
      %v2979 = vrot.slane %v2978, 4
      %v2980 = vrot.slane %v2561, 5
      %v2981 = vsel %vm1294, %v2979, %v2980
      %v2982 = vrot.slane %v2980, 4
      %v2983 = vrot.slane %v2562, 5
      %v2984 = vsel %vm1294, %v2982, %v2983
      %v2985 = vrot.slane %v2941, 5
      %v2986 = vrot.slane %v2985, 4
      %v2987 = vrot.slane %v2564, 5
      %v2988 = vsel %vm1294, %v2986, %v2987
      %v2989 = vrot.slane %v2987, 4
      %v2990 = vrot.slane %v2565, 5
      %v2991 = vsel %vm1294, %v2989, %v2990
      %v2992 = vrot.slane %v2942, 5
      %v2993 = vrot.slane %v2992, 4
      %v2994 = vrot.slane %v2567, 5
      %v2995 = vsel %vm1294, %v2993, %v2994
      %v2996 = vrot.slane %v2994, 4
      %v2997 = vrot.slane %v2568, 5
      %v2998 = vsel %vm1294, %v2996, %v2997
      %v2999 = vrot.slane %v2943, 5
      %v3000 = vrot.slane %v2999, 4
      %v3001 = vrot.slane %v2570, 5
      %v3002 = vsel %vm1294, %v3000, %v3001
      %v3003 = vrot.slane %v3001, 4
      %v3004 = vrot.slane %v2571, 5
      %v3005 = vsel %vm1294, %v3003, %v3004
      %v3006 = vrot.slane %v2944, 5
      %v3007 = vrot.slane %v3006, 4
      %v3008 = vrot.slane %v2573, 5
      %v3009 = vsel %vm1294, %v3007, %v3008
      %v3010 = vrot.slane %v3008, 4
      %v3011 = vrot.slane %v2574, 5
      %v3012 = vsel %vm1294, %v3010, %v3011
      %v3013 = vrot.slane %v2945, 5
      %v3014 = vrot.slane %v3013, 4
      %v3015 = vrot.slane %v2576, 5
      %v3016 = vsel %vm1294, %v3014, %v3015
      %v3017 = vrot.slane %v3015, 4
      %v3018 = vrot.slane %v2577, 5
      %v3019 = vsel %vm1294, %v3017, %v3018
      %v3020 = vrot.slane %v2946, 5
      %v3021 = vrot.slane %v3020, 4
      %v3022 = vrot.slane %v2579, 5
      %v3023 = vsel %vm1294, %v3021, %v3022
      %v3024 = vrot.slane %v3022, 4
      %v3025 = vrot.slane %v2580, 5
      %v3026 = vsel %vm1294, %v3024, %v3025
      %s3027 = scalar_lea.vmem %s1, 32
      %v3028 = vld [vmem:[%s3027] sm:$0xf]
      %v3029 = vunpack.c.l.b16 %v2974
      %v3030 = vunpack.c.l.b16 %v2977
      %v3031 = vunpack.c.l.b16 %v2981
      %v3032 = vunpack.c.l.b16 %v2984
      %v3033 = vunpack.c.l.b16 %v2988
      %v3034 = vunpack.c.l.b16 %v2991
      %v3035 = vunpack.c.l.b16 %v2995
      %v3036 = vunpack.c.l.b16 %v2998
      %v3037 = vunpack.c.l.b16 %v3002
      %v3038 = vunpack.c.l.b16 %v3005
      %v3039 = vunpack.c.l.b16 %v3009
      %v3040 = vunpack.c.l.b16 %v3012
      %v3041 = vunpack.c.l.b16 %v3016
      %v3042 = vunpack.c.l.b16 %v3019
      %v3043 = vunpack.c.l.b16 %v3023
      %v3044 = vunpack.c.l.b16 %v3026
      %v3045 = vpack.c.b16 %v3030, %v3029
      %v3046 = vpack.c.b16 %v3032, %v3031
      %v3047 = vpack.c.b16 %v3034, %v3033
      %v3048 = vpack.c.b16 %v3036, %v3035
      %v3049 = vpack.c.b16 %v3038, %v3037
      %v3050 = vpack.c.b16 %v3040, %v3039
      %v3051 = vpack.c.b16 %v3042, %v3041
      %v3052 = vpack.c.b16 %v3044, %v3043
      %v3054 = vsel %vm978, %v3045, 0
      %v3057 = vsel %vm978, %v3046, 0
      %v3060 = vsel %vm978, %v3047, 0
      %v3063 = vsel %vm978, %v3048, 0
      %v3066 = vsel %vm978, %v3049, 0
      %v3069 = vsel %vm978, %v3050, 0
      %v3072 = vsel %vm978, %v3051, 0
      %v3075 = vsel %vm978, %v3052, 0
      %v3078 = vsel %vm1003, %v3028, 0
      %3080 = vmatprep.subr.bf16.mxu0 0
      %3081 = vmatpush1.bf16.msra.mxu0 %v3078
      %3082 = vmatprep.subr.bf16.mxu0 0
      %3083 = vmatpush1.bf16.msra.mxu0 0
      %3084 = vmatprep.subr.bf16.mxu0 0
      %3085 = vmatpush1.bf16.msra.mxu0 0
      %3086 = vmatprep.subr.bf16.mxu0 0
      %3087 = vmatpush1.bf16.msra.mxu0 0
      %3088 = vmatprep.subr.bf16.mxu0 0
      %3089 = vmatpush1.bf16.msra.mxu0 0
      %3090 = vmatprep.subr.bf16.mxu0 0
      %3091 = vmatpush1.bf16.msra.mxu0 0
      %3092 = vmatprep.subr.bf16.mxu0 0
      %3093 = vmatpush1.bf16.msra.mxu0 0
      %3094 = vmatprep.subr.bf16.mxu0 0
      %3095 = vmatpush1.bf16.msra.mxu0 0
      %3096 = vmatprep.subr.bf16.mxu0 0
      %3097 = vmatpush1.bf16.msra.mxu0 0
      %3098 = vmatprep.subr.bf16.mxu0 0
      %3099 = vmatpush1.bf16.msra.mxu0 0
      %3100 = vmatprep.subr.bf16.mxu0 0
      %3101 = vmatpush1.bf16.msra.mxu0 0
      %3102 = vmatprep.subr.bf16.mxu0 0
      %3103 = vmatpush1.bf16.msra.mxu0 0
      %3104 = vmatprep.subr.bf16.mxu0 0
      %3105 = vmatpush1.bf16.msra.mxu0 0
      %3106 = vmatprep.subr.bf16.mxu0 0
      %3107 = vmatpush1.bf16.msra.mxu0 0
      %3108 = vmatprep.subr.bf16.mxu0 0
      %3109 = vmatpush1.bf16.msra.mxu0 0
      %3110 = vmatprep.subr.bf16.mxu0 0
      %3111 = vmatpush1.bf16.msra.mxu0 0
      %3112 = vmatprep.mubr.bf16.mxu0 0
      %3113 = vmatmul.mubr.bf16.gmra.mrb[0].mxu0 %v3054
      %v3114 = vpop.f32.mrb[0].mxu0
      %v3115 = vadd.f32 0.0, %v3114
      %v3116 = vpop.f32.mrb[0].mxu0
      %v3117 = vpop.f32.mrb[0].mxu0
      %v3118 = vadd.f32 0.0, %v3117
      %v3119 = vpop.f32.mrb[0].mxu0
      %3120 = vmatprep.mubr.bf16.mxu0 0
      %3121 = vmatmul.mubr.bf16.gmra.mrb[0].mxu0 %v3057
      %v3122 = vpop.f32.mrb[0].mxu0
      %v3123 = vadd.f32 0.0, %v3122
      %v3124 = vpop.f32.mrb[0].mxu0
      %v3125 = vpop.f32.mrb[0].mxu0
      %v3126 = vadd.f32 0.0, %v3125
      %v3127 = vpop.f32.mrb[0].mxu0
      %3128 = vmatprep.mubr.bf16.mxu0 0
      %3129 = vmatmul.mubr.bf16.gmra.mrb[0].mxu0 %v3060
      %v3130 = vpop.f32.mrb[0].mxu0
      %v3131 = vadd.f32 0.0, %v3130
      %v3132 = vpop.f32.mrb[0].mxu0
      %v3133 = vpop.f32.mrb[0].mxu0
      %v3134 = vadd.f32 0.0, %v3133
      %v3135 = vpop.f32.mrb[0].mxu0
      %3136 = vmatprep.mubr.bf16.mxu0 0
      %3137 = vmatmul.mubr.bf16.gmra.mrb[0].mxu0 %v3063
      %v3138 = vpop.f32.mrb[0].mxu0
      %v3139 = vadd.f32 0.0, %v3138
      %v3140 = vpop.f32.mrb[0].mxu0
      %v3141 = vpop.f32.mrb[0].mxu0
      %v3142 = vadd.f32 0.0, %v3141
      %v3143 = vpop.f32.mrb[0].mxu0
      %3144 = vmatprep.mubr.bf16.mxu0 0
      %3145 = vmatmul.mubr.bf16.gmra.mrb[0].mxu0 %v3066
      %v3146 = vpop.f32.mrb[0].mxu0
      %v3147 = vadd.f32 0.0, %v3146
      %v3148 = vpop.f32.mrb[0].mxu0
      %v3149 = vpop.f32.mrb[0].mxu0
      %v3150 = vadd.f32 0.0, %v3149
      %v3151 = vpop.f32.mrb[0].mxu0
      %3152 = vmatprep.mubr.bf16.mxu0 0
      %3153 = vmatmul.mubr.bf16.gmra.mrb[0].mxu0 %v3069
      %v3154 = vpop.f32.mrb[0].mxu0
      %v3155 = vadd.f32 0.0, %v3154
      %v3156 = vpop.f32.mrb[0].mxu0
      %v3157 = vpop.f32.mrb[0].mxu0
      %v3158 = vadd.f32 0.0, %v3157
      %v3159 = vpop.f32.mrb[0].mxu0
      %3160 = vmatprep.mubr.bf16.mxu0 0
      %3161 = vmatmul.mubr.bf16.gmra.mrb[0].mxu0 %v3072
      %v3162 = vpop.f32.mrb[0].mxu0
      %v3163 = vadd.f32 0.0, %v3162
      %v3164 = vpop.f32.mrb[0].mxu0
      %v3165 = vpop.f32.mrb[0].mxu0
      %v3166 = vadd.f32 0.0, %v3165
      %v3167 = vpop.f32.mrb[0].mxu0
      %3168 = vmatprep.mubr.bf16.mxu0 0
      %3169 = vmatmul.mubr.bf16.gmra.mrb[0].mxu0 %v3075
      %v3170 = vpop.f32.mrb[0].mxu0
      %v3171 = vadd.f32 0.0, %v3170
      %v3172 = vpop.f32.mrb[0].mxu0
      %v3173 = vpop.f32.mrb[0].mxu0
      %v3174 = vadd.f32 0.0, %v3173
      %v3175 = vpop.f32.mrb[0].mxu0
      %3176 = vdwg.mxu0
      %v3177 = vadd.f32 %v2923, %v3115
      %v3178 = vadd.f32 %v2924, %v3118
      %v3179 = vadd.f32 %v2925, %v3123
      %v3180 = vadd.f32 %v2926, %v3126
      %v3181 = vadd.f32 %v2927, %v3131
      %v3182 = vadd.f32 %v2928, %v3134
      %v3183 = vadd.f32 %v2929, %v3139
      %v3184 = vadd.f32 %v2930, %v3142
      %v3185 = vadd.f32 %v2931, %v3147
      %v3186 = vadd.f32 %v2932, %v3150
      %v3187 = vadd.f32 %v2933, %v3155
      %v3188 = vadd.f32 %v2934, %v3158
      %v3189 = vadd.f32 %v2935, %v3163
      %v3190 = vadd.f32 %v2936, %v3166
      %v3191 = vadd.f32 %v2937, %v3171
      %v3192 = vadd.f32 %v2938, %v3174
      %v3193 = vld [vmem:[%s2] sm:$0x1]
      %v3195 = vlaneseq
      %v3196 = vshrl.u32 %v3195, 7
      %v3197 = vsub.s32 0, %v3196
      %v3198 = vrot.slane %v3193, %v3197
      %v3200 = vadd.f32 %v3177, %v3198
      %v3201 = vadd.f32 %v3178, %v3198
      %v3202 = vadd.f32 %v3179, %v3198
      %v3203 = vadd.f32 %v3180, %v3198
      %v3204 = vadd.f32 %v3181, %v3198
      %v3205 = vadd.f32 %v3182, %v3198
      %v3206 = vadd.f32 %v3183, %v3198
      %v3207 = vadd.f32 %v3184, %v3198
      %v3208 = vadd.f32 %v3185, %v3198
      %v3209 = vadd.f32 %v3186, %v3198
      %v3210 = vadd.f32 %v3187, %v3198
      %v3211 = vadd.f32 %v3188, %v3198
      %v3212 = vadd.f32 %v3189, %v3198
      %v3213 = vadd.f32 %v3190, %v3198
      %v3214 = vadd.f32 %v3191, %v3198
      %v3215 = vadd.f32 %v3192, %v3198
      %vm3216 = vcmp.ge.f32.partialorder %v3200, 0.0
      %vm3217 = vcmp.ge.f32.partialorder %v3201, 0.0
      %vm3218 = vcmp.ge.f32.partialorder %v3202, 0.0
      %vm3219 = vcmp.ge.f32.partialorder %v3203, 0.0
      %vm3220 = vcmp.ge.f32.partialorder %v3204, 0.0
      %vm3221 = vcmp.ge.f32.partialorder %v3205, 0.0
      %vm3222 = vcmp.ge.f32.partialorder %v3206, 0.0
      %vm3223 = vcmp.ge.f32.partialorder %v3207, 0.0
      %vm3224 = vcmp.ge.f32.partialorder %v3208, 0.0
      %vm3225 = vcmp.ge.f32.partialorder %v3209, 0.0
      %vm3226 = vcmp.ge.f32.partialorder %v3210, 0.0
      %vm3227 = vcmp.ge.f32.partialorder %v3211, 0.0
      %vm3228 = vcmp.ge.f32.partialorder %v3212, 0.0
      %vm3229 = vcmp.ge.f32.partialorder %v3213, 0.0
      %vm3230 = vcmp.ge.f32.partialorder %v3214, 0.0
      %vm3231 = vcmp.ge.f32.partialorder %v3215, 0.0
      %v3232 = vmul.f32 %v3200, 0.1
      %v3233 = vmul.f32 %v3201, 0.1
      %v3234 = vmul.f32 %v3202, 0.1
      %v3235 = vmul.f32 %v3203, 0.1
      %v3236 = vmul.f32 %v3204, 0.1
      %v3237 = vmul.f32 %v3205, 0.1
      %v3238 = vmul.f32 %v3206, 0.1
      %v3239 = vmul.f32 %v3207, 0.1
      %v3240 = vmul.f32 %v3208, 0.1
      %v3241 = vmul.f32 %v3209, 0.1
      %v3242 = vmul.f32 %v3210, 0.1
      %v3243 = vmul.f32 %v3211, 0.1
      %v3244 = vmul.f32 %v3212, 0.1
      %v3245 = vmul.f32 %v3213, 0.1
      %v3246 = vmul.f32 %v3214, 0.1
      %v3247 = vmul.f32 %v3215, 0.1
      %v3248 = vsel %vm3216, %v3200, %v3232
      %v3249 = vsel %vm3217, %v3201, %v3233
      %v3250 = vsel %vm3218, %v3202, %v3234
      %v3251 = vsel %vm3219, %v3203, %v3235
      %v3252 = vsel %vm3220, %v3204, %v3236
      %v3253 = vsel %vm3221, %v3205, %v3237
      %v3254 = vsel %vm3222, %v3206, %v3238
      %v3255 = vsel %vm3223, %v3207, %v3239
      %v3256 = vsel %vm3224, %v3208, %v3240
      %v3257 = vsel %vm3225, %v3209, %v3241
      %v3258 = vsel %vm3226, %v3210, %v3242
      %v3259 = vsel %vm3227, %v3211, %v3243
      %v3260 = vsel %vm3228, %v3212, %v3244
      %v3261 = vsel %vm3229, %v3213, %v3245
      %v3262 = vsel %vm3230, %v3214, %v3246
      %v3263 = vsel %vm3231, %v3215, %v3247
      %v3264 = vpack.c.bf16 %v3249, %v3248
      %v3265 = vpack.c.bf16 %v3251, %v3250
      %v3266 = vpack.c.bf16 %v3253, %v3252
      %v3267 = vpack.c.bf16 %v3255, %v3254
      %v3268 = vpack.c.bf16 %v3257, %v3256
      %v3269 = vpack.c.bf16 %v3259, %v3258
      %v3270 = vpack.c.bf16 %v3261, %v3260
      %v3271 = vpack.c.bf16 %v3263, %v3262
      %v3280 = vunpack.c.l.b16 %v3264
      %v3281 = vunpack.c.h.b16 %v3264
      %v3282 = vunpack.c.l.b16 %v3265
      %v3283 = vunpack.c.h.b16 %v3265
      %v3284 = vunpack.c.l.b16 %v3266
      %v3285 = vunpack.c.h.b16 %v3266
      %v3286 = vunpack.c.l.b16 %v3267
      %v3287 = vunpack.c.h.b16 %v3267
      %v3288 = vunpack.c.l.b16 %v3268
      %v3289 = vunpack.c.h.b16 %v3268
      %v3290 = vunpack.c.l.b16 %v3269
      %v3291 = vunpack.c.h.b16 %v3269
      %v3292 = vunpack.c.l.b16 %v3270
      %v3293 = vunpack.c.h.b16 %v3270
      %v3294 = vunpack.c.l.b16 %v3271
      %v3295 = vunpack.c.h.b16 %v3271
      %v3296 = vpack.c.b16 %v3280, %v3280
      %v3297 = vpack.c.b16 %v3281, %v3281
      %v3298 = vpack.c.b16 %v3282, %v3282
      %v3299 = vpack.c.b16 %v3283, %v3283
      %v3300 = vpack.c.b16 %v3284, %v3284
      %v3301 = vpack.c.b16 %v3285, %v3285
      %v3302 = vpack.c.b16 %v3286, %v3286
      %v3303 = vpack.c.b16 %v3287, %v3287
      %v3304 = vpack.c.b16 %v3288, %v3288
      %v3305 = vpack.c.b16 %v3289, %v3289
      %v3306 = vpack.c.b16 %v3290, %v3290
      %v3307 = vpack.c.b16 %v3291, %v3291
      %v3308 = vpack.c.b16 %v3292, %v3292
      %v3309 = vpack.c.b16 %v3293, %v3293
      %v3310 = vpack.c.b16 %v3294, %v3294
      %v3311 = vpack.c.b16 %v3295, %v3295
      %3328 = vst [vmem:[%s190] sm:$0xf] %v3296
      %3329 = vst [vmem:[%s190 + $0x4] sm:$0xf] %v3297
      %3330 = vst [vmem:[%s190 + $0x8] sm:$0xf] %v3298
      %3331 = vst [vmem:[%s190 + $0xc] sm:$0xf] %v3299
      %3332 = vst [vmem:[%s190 + $0x10] sm:$0xf] %v3300
      %3333 = vst [vmem:[%s190 + $0x14] sm:$0xf] %v3301
      %3334 = vst [vmem:[%s190 + $0x18] sm:$0xf] %v3302
      %3335 = vst [vmem:[%s190 + $0x1c] sm:$0xf] %v3303
      %3336 = vst [vmem:[%s190 + $0x20] sm:$0xf] %v3304
      %3337 = vst [vmem:[%s190 + $0x24] sm:$0xf] %v3305
      %3338 = vst [vmem:[%s190 + $0x28] sm:$0xf] %v3306
      %3339 = vst [vmem:[%s190 + $0x2c] sm:$0xf] %v3307
      %3340 = vst [vmem:[%s190 + $0x30] sm:$0xf] %v3308
      %3341 = vst [vmem:[%s190 + $0x34] sm:$0xf] %v3309
      %3342 = vst [vmem:[%s190 + $0x38] sm:$0xf] %v3310
      %3343 = vst [vmem:[%s190 + $0x3c] sm:$0xf] %v3311
      %s3344 = smul.u32 %s18, 2
      %s3345 = sadd.s32 %s3344, %s19
      %s3346 = smul.u32 16, %s3345
      %p3347 = scmp.lt.s32.totalorder %s3346, 63
      %s3348 = scalar_select %p3347, %s3346, 63
      %s3349 = smul.addr %s3348, 4
      %s3350 = scalar_lea.vmem %s3, %s3349
      // Predicated region
      $region37: #{_lambda_.6} parent=31 // pred_check
        %p3351 = pneg %p116
      $region38: #{_lambda_.6} parent=31 // pred_check_branch
        %3353 = sbr.rel (%p3351) target = $region40
      $region39: #{_lambda_.6} parent=31 // pred_region
        %s3354 = smul.u32 %s18, 2
        %s3355 = sadd.s32 %s3354, %s19
        %s3356 = smul.u32 16, %s3355
      $region40: #{_lambda_.6} parent=31 // pred_fallthru
        _
    $region32: #{_lambda_.6} parent=5 // pred_fallthru
      _
    %p3357 = scmp.le.s32.totalorder 2, %s9
    // Predicated region
    $region41: #{_lambda_.6} parent=5 // pred_check
      %p3358 = pneg %p3357
    $region42: #{_lambda_.6} parent=5 // pred_check_branch
      %3360 = sbr.rel (%p3358) target = $region44
    $region43: #{_lambda_.6} parent=5 // pred_region
      %s3361 = ssub.s32 %s9, 2
      // Predicated region
      $region45: #{_lambda_.6} parent=43 // pred_check
        %p3362 = pneg %p122
      $region46: #{_lambda_.6} parent=43 // pred_check_branch
        %3364 = sbr.rel (%p3362) target = $region48
      $region47: #{_lambda_.6} parent=43 // pred_region
        %s3365 = smul.u32 %s20, 2
        %s3366 = sadd.s32 %s3365, %s21
        %s3367 = smul.u32 16, %s3366
        %p3368 = scmp.lt.s32.totalorder %s3367, 63
        %s3369 = scalar_select %p3368, %s3367, 63
        %s3370 = smul.addr %s3369, 4
        %s3371 = scalar_lea.vmem %s3, %s3370
      $region48: #{_lambda_.6} parent=43 // pred_fallthru
        _
    $region44: #{_lambda_.6} parent=5 // pred_fallthru
      _
  $region6: #{_lambda_.6} parent=0 // loop_footer
    %s13 = sadd.s32 1, %s9
  $region7: #{_lambda_.6} parent=0 // loop_footer_branch
    %8 = sbr.rel target = $region3
  $region8: #{_lambda_.6} parent=0 // loop_exit
    _

// kernel: _lambda_.11
$region0: #{_lambda_.11}
  #allocation0 [shape = 'u32[]', space=smem, size = 0x4, offset = 0x4, fixed_abs, tag = 'smem constant byte address 0x4 - core index']
  #allocation1 [shape = 'u32[144,128]{1,0:T(1,128)}', space=vmem, size = 0x12000, scoped, tag = 'internal scratch']
  %s0 = inlined_call_operand.vmem [shape: bf16[512,256], index: 0, kind: input, shape index: {}]
  %s1 = inlined_call_operand.vmem [shape: bf16[1,256,128], index: 1, kind: input, shape index: {}]
  %s2 = inlined_call_operand.vmem [shape: f32[1,128], index: 2, kind: input, shape index: {}]
  %s3 = inlined_call_operand.vmem [shape: f32[4,128], index: 3, kind: input, shape index: {}]
  %s4 = inlined_call_operand.vmem [shape: f32[512,128], index: 4, kind: output, shape index: {}]
  %s5 = sld [smem:[#allocation0]]
  $region49: #{_lambda_.11} parent=0
    _
  %s7 = ssub.s32 1, %s5
  %s8 = scalar_select 0, %s7, %s5
  loop: start=0, step=1, limit=6
  $region2: #{_lambda_.11} parent=0 // loop_pre_header
    _
  $region3: #{_lambda_.11} parent=0 // loop_header
    %s10 = sphi 0, %s14
    %p11 = scmp.ge.s32.totalorder %s10, 6
    %s17 = sphi 0, %s29
    %s18 = sphi 0, %s25
    %s19 = sphi 0, %s17
    %s20 = sphi 0, %s18
    %s21 = sphi 0, %s19
    %s22 = sphi 0, %s20
    %s36 = sphi 0, %s38
    %s39 = sphi 0, %s36
    %s40 = sphi 0, %s39
    %s56 = sphi 0, %s40
    %s60 = sphi 0, %s60
    %s62 = sphi 0, %s60
    %s63 = sphi 0, %s62
    %s77 = sphi 0, %s63
    %s81 = sphi 0, %s81
    %s83 = sphi 0, %s81
    %s84 = sphi 0, %s83
    %s98 = sphi 0, %s84
    %s102 = sphi 0, %s102
    %s104 = sphi 0, %s102
    %s105 = sphi 0, %s104
    %s119 = sphi 0, %s105
    %s129 = sphi 0, %s131
    %s132 = sphi 0, %s129
    %s133 = sphi 0, %s132
    %s149 = sphi 0, %s133
  $region4: #{_lambda_.11} parent=0 // loop_header_branch
    %13 = sbr.rel (%p11) target = $region8
  $region5: #{_lambda_.11} parent=0 // loop_body
    %s15 = ssub.s32 %s10, 1
    %s16 = ssub.s32 %s10, 2
    %s23 = sadd.s32 1, %s18
    %p24 = scmp.ge.s32.totalorder %s23, 2
    %s25 = scalar_select %p24, 0, %s23
    %s26 = sadd.s32 1, %s17
    %s27 = scalar_select %p24, %s26, %s17
    %p28 = scmp.ge.s32.totalorder %s27, 2
    %s29 = scalar_select %p28, 0, %s27
    %s30 = smul.u32 %s17, 2
    %s31 = sadd.s32 %s30, %s18
    %s32 = smul.u32 %s29, 2
    %s33 = sadd.s32 %s32, %s25
    %s34 = ssub.s32 %s31, %s33
    %p35 = scmp.eq.s32.totalorder %s34, 0
    %s37 = sadd.s32 %s36, 1
    %s38 = scalar_select %p35, %s36, %s37
    %p41 = pneg %p35
    %p42 = scmp.eq.s32.totalorder %s10, 3
    %p43 = por %p41, %p42
    %p44 = scmp.ne.s32.totalorder %s36, %s39
    %p45 = scmp.eq.s32.totalorder %s10, 0
    %p46 = por %p44, %p45
    %p47 = scmp.ne.s32.totalorder %s36, %s39
    %p48 = scmp.eq.s32.totalorder %s15, 3
    %p49 = por %p47, %p48
    %p50 = scmp.ne.s32.totalorder %s39, %s40
    %p51 = scmp.eq.s32.totalorder %s15, 0
    %p52 = por %p50, %p51
    %p53 = scmp.ne.s32.totalorder %s39, %s40
    %p54 = scmp.eq.s32.totalorder %s16, 3
    %p55 = por %p53, %p54
    %p57 = scmp.ne.s32.totalorder %s40, %s56
    %p58 = scmp.eq.s32.totalorder %s16, 0
    %p59 = por %p57, %p58
    %s61 = sadd.s32 %s60, 1
    %p64 = scmp.eq.s32.totalorder %s10, 3
    %p65 = scmp.ne.s32.totalorder %s60, %s62
    %p66 = scmp.eq.s32.totalorder %s10, 0
    %p67 = por %p65, %p66
    %p68 = scmp.ne.s32.totalorder %s60, %s62
    %p69 = scmp.eq.s32.totalorder %s15, 3
    %p70 = por %p68, %p69
    %p71 = scmp.ne.s32.totalorder %s62, %s63
    %p72 = scmp.eq.s32.totalorder %s15, 0
    %p73 = por %p71, %p72
    %p74 = scmp.ne.s32.totalorder %s62, %s63
    %p75 = scmp.eq.s32.totalorder %s16, 3
    %p76 = por %p74, %p75
    %p78 = scmp.ne.s32.totalorder %s63, %s77
    %p79 = scmp.eq.s32.totalorder %s16, 0
    %p80 = por %p78, %p79
    %s82 = sadd.s32 %s81, 1
    %p85 = scmp.eq.s32.totalorder %s10, 3
    %p86 = scmp.ne.s32.totalorder %s81, %s83
    %p87 = scmp.eq.s32.totalorder %s10, 0
    %p88 = por %p86, %p87
    %p89 = scmp.ne.s32.totalorder %s81, %s83
    %p90 = scmp.eq.s32.totalorder %s15, 3
    %p91 = por %p89, %p90
    %p92 = scmp.ne.s32.totalorder %s83, %s84
    %p93 = scmp.eq.s32.totalorder %s15, 0
    %p94 = por %p92, %p93
    %p95 = scmp.ne.s32.totalorder %s83, %s84
    %p96 = scmp.eq.s32.totalorder %s16, 3
    %p97 = por %p95, %p96
    %p99 = scmp.ne.s32.totalorder %s84, %s98
    %p100 = scmp.eq.s32.totalorder %s16, 0
    %p101 = por %p99, %p100
    %s103 = sadd.s32 %s102, 1
    %p106 = scmp.eq.s32.totalorder %s10, 3
    %p107 = scmp.ne.s32.totalorder %s102, %s104
    %p108 = scmp.eq.s32.totalorder %s10, 0
    %p109 = por %p107, %p108
    %p110 = scmp.ne.s32.totalorder %s102, %s104
    %p111 = scmp.eq.s32.totalorder %s15, 3
    %p112 = por %p110, %p111
    %p113 = scmp.ne.s32.totalorder %s104, %s105
    %p114 = scmp.eq.s32.totalorder %s15, 0
    %p115 = por %p113, %p114
    %p116 = scmp.ne.s32.totalorder %s104, %s105
    %p117 = scmp.eq.s32.totalorder %s16, 3
    %p118 = por %p116, %p117
    %p120 = scmp.ne.s32.totalorder %s105, %s119
    %p121 = scmp.eq.s32.totalorder %s16, 0
    %p122 = por %p120, %p121
    %s123 = smul.u32 %s17, 2
    %s124 = sadd.s32 %s123, %s18
    %s125 = smul.u32 %s29, 2
    %s126 = sadd.s32 %s125, %s25
    %s127 = ssub.s32 %s124, %s126
    %p128 = scmp.eq.s32.totalorder %s127, 0
    %s130 = sadd.s32 %s129, 1
    %s131 = scalar_select %p128, %s129, %s130
    %p134 = pneg %p128
    %p135 = scmp.eq.s32.totalorder %s10, 3
    %p136 = por %p134, %p135
    %p137 = scmp.ne.s32.totalorder %s129, %s132
    %p138 = scmp.eq.s32.totalorder %s10, 0
    %p139 = por %p137, %p138
    %p140 = scmp.ne.s32.totalorder %s129, %s132
    %p141 = scmp.eq.s32.totalorder %s15, 3
    %p142 = por %p140, %p141
    %p143 = scmp.ne.s32.totalorder %s132, %s133
    %p144 = scmp.eq.s32.totalorder %s15, 0
    %p145 = por %p143, %p144
    %p146 = scmp.ne.s32.totalorder %s132, %s133
    %p147 = scmp.eq.s32.totalorder %s16, 3
    %p148 = por %p146, %p147
    %p150 = scmp.ne.s32.totalorder %s133, %s149
    %p151 = scmp.eq.s32.totalorder %s16, 0
    %p152 = por %p150, %p151
    %p153 = scmp.le.s32.totalorder 1, %s10
    %p154 = scmp.lt.s32.totalorder %s10, 5
    %p155 = pnand %p153, %p154
    %p156 = pneg %p155
    // Predicated region
    $region9: #{_lambda_.11} parent=5 // pred_check
      _
    $region10: #{_lambda_.11} parent=5 // pred_check_branch
      %158 = sbr.rel (%p155) target = $region12
    $region11: #{_lambda_.11} parent=5 // pred_region
      %s159 = ssub.s32 %s10, 1
      // Predicated region
      $region13: #{_lambda_.11} parent=11 // pred_check
        %p160 = pneg %p73
      $region14: #{_lambda_.11} parent=11 // pred_check_branch
        %162 = sbr.rel (%p160) target = $region16
      $region15: #{_lambda_.11} parent=11 // pred_region
        _
      $region16: #{_lambda_.11} parent=11 // pred_fallthru
        _
      // Predicated region
      $region17: #{_lambda_.11} parent=11 // pred_check
        %p163 = pneg %p94
      $region18: #{_lambda_.11} parent=11 // pred_check_branch
        %165 = sbr.rel (%p163) target = $region20
      $region19: #{_lambda_.11} parent=11 // pred_region
        _
      $region20: #{_lambda_.11} parent=11 // pred_fallthru
        _
      // Predicated region
      $region21: #{_lambda_.11} parent=11 // pred_check
        %p166 = pneg %p115
      $region22: #{_lambda_.11} parent=11 // pred_check_branch
        %168 = sbr.rel (%p166) target = $region24
      $region23: #{_lambda_.11} parent=11 // pred_region
        _
      $region24: #{_lambda_.11} parent=11 // pred_fallthru
        _
    $region12: #{_lambda_.11} parent=5 // pred_fallthru
      _
    %p169 = scmp.lt.s32.totalorder %s10, 4
    // Predicated region
    $region25: #{_lambda_.11} parent=5 // pred_check
      %p170 = pneg %p169
    $region26: #{_lambda_.11} parent=5 // pred_check_branch
      %172 = sbr.rel (%p170) target = $region28
    $region27: #{_lambda_.11} parent=5 // pred_region
      // Predicated region
      $region29: #{_lambda_.11} parent=27 // pred_check
        %p173 = pneg %p46
      $region30: #{_lambda_.11} parent=27 // pred_check_branch
        %175 = sbr.rel (%p173) target = $region32
      $region31: #{_lambda_.11} parent=27 // pred_region
        %s176 = smul.u32 %s17, 2
        %s177 = sadd.s32 %s176, %s18
        %s178 = smul.u32 16, %s177
        %p179 = scmp.lt.s32.totalorder %s178, 63
        %s180 = scalar_select %p179, %s178, 63
        %s181 = smul.addr %s180, 2
        %s182 = smul.addr %s181, 4
        %s183 = scalar_lea.vmem %s0, %s182
        %s184 = smul.u32 %s17, 2
        %s185 = sadd.s32 %s184, %s18
        %s186 = smul.u32 16, %s185
      $region32: #{_lambda_.11} parent=27 // pred_fallthru
        _
    $region28: #{_lambda_.11} parent=5 // pred_fallthru
      _
    %p187 = scmp.le.s32.totalorder 1, %s10
    %p188 = scmp.lt.s32.totalorder %s10, 5
    %p189 = pnand %p187, %p188
    %p190 = pneg %p189
    // Predicated region
    $region33: #{_lambda_.11} parent=5 // pred_check
      _
    $region34: #{_lambda_.11} parent=5 // pred_check_branch
      %192 = sbr.rel (%p189) target = $region36
    $region35: #{_lambda_.11} parent=5 // pred_region
      %s193 = ssub.s32 %s10, 1
      %s194 = smul.u32 %s19, 2
      %s195 = sadd.s32 %s194, %s20
      %s196 = smul.u32 16, %s195
      %p197 = scmp.lt.s32.totalorder %s196, 63
      %s198 = scalar_select %p197, %s196, 63
      %s199 = smul.addr %s198, 2
      %s200 = smul.addr %s199, 4
      %s201 = scalar_lea.vmem %s0, %s200
      %p202 = pneg %p52
      %p203 = pneg %p49
      %p204 = pneg %p73
      %p205 = pneg %p70
      %p206 = pneg %p94
      %p207 = pneg %p91
      %p208 = pneg %p115
      %p209 = pneg %p112
      %p210 = pneg %p145
      %p211 = pneg %p142
      %s212 = smul.u32 %s19, 2
      %s213 = sadd.s32 %s212, %s20
      %s214 = smul.u32 16, %s213
      %p215 = scmp.lt.s32.totalorder %s214, 63
      %s216 = scalar_select %p215, %s214, 63
      %s217 = smul.addr %s216, 8
      %s218 = scalar_lea.vmem %s4, %s217
      %s219 = smul.u32 %s19, 2
      %s220 = sadd.s32 %s219, %s20
      %s221 = smul.u32 16, %s220
      %p222 = scmp.lt.s32.totalorder %s221, 63
      %s223 = scalar_select %p222, %s221, 63
      %s224 = smul.addr %s223, 2
      %s225 = smul.addr %s224, 4
      %s226 = scalar_lea.vmem %s0, %s225
      %s227 = smul.u32 %s19, 2
      %s228 = sadd.s32 %s227, %s20
      %s229 = smul.u32 16, %s228
      %s230 = smul.u32 %s19, 2
      %s231 = sadd.s32 %s230, %s20
      %s232 = smul.u32 16, %s231
      %p233 = scmp.lt.s32.totalorder %s232, 63
      %s234 = scalar_select %p233, %s232, 63
      %s235 = smul.addr %s234, 8
      %s236 = scalar_lea.vmem %s4, %s235
      %s237 = smul.u32 %s19, 2
      %s238 = sadd.s32 %s237, %s20
      %s239 = smul.u32 16, %s238
      %s241 = smul.u32 %s20, 8
      %v242 = vld [vmem:[%s226] sm:$0xff]
      %v243 = vld [vmem:[%s226 + $0x8] sm:$0xff]
      %v244 = vld [vmem:[%s226 + $0x10] sm:$0xff]
      %v245 = vld [vmem:[%s226 + $0x18] sm:$0xff]
      %v246 = vld [vmem:[%s226 + $0x20] sm:$0xff]
      %v247 = vld [vmem:[%s226 + $0x28] sm:$0xff]
      %v248 = vld [vmem:[%s226 + $0x30] sm:$0xff]
      %v249 = vld [vmem:[%s226 + $0x38] sm:$0xff]
      %v250 = vld [vmem:[%s226 + $0x40] sm:$0xff]
      %v251 = vld [vmem:[%s226 + $0x48] sm:$0xff]
      %v252 = vld [vmem:[%s226 + $0x50] sm:$0xff]
      %v253 = vld [vmem:[%s226 + $0x58] sm:$0xff]
      %v254 = vld [vmem:[%s226 + $0x60] sm:$0xff]
      %v255 = vld [vmem:[%s226 + $0x68] sm:$0xff]
      %v256 = vld [vmem:[%s226 + $0x70] sm:$0xff]
      %v257 = vld [vmem:[%s226 + $0x78] sm:$0xff]
      %v258 = vld [vmem:[%s1] sm:$0xf]
      %v259 = vld [vmem:[%s1 + $0x4] sm:$0xf]
      %v260 = vld [vmem:[%s1 + $0x8] sm:$0xf]
      %v261 = vld [vmem:[%s1 + $0xc] sm:$0xf]
      %v262 = vld [vmem:[%s1 + $0x10] sm:$0xf]
      %v263 = vld [vmem:[%s1 + $0x14] sm:$0xf]
      %v264 = vld [vmem:[%s1 + $0x18] sm:$0xf]
      %v265 = vld [vmem:[%s1 + $0x1c] sm:$0xf]
      %v266 = vld [vmem:[%s1 + $0x20] sm:$0xf]
      %v267 = vld [vmem:[%s1 + $0x24] sm:$0xf]
      %v268 = vld [vmem:[%s1 + $0x28] sm:$0xf]
      %v269 = vld [vmem:[%s1 + $0x2c] sm:$0xf]
      %v270 = vld [vmem:[%s1 + $0x30] sm:$0xf]
      %v271 = vld [vmem:[%s1 + $0x34] sm:$0xf]
      %v272 = vld [vmem:[%s1 + $0x38] sm:$0xf]
      %v273 = vld [vmem:[%s1 + $0x3c] sm:$0xf]
      %v274 = vld [vmem:[%s1 + $0x40] sm:$0xf]
      %v275 = vld [vmem:[%s1 + $0x44] sm:$0xf]
      %v276 = vld [vmem:[%s1 + $0x48] sm:$0xf]
      %v277 = vld [vmem:[%s1 + $0x4c] sm:$0xf]
      %v278 = vld [vmem:[%s1 + $0x50] sm:$0xf]
      %v279 = vld [vmem:[%s1 + $0x54] sm:$0xf]
      %v280 = vld [vmem:[%s1 + $0x58] sm:$0xf]
      %v281 = vld [vmem:[%s1 + $0x5c] sm:$0xf]
      %v282 = vld [vmem:[%s1 + $0x60] sm:$0xf]
      %v283 = vld [vmem:[%s1 + $0x64] sm:$0xf]
      %v284 = vld [vmem:[%s1 + $0x68] sm:$0xf]
      %v285 = vld [vmem:[%s1 + $0x6c] sm:$0xf]
      %v286 = vld [vmem:[%s1 + $0x70] sm:$0xf]
      %v287 = vld [vmem:[%s1 + $0x74] sm:$0xf]
      %v288 = vld [vmem:[%s1 + $0x78] sm:$0xf]
      %v289 = vld [vmem:[%s1 + $0x7c] sm:$0xf]
      %v290 = vld [vmem:[%s2] sm:$0x1]
      %v292 = vlaneseq
      %v293 = vshrl.u32 %v292, 7
      %v294 = vsub.s32 0, %v293
      %v295 = vrot.slane %v290, %v294
      %v313 = vunpack.c.l.b16 %v242
      %v314 = vunpack.c.h.b16 %v242
      %v315 = vunpack.c.l.b16 %v243
      %v316 = vunpack.c.h.b16 %v243
      %v317 = vunpack.c.l.b16 %v244
      %v318 = vunpack.c.h.b16 %v244
      %v319 = vunpack.c.l.b16 %v245
      %v320 = vunpack.c.h.b16 %v245
      %v321 = vunpack.c.l.b16 %v246
      %v322 = vunpack.c.h.b16 %v246
      %v323 = vunpack.c.l.b16 %v247
      %v324 = vunpack.c.h.b16 %v247
      %v325 = vunpack.c.l.b16 %v248
      %v326 = vunpack.c.h.b16 %v248
      %v327 = vunpack.c.l.b16 %v249
      %v328 = vunpack.c.h.b16 %v249
      %v329 = vunpack.c.l.b16 %v250
      %v330 = vunpack.c.h.b16 %v250
      %v331 = vunpack.c.l.b16 %v251
      %v332 = vunpack.c.h.b16 %v251
      %v333 = vunpack.c.l.b16 %v252
      %v334 = vunpack.c.h.b16 %v252
      %v335 = vunpack.c.l.b16 %v253
      %v336 = vunpack.c.h.b16 %v253
      %v337 = vunpack.c.l.b16 %v254
      %v338 = vunpack.c.h.b16 %v254
      %v339 = vunpack.c.l.b16 %v255
      %v340 = vunpack.c.h.b16 %v255
      %v341 = vunpack.c.l.b16 %v256
      %v342 = vunpack.c.h.b16 %v256
      %v343 = vunpack.c.l.b16 %v257
      %v344 = vunpack.c.h.b16 %v257
      %v345 = vpack.c.b16 %v315, %v313
      %v346 = vpack.c.b16 %v316, %v314
      %v347 = vpack.c.b16 %v319, %v317
      %v348 = vpack.c.b16 %v320, %v318
      %v349 = vpack.c.b16 %v323, %v321
      %v350 = vpack.c.b16 %v324, %v322
      %v351 = vpack.c.b16 %v327, %v325
      %v352 = vpack.c.b16 %v328, %v326
      %v353 = vpack.c.b16 %v331, %v329
      %v354 = vpack.c.b16 %v332, %v330
      %v355 = vpack.c.b16 %v335, %v333
      %v356 = vpack.c.b16 %v336, %v334
      %v357 = vpack.c.b16 %v339, %v337
      %v358 = vpack.c.b16 %v340, %v338
      %v359 = vpack.c.b16 %v343, %v341
      %v360 = vpack.c.b16 %v344, %v342
      %v409 = vunpack.c.l.b16 %v258
      %v410 = vunpack.c.l.b16 %v259
      %v411 = vunpack.c.l.b16 %v260
      %v412 = vunpack.c.l.b16 %v261
      %v413 = vunpack.c.l.b16 %v262
      %v414 = vunpack.c.l.b16 %v263
      %v415 = vunpack.c.l.b16 %v264
      %v416 = vunpack.c.l.b16 %v265
      %v417 = vunpack.c.l.b16 %v266
      %v418 = vunpack.c.l.b16 %v267
      %v419 = vunpack.c.l.b16 %v268
      %v420 = vunpack.c.l.b16 %v269
      %v421 = vunpack.c.l.b16 %v270
      %v422 = vunpack.c.l.b16 %v271
      %v423 = vunpack.c.l.b16 %v272
      %v424 = vunpack.c.l.b16 %v273
      %v425 = vunpack.c.l.b16 %v274
      %v426 = vunpack.c.l.b16 %v275
      %v427 = vunpack.c.l.b16 %v276
      %v428 = vunpack.c.l.b16 %v277
      %v429 = vunpack.c.l.b16 %v278
      %v430 = vunpack.c.l.b16 %v279
      %v431 = vunpack.c.l.b16 %v280
      %v432 = vunpack.c.l.b16 %v281
      %v433 = vunpack.c.l.b16 %v282
      %v434 = vunpack.c.l.b16 %v283
      %v435 = vunpack.c.l.b16 %v284
      %v436 = vunpack.c.l.b16 %v285
      %v437 = vunpack.c.l.b16 %v286
      %v438 = vunpack.c.l.b16 %v287
      %v439 = vunpack.c.l.b16 %v288
      %v440 = vunpack.c.l.b16 %v289
      %v441 = vpack.c.b16 %v410, %v409
      %v442 = vpack.c.b16 %v412, %v411
      %v443 = vpack.c.b16 %v414, %v413
      %v444 = vpack.c.b16 %v416, %v415
      %v445 = vpack.c.b16 %v418, %v417
      %v446 = vpack.c.b16 %v420, %v419
      %v447 = vpack.c.b16 %v422, %v421
      %v448 = vpack.c.b16 %v424, %v423
      %v449 = vpack.c.b16 %v426, %v425
      %v450 = vpack.c.b16 %v428, %v427
      %v451 = vpack.c.b16 %v430, %v429
      %v452 = vpack.c.b16 %v432, %v431
      %v453 = vpack.c.b16 %v434, %v433
      %v454 = vpack.c.b16 %v436, %v435
      %v455 = vpack.c.b16 %v438, %v437
      %v456 = vpack.c.b16 %v440, %v439
      %473 = vmatprep.subr.bf16.mxu0 0
      %474 = vmatpush1.bf16.msra.mxu0 %v441
      %475 = vmatprep.subr.bf16.mxu0 0
      %476 = vmatpush1.bf16.msra.mxu0 %v442
      %477 = vmatprep.subr.bf16.mxu0 0
      %478 = vmatpush1.bf16.msra.mxu0 %v443
      %479 = vmatprep.subr.bf16.mxu0 0
      %480 = vmatpush1.bf16.msra.mxu0 %v444
      %481 = vmatprep.subr.bf16.mxu0 0
      %482 = vmatpush1.bf16.msra.mxu0 %v445
      %483 = vmatprep.subr.bf16.mxu0 0
      %484 = vmatpush1.bf16.msra.mxu0 %v446
      %485 = vmatprep.subr.bf16.mxu0 0
      %486 = vmatpush1.bf16.msra.mxu0 %v447
      %487 = vmatprep.subr.bf16.mxu0 0
      %488 = vmatpush1.bf16.msra.mxu0 %v448
      %489 = vmatprep.subr.bf16.mxu0 0
      %490 = vmatpush1.bf16.msra.mxu0 %v449
      %491 = vmatprep.subr.bf16.mxu0 0
      %492 = vmatpush1.bf16.msra.mxu0 %v450
      %493 = vmatprep.subr.bf16.mxu0 0
      %494 = vmatpush1.bf16.msra.mxu0 %v451
      %495 = vmatprep.subr.bf16.mxu0 0
      %496 = vmatpush1.bf16.msra.mxu0 %v452
      %497 = vmatprep.subr.bf16.mxu0 0
      %498 = vmatpush1.bf16.msra.mxu0 %v453
      %499 = vmatprep.subr.bf16.mxu0 0
      %500 = vmatpush1.bf16.msra.mxu0 %v454
      %501 = vmatprep.subr.bf16.mxu0 0
      %502 = vmatpush1.bf16.msra.mxu0 %v455
      %503 = vmatprep.subr.bf16.mxu0 0
      %504 = vmatpush1.bf16.msra.mxu0 %v456
      %505 = vmatprep.mubr.bf16.mxu0 %v346
      %506 = vmatmul.mubr.bf16.gmra.mrb[0].mxu0 %v345
      %v507 = vpop.f32.mrb[0].mxu0
      %v508 = vadd.f32 %v295, %v507
      %v509 = vpop.f32.mrb[0].mxu0
      %v510 = vpop.f32.mrb[0].mxu0
      %v511 = vadd.f32 %v295, %v510
      %v512 = vpop.f32.mrb[0].mxu0
      %513 = vmatprep.mubr.bf16.mxu0 %v348
      %514 = vmatmul.mubr.bf16.gmra.mrb[0].mxu0 %v347
      %v515 = vpop.f32.mrb[0].mxu0
      %v516 = vadd.f32 %v295, %v515
      %v517 = vpop.f32.mrb[0].mxu0
      %v518 = vpop.f32.mrb[0].mxu0
      %v519 = vadd.f32 %v295, %v518
      %v520 = vpop.f32.mrb[0].mxu0
      %521 = vmatprep.mubr.bf16.mxu0 %v350
      %522 = vmatmul.mubr.bf16.gmra.mrb[0].mxu0 %v349
      %v523 = vpop.f32.mrb[0].mxu0
      %v524 = vadd.f32 %v295, %v523
      %v525 = vpop.f32.mrb[0].mxu0
      %v526 = vpop.f32.mrb[0].mxu0
      %v527 = vadd.f32 %v295, %v526
      %v528 = vpop.f32.mrb[0].mxu0
      %529 = vmatprep.mubr.bf16.mxu0 %v352
      %530 = vmatmul.mubr.bf16.gmra.mrb[0].mxu0 %v351
      %v531 = vpop.f32.mrb[0].mxu0
      %v532 = vadd.f32 %v295, %v531
      %v533 = vpop.f32.mrb[0].mxu0
      %v534 = vpop.f32.mrb[0].mxu0
      %v535 = vadd.f32 %v295, %v534
      %v536 = vpop.f32.mrb[0].mxu0
      %537 = vmatprep.mubr.bf16.mxu0 %v354
      %538 = vmatmul.mubr.bf16.gmra.mrb[0].mxu0 %v353
      %v539 = vpop.f32.mrb[0].mxu0
      %v540 = vadd.f32 %v295, %v539
      %v541 = vpop.f32.mrb[0].mxu0
      %v542 = vpop.f32.mrb[0].mxu0
      %v543 = vadd.f32 %v295, %v542
      %v544 = vpop.f32.mrb[0].mxu0
      %545 = vmatprep.mubr.bf16.mxu0 %v356
      %546 = vmatmul.mubr.bf16.gmra.mrb[0].mxu0 %v355
      %v547 = vpop.f32.mrb[0].mxu0
      %v548 = vadd.f32 %v295, %v547
      %v549 = vpop.f32.mrb[0].mxu0
      %v550 = vpop.f32.mrb[0].mxu0
      %v551 = vadd.f32 %v295, %v550
      %v552 = vpop.f32.mrb[0].mxu0
      %553 = vmatprep.mubr.bf16.mxu0 %v358
      %554 = vmatmul.mubr.bf16.gmra.mrb[0].mxu0 %v357
      %v555 = vpop.f32.mrb[0].mxu0
      %v556 = vadd.f32 %v295, %v555
      %v557 = vpop.f32.mrb[0].mxu0
      %v558 = vpop.f32.mrb[0].mxu0
      %v559 = vadd.f32 %v295, %v558
      %v560 = vpop.f32.mrb[0].mxu0
      %561 = vmatprep.mubr.bf16.mxu0 %v360
      %562 = vmatmul.mubr.bf16.gmra.mrb[0].mxu0 %v359
      %v563 = vpop.f32.mrb[0].mxu0
      %v564 = vadd.f32 %v295, %v563
      %v565 = vpop.f32.mrb[0].mxu0
      %v566 = vpop.f32.mrb[0].mxu0
      %v567 = vadd.f32 %v295, %v566
      %v568 = vpop.f32.mrb[0].mxu0
      %569 = vdwg.mxu0
      %v570 = vld [vmem:[%s3] sm:$0x1]
      %v571 = vld [vmem:[%s3 + $0x1] sm:$0x1]
      %v572 = vld [vmem:[%s3 + $0x2] sm:$0x1]
      %v573 = vld [vmem:[%s3 + $0x3] sm:$0x1]
      %v574 = vstv %s241
      %v575 = vadd.s32 %v574, 1
      %v576 = vadd.s32 %v574, 2
      %v577 = vadd.s32 %v574, 3
      %v578 = vadd.s32 %v574, 4
      %v579 = vadd.s32 %v574, 5
      %v580 = vadd.s32 %v574, 6
      %v581 = vadd.s32 %v574, 7
      %v582 = vcvt.s32.f32 %v574
      %v583 = vcvt.s32.f32 %v575
      %v584 = vcvt.s32.f32 %v576
      %v585 = vcvt.s32.f32 %v577
      %v586 = vcvt.s32.f32 %v578
      %v587 = vcvt.s32.f32 %v579
      %v588 = vcvt.s32.f32 %v580
      %v589 = vcvt.s32.f32 %v581
      %v590 = vlaneseq
      %v591 = vshrl.u32 %v590, 7
      %v592 = vadd.s32 %v591, 8
      %v593 = vcvt.s32.f32 %v591
      %v594 = vcvt.s32.f32 %v592
      %v595 = vsub.f32 0.0, %v508
      %v596 = vsub.f32 0.0, %v511
      %v597 = vsub.f32 0.0, %v516
      %v598 = vsub.f32 0.0, %v519
      %v599 = vsub.f32 0.0, %v524
      %v600 = vsub.f32 0.0, %v527
      %v601 = vsub.f32 0.0, %v532
      %v602 = vsub.f32 0.0, %v535
      %v603 = vsub.f32 0.0, %v540
      %v604 = vsub.f32 0.0, %v543
      %v605 = vsub.f32 0.0, %v548
      %v606 = vsub.f32 0.0, %v551
      %v607 = vsub.f32 0.0, %v556
      %v608 = vsub.f32 0.0, %v559
      %v609 = vsub.f32 0.0, %v564
      %v610 = vsub.f32 0.0, %v567
      %v611 = vmul.f32 %v595, 1.442695
      %v612 = vpow.pop %v611
      %v613 = vmul.f32 %v596, 1.442695
      %v614 = vpow.pop %v613
      %v615 = vmul.f32 %v597, 1.442695
      %v616 = vpow.pop %v615
      %v617 = vmul.f32 %v598, 1.442695
      %v618 = vpow.pop %v617
      %v619 = vmul.f32 %v599, 1.442695
      %v620 = vpow.pop %v619
      %v621 = vmul.f32 %v600, 1.442695
      %v622 = vpow.pop %v621
      %v623 = vmul.f32 %v601, 1.442695
      %v624 = vpow.pop %v623
      %v625 = vmul.f32 %v602, 1.442695
      %v626 = vpow.pop %v625
      %v627 = vmul.f32 %v603, 1.442695
      %v628 = vpow.pop %v627
      %v629 = vmul.f32 %v604, 1.442695
      %v630 = vpow.pop %v629
      %v631 = vmul.f32 %v605, 1.442695
      %v632 = vpow.pop %v631
      %v633 = vmul.f32 %v606, 1.442695
      %v634 = vpow.pop %v633
      %v635 = vmul.f32 %v607, 1.442695
      %v636 = vpow.pop %v635
      %v637 = vmul.f32 %v608, 1.442695
      %v638 = vpow.pop %v637
      %v639 = vmul.f32 %v609, 1.442695
      %v640 = vpow.pop %v639
      %v641 = vmul.f32 %v610, 1.442695
      %v642 = vpow.pop %v641
      %v643 = vadd.f32 %v612, 1.0
      %v644 = vadd.f32 %v614, 1.0
      %v645 = vadd.f32 %v616, 1.0
      %v646 = vadd.f32 %v618, 1.0
      %v647 = vadd.f32 %v620, 1.0
      %v648 = vadd.f32 %v622, 1.0
      %v649 = vadd.f32 %v624, 1.0
      %v650 = vadd.f32 %v626, 1.0
      %v651 = vadd.f32 %v628, 1.0
      %v652 = vadd.f32 %v630, 1.0
      %v653 = vadd.f32 %v632, 1.0
      %v654 = vadd.f32 %v634, 1.0
      %v655 = vadd.f32 %v636, 1.0
      %v656 = vadd.f32 %v638, 1.0
      %v657 = vadd.f32 %v640, 1.0
      %v658 = vadd.f32 %v642, 1.0
      %v659 = vrcp.pop %v643
      %v660 = vmul.f32 1.0, %v659
      %v661 = vrcp.pop %v644
      %v662 = vmul.f32 1.0, %v661
      %v663 = vrcp.pop %v645
      %v664 = vmul.f32 1.0, %v663
      %v665 = vrcp.pop %v646
      %v666 = vmul.f32 1.0, %v665
      %v667 = vrcp.pop %v647
      %v668 = vmul.f32 1.0, %v667
      %v669 = vrcp.pop %v648
      %v670 = vmul.f32 1.0, %v669
      %v671 = vrcp.pop %v649
      %v672 = vmul.f32 1.0, %v671
      %v673 = vrcp.pop %v650
      %v674 = vmul.f32 1.0, %v673
      %v675 = vrcp.pop %v651
      %v676 = vmul.f32 1.0, %v675
      %v677 = vrcp.pop %v652
      %v678 = vmul.f32 1.0, %v677
      %v679 = vrcp.pop %v653
      %v680 = vmul.f32 1.0, %v679
      %v681 = vrcp.pop %v654
      %v682 = vmul.f32 1.0, %v681
      %v683 = vrcp.pop %v655
      %v684 = vmul.f32 1.0, %v683
      %v685 = vrcp.pop %v656
      %v686 = vmul.f32 1.0, %v685
      %v687 = vrcp.pop %v657
      %v688 = vmul.f32 1.0, %v687
      %v689 = vrcp.pop %v658
      %v690 = vmul.f32 1.0, %v689
      %v691 = vmul.f32 %v508, 1.442695
      %v692 = vpow.pop %v691
      %v693 = vmul.f32 %v511, 1.442695
      %v694 = vpow.pop %v693
      %v695 = vmul.f32 %v516, 1.442695
      %v696 = vpow.pop %v695
      %v697 = vmul.f32 %v519, 1.442695
      %v698 = vpow.pop %v697
      %v699 = vmul.f32 %v524, 1.442695
      %v700 = vpow.pop %v699
      %v701 = vmul.f32 %v527, 1.442695
      %v702 = vpow.pop %v701
      %v703 = vmul.f32 %v532, 1.442695
      %v704 = vpow.pop %v703
      %v705 = vmul.f32 %v535, 1.442695
      %v706 = vpow.pop %v705
      %v707 = vmul.f32 %v540, 1.442695
      %v708 = vpow.pop %v707
      %v709 = vmul.f32 %v543, 1.442695
      %v710 = vpow.pop %v709
      %v711 = vmul.f32 %v548, 1.442695
      %v712 = vpow.pop %v711
      %v713 = vmul.f32 %v551, 1.442695
      %v714 = vpow.pop %v713
      %v715 = vmul.f32 %v556, 1.442695
      %v716 = vpow.pop %v715
      %v717 = vmul.f32 %v559, 1.442695
      %v718 = vpow.pop %v717
      %v719 = vmul.f32 %v564, 1.442695
      %v720 = vpow.pop %v719
      %v721 = vmul.f32 %v567, 1.442695
      %v722 = vpow.pop %v721
      %vm723 = vcmp.gt.f32.partialorder %v573, 0.0
      %v724 = vsel %vm723, 1, 0
      %v725 = vlaneseq
      %v726 = vshrl.u32 %v725, 7
      %v727 = vsub.s32 0, %v726
      %v728 = vrot.slane %v724, %v727
      %vm729 = vcmp.eq.s32.totalorder %v728, 1
      %v730 = vsel %vm729, %v692, %v660
      %v731 = vsel %vm729, %v694, %v662
      %v732 = vsel %vm729, %v696, %v664
      %v733 = vsel %vm729, %v698, %v666
      %v734 = vsel %vm729, %v700, %v668
      %v735 = vsel %vm729, %v702, %v670
      %v736 = vsel %vm729, %v704, %v672
      %v737 = vsel %vm729, %v706, %v674
      %v738 = vsel %vm729, %v708, %v676
      %v739 = vsel %vm729, %v710, %v678
      %v740 = vsel %vm729, %v712, %v680
      %v741 = vsel %vm729, %v714, %v682
      %v742 = vsel %vm729, %v716, %v684
      %v743 = vsel %vm729, %v718, %v686
      %v744 = vsel %vm729, %v720, %v688
      %v745 = vsel %vm729, %v722, %v690
      %v746 = vlaneseq
      %v747 = vshrl.u32 %v746, 7
      %v748 = vsub.s32 0, %v747
      %v749 = vrot.slane %v570, %v748
      %v750 = vmul.f32 %v730, %v749
      %v751 = vmul.f32 %v731, %v749
      %v752 = vmul.f32 %v732, %v749
      %v753 = vmul.f32 %v733, %v749
      %v754 = vmul.f32 %v734, %v749
      %v755 = vmul.f32 %v735, %v749
      %v756 = vmul.f32 %v736, %v749
      %v757 = vmul.f32 %v737, %v749
      %v758 = vmul.f32 %v738, %v749
      %v759 = vmul.f32 %v739, %v749
      %v760 = vmul.f32 %v740, %v749
      %v761 = vmul.f32 %v741, %v749
      %v762 = vmul.f32 %v742, %v749
      %v763 = vmul.f32 %v743, %v749
      %v764 = vmul.f32 %v744, %v749
      %v765 = vmul.f32 %v745, %v749
      %v766 = vlaneseq
      %v767 = vshrl.u32 %v766, 7
      %v768 = vsub.s32 0, %v767
      %v769 = vrot.slane %v571, %v768
      %v770 = vmul.f32 %v769, %v593
      %v771 = vmul.f32 %v769, %v594
      %v772 = vlaneseq
      %v773 = vshrl.u32 %v772, 7
      %v774 = vsub.s32 0, %v773
      %v775 = vrot.slane %v572, %v774
      %v776 = vmul.f32 %v775, %v582
      %v777 = vmul.f32 %v775, %v583
      %v778 = vmul.f32 %v775, %v584
      %v779 = vmul.f32 %v775, %v585
      %v780 = vmul.f32 %v775, %v586
      %v781 = vmul.f32 %v775, %v587
      %v782 = vmul.f32 %v775, %v588
      %v783 = vmul.f32 %v775, %v589
      %v784 = vadd.f32 %v770, %v776
      %v785 = vadd.f32 %v771, %v776
      %v786 = vadd.f32 %v770, %v777
      %v787 = vadd.f32 %v771, %v777
      %v788 = vadd.f32 %v770, %v778
      %v789 = vadd.f32 %v771, %v778
      %v790 = vadd.f32 %v770, %v779
      %v791 = vadd.f32 %v771, %v779
      %v792 = vadd.f32 %v770, %v780
      %v793 = vadd.f32 %v771, %v780
      %v794 = vadd.f32 %v770, %v781
      %v795 = vadd.f32 %v771, %v781
      %v796 = vadd.f32 %v770, %v782
      %v797 = vadd.f32 %v771, %v782
      %v798 = vadd.f32 %v770, %v783
      %v799 = vadd.f32 %v771, %v783
      %v800 = vadd.f32 %v750, %v784
      %v801 = vadd.f32 %v751, %v785
      %v802 = vadd.f32 %v752, %v786
      %v803 = vadd.f32 %v753, %v787
      %v804 = vadd.f32 %v754, %v788
      %v805 = vadd.f32 %v755, %v789
      %v806 = vadd.f32 %v756, %v790
      %v807 = vadd.f32 %v757, %v791
      %v808 = vadd.f32 %v758, %v792
      %v809 = vadd.f32 %v759, %v793
      %v810 = vadd.f32 %v760, %v794
      %v811 = vadd.f32 %v761, %v795
      %v812 = vadd.f32 %v762, %v796
      %v813 = vadd.f32 %v763, %v797
      %v814 = vadd.f32 %v764, %v798
      %v815 = vadd.f32 %v765, %v799
      %816 = vst [vmem:[%s236] sm:$0xff] %v800
      %817 = vst [vmem:[%s236 + $0x8] sm:$0xff] %v801
      %818 = vst [vmem:[%s236 + $0x10] sm:$0xff] %v802
      %819 = vst [vmem:[%s236 + $0x18] sm:$0xff] %v803
      %820 = vst [vmem:[%s236 + $0x20] sm:$0xff] %v804
      %821 = vst [vmem:[%s236 + $0x28] sm:$0xff] %v805
      %822 = vst [vmem:[%s236 + $0x30] sm:$0xff] %v806
      %823 = vst [vmem:[%s236 + $0x38] sm:$0xff] %v807
      %824 = vst [vmem:[%s236 + $0x40] sm:$0xff] %v808
      %825 = vst [vmem:[%s236 + $0x48] sm:$0xff] %v809
      %826 = vst [vmem:[%s236 + $0x50] sm:$0xff] %v810
      %827 = vst [vmem:[%s236 + $0x58] sm:$0xff] %v811
      %828 = vst [vmem:[%s236 + $0x60] sm:$0xff] %v812
      %829 = vst [vmem:[%s236 + $0x68] sm:$0xff] %v813
      %830 = vst [vmem:[%s236 + $0x70] sm:$0xff] %v814
      %831 = vst [vmem:[%s236 + $0x78] sm:$0xff] %v815
      %s832 = smul.u32 %s19, 2
      %s833 = sadd.s32 %s832, %s20
      %s834 = smul.u32 16, %s833
      %p835 = scmp.lt.s32.totalorder %s834, 63
      %s836 = scalar_select %p835, %s834, 63
      %s837 = smul.addr %s836, 8
      %s838 = scalar_lea.vmem %s4, %s837
      // Predicated region
      $region37: #{_lambda_.11} parent=35 // pred_check
        %p839 = pneg %p142
      $region38: #{_lambda_.11} parent=35 // pred_check_branch
        %841 = sbr.rel (%p839) target = $region40
      $region39: #{_lambda_.11} parent=35 // pred_region
        %s842 = smul.u32 %s19, 2
        %s843 = sadd.s32 %s842, %s20
        %s844 = smul.u32 16, %s843
      $region40: #{_lambda_.11} parent=35 // pred_fallthru
        _
    $region36: #{_lambda_.11} parent=5 // pred_fallthru
      _
    %p845 = scmp.le.s32.totalorder 2, %s10
    // Predicated region
    $region41: #{_lambda_.11} parent=5 // pred_check
      %p846 = pneg %p845
    $region42: #{_lambda_.11} parent=5 // pred_check_branch
      %848 = sbr.rel (%p846) target = $region44
    $region43: #{_lambda_.11} parent=5 // pred_region
      %s849 = ssub.s32 %s10, 2
      // Predicated region
      $region45: #{_lambda_.11} parent=43 // pred_check
        %p850 = pneg %p148
      $region46: #{_lambda_.11} parent=43 // pred_check_branch
        %852 = sbr.rel (%p850) target = $region48
      $region47: #{_lambda_.11} parent=43 // pred_region
        %s853 = smul.u32 %s21, 2
        %s854 = sadd.s32 %s853, %s22
        %s855 = smul.u32 16, %s854
        %p856 = scmp.lt.s32.totalorder %s855, 63
        %s857 = scalar_select %p856, %s855, 63
        %s858 = smul.addr %s857, 8
        %s859 = scalar_lea.vmem %s4, %s858
      $region48: #{_lambda_.11} parent=43 // pred_fallthru
        _
    $region44: #{_lambda_.11} parent=5 // pred_fallthru
      _
  $region6: #{_lambda_.11} parent=0 // loop_footer
    %s14 = sadd.s32 1, %s10
  $region7: #{_lambda_.11} parent=0 // loop_footer_branch
    %9 = sbr.rel target = $region3
  $region8: #{_lambda_.11} parent=0 // loop_exit
    _

</llo_original>
